<compile_context>
chip_gen: v7x
topology: tpu7x:2x2x1
jax: 0.10.0
libtpu: 0.0.40
codegen_flags: <defaults>
</compile_context>

<pallas_src>
from functools import partial

import numpy as np
import jax
import jax.numpy as jnp
from jax.experimental import pallas as pl
from jax.experimental.pallas import tpu as pltpu


# ---------------------------------------------------------------------------
# Fused decoder kernel
# ---------------------------------------------------------------------------

def decoder_kernel(x_ref, dm_ref, w0r_ref, ohw_ref, bc1_ref,
                   wm_ref, bm_ref, w2_ref, b2_ref, w1_ref, b1_ref,
                   g3_ref, be3_ref, a3_ref, e3_ref, m3_ref, cb3_ref, u3_ref,
                   g2_ref, be2_ref, a2_ref, e2_ref, m2_ref, cb2_ref, u2_ref,
                   g1_ref, be1_ref, a1_ref, e1_ref, m1_ref, cb1_ref, u1_ref,
                   o_ref):
    f32 = jnp.float32
    B, ZD = x_ref.shape
    NCP = ohw_ref.shape[0]                  # padded number of classes
    NCH = w0r_ref.shape[1] // ZD            # conv1x1 output channels (8)

    def lrelu(v):
        return jnp.where(v > 0, v, 0.2 * v)

    # ---- conv1x1([x ; one_hot]) -> LeakyReLU -> flatten -> mid_linear ----------------
    xv = x_ref[...]                                                    # (B, 512)
    cls = jax.lax.broadcasted_iota(jnp.int32, (B, NCP), 1)
    onehot = (dm_ref[...] == cls).astype(f32)                          # (B, NCP)

    # lane-dense channel-major (B, 8*512) pre-activation of the 1x1 conv:
    #   pre[b, o*512 + t] = w1x[o,0]*x[b,t] + sum_c onehot[b,c]*w1x[o,1+c] + bias[o]
    xt = jnp.tile(xv, (1, NCH))                                        # (B, 4096)
    pre = (xt * w0r_ref[...]
           + jnp.dot(onehot, ohw_ref[...], preferred_element_type=f32)
           + bc1_ref[...])
    h = lrelu(pre).astype(jnp.bfloat16)                                # (B, 4096)

    # flatten + mid_linear folded into ONE matmul (channel-major flatten == weight layout)
    y = jnp.dot(h, wm_ref[...], preferred_element_type=f32) + bm_ref[...]   # (B, 512)

    # ---- dec_linear2 -> LeakyReLU -> dec_linear1 --------------------------------------
    h2 = jnp.dot(y, w2_ref[...], preferred_element_type=f32) + b2_ref[...]
    h2 = lrelu(h2)
    h3 = jnp.dot(h2, w1_ref[...], preferred_element_type=f32) + b1_ref[...]  # (B, 32*2*2)

    # ---- decoder block: BN (batch stats) -> convT 3x3 -> LeakyReLU -> bilinear x2 -----
    def block(X, g_ref, be_ref, a_ref, e_ref, m_ref, cb_ref, u_ref):
        C = a_ref.shape[1]
        inv = 1.0 / (X.shape[0] * (X.shape[1] // C))                   # 1 / (N*H*W)
        s1 = jnp.sum(X, axis=0, keepdims=True)                         # (1, C*P)
        s2 = jnp.sum(X * X, axis=0, keepdims=True)
        mu = jnp.dot(s1, a_ref[...], preferred_element_type=f32) * inv        # (1, C)
        ex2 = jnp.dot(s2, a_ref[...], preferred_element_type=f32) * inv
        var = jnp.maximum(ex2 - mu * mu, 0.0)                          # biased var (PyTorch)
        sc = g_ref[...] * jax.lax.rsqrt(var + 1e-5)
        sh = be_ref[...] - mu * sc
        Xn = (X * jnp.dot(sc, e_ref[...], preferred_element_type=f32)
              + jnp.dot(sh, e_ref[...], preferred_element_type=f32))
        Y = lrelu(jnp.dot(Xn, m_ref[...], preferred_element_type=f32) + cb_ref[...])
        return jnp.dot(Y, u_ref[...], preferred_element_type=f32)      # bilinear x2 upsample

    X = block(h3, g3_ref, be3_ref, a3_ref, e3_ref, m3_ref, cb3_ref, u3_ref)
    X = block(X, g2_ref, be2_ref, a2_ref, e2_ref, m2_ref, cb2_ref, u2_ref)
    X = block(X, g1_ref, be1_ref, a1_ref, e1_ref, m1_ref, cb1_ref, u1_ref)

    o_ref[...] = X                                                     # (B, n_ch*H*W), lane-dense


# ---------------------------------------------------------------------------
# One-time parameter preprocessing (outside jit): build the dense operator
# matrices used by the kernel.
# ---------------------------------------------------------------------------

def _bilinear_up2_1d(n_in):
    """(2*n_in, n_in) matrix of nn.Upsample(scale_factor=2, mode='bilinear', align_corners=True)."""
    n_out = 2 * n_in
    U = np.zeros((n_out, n_in), np.float32)
    if n_in == 1:
        U[:, 0] = 1.0
        return U
    scale = (n_in - 1.0) / (n_out - 1.0)
    for io in range(n_out):
        src = io * scale
        i0 = min(int(np.floor(src)), n_in - 2)
        frac = src - i0
        U[io, i0] += 1.0 - frac
        U[io, i0 + 1] += frac
    return U


def _shift_matrix(h, w, dh, dw):
    """R[p_in, p_out] = 1 iff input position p_in equals output position p_out shifted by (dh, dw)."""
    R = np.zeros((h * w, h * w), np.float32)
    for i in range(h):
        for j in range(w):
            ii, jj = i + dh, j + dw
            if 0 <= ii < h and 0 <= jj < w:
                R[ii * w + jj, i * w + j] = 1.0
    return R


def _convT_matrix(wt, h, w):
    """ConvTranspose2d(k=3, stride=1, padding=1) as a dense (Cin*H*W, Cout*H*W) matrix
    acting on channel-major flattened maps: out_flat = in_flat @ M (+ bias)."""
    M = jnp.zeros((wt.shape[0] * h * w, wt.shape[1] * h * w), jnp.float32)
    for kh in range(3):
        for kw in range(3):
            R = _shift_matrix(h, w, 1 - kh, 1 - kw)
            M = M + jnp.kron(wt[:, :, kh, kw], jnp.asarray(R))
    return M


def _block_prep(wt, bias, gamma, beta, h, w):
    cin, cout = wt.shape[0], wt.shape[1]
    p = h * w
    eye_in = np.eye(cin, dtype=np.float32)
    A = np.kron(eye_in, np.ones((p, 1), np.float32))            # channel pooling  (C*P, C)
    E = np.kron(eye_in, np.ones((1, p), np.float32))            # channel expansion (C, C*P)
    U2 = np.kron(_bilinear_up2_1d(h), _bilinear_up2_1d(w))      # spatial upsample (4P, P)
    MU = np.kron(np.eye(cout, dtype=np.float32), U2.T)          # (Cout*P, Cout*4P)
    return {
        "g": gamma.reshape(1, cin).astype(jnp.float32),
        "b": beta.reshape(1, cin).astype(jnp.float32),
        "A": jnp.asarray(A),
        "E": jnp.asarray(E),
        "M": _convT_matrix(wt, h, w),
        "cb": jnp.repeat(bias, p).reshape(1, cout * p).astype(jnp.float32),
        "U": jnp.asarray(MU),
    }


def prepare_decoder(params, im_size, n_channels, n_classes):
    z_dim = 512
    nch = 8                                                      # conv1x1 output channels
    s0 = im_size // 8                                            # spatial size entering block 3
    nc_pad = max(8, n_classes)                                   # pad the tiny one-hot matmul
    w1x = params["conv1x1_w"]                                    # (8, 1+nc)

    # lane-dense channel-major expansions for the fused conv1x1 + mid_linear
    w0_rep = jnp.repeat(w1x[:, 0], z_dim).reshape(1, nch * z_dim)          # (1, 4096)
    ohw = jnp.zeros((nc_pad, nch * z_dim), jnp.float32)
    ohw = ohw.at[:n_classes, :].set(jnp.repeat(w1x[:, 1:].T, z_dim, axis=1))  # (nc_pad, 4096)
    bias_rep = jnp.repeat(params["conv1x1_b"], z_dim).reshape(1, nch * z_dim)

    prep = {
        "w0r": w0_rep,
        "w_oh": ohw,
        "b_c1": bias_rep,
        "w_mid": params["mid_w"].astype(jnp.bfloat16),           # (4096, 512) bf16
        "b_mid": params["mid_b"].reshape(1, z_dim),
        "w_l2": params["l2_w"],
        "b_l2": params["l2_b"].reshape(1, -1),
        "w_l1": params["l1_w"],
        "b_l1": params["l1_b"].reshape(1, -1),
    }
    blocks = {
        "3": _block_prep(params["convT3_w"], params["convT3_b"],
                         params["bn3_g"], params["bn3_b"], s0, s0),
        "2": _block_prep(params["convT2_w"], params["convT2_b"],
                         params["bn2_g"], params["bn2_b"], 2 * s0, 2 * s0),
        "1": _block_prep(params["convT1_w"], params["convT1_b"],
                         params["bn1_g"], params["bn1_b"], 4 * s0, 4 * s0),
    }
    for tag, d in blocks.items():
        for name, v in d.items():
            prep[name + tag] = v
    return prep


# ---------------------------------------------------------------------------
# Parameter initialization (deterministic, PyTorch-default-like fan-in bounds)
# ---------------------------------------------------------------------------

def _uniform(key, shape, fan_in):
    bound = 1.0 / float(np.sqrt(fan_in))
    return jax.random.uniform(key, shape, jnp.float32, -bound, bound)


def init_decoder_params(key, im_size, n_channels, n_classes):
    z_dim = 512
    n_layers, last_c = 3, 32                                     # im_size != 128 branch
    s0 = im_size // 2 ** n_layers
    feat = s0 * s0 * last_c                                      # 128 for im_size=16
    k = jax.random.split(key, 14)
    cin1 = 1 + n_classes
    return {
        "conv1x1_w": _uniform(k[0], (8, cin1), cin1),            # Conv1d(1+nc, 8, k=1)
        "conv1x1_b": _uniform(k[1], (8,), cin1),
        "mid_w": _uniform(k[2], (8 * z_dim, z_dim), 8 * z_dim),  # Linear(4096, 512), (in, out)
        "mid_b": _uniform(k[3], (z_dim,), 8 * z_dim),
        "l2_w": _uniform(k[4], (z_dim, 256), z_dim),             # dec_linear2
        "l2_b": _uniform(k[5], (256,), z_dim),
        "l1_w": _uniform(k[6], (256, feat), 256),                # dec_linear1
        "l1_b": _uniform(k[7], (feat,), 256),
        "convT3_w": _uniform(k[8], (32, 16, 3, 3), 32 * 9),      # ConvTranspose2d (in,out,kh,kw)
        "convT3_b": _uniform(k[9], (16,), 32 * 9),
        "convT2_w": _uniform(k[10], (16, 8, 3, 3), 16 * 9),
        "convT2_b": _uniform(k[11], (8,), 16 * 9),
        "convT1_w": _uniform(k[12], (8, n_channels, 3, 3), 8 * 9),
        "convT1_b": _uniform(k[13], (n_channels,), 8 * 9),
        "bn3_g": jnp.ones((32,), jnp.float32), "bn3_b": jnp.zeros((32,), jnp.float32),
        "bn2_g": jnp.ones((16,), jnp.float32), "bn2_b": jnp.zeros((16,), jnp.float32),
        "bn1_g": jnp.ones((8,), jnp.float32), "bn1_b": jnp.zeros((8,), jnp.float32),
    }


# ---------------------------------------------------------------------------
# Forward
# ---------------------------------------------------------------------------

@partial(jax.jit, static_argnames=("im_size", "n_channels"))
def decoder_forward(prep, x, dataset_membership, *, im_size, n_channels):
    b = x.shape[0]
    dm = dataset_membership.reshape(b, 1).astype(jnp.int32)
    operands = (
        x.astype(jnp.float32), dm,
        prep["w0r"], prep["w_oh"], prep["b_c1"],
        prep["w_mid"], prep["b_mid"], prep["w_l2"], prep["b_l2"],
        prep["w_l1"], prep["b_l1"],
        prep["g3"], prep["b3"], prep["A3"], prep["E3"], prep["M3"], prep["cb3"], prep["U3"],
        prep["g2"], prep["b2"], prep["A2"], prep["E2"], prep["M2"], prep["cb2"], prep["U2"],
        prep["g1"], prep["b1"], prep["A1"], prep["E1"], prep["M1"], prep["cb1"], prep["U1"],
    )
    in_specs = [pl.BlockSpec(memory_space=pltpu.MemorySpace.VMEM)] * len(operands)
    out = pl.pallas_call(
        decoder_kernel,
        out_shape=jax.ShapeDtypeStruct((b, n_channels * im_size * im_size), jnp.float32),
        in_specs=in_specs,
        out_specs=pl.BlockSpec(memory_space=pltpu.MemorySpace.VMEM),
    )(*operands)
    # Channel-major feature columns -> NCHW is a pure metadata reshape (no transpose).
    return out.reshape(b, n_channels, im_size, im_size)


if __name__ == "__main__":
    key = jax.random.PRNGKey(0)
    k_param, k_x, k_dm = jax.random.split(key, 3)

    im_size, n_channels, n_classes, batch, z_dim = 16, 1, 3, 2, 512
    params = init_decoder_params(k_param, im_size, n_channels, n_classes)
    prep = prepare_decoder(params, im_size, n_channels, n_classes)

    x = jax.random.normal(k_x, (batch, z_dim), jnp.float32)
    dm = jax.random.randint(k_dm, (batch,), 0, n_classes, jnp.int32)

    out = decoder_forward(prep, x, dm, im_size=im_size, n_channels=n_channels)
    out = jax.block_until_ready(out)
    assert out.shape == (batch, n_channels, im_size, im_size)
    assert out.dtype == jnp.float32
    assert bool(jnp.all(jnp.isfinite(out)))
    print("KERNEL_OK")
</pallas_src>

<mosaic_0001>
module attributes {stable_mosaic.version = 11 : i64} {
  func.func @decoder_kernel(%arg0: memref<2x512xf32, #tpu.memory_space<vmem>>, %arg1: memref<2x1xi32, #tpu.memory_space<vmem>>, %arg2: memref<1x4096xf32, #tpu.memory_space<vmem>>, %arg3: memref<8x4096xf32, #tpu.memory_space<vmem>>, %arg4: memref<1x4096xf32, #tpu.memory_space<vmem>>, %arg5: memref<4096x512xbf16, #tpu.memory_space<vmem>>, %arg6: memref<1x512xf32, #tpu.memory_space<vmem>>, %arg7: memref<512x256xf32, #tpu.memory_space<vmem>>, %arg8: memref<1x256xf32, #tpu.memory_space<vmem>>, %arg9: memref<256x128xf32, #tpu.memory_space<vmem>>, %arg10: memref<1x128xf32, #tpu.memory_space<vmem>>, %arg11: memref<1x32xf32, #tpu.memory_space<vmem>>, %arg12: memref<1x32xf32, #tpu.memory_space<vmem>>, %arg13: memref<128x32xf32, #tpu.memory_space<vmem>>, %arg14: memref<32x128xf32, #tpu.memory_space<vmem>>, %arg15: memref<128x64xf32, #tpu.memory_space<vmem>>, %arg16: memref<1x64xf32, #tpu.memory_space<vmem>>, %arg17: memref<64x256xf32, #tpu.memory_space<vmem>>, %arg18: memref<1x16xf32, #tpu.memory_space<vmem>>, %arg19: memref<1x16xf32, #tpu.memory_space<vmem>>, %arg20: memref<256x16xf32, #tpu.memory_space<vmem>>, %arg21: memref<16x256xf32, #tpu.memory_space<vmem>>, %arg22: memref<256x128xf32, #tpu.memory_space<vmem>>, %arg23: memref<1x128xf32, #tpu.memory_space<vmem>>, %arg24: memref<128x512xf32, #tpu.memory_space<vmem>>, %arg25: memref<1x8xf32, #tpu.memory_space<vmem>>, %arg26: memref<1x8xf32, #tpu.memory_space<vmem>>, %arg27: memref<512x8xf32, #tpu.memory_space<vmem>>, %arg28: memref<8x512xf32, #tpu.memory_space<vmem>>, %arg29: memref<512x64xf32, #tpu.memory_space<vmem>>, %arg30: memref<1x64xf32, #tpu.memory_space<vmem>>, %arg31: memref<64x256xf32, #tpu.memory_space<vmem>>, %arg32: memref<2x256xf32, #tpu.memory_space<vmem>>) attributes {dimension_semantics = [], scalar_prefetch = 0 : i64, scratch_operands = 0 : i64, tpu.core_type = #tpu.core_type<tc>} {
    %c0 = arith.constant 0 : index
    %c0_0 = arith.constant 0 : index
    %0 = vector.load %arg0[%c0, %c0_0] : memref<2x512xf32, #tpu.memory_space<vmem>>, vector<2x512xf32>
    %1 = tpu.iota {dimensions = array<i32: 1>} : vector<2x8xi32>
    %c0_1 = arith.constant 0 : index
    %c0_2 = arith.constant 0 : index
    %2 = vector.load %arg1[%c0_1, %c0_2] : memref<2x1xi32, #tpu.memory_space<vmem>>, vector<2x1xi32>
    %3 = vector.broadcast %2 : vector<2x1xi32> to vector<2x8xi32>
    %4 = arith.cmpi eq, %3, %1 : vector<2x8xi32>
    %5 = arith.extui %4 : vector<2x8xi1> to vector<2x8xi32>
    %6 = arith.sitofp %5 : vector<2x8xi32> to vector<2x8xf32>
    %7 = tpu.concatenate %0, %0, %0, %0, %0, %0, %0, %0 in 1 : vector<2x512xf32>, vector<2x512xf32>, vector<2x512xf32>, vector<2x512xf32>, vector<2x512xf32>, vector<2x512xf32>, vector<2x512xf32>, vector<2x512xf32> -> vector<2x4096xf32>
    %c0_3 = arith.constant 0 : index
    %c0_4 = arith.constant 0 : index
    %8 = vector.load %arg2[%c0_3, %c0_4] : memref<1x4096xf32, #tpu.memory_space<vmem>>, vector<1x4096xf32>
    %9 = vector.broadcast %8 : vector<1x4096xf32> to vector<2x4096xf32>
    %10 = arith.mulf %7, %9 : vector<2x4096xf32>
    %c0_5 = arith.constant 0 : index
    %c0_6 = arith.constant 0 : index
    %11 = vector.load %arg3[%c0_5, %c0_6] : memref<8x4096xf32, #tpu.memory_space<vmem>>, vector<8x4096xf32>
    %cst = arith.constant dense<0.000000e+00> : vector<2x4096xf32>
    %12 = tpu.matmul %6, %11, %cst {dimension_numbers = #tpu.dot_dimension_numbers<[1], [0], [0], [1], [0, 0, 1, 1], [], []>} : vector<2x8xf32>, vector<8x4096xf32>, vector<2x4096xf32> -> vector<2x4096xf32>
    %13 = arith.addf %10, %12 : vector<2x4096xf32>
    %c0_7 = arith.constant 0 : index
    %c0_8 = arith.constant 0 : index
    %14 = vector.load %arg4[%c0_7, %c0_8] : memref<1x4096xf32, #tpu.memory_space<vmem>>, vector<1x4096xf32>
    %15 = vector.broadcast %14 : vector<1x4096xf32> to vector<2x4096xf32>
    %16 = arith.addf %13, %15 : vector<2x4096xf32>
    %cst_9 = arith.constant 0.000000e+00 : f32
    %17 = vector.broadcast %cst_9 : f32 to vector<2x4096xf32>
    %18 = arith.cmpf ogt, %16, %17 : vector<2x4096xf32>
    %cst_10 = arith.constant 2.000000e-01 : f32
    %19 = vector.broadcast %cst_10 : f32 to vector<2x4096xf32>
    %20 = arith.mulf %19, %16 : vector<2x4096xf32>
    %21 = arith.select %18, %16, %20 : vector<2x4096xi1>, vector<2x4096xf32>
    %22 = arith.truncf %21 : vector<2x4096xf32> to vector<2x4096xbf16>
    %c0_11 = arith.constant 0 : index
    %c0_12 = arith.constant 0 : index
    %23 = vector.load %arg5[%c0_11, %c0_12] : memref<4096x512xbf16, #tpu.memory_space<vmem>>, vector<4096x512xbf16>
    %cst_13 = arith.constant dense<0.000000e+00> : vector<2x512xf32>
    %24 = tpu.matmul %22, %23, %cst_13 {dimension_numbers = #tpu.dot_dimension_numbers<[1], [0], [0], [1], [0, 0, 1, 1], [], []>} : vector<2x4096xbf16>, vector<4096x512xbf16>, vector<2x512xf32> -> vector<2x512xf32>
    %c0_14 = arith.constant 0 : index
    %c0_15 = arith.constant 0 : index
    %25 = vector.load %arg6[%c0_14, %c0_15] : memref<1x512xf32, #tpu.memory_space<vmem>>, vector<1x512xf32>
    %26 = vector.broadcast %25 : vector<1x512xf32> to vector<2x512xf32>
    %27 = arith.addf %24, %26 : vector<2x512xf32>
    %c0_16 = arith.constant 0 : index
    %c0_17 = arith.constant 0 : index
    %28 = vector.load %arg7[%c0_16, %c0_17] : memref<512x256xf32, #tpu.memory_space<vmem>>, vector<512x256xf32>
    %cst_18 = arith.constant dense<0.000000e+00> : vector<2x256xf32>
    %29 = tpu.matmul %27, %28, %cst_18 {dimension_numbers = #tpu.dot_dimension_numbers<[1], [0], [0], [1], [0, 0, 1, 1], [], []>} : vector<2x512xf32>, vector<512x256xf32>, vector<2x256xf32> -> vector<2x256xf32>
    %c0_19 = arith.constant 0 : index
    %c0_20 = arith.constant 0 : index
    %30 = vector.load %arg8[%c0_19, %c0_20] : memref<1x256xf32, #tpu.memory_space<vmem>>, vector<1x256xf32>
    %31 = vector.broadcast %30 : vector<1x256xf32> to vector<2x256xf32>
    %32 = arith.addf %29, %31 : vector<2x256xf32>
    %cst_21 = arith.constant 0.000000e+00 : f32
    %33 = vector.broadcast %cst_21 : f32 to vector<2x256xf32>
    %34 = arith.cmpf ogt, %32, %33 : vector<2x256xf32>
    %cst_22 = arith.constant 2.000000e-01 : f32
    %35 = vector.broadcast %cst_22 : f32 to vector<2x256xf32>
    %36 = arith.mulf %35, %32 : vector<2x256xf32>
    %37 = arith.select %34, %32, %36 : vector<2x256xi1>, vector<2x256xf32>
    %c0_23 = arith.constant 0 : index
    %c0_24 = arith.constant 0 : index
    %38 = vector.load %arg9[%c0_23, %c0_24] : memref<256x128xf32, #tpu.memory_space<vmem>>, vector<256x128xf32>
    %cst_25 = arith.constant dense<0.000000e+00> : vector<2x128xf32>
    %39 = tpu.matmul %37, %38, %cst_25 {dimension_numbers = #tpu.dot_dimension_numbers<[1], [0], [0], [1], [0, 0, 1, 1], [], []>} : vector<2x256xf32>, vector<256x128xf32>, vector<2x128xf32> -> vector<2x128xf32>
    %c0_26 = arith.constant 0 : index
    %c0_27 = arith.constant 0 : index
    %40 = vector.load %arg10[%c0_26, %c0_27] : memref<1x128xf32, #tpu.memory_space<vmem>>, vector<1x128xf32>
    %41 = vector.broadcast %40 : vector<1x128xf32> to vector<2x128xf32>
    %42 = arith.addf %39, %41 : vector<2x128xf32>
    %cst_28 = arith.constant dense<0.000000e+00> : vector<128xf32>
    %43 = vector.multi_reduction <add>, %42, %cst_28 [0] : vector<2x128xf32> to vector<128xf32>
    %44 = vector.shape_cast %43 : vector<128xf32> to vector<1x128xf32>
    %45 = arith.mulf %42, %42 : vector<2x128xf32>
    %cst_29 = arith.constant dense<0.000000e+00> : vector<128xf32>
    %46 = vector.multi_reduction <add>, %45, %cst_29 [0] : vector<2x128xf32> to vector<128xf32>
    %47 = vector.shape_cast %46 : vector<128xf32> to vector<1x128xf32>
    %c0_30 = arith.constant 0 : index
    %c0_31 = arith.constant 0 : index
    %48 = vector.load %arg13[%c0_30, %c0_31] : memref<128x32xf32, #tpu.memory_space<vmem>>, vector<128x32xf32>
    %cst_32 = arith.constant dense<0.000000e+00> : vector<1x32xf32>
    %49 = tpu.matmul %44, %48, %cst_32 {dimension_numbers = #tpu.dot_dimension_numbers<[1], [0], [0], [1], [0, 0, 1, 1], [], []>} : vector<1x128xf32>, vector<128x32xf32>, vector<1x32xf32> -> vector<1x32xf32>
    %cst_33 = arith.constant 1.250000e-01 : f32
    %50 = vector.broadcast %cst_33 : f32 to vector<1x32xf32>
    %51 = arith.mulf %49, %50 : vector<1x32xf32>
    %c0_34 = arith.constant 0 : index
    %c0_35 = arith.constant 0 : index
    %52 = vector.load %arg13[%c0_34, %c0_35] : memref<128x32xf32, #tpu.memory_space<vmem>>, vector<128x32xf32>
    %cst_36 = arith.constant dense<0.000000e+00> : vector<1x32xf32>
    %53 = tpu.matmul %47, %52, %cst_36 {dimension_numbers = #tpu.dot_dimension_numbers<[1], [0], [0], [1], [0, 0, 1, 1], [], []>} : vector<1x128xf32>, vector<128x32xf32>, vector<1x32xf32> -> vector<1x32xf32>
    %cst_37 = arith.constant 1.250000e-01 : f32
    %54 = vector.broadcast %cst_37 : f32 to vector<1x32xf32>
    %55 = arith.mulf %53, %54 : vector<1x32xf32>
    %56 = arith.mulf %51, %51 : vector<1x32xf32>
    %57 = arith.subf %55, %56 : vector<1x32xf32>
    %cst_38 = arith.constant 0.000000e+00 : f32
    %58 = vector.broadcast %cst_38 : f32 to vector<1x32xf32>
    %59 = arith.maximumf %57, %58 : vector<1x32xf32>
    %c0_39 = arith.constant 0 : index
    %c0_40 = arith.constant 0 : index
    %60 = vector.load %arg11[%c0_39, %c0_40] : memref<1x32xf32, #tpu.memory_space<vmem>>, vector<1x32xf32>
    %cst_41 = arith.constant 9.99999974E-6 : f32
    %61 = vector.broadcast %cst_41 : f32 to vector<1x32xf32>
    %62 = arith.addf %59, %61 : vector<1x32xf32>
    %63 = math.rsqrt %62 : vector<1x32xf32>
    %64 = arith.mulf %60, %63 : vector<1x32xf32>
    %c0_42 = arith.constant 0 : index
    %c0_43 = arith.constant 0 : index
    %65 = vector.load %arg12[%c0_42, %c0_43] : memref<1x32xf32, #tpu.memory_space<vmem>>, vector<1x32xf32>
    %66 = arith.mulf %51, %64 : vector<1x32xf32>
    %67 = arith.subf %65, %66 : vector<1x32xf32>
    %c0_44 = arith.constant 0 : index
    %c0_45 = arith.constant 0 : index
    %68 = vector.load %arg14[%c0_44, %c0_45] : memref<32x128xf32, #tpu.memory_space<vmem>>, vector<32x128xf32>
    %cst_46 = arith.constant dense<0.000000e+00> : vector<1x128xf32>
    %69 = tpu.matmul %64, %68, %cst_46 {dimension_numbers = #tpu.dot_dimension_numbers<[1], [0], [0], [1], [0, 0, 1, 1], [], []>} : vector<1x32xf32>, vector<32x128xf32>, vector<1x128xf32> -> vector<1x128xf32>
    %70 = vector.broadcast %69 : vector<1x128xf32> to vector<2x128xf32>
    %71 = arith.mulf %42, %70 : vector<2x128xf32>
    %c0_47 = arith.constant 0 : index
    %c0_48 = arith.constant 0 : index
    %72 = vector.load %arg14[%c0_47, %c0_48] : memref<32x128xf32, #tpu.memory_space<vmem>>, vector<32x128xf32>
    %cst_49 = arith.constant dense<0.000000e+00> : vector<1x128xf32>
    %73 = tpu.matmul %67, %72, %cst_49 {dimension_numbers = #tpu.dot_dimension_numbers<[1], [0], [0], [1], [0, 0, 1, 1], [], []>} : vector<1x32xf32>, vector<32x128xf32>, vector<1x128xf32> -> vector<1x128xf32>
    %74 = vector.broadcast %73 : vector<1x128xf32> to vector<2x128xf32>
    %75 = arith.addf %71, %74 : vector<2x128xf32>
    %c0_50 = arith.constant 0 : index
    %c0_51 = arith.constant 0 : index
    %76 = vector.load %arg15[%c0_50, %c0_51] : memref<128x64xf32, #tpu.memory_space<vmem>>, vector<128x64xf32>
    %cst_52 = arith.constant dense<0.000000e+00> : vector<2x64xf32>
    %77 = tpu.matmul %75, %76, %cst_52 {dimension_numbers = #tpu.dot_dimension_numbers<[1], [0], [0], [1], [0, 0, 1, 1], [], []>} : vector<2x128xf32>, vector<128x64xf32>, vector<2x64xf32> -> vector<2x64xf32>
    %c0_53 = arith.constant 0 : index
    %c0_54 = arith.constant 0 : index
    %78 = vector.load %arg16[%c0_53, %c0_54] : memref<1x64xf32, #tpu.memory_space<vmem>>, vector<1x64xf32>
    %79 = vector.broadcast %78 : vector<1x64xf32> to vector<2x64xf32>
    %80 = arith.addf %77, %79 : vector<2x64xf32>
    %cst_55 = arith.constant 0.000000e+00 : f32
    %81 = vector.broadcast %cst_55 : f32 to vector<2x64xf32>
    %82 = arith.cmpf ogt, %80, %81 : vector<2x64xf32>
    %cst_56 = arith.constant 2.000000e-01 : f32
    %83 = vector.broadcast %cst_56 : f32 to vector<2x64xf32>
    %84 = arith.mulf %83, %80 : vector<2x64xf32>
    %85 = arith.select %82, %80, %84 : vector<2x64xi1>, vector<2x64xf32>
    %c0_57 = arith.constant 0 : index
    %c0_58 = arith.constant 0 : index
    %86 = vector.load %arg17[%c0_57, %c0_58] : memref<64x256xf32, #tpu.memory_space<vmem>>, vector<64x256xf32>
    %cst_59 = arith.constant dense<0.000000e+00> : vector<2x256xf32>
    %87 = tpu.matmul %85, %86, %cst_59 {dimension_numbers = #tpu.dot_dimension_numbers<[1], [0], [0], [1], [0, 0, 1, 1], [], []>} : vector<2x64xf32>, vector<64x256xf32>, vector<2x256xf32> -> vector<2x256xf32>
    %cst_60 = arith.constant dense<0.000000e+00> : vector<256xf32>
    %88 = vector.multi_reduction <add>, %87, %cst_60 [0] : vector<2x256xf32> to vector<256xf32>
    %89 = vector.shape_cast %88 : vector<256xf32> to vector<1x256xf32>
    %90 = arith.mulf %87, %87 : vector<2x256xf32>
    %cst_61 = arith.constant dense<0.000000e+00> : vector<256xf32>
    %91 = vector.multi_reduction <add>, %90, %cst_61 [0] : vector<2x256xf32> to vector<256xf32>
    %92 = vector.shape_cast %91 : vector<256xf32> to vector<1x256xf32>
    %c0_62 = arith.constant 0 : index
    %c0_63 = arith.constant 0 : index
    %93 = vector.load %arg20[%c0_62, %c0_63] : memref<256x16xf32, #tpu.memory_space<vmem>>, vector<256x16xf32>
    %cst_64 = arith.constant dense<0.000000e+00> : vector<1x16xf32>
    %94 = tpu.matmul %89, %93, %cst_64 {dimension_numbers = #tpu.dot_dimension_numbers<[1], [0], [0], [1], [0, 0, 1, 1], [], []>} : vector<1x256xf32>, vector<256x16xf32>, vector<1x16xf32> -> vector<1x16xf32>
    %cst_65 = arith.constant 3.125000e-02 : f32
    %95 = vector.broadcast %cst_65 : f32 to vector<1x16xf32>
    %96 = arith.mulf %94, %95 : vector<1x16xf32>
    %c0_66 = arith.constant 0 : index
    %c0_67 = arith.constant 0 : index
    %97 = vector.load %arg20[%c0_66, %c0_67] : memref<256x16xf32, #tpu.memory_space<vmem>>, vector<256x16xf32>
    %cst_68 = arith.constant dense<0.000000e+00> : vector<1x16xf32>
    %98 = tpu.matmul %92, %97, %cst_68 {dimension_numbers = #tpu.dot_dimension_numbers<[1], [0], [0], [1], [0, 0, 1, 1], [], []>} : vector<1x256xf32>, vector<256x16xf32>, vector<1x16xf32> -> vector<1x16xf32>
    %cst_69 = arith.constant 3.125000e-02 : f32
    %99 = vector.broadcast %cst_69 : f32 to vector<1x16xf32>
    %100 = arith.mulf %98, %99 : vector<1x16xf32>
    %101 = arith.mulf %96, %96 : vector<1x16xf32>
    %102 = arith.subf %100, %101 : vector<1x16xf32>
    %cst_70 = arith.constant 0.000000e+00 : f32
    %103 = vector.broadcast %cst_70 : f32 to vector<1x16xf32>
    %104 = arith.maximumf %102, %103 : vector<1x16xf32>
    %c0_71 = arith.constant 0 : index
    %c0_72 = arith.constant 0 : index
    %105 = vector.load %arg18[%c0_71, %c0_72] : memref<1x16xf32, #tpu.memory_space<vmem>>, vector<1x16xf32>
    %cst_73 = arith.constant 9.99999974E-6 : f32
    %106 = vector.broadcast %cst_73 : f32 to vector<1x16xf32>
    %107 = arith.addf %104, %106 : vector<1x16xf32>
    %108 = math.rsqrt %107 : vector<1x16xf32>
    %109 = arith.mulf %105, %108 : vector<1x16xf32>
    %c0_74 = arith.constant 0 : index
    %c0_75 = arith.constant 0 : index
    %110 = vector.load %arg19[%c0_74, %c0_75] : memref<1x16xf32, #tpu.memory_space<vmem>>, vector<1x16xf32>
    %111 = arith.mulf %96, %109 : vector<1x16xf32>
    %112 = arith.subf %110, %111 : vector<1x16xf32>
    %c0_76 = arith.constant 0 : index
    %c0_77 = arith.constant 0 : index
    %113 = vector.load %arg21[%c0_76, %c0_77] : memref<16x256xf32, #tpu.memory_space<vmem>>, vector<16x256xf32>
    %cst_78 = arith.constant dense<0.000000e+00> : vector<1x256xf32>
    %114 = tpu.matmul %109, %113, %cst_78 {dimension_numbers = #tpu.dot_dimension_numbers<[1], [0], [0], [1], [0, 0, 1, 1], [], []>} : vector<1x16xf32>, vector<16x256xf32>, vector<1x256xf32> -> vector<1x256xf32>
    %115 = vector.broadcast %114 : vector<1x256xf32> to vector<2x256xf32>
    %116 = arith.mulf %87, %115 : vector<2x256xf32>
    %c0_79 = arith.constant 0 : index
    %c0_80 = arith.constant 0 : index
    %117 = vector.load %arg21[%c0_79, %c0_80] : memref<16x256xf32, #tpu.memory_space<vmem>>, vector<16x256xf32>
    %cst_81 = arith.constant dense<0.000000e+00> : vector<1x256xf32>
    %118 = tpu.matmul %112, %117, %cst_81 {dimension_numbers = #tpu.dot_dimension_numbers<[1], [0], [0], [1], [0, 0, 1, 1], [], []>} : vector<1x16xf32>, vector<16x256xf32>, vector<1x256xf32> -> vector<1x256xf32>
    %119 = vector.broadcast %118 : vector<1x256xf32> to vector<2x256xf32>
    %120 = arith.addf %116, %119 : vector<2x256xf32>
    %c0_82 = arith.constant 0 : index
    %c0_83 = arith.constant 0 : index
    %121 = vector.load %arg22[%c0_82, %c0_83] : memref<256x128xf32, #tpu.memory_space<vmem>>, vector<256x128xf32>
    %cst_84 = arith.constant dense<0.000000e+00> : vector<2x128xf32>
    %122 = tpu.matmul %120, %121, %cst_84 {dimension_numbers = #tpu.dot_dimension_numbers<[1], [0], [0], [1], [0, 0, 1, 1], [], []>} : vector<2x256xf32>, vector<256x128xf32>, vector<2x128xf32> -> vector<2x128xf32>
    %c0_85 = arith.constant 0 : index
    %c0_86 = arith.constant 0 : index
    %123 = vector.load %arg23[%c0_85, %c0_86] : memref<1x128xf32, #tpu.memory_space<vmem>>, vector<1x128xf32>
    %124 = vector.broadcast %123 : vector<1x128xf32> to vector<2x128xf32>
    %125 = arith.addf %122, %124 : vector<2x128xf32>
    %cst_87 = arith.constant 0.000000e+00 : f32
    %126 = vector.broadcast %cst_87 : f32 to vector<2x128xf32>
    %127 = arith.cmpf ogt, %125, %126 : vector<2x128xf32>
    %cst_88 = arith.constant 2.000000e-01 : f32
    %128 = vector.broadcast %cst_88 : f32 to vector<2x128xf32>
    %129 = arith.mulf %128, %125 : vector<2x128xf32>
    %130 = arith.select %127, %125, %129 : vector<2x128xi1>, vector<2x128xf32>
    %c0_89 = arith.constant 0 : index
    %c0_90 = arith.constant 0 : index
    %131 = vector.load %arg24[%c0_89, %c0_90] : memref<128x512xf32, #tpu.memory_space<vmem>>, vector<128x512xf32>
    %cst_91 = arith.constant dense<0.000000e+00> : vector<2x512xf32>
    %132 = tpu.matmul %130, %131, %cst_91 {dimension_numbers = #tpu.dot_dimension_numbers<[1], [0], [0], [1], [0, 0, 1, 1], [], []>} : vector<2x128xf32>, vector<128x512xf32>, vector<2x512xf32> -> vector<2x512xf32>
    %cst_92 = arith.constant dense<0.000000e+00> : vector<512xf32>
    %133 = vector.multi_reduction <add>, %132, %cst_92 [0] : vector<2x512xf32> to vector<512xf32>
    %134 = vector.shape_cast %133 : vector<512xf32> to vector<1x512xf32>
    %135 = arith.mulf %132, %132 : vector<2x512xf32>
    %cst_93 = arith.constant dense<0.000000e+00> : vector<512xf32>
    %136 = vector.multi_reduction <add>, %135, %cst_93 [0] : vector<2x512xf32> to vector<512xf32>
    %137 = vector.shape_cast %136 : vector<512xf32> to vector<1x512xf32>
    %c0_94 = arith.constant 0 : index
    %c0_95 = arith.constant 0 : index
    %138 = vector.load %arg27[%c0_94, %c0_95] : memref<512x8xf32, #tpu.memory_space<vmem>>, vector<512x8xf32>
    %cst_96 = arith.constant dense<0.000000e+00> : vector<1x8xf32>
    %139 = tpu.matmul %134, %138, %cst_96 {dimension_numbers = #tpu.dot_dimension_numbers<[1], [0], [0], [1], [0, 0, 1, 1], [], []>} : vector<1x512xf32>, vector<512x8xf32>, vector<1x8xf32> -> vector<1x8xf32>
    %cst_97 = arith.constant 7.812500e-03 : f32
    %140 = vector.broadcast %cst_97 : f32 to vector<1x8xf32>
    %141 = arith.mulf %139, %140 : vector<1x8xf32>
    %c0_98 = arith.constant 0 : index
    %c0_99 = arith.constant 0 : index
    %142 = vector.load %arg27[%c0_98, %c0_99] : memref<512x8xf32, #tpu.memory_space<vmem>>, vector<512x8xf32>
    %cst_100 = arith.constant dense<0.000000e+00> : vector<1x8xf32>
    %143 = tpu.matmul %137, %142, %cst_100 {dimension_numbers = #tpu.dot_dimension_numbers<[1], [0], [0], [1], [0, 0, 1, 1], [], []>} : vector<1x512xf32>, vector<512x8xf32>, vector<1x8xf32> -> vector<1x8xf32>
    %cst_101 = arith.constant 7.812500e-03 : f32
    %144 = vector.broadcast %cst_101 : f32 to vector<1x8xf32>
    %145 = arith.mulf %143, %144 : vector<1x8xf32>
    %146 = arith.mulf %141, %141 : vector<1x8xf32>
    %147 = arith.subf %145, %146 : vector<1x8xf32>
    %cst_102 = arith.constant 0.000000e+00 : f32
    %148 = vector.broadcast %cst_102 : f32 to vector<1x8xf32>
    %149 = arith.maximumf %147, %148 : vector<1x8xf32>
    %c0_103 = arith.constant 0 : index
    %c0_104 = arith.constant 0 : index
    %150 = vector.load %arg25[%c0_103, %c0_104] : memref<1x8xf32, #tpu.memory_space<vmem>>, vector<1x8xf32>
    %cst_105 = arith.constant 9.99999974E-6 : f32
    %151 = vector.broadcast %cst_105 : f32 to vector<1x8xf32>
    %152 = arith.addf %149, %151 : vector<1x8xf32>
    %153 = math.rsqrt %152 : vector<1x8xf32>
    %154 = arith.mulf %150, %153 : vector<1x8xf32>
    %c0_106 = arith.constant 0 : index
    %c0_107 = arith.constant 0 : index
    %155 = vector.load %arg26[%c0_106, %c0_107] : memref<1x8xf32, #tpu.memory_space<vmem>>, vector<1x8xf32>
    %156 = arith.mulf %141, %154 : vector<1x8xf32>
    %157 = arith.subf %155, %156 : vector<1x8xf32>
    %c0_108 = arith.constant 0 : index
    %c0_109 = arith.constant 0 : index
    %158 = vector.load %arg28[%c0_108, %c0_109] : memref<8x512xf32, #tpu.memory_space<vmem>>, vector<8x512xf32>
    %cst_110 = arith.constant dense<0.000000e+00> : vector<1x512xf32>
    %159 = tpu.matmul %154, %158, %cst_110 {dimension_numbers = #tpu.dot_dimension_numbers<[1], [0], [0], [1], [0, 0, 1, 1], [], []>} : vector<1x8xf32>, vector<8x512xf32>, vector<1x512xf32> -> vector<1x512xf32>
    %160 = vector.broadcast %159 : vector<1x512xf32> to vector<2x512xf32>
    %161 = arith.mulf %132, %160 : vector<2x512xf32>
    %c0_111 = arith.constant 0 : index
    %c0_112 = arith.constant 0 : index
    %162 = vector.load %arg28[%c0_111, %c0_112] : memref<8x512xf32, #tpu.memory_space<vmem>>, vector<8x512xf32>
    %cst_113 = arith.constant dense<0.000000e+00> : vector<1x512xf32>
    %163 = tpu.matmul %157, %162, %cst_113 {dimension_numbers = #tpu.dot_dimension_numbers<[1], [0], [0], [1], [0, 0, 1, 1], [], []>} : vector<1x8xf32>, vector<8x512xf32>, vector<1x512xf32> -> vector<1x512xf32>
    %164 = vector.broadcast %163 : vector<1x512xf32> to vector<2x512xf32>
    %165 = arith.addf %161, %164 : vector<2x512xf32>
    %c0_114 = arith.constant 0 : index
    %c0_115 = arith.constant 0 : index
    %166 = vector.load %arg29[%c0_114, %c0_115] : memref<512x64xf32, #tpu.memory_space<vmem>>, vector<512x64xf32>
    %cst_116 = arith.constant dense<0.000000e+00> : vector<2x64xf32>
    %167 = tpu.matmul %165, %166, %cst_116 {dimension_numbers = #tpu.dot_dimension_numbers<[1], [0], [0], [1], [0, 0, 1, 1], [], []>} : vector<2x512xf32>, vector<512x64xf32>, vector<2x64xf32> -> vector<2x64xf32>
    %c0_117 = arith.constant 0 : index
    %c0_118 = arith.constant 0 : index
    %168 = vector.load %arg30[%c0_117, %c0_118] : memref<1x64xf32, #tpu.memory_space<vmem>>, vector<1x64xf32>
    %169 = vector.broadcast %168 : vector<1x64xf32> to vector<2x64xf32>
    %170 = arith.addf %167, %169 : vector<2x64xf32>
    %cst_119 = arith.constant 0.000000e+00 : f32
    %171 = vector.broadcast %cst_119 : f32 to vector<2x64xf32>
    %172 = arith.cmpf ogt, %170, %171 : vector<2x64xf32>
    %cst_120 = arith.constant 2.000000e-01 : f32
    %173 = vector.broadcast %cst_120 : f32 to vector<2x64xf32>
    %174 = arith.mulf %173, %170 : vector<2x64xf32>
    %175 = arith.select %172, %170, %174 : vector<2x64xi1>, vector<2x64xf32>
    %c0_121 = arith.constant 0 : index
    %c0_122 = arith.constant 0 : index
    %176 = vector.load %arg31[%c0_121, %c0_122] : memref<64x256xf32, #tpu.memory_space<vmem>>, vector<64x256xf32>
    %cst_123 = arith.constant dense<0.000000e+00> : vector<2x256xf32>
    %177 = tpu.matmul %175, %176, %cst_123 {dimension_numbers = #tpu.dot_dimension_numbers<[1], [0], [0], [1], [0, 0, 1, 1], [], []>} : vector<2x64xf32>, vector<64x256xf32>, vector<2x256xf32> -> vector<2x256xf32>
    %c0_124 = arith.constant 0 : index
    %c0_125 = arith.constant 0 : index
    %178 = vector.load %arg32[%c0_124, %c0_125] : memref<2x256xf32, #tpu.memory_space<vmem>>, vector<2x256xf32>
    tpu.vector_store %arg32[%c0_124, %c0_125], %177 {strides = array<i32>} : memref<2x256xf32, #tpu.memory_space<vmem>>, vector<2x256xf32>,
    return
  }
}

</mosaic_0001>

<llo_original>
// kernel: decoder_forward.1
$region0: #{decoder_forward.1}
  #allocation0 [shape = 'u32[]', space=smem, size = 0x4, offset = 0x4, fixed_abs, tag = 'smem constant byte address 0x4 - core index']
  #allocation1 [shape = 'u32[144,128]{1,0:T(1,128)}', space=vmem, size = 0x12000, scoped, tag = 'internal scratch']
  %s0 = inlined_call_operand.smem [shape: u32[33], index: -1, kind: input, shape index: {}]
  %s1 = sld [smem:[%s0]]
  %s2 = scalar_lea.smem %s0, 1
  %s3 = sld [smem:[%s2]]
  %s4 = scalar_lea.smem %s0, 2
  %s5 = sld [smem:[%s4]]
  %s6 = scalar_lea.smem %s0, 3
  %s7 = sld [smem:[%s6]]
  %s8 = scalar_lea.smem %s0, 4
  %s9 = sld [smem:[%s8]]
  %s10 = scalar_lea.smem %s0, 5
  %s11 = sld [smem:[%s10]]
  %s12 = scalar_lea.smem %s0, 6
  %s13 = sld [smem:[%s12]]
  %s14 = scalar_lea.smem %s0, 7
  %s15 = sld [smem:[%s14]]
  %s16 = scalar_lea.smem %s0, 8
  %s17 = sld [smem:[%s16]]
  %s18 = scalar_lea.smem %s0, 9
  %s19 = sld [smem:[%s18]]
  %s20 = scalar_lea.smem %s0, 10
  %s21 = sld [smem:[%s20]]
  %s22 = scalar_lea.smem %s0, 11
  %s23 = sld [smem:[%s22]]
  %s24 = scalar_lea.smem %s0, 12
  %s25 = sld [smem:[%s24]]
  %s26 = scalar_lea.smem %s0, 13
  %s27 = sld [smem:[%s26]]
  %s28 = scalar_lea.smem %s0, 14
  %s29 = sld [smem:[%s28]]
  %s30 = scalar_lea.smem %s0, 15
  %s31 = sld [smem:[%s30]]
  %s32 = scalar_lea.smem %s0, 16
  %s33 = sld [smem:[%s32]]
  %s34 = scalar_lea.smem %s0, 17
  %s35 = sld [smem:[%s34]]
  %s36 = scalar_lea.smem %s0, 18
  %s37 = sld [smem:[%s36]]
  %s38 = scalar_lea.smem %s0, 19
  %s39 = sld [smem:[%s38]]
  %s40 = scalar_lea.smem %s0, 20
  %s41 = sld [smem:[%s40]]
  %s42 = scalar_lea.smem %s0, 21
  %s43 = sld [smem:[%s42]]
  %s44 = scalar_lea.smem %s0, 22
  %s45 = sld [smem:[%s44]]
  %s46 = scalar_lea.smem %s0, 23
  %s47 = sld [smem:[%s46]]
  %s48 = scalar_lea.smem %s0, 24
  %s49 = sld [smem:[%s48]]
  %s50 = scalar_lea.smem %s0, 25
  %s51 = sld [smem:[%s50]]
  %s52 = scalar_lea.smem %s0, 26
  %s53 = sld [smem:[%s52]]
  %s54 = scalar_lea.smem %s0, 27
  %s55 = sld [smem:[%s54]]
  %s56 = scalar_lea.smem %s0, 28
  %s57 = sld [smem:[%s56]]
  %s58 = scalar_lea.smem %s0, 29
  %s59 = sld [smem:[%s58]]
  %s60 = scalar_lea.smem %s0, 30
  %s61 = sld [smem:[%s60]]
  %s62 = scalar_lea.smem %s0, 31
  %s63 = sld [smem:[%s62]]
  %s64 = scalar_lea.smem %s0, 32
  %s65 = sld [smem:[%s64]]
  %s66 = sld [smem:[#allocation0]]
  $region242: #{decoder_forward.1} parent=0
    _
  %s68 = ssub.s32 1, %s66
  %s69 = scalar_select 0, %s68, %s66
  $region1: #{decoder_forward.1} parent=0
    #allocation2 [shape = 'u8[4096]{0}', space=vmem, size = 0x1000, scoped, tag = 'input window, operand 0, single buffered']
    #allocation3 [shape = 's32[1]{0}', space=sflag, size = 0x4, scoped, tag = 'scoped memory for decoder_forward.1']
    #allocation4 [shape = 'u8[16384]{0}', space=vmem, size = 0x4000, scoped, tag = 'input window, operand 2, single buffered']
    #allocation5 [shape = 's32[1]{0}', space=sflag, size = 0x4, scoped, tag = 'scoped memory for decoder_forward.1']
    #allocation6 [shape = 'u8[131072]{0}', space=vmem, size = 0x20000, scoped, tag = 'input window, operand 3, single buffered']
    #allocation7 [shape = 'u8[16384]{0}', space=vmem, size = 0x4000, scoped, tag = 'input window, operand 4, single buffered']
    #allocation8 [shape = 's32[1]{0}', space=sflag, size = 0x4, scoped, tag = 'scoped memory for decoder_forward.1']
    #allocation9 [shape = 'u8[4194304]{0}', space=vmem, size = 0x400000, scoped, tag = 'input window, operand 5, single buffered']
    #allocation10 [shape = 'u8[2048]{0}', space=vmem, size = 0x800, scoped, tag = 'input window, operand 6, single buffered']
    #allocation11 [shape = 's32[1]{0}', space=sflag, size = 0x4, scoped, tag = 'scoped memory for decoder_forward.1']
    #allocation12 [shape = 'u8[524288]{0}', space=vmem, size = 0x80000, scoped, tag = 'input window, operand 7, single buffered']
    #allocation13 [shape = 'u8[1024]{0}', space=vmem, size = 0x400, scoped, tag = 'input window, operand 8, single buffered']
    #allocation14 [shape = 's32[1]{0}', space=sflag, size = 0x4, scoped, tag = 'scoped memory for decoder_forward.1']
    #allocation15 [shape = 'u8[131072]{0}', space=vmem, size = 0x20000, scoped, tag = 'input window, operand 9, single buffered']
    #allocation16 [shape = 'u8[512]{0}', space=vmem, size = 0x400, scoped, tag = 'input window, operand 10, single buffered']
    #allocation17 [shape = 's32[1]{0}', space=sflag, size = 0x4, scoped, tag = 'scoped memory for decoder_forward.1']
    #allocation18 [shape = 'u8[512]{0}', space=vmem, size = 0x400, scoped, tag = 'input window, operand 11, single buffered']
    #allocation19 [shape = 'u8[512]{0}', space=vmem, size = 0x400, scoped, tag = 'input window, operand 12, single buffered']
    #allocation20 [shape = 's32[1]{0}', space=sflag, size = 0x4, scoped, tag = 'scoped memory for decoder_forward.1']
    #allocation21 [shape = 'u8[16384]{0}', space=vmem, size = 0x4000, scoped, tag = 'input window, operand 14, single buffered']
    #allocation22 [shape = 'u8[512]{0}', space=vmem, size = 0x400, scoped, tag = 'input window, operand 16, single buffered']
    #allocation23 [shape = 's32[1]{0}', space=sflag, size = 0x4, scoped, tag = 'scoped memory for decoder_forward.1']
    #allocation24 [shape = 'u8[65536]{0}', space=vmem, size = 0x10000, scoped, tag = 'input window, operand 17, single buffered']
    #allocation25 [shape = 'u8[512]{0}', space=vmem, size = 0x400, scoped, tag = 'input window, operand 18, single buffered']
    #allocation26 [shape = 's32[1]{0}', space=sflag, size = 0x4, scoped, tag = 'scoped memory for decoder_forward.1']
    #allocation27 [shape = 'u8[512]{0}', space=vmem, size = 0x400, scoped, tag = 'input window, operand 19, single buffered']
    #allocation28 [shape = 'u8[16384]{0}', space=vmem, size = 0x4000, scoped, tag = 'input window, operand 21, single buffered']
    #allocation29 [shape = 's32[1]{0}', space=sflag, size = 0x4, scoped, tag = 'scoped memory for decoder_forward.1']
    #allocation30 [shape = 'u8[131072]{0}', space=vmem, size = 0x20000, scoped, tag = 'input window, operand 22, single buffered']
    #allocation31 [shape = 'u8[512]{0}', space=vmem, size = 0x400, scoped, tag = 'input window, operand 23, single buffered']
    #allocation32 [shape = 's32[1]{0}', space=sflag, size = 0x4, scoped, tag = 'scoped memory for decoder_forward.1']
    #allocation33 [shape = 'u8[262144]{0}', space=vmem, size = 0x40000, scoped, tag = 'input window, operand 24, single buffered']
    #allocation34 [shape = 'u8[512]{0}', space=vmem, size = 0x400, scoped, tag = 'input window, operand 25, single buffered']
    #allocation35 [shape = 's32[1]{0}', space=sflag, size = 0x4, scoped, tag = 'scoped memory for decoder_forward.1']
    #allocation36 [shape = 'u8[512]{0}', space=vmem, size = 0x400, scoped, tag = 'input window, operand 26, single buffered']
    #allocation37 [shape = 'u8[16384]{0}', space=vmem, size = 0x4000, scoped, tag = 'input window, operand 28, single buffered']
    #allocation38 [shape = 's32[1]{0}', space=sflag, size = 0x4, scoped, tag = 'scoped memory for decoder_forward.1']
    #allocation39 [shape = 'u8[512]{0}', space=vmem, size = 0x400, scoped, tag = 'input window, operand 30, single buffered']
    #allocation40 [shape = 'u8[65536]{0}', space=vmem, size = 0x10000, scoped, tag = 'input window, operand 31, single buffered']
    #allocation41 [shape = 's32[1]{0}', space=sflag, size = 0x4, scoped, tag = 'scoped memory for decoder_forward.1']
    %70 = vsyncpa [#allocation3], 0
    %71 = vsyncpa [#allocation5], 0
    %72 = vsyncpa [#allocation8], 0
    %73 = vsyncpa [#allocation11], 0
    %74 = vsyncpa [#allocation14], 0
    %75 = vsyncpa [#allocation17], 0
    %76 = vsyncpa [#allocation20], 0
    %77 = vsyncpa [#allocation23], 0
    %78 = vsyncpa [#allocation26], 0
    %79 = vsyncpa [#allocation29], 0
    %80 = vsyncpa [#allocation32], 0
    %81 = vsyncpa [#allocation35], 0
    %82 = vsyncpa [#allocation38], 0
    %83 = vsyncpa [#allocation41], 0
    // Predicated region
    $region2: #{decoder_forward.1} parent=1 // pred_check
      _
    $region3: #{decoder_forward.1} parent=1 // pred_check_branch
      %85 = sbr.rel (0) target = $region5
    $region4: #{decoder_forward.1} parent=1 // pred_region
      %s87 = ssub.s32 128, 128
      %88 = vsyncadd [#allocation3], %s87
      %s90 = sshll.u32 [#allocation2], 4
      %s91 = int_to_ptr.vmem [resolvable:$true] %s90
      %93 = dma.hbm_to_vmem [thread:$0]  %s1, 128, %s91, [#allocation3]
    $region5: #{decoder_forward.1} parent=1 // pred_fallthru
      _
    // Predicated region
    $region6: #{decoder_forward.1} parent=1 // pred_check
      _
    $region7: #{decoder_forward.1} parent=1 // pred_check_branch
      %95 = sbr.rel (0) target = $region9
    $region8: #{decoder_forward.1} parent=1 // pred_region
      _
    $region9: #{decoder_forward.1} parent=1 // pred_fallthru
      _
    // Predicated region
    $region10: #{decoder_forward.1} parent=1 // pred_check
      _
    $region11: #{decoder_forward.1} parent=1 // pred_check_branch
      %97 = sbr.rel (0) target = $region13
    $region12: #{decoder_forward.1} parent=1 // pred_region
      %s99 = ssub.s32 512, 512
      %100 = vsyncadd [#allocation5], %s99
      %s102 = sshll.u32 [#allocation4], 4
      %s103 = int_to_ptr.vmem [resolvable:$true] %s102
      %105 = dma.hbm_to_vmem [thread:$0]  %s5, 512, %s103, [#allocation5]
    $region13: #{decoder_forward.1} parent=1 // pred_fallthru
      _
    // Predicated region
    $region14: #{decoder_forward.1} parent=1 // pred_check
      _
    $region15: #{decoder_forward.1} parent=1 // pred_check_branch
      %107 = sbr.rel (0) target = $region17
    $region16: #{decoder_forward.1} parent=1 // pred_region
      %s109 = ssub.s32 4096, 4096
      %110 = vsyncadd [#allocation5], %s109
      %s112 = sshll.u32 [#allocation6], 4
      %s113 = int_to_ptr.vmem [resolvable:$true] %s112
      %115 = dma.hbm_to_vmem [thread:$0]  %s7, 4096, %s113, [#allocation5]
    $region17: #{decoder_forward.1} parent=1 // pred_fallthru
      _
    // Predicated region
    $region18: #{decoder_forward.1} parent=1 // pred_check
      _
    $region19: #{decoder_forward.1} parent=1 // pred_check_branch
      %117 = sbr.rel (0) target = $region21
    $region20: #{decoder_forward.1} parent=1 // pred_region
      %s119 = ssub.s32 512, 512
      %120 = vsyncadd [#allocation8], %s119
      %s122 = sshll.u32 [#allocation7], 4
      %s123 = int_to_ptr.vmem [resolvable:$true] %s122
      %125 = dma.hbm_to_vmem [thread:$0]  %s9, 512, %s123, [#allocation8]
    $region21: #{decoder_forward.1} parent=1 // pred_fallthru
      _
    // Predicated region
    $region22: #{decoder_forward.1} parent=1 // pred_check
      _
    $region23: #{decoder_forward.1} parent=1 // pred_check_branch
      %127 = sbr.rel (0) target = $region25
    $region24: #{decoder_forward.1} parent=1 // pred_region
      %s129 = ssub.s32 131072, 131072
      %130 = vsyncadd [#allocation8], %s129
      %s131 = sshll.u32 [#allocation9], 4
      %s132 = int_to_ptr.vmem [resolvable:$true] %s131
      %137 = dma.hbm_to_vmem [thread:$0]  %s11, 131072, %s132, [#allocation8], 256, 256, 16
    $region25: #{decoder_forward.1} parent=1 // pred_fallthru
      _
    // Predicated region
    $region26: #{decoder_forward.1} parent=1 // pred_check
      _
    $region27: #{decoder_forward.1} parent=1 // pred_check_branch
      %139 = sbr.rel (0) target = $region29
    $region28: #{decoder_forward.1} parent=1 // pred_region
      %s141 = ssub.s32 64, 64
      %142 = vsyncadd [#allocation11], %s141
      %s144 = sshll.u32 [#allocation10], 4
      %s145 = int_to_ptr.vmem [resolvable:$true] %s144
      %147 = dma.hbm_to_vmem [thread:$0]  %s13, 64, %s145, [#allocation11]
    $region29: #{decoder_forward.1} parent=1 // pred_fallthru
      _
    // Predicated region
    $region30: #{decoder_forward.1} parent=1 // pred_check
      _
    $region31: #{decoder_forward.1} parent=1 // pred_check_branch
      %149 = sbr.rel (0) target = $region33
    $region32: #{decoder_forward.1} parent=1 // pred_region
      %s151 = ssub.s32 16384, 16384
      %152 = vsyncadd [#allocation11], %s151
      %s153 = sshll.u32 [#allocation12], 4
      %s154 = int_to_ptr.vmem [resolvable:$true] %s153
      %159 = dma.hbm_to_vmem [thread:$0]  %s15, 16384, %s154, [#allocation11], 256, 256, 16
    $region33: #{decoder_forward.1} parent=1 // pred_fallthru
      _
    // Predicated region
    $region34: #{decoder_forward.1} parent=1 // pred_check
      _
    $region35: #{decoder_forward.1} parent=1 // pred_check_branch
      %161 = sbr.rel (0) target = $region37
    $region36: #{decoder_forward.1} parent=1 // pred_region
      %s163 = ssub.s32 32, 32
      %164 = vsyncadd [#allocation14], %s163
      %s166 = sshll.u32 [#allocation13], 4
      %s167 = int_to_ptr.vmem [resolvable:$true] %s166
      %169 = dma.hbm_to_vmem [thread:$0]  %s17, 32, %s167, [#allocation14]
    $region37: #{decoder_forward.1} parent=1 // pred_fallthru
      _
    // Predicated region
    $region38: #{decoder_forward.1} parent=1 // pred_check
      _
    $region39: #{decoder_forward.1} parent=1 // pred_check_branch
      %171 = sbr.rel (0) target = $region41
    $region40: #{decoder_forward.1} parent=1 // pred_region
      %s173 = ssub.s32 4096, 4096
      %174 = vsyncadd [#allocation14], %s173
      %s175 = sshll.u32 [#allocation15], 4
      %s176 = int_to_ptr.vmem [resolvable:$true] %s175
      %181 = dma.hbm_to_vmem [thread:$0]  %s19, 4096, %s176, [#allocation14], 128, 128, 8
    $region41: #{decoder_forward.1} parent=1 // pred_fallthru
      _
    // Predicated region
    $region42: #{decoder_forward.1} parent=1 // pred_check
      _
    $region43: #{decoder_forward.1} parent=1 // pred_check_branch
      %183 = sbr.rel (0) target = $region45
    $region44: #{decoder_forward.1} parent=1 // pred_region
      %s185 = ssub.s32 16, 16
      %186 = vsyncadd [#allocation17], %s185
      %s188 = sshll.u32 [#allocation16], 4
      %s189 = int_to_ptr.vmem [resolvable:$true] %s188
      %191 = dma.hbm_to_vmem [thread:$0]  %s21, 16, %s189, [#allocation17]
    $region45: #{decoder_forward.1} parent=1 // pred_fallthru
      _
    // Predicated region
    $region46: #{decoder_forward.1} parent=1 // pred_check
      _
    $region47: #{decoder_forward.1} parent=1 // pred_check_branch
      %193 = sbr.rel (0) target = $region49
    $region48: #{decoder_forward.1} parent=1 // pred_region
      %s195 = ssub.s32 16, 16
      %196 = vsyncadd [#allocation17], %s195
      %s198 = sshll.u32 [#allocation18], 4
      %s199 = int_to_ptr.vmem [resolvable:$true] %s198
      %201 = dma.hbm_to_vmem [thread:$0]  %s23, 16, %s199, [#allocation17]
    $region49: #{decoder_forward.1} parent=1 // pred_fallthru
      _
    // Predicated region
    $region50: #{decoder_forward.1} parent=1 // pred_check
      _
    $region51: #{decoder_forward.1} parent=1 // pred_check_branch
      %203 = sbr.rel (0) target = $region53
    $region52: #{decoder_forward.1} parent=1 // pred_region
      %s205 = ssub.s32 16, 16
      %206 = vsyncadd [#allocation20], %s205
      %s208 = sshll.u32 [#allocation19], 4
      %s209 = int_to_ptr.vmem [resolvable:$true] %s208
      %211 = dma.hbm_to_vmem [thread:$0]  %s25, 16, %s209, [#allocation20]
    $region53: #{decoder_forward.1} parent=1 // pred_fallthru
      _
    // Predicated region
    $region54: #{decoder_forward.1} parent=1 // pred_check
      _
    $region55: #{decoder_forward.1} parent=1 // pred_check_branch
      %213 = sbr.rel (0) target = $region57
    $region56: #{decoder_forward.1} parent=1 // pred_region
      _
    $region57: #{decoder_forward.1} parent=1 // pred_fallthru
      _
    // Predicated region
    $region58: #{decoder_forward.1} parent=1 // pred_check
      _
    $region59: #{decoder_forward.1} parent=1 // pred_check_branch
      %215 = sbr.rel (0) target = $region61
    $region60: #{decoder_forward.1} parent=1 // pred_region
      %s217 = ssub.s32 512, 512
      %218 = vsyncadd [#allocation20], %s217
      %s219 = sshll.u32 [#allocation21], 4
      %s220 = int_to_ptr.vmem [resolvable:$true] %s219
      %225 = dma.hbm_to_vmem [thread:$0]  %s29, 512, %s220, [#allocation20], 128, 128, 8
    $region61: #{decoder_forward.1} parent=1 // pred_fallthru
      _
    // Predicated region
    $region62: #{decoder_forward.1} parent=1 // pred_check
      _
    $region63: #{decoder_forward.1} parent=1 // pred_check_branch
      %227 = sbr.rel (0) target = $region65
    $region64: #{decoder_forward.1} parent=1 // pred_region
      _
    $region65: #{decoder_forward.1} parent=1 // pred_fallthru
      _
    // Predicated region
    $region66: #{decoder_forward.1} parent=1 // pred_check
      _
    $region67: #{decoder_forward.1} parent=1 // pred_check_branch
      %229 = sbr.rel (0) target = $region69
    $region68: #{decoder_forward.1} parent=1 // pred_region
      %s231 = ssub.s32 16, 16
      %232 = vsyncadd [#allocation23], %s231
      %s234 = sshll.u32 [#allocation22], 4
      %s235 = int_to_ptr.vmem [resolvable:$true] %s234
      %237 = dma.hbm_to_vmem [thread:$0]  %s33, 16, %s235, [#allocation23]
    $region69: #{decoder_forward.1} parent=1 // pred_fallthru
      _
    // Predicated region
    $region70: #{decoder_forward.1} parent=1 // pred_check
      _
    $region71: #{decoder_forward.1} parent=1 // pred_check_branch
      %239 = sbr.rel (0) target = $region73
    $region72: #{decoder_forward.1} parent=1 // pred_region
      %s241 = ssub.s32 2048, 2048
      %242 = vsyncadd [#allocation23], %s241
      %s243 = sshll.u32 [#allocation24], 4
      %s244 = int_to_ptr.vmem [resolvable:$true] %s243
      %249 = dma.hbm_to_vmem [thread:$0]  %s35, 2048, %s244, [#allocation23], 256, 256, 16
    $region73: #{decoder_forward.1} parent=1 // pred_fallthru
      _
    // Predicated region
    $region74: #{decoder_forward.1} parent=1 // pred_check
      _
    $region75: #{decoder_forward.1} parent=1 // pred_check_branch
      %251 = sbr.rel (0) target = $region77
    $region76: #{decoder_forward.1} parent=1 // pred_region
      %s253 = ssub.s32 16, 16
      %254 = vsyncadd [#allocation26], %s253
      %s256 = sshll.u32 [#allocation25], 4
      %s257 = int_to_ptr.vmem [resolvable:$true] %s256
      %259 = dma.hbm_to_vmem [thread:$0]  %s37, 16, %s257, [#allocation26]
    $region77: #{decoder_forward.1} parent=1 // pred_fallthru
      _
    // Predicated region
    $region78: #{decoder_forward.1} parent=1 // pred_check
      _
    $region79: #{decoder_forward.1} parent=1 // pred_check_branch
      %261 = sbr.rel (0) target = $region81
    $region80: #{decoder_forward.1} parent=1 // pred_region
      %s263 = ssub.s32 16, 16
      %264 = vsyncadd [#allocation26], %s263
      %s266 = sshll.u32 [#allocation27], 4
      %s267 = int_to_ptr.vmem [resolvable:$true] %s266
      %269 = dma.hbm_to_vmem [thread:$0]  %s39, 16, %s267, [#allocation26]
    $region81: #{decoder_forward.1} parent=1 // pred_fallthru
      _
    // Predicated region
    $region82: #{decoder_forward.1} parent=1 // pred_check
      _
    $region83: #{decoder_forward.1} parent=1 // pred_check_branch
      %271 = sbr.rel (0) target = $region85
    $region84: #{decoder_forward.1} parent=1 // pred_region
      _
    $region85: #{decoder_forward.1} parent=1 // pred_fallthru
      _
    // Predicated region
    $region86: #{decoder_forward.1} parent=1 // pred_check
      _
    $region87: #{decoder_forward.1} parent=1 // pred_check_branch
      %273 = sbr.rel (0) target = $region89
    $region88: #{decoder_forward.1} parent=1 // pred_region
      %s275 = ssub.s32 512, 512
      %276 = vsyncadd [#allocation29], %s275
      %s277 = sshll.u32 [#allocation28], 4
      %s278 = int_to_ptr.vmem [resolvable:$true] %s277
      %283 = dma.hbm_to_vmem [thread:$0]  %s43, 512, %s278, [#allocation29], 256, 256, 16
    $region89: #{decoder_forward.1} parent=1 // pred_fallthru
      _
    // Predicated region
    $region90: #{decoder_forward.1} parent=1 // pred_check
      _
    $region91: #{decoder_forward.1} parent=1 // pred_check_branch
      %285 = sbr.rel (0) target = $region93
    $region92: #{decoder_forward.1} parent=1 // pred_region
      %s287 = ssub.s32 4096, 4096
      %288 = vsyncadd [#allocation29], %s287
      %s289 = sshll.u32 [#allocation30], 4
      %s290 = int_to_ptr.vmem [resolvable:$true] %s289
      %295 = dma.hbm_to_vmem [thread:$0]  %s45, 4096, %s290, [#allocation29], 128, 128, 8
    $region93: #{decoder_forward.1} parent=1 // pred_fallthru
      _
    // Predicated region
    $region94: #{decoder_forward.1} parent=1 // pred_check
      _
    $region95: #{decoder_forward.1} parent=1 // pred_check_branch
      %297 = sbr.rel (0) target = $region97
    $region96: #{decoder_forward.1} parent=1 // pred_region
      %s299 = ssub.s32 16, 16
      %300 = vsyncadd [#allocation32], %s299
      %s302 = sshll.u32 [#allocation31], 4
      %s303 = int_to_ptr.vmem [resolvable:$true] %s302
      %305 = dma.hbm_to_vmem [thread:$0]  %s47, 16, %s303, [#allocation32]
    $region97: #{decoder_forward.1} parent=1 // pred_fallthru
      _
    // Predicated region
    $region98: #{decoder_forward.1} parent=1 // pred_check
      _
    $region99: #{decoder_forward.1} parent=1 // pred_check_branch
      %307 = sbr.rel (0) target = $region101
    $region100: #{decoder_forward.1} parent=1 // pred_region
      %s309 = ssub.s32 8192, 8192
      %310 = vsyncadd [#allocation32], %s309
      %s311 = sshll.u32 [#allocation33], 4
      %s312 = int_to_ptr.vmem [resolvable:$true] %s311
      %317 = dma.hbm_to_vmem [thread:$0]  %s49, 8192, %s312, [#allocation32], 512, 512, 32
    $region101: #{decoder_forward.1} parent=1 // pred_fallthru
      _
    // Predicated region
    $region102: #{decoder_forward.1} parent=1 // pred_check
      _
    $region103: #{decoder_forward.1} parent=1 // pred_check_branch
      %319 = sbr.rel (0) target = $region105
    $region104: #{decoder_forward.1} parent=1 // pred_region
      %s321 = ssub.s32 16, 16
      %322 = vsyncadd [#allocation35], %s321
      %s324 = sshll.u32 [#allocation34], 4
      %s325 = int_to_ptr.vmem [resolvable:$true] %s324
      %327 = dma.hbm_to_vmem [thread:$0]  %s51, 16, %s325, [#allocation35]
    $region105: #{decoder_forward.1} parent=1 // pred_fallthru
      _
    // Predicated region
    $region106: #{decoder_forward.1} parent=1 // pred_check
      _
    $region107: #{decoder_forward.1} parent=1 // pred_check_branch
      %329 = sbr.rel (0) target = $region109
    $region108: #{decoder_forward.1} parent=1 // pred_region
      %s331 = ssub.s32 16, 16
      %332 = vsyncadd [#allocation35], %s331
      %s334 = sshll.u32 [#allocation36], 4
      %s335 = int_to_ptr.vmem [resolvable:$true] %s334
      %337 = dma.hbm_to_vmem [thread:$0]  %s53, 16, %s335, [#allocation35]
    $region109: #{decoder_forward.1} parent=1 // pred_fallthru
      _
    // Predicated region
    $region110: #{decoder_forward.1} parent=1 // pred_check
      _
    $region111: #{decoder_forward.1} parent=1 // pred_check_branch
      %339 = sbr.rel (0) target = $region113
    $region112: #{decoder_forward.1} parent=1 // pred_region
      _
    $region113: #{decoder_forward.1} parent=1 // pred_fallthru
      _
    // Predicated region
    $region114: #{decoder_forward.1} parent=1 // pred_check
      _
    $region115: #{decoder_forward.1} parent=1 // pred_check_branch
      %341 = sbr.rel (0) target = $region117
    $region116: #{decoder_forward.1} parent=1 // pred_region
      %s343 = ssub.s32 512, 512
      %344 = vsyncadd [#allocation38], %s343
      %s346 = sshll.u32 [#allocation37], 4
      %s347 = int_to_ptr.vmem [resolvable:$true] %s346
      %349 = dma.hbm_to_vmem [thread:$0]  %s57, 512, %s347, [#allocation38]
    $region117: #{decoder_forward.1} parent=1 // pred_fallthru
      _
    // Predicated region
    $region118: #{decoder_forward.1} parent=1 // pred_check
      _
    $region119: #{decoder_forward.1} parent=1 // pred_check_branch
      %351 = sbr.rel (0) target = $region121
    $region120: #{decoder_forward.1} parent=1 // pred_region
      _
    $region121: #{decoder_forward.1} parent=1 // pred_fallthru
      _
    // Predicated region
    $region122: #{decoder_forward.1} parent=1 // pred_check
      _
    $region123: #{decoder_forward.1} parent=1 // pred_check_branch
      %353 = sbr.rel (0) target = $region125
    $region124: #{decoder_forward.1} parent=1 // pred_region
      %s355 = ssub.s32 16, 16
      %356 = vsyncadd [#allocation38], %s355
      %s358 = sshll.u32 [#allocation39], 4
      %s359 = int_to_ptr.vmem [resolvable:$true] %s358
      %361 = dma.hbm_to_vmem [thread:$0]  %s61, 16, %s359, [#allocation38]
    $region125: #{decoder_forward.1} parent=1 // pred_fallthru
      _
    // Predicated region
    $region126: #{decoder_forward.1} parent=1 // pred_check
      _
    $region127: #{decoder_forward.1} parent=1 // pred_check_branch
      %363 = sbr.rel (0) target = $region129
    $region128: #{decoder_forward.1} parent=1 // pred_region
      %s365 = ssub.s32 2048, 2048
      %366 = vsyncadd [#allocation41], %s365
      %s367 = sshll.u32 [#allocation40], 4
      %s368 = int_to_ptr.vmem [resolvable:$true] %s367
      %373 = dma.hbm_to_vmem [thread:$0]  %s63, 2048, %s368, [#allocation41], 256, 256, 16
    $region129: #{decoder_forward.1} parent=1 // pred_fallthru
      _
    // Predicated region
    $region130: #{decoder_forward.1} parent=1 // pred_check
      _
    $region131: #{decoder_forward.1} parent=1 // pred_check_branch
      %375 = sbr.rel (0) target = $region133
    $region132: #{decoder_forward.1} parent=1 // pred_region
      %376 = dma.done [#allocation3], 128
    $region133: #{decoder_forward.1} parent=1 // pred_fallthru
      _
    // Predicated region
    $region134: #{decoder_forward.1} parent=1 // pred_check
      _
    $region135: #{decoder_forward.1} parent=1 // pred_check_branch
      %378 = sbr.rel (0) target = $region137
    $region136: #{decoder_forward.1} parent=1 // pred_region
      %379 = dma.done [#allocation5], 512
    $region137: #{decoder_forward.1} parent=1 // pred_fallthru
      _
    // Predicated region
    $region138: #{decoder_forward.1} parent=1 // pred_check
      _
    $region139: #{decoder_forward.1} parent=1 // pred_check_branch
      %381 = sbr.rel (0) target = $region141
    $region140: #{decoder_forward.1} parent=1 // pred_region
      %382 = dma.done [#allocation5], 4096
    $region141: #{decoder_forward.1} parent=1 // pred_fallthru
      _
    // Predicated region
    $region142: #{decoder_forward.1} parent=1 // pred_check
      _
    $region143: #{decoder_forward.1} parent=1 // pred_check_branch
      %384 = sbr.rel (0) target = $region145
    $region144: #{decoder_forward.1} parent=1 // pred_region
      %385 = dma.done [#allocation8], 512
    $region145: #{decoder_forward.1} parent=1 // pred_fallthru
      _
    // Predicated region
    $region146: #{decoder_forward.1} parent=1 // pred_check
      _
    $region147: #{decoder_forward.1} parent=1 // pred_check_branch
      %387 = sbr.rel (0) target = $region149
    $region148: #{decoder_forward.1} parent=1 // pred_region
      %388 = dma.done [#allocation8], 131072
    $region149: #{decoder_forward.1} parent=1 // pred_fallthru
      _
    // Predicated region
    $region150: #{decoder_forward.1} parent=1 // pred_check
      _
    $region151: #{decoder_forward.1} parent=1 // pred_check_branch
      %390 = sbr.rel (0) target = $region153
    $region152: #{decoder_forward.1} parent=1 // pred_region
      %391 = dma.done [#allocation11], 64
    $region153: #{decoder_forward.1} parent=1 // pred_fallthru
      _
    // Predicated region
    $region154: #{decoder_forward.1} parent=1 // pred_check
      _
    $region155: #{decoder_forward.1} parent=1 // pred_check_branch
      %393 = sbr.rel (0) target = $region157
    $region156: #{decoder_forward.1} parent=1 // pred_region
      %394 = dma.done [#allocation11], 16384
    $region157: #{decoder_forward.1} parent=1 // pred_fallthru
      _
    // Predicated region
    $region158: #{decoder_forward.1} parent=1 // pred_check
      _
    $region159: #{decoder_forward.1} parent=1 // pred_check_branch
      %396 = sbr.rel (0) target = $region161
    $region160: #{decoder_forward.1} parent=1 // pred_region
      %397 = dma.done [#allocation14], 32
    $region161: #{decoder_forward.1} parent=1 // pred_fallthru
      _
    // Predicated region
    $region162: #{decoder_forward.1} parent=1 // pred_check
      _
    $region163: #{decoder_forward.1} parent=1 // pred_check_branch
      %399 = sbr.rel (0) target = $region165
    $region164: #{decoder_forward.1} parent=1 // pred_region
      %400 = dma.done [#allocation14], 4096
    $region165: #{decoder_forward.1} parent=1 // pred_fallthru
      _
    // Predicated region
    $region166: #{decoder_forward.1} parent=1 // pred_check
      _
    $region167: #{decoder_forward.1} parent=1 // pred_check_branch
      %402 = sbr.rel (0) target = $region169
    $region168: #{decoder_forward.1} parent=1 // pred_region
      %403 = dma.done [#allocation17], 16
    $region169: #{decoder_forward.1} parent=1 // pred_fallthru
      _
    // Predicated region
    $region170: #{decoder_forward.1} parent=1 // pred_check
      _
    $region171: #{decoder_forward.1} parent=1 // pred_check_branch
      %405 = sbr.rel (0) target = $region173
    $region172: #{decoder_forward.1} parent=1 // pred_region
      %406 = dma.done [#allocation17], 16
    $region173: #{decoder_forward.1} parent=1 // pred_fallthru
      _
    // Predicated region
    $region174: #{decoder_forward.1} parent=1 // pred_check
      _
    $region175: #{decoder_forward.1} parent=1 // pred_check_branch
      %408 = sbr.rel (0) target = $region177
    $region176: #{decoder_forward.1} parent=1 // pred_region
      %409 = dma.done [#allocation20], 16
    $region177: #{decoder_forward.1} parent=1 // pred_fallthru
      _
    // Predicated region
    $region178: #{decoder_forward.1} parent=1 // pred_check
      _
    $region179: #{decoder_forward.1} parent=1 // pred_check_branch
      %411 = sbr.rel (0) target = $region181
    $region180: #{decoder_forward.1} parent=1 // pred_region
      %412 = dma.done [#allocation20], 512
    $region181: #{decoder_forward.1} parent=1 // pred_fallthru
      _
    // Predicated region
    $region182: #{decoder_forward.1} parent=1 // pred_check
      _
    $region183: #{decoder_forward.1} parent=1 // pred_check_branch
      %414 = sbr.rel (0) target = $region185
    $region184: #{decoder_forward.1} parent=1 // pred_region
      %415 = dma.done [#allocation23], 16
    $region185: #{decoder_forward.1} parent=1 // pred_fallthru
      _
    // Predicated region
    $region186: #{decoder_forward.1} parent=1 // pred_check
      _
    $region187: #{decoder_forward.1} parent=1 // pred_check_branch
      %417 = sbr.rel (0) target = $region189
    $region188: #{decoder_forward.1} parent=1 // pred_region
      %418 = dma.done [#allocation23], 2048
    $region189: #{decoder_forward.1} parent=1 // pred_fallthru
      _
    // Predicated region
    $region190: #{decoder_forward.1} parent=1 // pred_check
      _
    $region191: #{decoder_forward.1} parent=1 // pred_check_branch
      %420 = sbr.rel (0) target = $region193
    $region192: #{decoder_forward.1} parent=1 // pred_region
      %421 = dma.done [#allocation26], 16
    $region193: #{decoder_forward.1} parent=1 // pred_fallthru
      _
    // Predicated region
    $region194: #{decoder_forward.1} parent=1 // pred_check
      _
    $region195: #{decoder_forward.1} parent=1 // pred_check_branch
      %423 = sbr.rel (0) target = $region197
    $region196: #{decoder_forward.1} parent=1 // pred_region
      %424 = dma.done [#allocation26], 16
    $region197: #{decoder_forward.1} parent=1 // pred_fallthru
      _
    // Predicated region
    $region198: #{decoder_forward.1} parent=1 // pred_check
      _
    $region199: #{decoder_forward.1} parent=1 // pred_check_branch
      %426 = sbr.rel (0) target = $region201
    $region200: #{decoder_forward.1} parent=1 // pred_region
      %427 = dma.done [#allocation29], 512
    $region201: #{decoder_forward.1} parent=1 // pred_fallthru
      _
    // Predicated region
    $region202: #{decoder_forward.1} parent=1 // pred_check
      _
    $region203: #{decoder_forward.1} parent=1 // pred_check_branch
      %429 = sbr.rel (0) target = $region205
    $region204: #{decoder_forward.1} parent=1 // pred_region
      %430 = dma.done [#allocation29], 4096
    $region205: #{decoder_forward.1} parent=1 // pred_fallthru
      _
    // Predicated region
    $region206: #{decoder_forward.1} parent=1 // pred_check
      _
    $region207: #{decoder_forward.1} parent=1 // pred_check_branch
      %432 = sbr.rel (0) target = $region209
    $region208: #{decoder_forward.1} parent=1 // pred_region
      %433 = dma.done [#allocation32], 16
    $region209: #{decoder_forward.1} parent=1 // pred_fallthru
      _
    // Predicated region
    $region210: #{decoder_forward.1} parent=1 // pred_check
      _
    $region211: #{decoder_forward.1} parent=1 // pred_check_branch
      %435 = sbr.rel (0) target = $region213
    $region212: #{decoder_forward.1} parent=1 // pred_region
      %436 = dma.done [#allocation32], 8192
    $region213: #{decoder_forward.1} parent=1 // pred_fallthru
      _
    // Predicated region
    $region214: #{decoder_forward.1} parent=1 // pred_check
      _
    $region215: #{decoder_forward.1} parent=1 // pred_check_branch
      %438 = sbr.rel (0) target = $region217
    $region216: #{decoder_forward.1} parent=1 // pred_region
      %439 = dma.done [#allocation35], 16
    $region217: #{decoder_forward.1} parent=1 // pred_fallthru
      _
    // Predicated region
    $region218: #{decoder_forward.1} parent=1 // pred_check
      _
    $region219: #{decoder_forward.1} parent=1 // pred_check_branch
      %441 = sbr.rel (0) target = $region221
    $region220: #{decoder_forward.1} parent=1 // pred_region
      %442 = dma.done [#allocation35], 16
    $region221: #{decoder_forward.1} parent=1 // pred_fallthru
      _
    // Predicated region
    $region222: #{decoder_forward.1} parent=1 // pred_check
      _
    $region223: #{decoder_forward.1} parent=1 // pred_check_branch
      %444 = sbr.rel (0) target = $region225
    $region224: #{decoder_forward.1} parent=1 // pred_region
      %445 = dma.done [#allocation38], 512
    $region225: #{decoder_forward.1} parent=1 // pred_fallthru
      _
    // Predicated region
    $region226: #{decoder_forward.1} parent=1 // pred_check
      _
    $region227: #{decoder_forward.1} parent=1 // pred_check_branch
      %447 = sbr.rel (0) target = $region229
    $region228: #{decoder_forward.1} parent=1 // pred_region
      %448 = dma.done [#allocation38], 16
    $region229: #{decoder_forward.1} parent=1 // pred_fallthru
      _
    // Predicated region
    $region230: #{decoder_forward.1} parent=1 // pred_check
      _
    $region231: #{decoder_forward.1} parent=1 // pred_check_branch
      %450 = sbr.rel (0) target = $region233
    $region232: #{decoder_forward.1} parent=1 // pred_region
      %451 = dma.done [#allocation41], 2048
    $region233: #{decoder_forward.1} parent=1 // pred_fallthru
      _
    %v452 = vld [vmem:[#allocation2] sm:$0xff]
    %v453 = vlaneseq
    %v454 = vand.u32 %v453, 127
    %v455 = vld [vmem:[%s3] sm:$0x3]
    %456 = vset.pattern.permute.xlu0 0
    %457 = vperm.xlu0 %456, %v455
    %v458 = vpop.permute.xlu0 %457
    %vm459 = vcmp.eq.s32.totalorder %v458, %v454
    %v460 = vsel %vm459, 1, 0
    %v461 = vcvt.s32.f32 %v460
    %v463 = vcombine.high %v452, %v452
    %v465 = vunpack.c.l.s4 1983009808
    %v466 = vunpack.c.0.s8 %v465
    %v467 = vlaneseq
    %v468 = vshrl.u32 %v467, 7
    %v469 = vsub.s32 %v466, %v468
    %v470 = vrot.slane %v452, %v469
    %v472 = vunpack.c.l.s4 1983009808
    %v473 = vunpack.c.0.s8 %v472
    %v474 = vlaneseq
    %v475 = vshrl.u32 %v474, 7
    %v476 = vsub.s32 %v473, %v475
    %v477 = vrot.slane %v463, %v476
    %v478 = vcombine.high %v470, %v470
    %v479 = vcombine.high %v477, %v477
    %v484 = vld [vmem:[#allocation4] sm:$0xff]
    %v485 = vld [vmem:[#allocation4 + $0x8] sm:$0xff]
    %v486 = vld [vmem:[#allocation4 + $0x10] sm:$0xff]
    %v487 = vld [vmem:[#allocation4 + $0x18] sm:$0xff]
    %v492 = vlaneseq
    %v493 = vshrl.u32 %v492, 7
    %v494 = vsub.s32 0, %v493
    %v495 = vrot.slane %v484, %v494
    %v496 = vlaneseq
    %v497 = vshrl.u32 %v496, 7
    %v498 = vsub.s32 1, %v497
    %v499 = vrot.slane %v484, %v498
    %v500 = vlaneseq
    %v501 = vshrl.u32 %v500, 7
    %v502 = vsub.s32 2, %v501
    %v503 = vrot.slane %v484, %v502
    %v504 = vlaneseq
    %v505 = vshrl.u32 %v504, 7
    %v506 = vsub.s32 3, %v505
    %v507 = vrot.slane %v484, %v506
    %v508 = vlaneseq
    %v509 = vshrl.u32 %v508, 7
    %v510 = vsub.s32 4, %v509
    %v511 = vrot.slane %v484, %v510
    %v512 = vlaneseq
    %v513 = vshrl.u32 %v512, 7
    %v514 = vsub.s32 5, %v513
    %v515 = vrot.slane %v484, %v514
    %v516 = vlaneseq
    %v517 = vshrl.u32 %v516, 7
    %v518 = vsub.s32 6, %v517
    %v519 = vrot.slane %v484, %v518
    %v520 = vlaneseq
    %v521 = vshrl.u32 %v520, 7
    %v522 = vsub.s32 7, %v521
    %v523 = vrot.slane %v484, %v522
    %v524 = vlaneseq
    %v525 = vshrl.u32 %v524, 7
    %v526 = vsub.s32 0, %v525
    %v527 = vrot.slane %v485, %v526
    %v528 = vlaneseq
    %v529 = vshrl.u32 %v528, 7
    %v530 = vsub.s32 1, %v529
    %v531 = vrot.slane %v485, %v530
    %v532 = vlaneseq
    %v533 = vshrl.u32 %v532, 7
    %v534 = vsub.s32 2, %v533
    %v535 = vrot.slane %v485, %v534
    %v536 = vlaneseq
    %v537 = vshrl.u32 %v536, 7
    %v538 = vsub.s32 3, %v537
    %v539 = vrot.slane %v485, %v538
    %v540 = vlaneseq
    %v541 = vshrl.u32 %v540, 7
    %v542 = vsub.s32 4, %v541
    %v543 = vrot.slane %v485, %v542
    %v544 = vlaneseq
    %v545 = vshrl.u32 %v544, 7
    %v546 = vsub.s32 5, %v545
    %v547 = vrot.slane %v485, %v546
    %v548 = vlaneseq
    %v549 = vshrl.u32 %v548, 7
    %v550 = vsub.s32 6, %v549
    %v551 = vrot.slane %v485, %v550
    %v552 = vlaneseq
    %v553 = vshrl.u32 %v552, 7
    %v554 = vsub.s32 7, %v553
    %v555 = vrot.slane %v485, %v554
    %v556 = vlaneseq
    %v557 = vshrl.u32 %v556, 7
    %v558 = vsub.s32 0, %v557
    %v559 = vrot.slane %v486, %v558
    %v560 = vlaneseq
    %v561 = vshrl.u32 %v560, 7
    %v562 = vsub.s32 1, %v561
    %v563 = vrot.slane %v486, %v562
    %v564 = vlaneseq
    %v565 = vshrl.u32 %v564, 7
    %v566 = vsub.s32 2, %v565
    %v567 = vrot.slane %v486, %v566
    %v568 = vlaneseq
    %v569 = vshrl.u32 %v568, 7
    %v570 = vsub.s32 3, %v569
    %v571 = vrot.slane %v486, %v570
    %v572 = vlaneseq
    %v573 = vshrl.u32 %v572, 7
    %v574 = vsub.s32 4, %v573
    %v575 = vrot.slane %v486, %v574
    %v576 = vlaneseq
    %v577 = vshrl.u32 %v576, 7
    %v578 = vsub.s32 5, %v577
    %v579 = vrot.slane %v486, %v578
    %v580 = vlaneseq
    %v581 = vshrl.u32 %v580, 7
    %v582 = vsub.s32 6, %v581
    %v583 = vrot.slane %v486, %v582
    %v584 = vlaneseq
    %v585 = vshrl.u32 %v584, 7
    %v586 = vsub.s32 7, %v585
    %v587 = vrot.slane %v486, %v586
    %v588 = vlaneseq
    %v589 = vshrl.u32 %v588, 7
    %v590 = vsub.s32 0, %v589
    %v591 = vrot.slane %v487, %v590
    %v592 = vlaneseq
    %v593 = vshrl.u32 %v592, 7
    %v594 = vsub.s32 1, %v593
    %v595 = vrot.slane %v487, %v594
    %v596 = vlaneseq
    %v597 = vshrl.u32 %v596, 7
    %v598 = vsub.s32 2, %v597
    %v599 = vrot.slane %v487, %v598
    %v600 = vlaneseq
    %v601 = vshrl.u32 %v600, 7
    %v602 = vsub.s32 3, %v601
    %v603 = vrot.slane %v487, %v602
    %v604 = vlaneseq
    %v605 = vshrl.u32 %v604, 7
    %v606 = vsub.s32 4, %v605
    %v607 = vrot.slane %v487, %v606
    %v608 = vlaneseq
    %v609 = vshrl.u32 %v608, 7
    %v610 = vsub.s32 5, %v609
    %v611 = vrot.slane %v487, %v610
    %v612 = vlaneseq
    %v613 = vshrl.u32 %v612, 7
    %v614 = vsub.s32 6, %v613
    %v615 = vrot.slane %v487, %v614
    %v616 = vlaneseq
    %v617 = vshrl.u32 %v616, 7
    %v618 = vsub.s32 7, %v617
    %v619 = vrot.slane %v487, %v618
    %v652 = vmul.f32 %v470, %v495
    %v653 = vmul.f32 %v478, %v499
    %v654 = vmul.f32 %v477, %v503
    %v655 = vmul.f32 %v479, %v507
    %v656 = vmul.f32 %v470, %v511
    %v657 = vmul.f32 %v478, %v515
    %v658 = vmul.f32 %v477, %v519
    %v659 = vmul.f32 %v479, %v523
    %v660 = vmul.f32 %v470, %v527
    %v661 = vmul.f32 %v478, %v531
    %v662 = vmul.f32 %v477, %v535
    %v663 = vmul.f32 %v479, %v539
    %v664 = vmul.f32 %v470, %v543
    %v665 = vmul.f32 %v478, %v547
    %v666 = vmul.f32 %v477, %v551
    %v667 = vmul.f32 %v479, %v555
    %v668 = vmul.f32 %v470, %v559
    %v669 = vmul.f32 %v478, %v563
    %v670 = vmul.f32 %v477, %v567
    %v671 = vmul.f32 %v479, %v571
    %v672 = vmul.f32 %v470, %v575
    %v673 = vmul.f32 %v478, %v579
    %v674 = vmul.f32 %v477, %v583
    %v675 = vmul.f32 %v479, %v587
    %v676 = vmul.f32 %v470, %v591
    %v677 = vmul.f32 %v478, %v595
    %v678 = vmul.f32 %v477, %v599
    %v679 = vmul.f32 %v479, %v603
    %v680 = vmul.f32 %v470, %v607
    %v681 = vmul.f32 %v478, %v611
    %v682 = vmul.f32 %v477, %v615
    %v683 = vmul.f32 %v479, %v619
    %v684 = vld [vmem:[#allocation6] sm:$0xff]
    %v685 = vld [vmem:[#allocation6 + $0x8] sm:$0xff]
    %v686 = vld [vmem:[#allocation6 + $0x10] sm:$0xff]
    %v687 = vld [vmem:[#allocation6 + $0x18] sm:$0xff]
    %v688 = vld [vmem:[#allocation6 + $0x20] sm:$0xff]
    %v689 = vld [vmem:[#allocation6 + $0x28] sm:$0xff]
    %v690 = vld [vmem:[#allocation6 + $0x30] sm:$0xff]
    %v691 = vld [vmem:[#allocation6 + $0x38] sm:$0xff]
    %v692 = vld [vmem:[#allocation6 + $0x40] sm:$0xff]
    %v693 = vld [vmem:[#allocation6 + $0x48] sm:$0xff]
    %v694 = vld [vmem:[#allocation6 + $0x50] sm:$0xff]
    %v695 = vld [vmem:[#allocation6 + $0x58] sm:$0xff]
    %v696 = vld [vmem:[#allocation6 + $0x60] sm:$0xff]
    %v697 = vld [vmem:[#allocation6 + $0x68] sm:$0xff]
    %v698 = vld [vmem:[#allocation6 + $0x70] sm:$0xff]
    %v699 = vld [vmem:[#allocation6 + $0x78] sm:$0xff]
    %v700 = vld [vmem:[#allocation6 + $0x80] sm:$0xff]
    %v701 = vld [vmem:[#allocation6 + $0x88] sm:$0xff]
    %v702 = vld [vmem:[#allocation6 + $0x90] sm:$0xff]
    %v703 = vld [vmem:[#allocation6 + $0x98] sm:$0xff]
    %v704 = vld [vmem:[#allocation6 + $0xa0] sm:$0xff]
    %v705 = vld [vmem:[#allocation6 + $0xa8] sm:$0xff]
    %v706 = vld [vmem:[#allocation6 + $0xb0] sm:$0xff]
    %v707 = vld [vmem:[#allocation6 + $0xb8] sm:$0xff]
    %v708 = vld [vmem:[#allocation6 + $0xc0] sm:$0xff]
    %v709 = vld [vmem:[#allocation6 + $0xc8] sm:$0xff]
    %v710 = vld [vmem:[#allocation6 + $0xd0] sm:$0xff]
    %v711 = vld [vmem:[#allocation6 + $0xd8] sm:$0xff]
    %v712 = vld [vmem:[#allocation6 + $0xe0] sm:$0xff]
    %v713 = vld [vmem:[#allocation6 + $0xe8] sm:$0xff]
    %v714 = vld [vmem:[#allocation6 + $0xf0] sm:$0xff]
    %v715 = vld [vmem:[#allocation6 + $0xf8] sm:$0xff]
    %vm716 = vcmask 64512
    %v718 = vsel %vm716, %v461, 0
    %720 = vmatprep.subr.mxu0 %v685
    %721 = vmatpush1.msra.mxu0 %v684
    %722 = vmatprep.subr.mxu0 0.0
    %723 = vmatpush1.msra.mxu0 0.0
    %724 = vmatprep.subr.mxu0 0.0
    %725 = vmatpush1.msra.mxu0 0.0
    %726 = vmatprep.subr.mxu0 0.0
    %727 = vmatpush1.msra.mxu0 0.0
    %728 = vmatprep.subr.mxu0 0.0
    %729 = vmatpush1.msra.mxu0 0.0
    %730 = vmatprep.subr.mxu0 0.0
    %731 = vmatpush1.msra.mxu0 0.0
    %732 = vmatprep.subr.mxu0 0.0
    %733 = vmatpush1.msra.mxu0 0.0
    %734 = vmatprep.subr.mxu0 0.0
    %735 = vmatpush1.msra.mxu0 0.0
    %736 = vmatprep.subr.mxu0 0.0
    %737 = vmatpush1.msra.mxu0 0.0
    %738 = vmatprep.subr.mxu0 0.0
    %739 = vmatpush1.msra.mxu0 0.0
    %740 = vmatprep.subr.mxu0 0.0
    %741 = vmatpush1.msra.mxu0 0.0
    %742 = vmatprep.subr.mxu0 0.0
    %743 = vmatpush1.msra.mxu0 0.0
    %744 = vmatprep.subr.mxu0 0.0
    %745 = vmatpush1.msra.mxu0 0.0
    %746 = vmatprep.subr.mxu0 0.0
    %747 = vmatpush1.msra.mxu0 0.0
    %748 = vmatprep.subr.mxu0 0.0
    %749 = vmatpush1.msra.mxu0 0.0
    %750 = vmatprep.subr.mxu0 0.0
    %751 = vmatpush1.msra.mxu0 0.0
    %752 = vmatprep.subr.mxu0 0.0
    %753 = vmatpush1.msra.mxu0 0.0
    %754 = vmatprep.subr.mxu0 0.0
    %755 = vmatpush1.msra.mxu0 0.0
    %756 = vmatprep.subr.mxu0 0.0
    %757 = vmatpush1.msra.mxu0 0.0
    %758 = vmatprep.subr.mxu0 0.0
    %759 = vmatpush1.msra.mxu0 0.0
    %760 = vmatprep.subr.mxu0 0.0
    %761 = vmatpush1.msra.mxu0 0.0
    %762 = vmatprep.subr.mxu0 0.0
    %763 = vmatpush1.msra.mxu0 0.0
    %764 = vmatprep.subr.mxu0 0.0
    %765 = vmatpush1.msra.mxu0 0.0
    %766 = vmatprep.subr.mxu0 0.0
    %767 = vmatpush1.msra.mxu0 0.0
    %768 = vmatprep.subr.mxu0 0.0
    %769 = vmatpush1.msra.mxu0 0.0
    %770 = vmatprep.subr.mxu0 0.0
    %771 = vmatpush1.msra.mxu0 0.0
    %772 = vmatprep.subr.mxu0 0.0
    %773 = vmatpush1.msra.mxu0 0.0
    %774 = vmatprep.subr.mxu0 0.0
    %775 = vmatpush1.msra.mxu0 0.0
    %776 = vmatprep.subr.mxu0 0.0
    %777 = vmatpush1.msra.mxu0 0.0
    %778 = vmatprep.subr.mxu0 0.0
    %779 = vmatpush1.msra.mxu0 0.0
    %780 = vmatprep.subr.mxu0 0.0
    %781 = vmatpush1.msra.mxu0 0.0
    %782 = vmatprep.subr.mxu0 0.0
    %783 = vmatpush1.msra.mxu0 0.0
    %784 = vmatprep.mubr.f32.mxu0 0.0
    %785 = vmatmul.mubr.f32.gmra.mrb[0].mxu0 %v718
    %v786 = vpop.f32.mrb[0].mxu0
    %v787 = vadd.f32 0.0, %v786
    %v788 = vpop.f32.mrb[0].mxu0
    %v789 = vadd.f32 0.0, %v788
    %790 = vdwg.mxu0
    %791 = vmatprep.subr.mxu0 %v687
    %792 = vmatpush1.msra.mxu0 %v686
    %793 = vmatprep.subr.mxu0 0.0
    %794 = vmatpush1.msra.mxu0 0.0
    %795 = vmatprep.subr.mxu0 0.0
    %796 = vmatpush1.msra.mxu0 0.0
    %797 = vmatprep.subr.mxu0 0.0
    %798 = vmatpush1.msra.mxu0 0.0
    %799 = vmatprep.subr.mxu0 0.0
    %800 = vmatpush1.msra.mxu0 0.0
    %801 = vmatprep.subr.mxu0 0.0
    %802 = vmatpush1.msra.mxu0 0.0
    %803 = vmatprep.subr.mxu0 0.0
    %804 = vmatpush1.msra.mxu0 0.0
    %805 = vmatprep.subr.mxu0 0.0
    %806 = vmatpush1.msra.mxu0 0.0
    %807 = vmatprep.subr.mxu0 0.0
    %808 = vmatpush1.msra.mxu0 0.0
    %809 = vmatprep.subr.mxu0 0.0
    %810 = vmatpush1.msra.mxu0 0.0
    %811 = vmatprep.subr.mxu0 0.0
    %812 = vmatpush1.msra.mxu0 0.0
    %813 = vmatprep.subr.mxu0 0.0
    %814 = vmatpush1.msra.mxu0 0.0
    %815 = vmatprep.subr.mxu0 0.0
    %816 = vmatpush1.msra.mxu0 0.0
    %817 = vmatprep.subr.mxu0 0.0
    %818 = vmatpush1.msra.mxu0 0.0
    %819 = vmatprep.subr.mxu0 0.0
    %820 = vmatpush1.msra.mxu0 0.0
    %821 = vmatprep.subr.mxu0 0.0
    %822 = vmatpush1.msra.mxu0 0.0
    %823 = vmatprep.subr.mxu0 0.0
    %824 = vmatpush1.msra.mxu0 0.0
    %825 = vmatprep.subr.mxu0 0.0
    %826 = vmatpush1.msra.mxu0 0.0
    %827 = vmatprep.subr.mxu0 0.0
    %828 = vmatpush1.msra.mxu0 0.0
    %829 = vmatprep.subr.mxu0 0.0
    %830 = vmatpush1.msra.mxu0 0.0
    %831 = vmatprep.subr.mxu0 0.0
    %832 = vmatpush1.msra.mxu0 0.0
    %833 = vmatprep.subr.mxu0 0.0
    %834 = vmatpush1.msra.mxu0 0.0
    %835 = vmatprep.subr.mxu0 0.0
    %836 = vmatpush1.msra.mxu0 0.0
    %837 = vmatprep.subr.mxu0 0.0
    %838 = vmatpush1.msra.mxu0 0.0
    %839 = vmatprep.subr.mxu0 0.0
    %840 = vmatpush1.msra.mxu0 0.0
    %841 = vmatprep.subr.mxu0 0.0
    %842 = vmatpush1.msra.mxu0 0.0
    %843 = vmatprep.subr.mxu0 0.0
    %844 = vmatpush1.msra.mxu0 0.0
    %845 = vmatprep.subr.mxu0 0.0
    %846 = vmatpush1.msra.mxu0 0.0
    %847 = vmatprep.subr.mxu0 0.0
    %848 = vmatpush1.msra.mxu0 0.0
    %849 = vmatprep.subr.mxu0 0.0
    %850 = vmatpush1.msra.mxu0 0.0
    %851 = vmatprep.subr.mxu0 0.0
    %852 = vmatpush1.msra.mxu0 0.0
    %853 = vmatprep.subr.mxu0 0.0
    %854 = vmatpush1.msra.mxu0 0.0
    %855 = vmatprep.mubr.f32.mxu0 0.0
    %856 = vmatmul.mubr.f32.gmra.mrb[0].mxu0 %v718
    %v857 = vpop.f32.mrb[0].mxu0
    %v858 = vadd.f32 0.0, %v857
    %v859 = vpop.f32.mrb[0].mxu0
    %v860 = vadd.f32 0.0, %v859
    %861 = vdwg.mxu0
    %862 = vmatprep.subr.mxu0 %v689
    %863 = vmatpush1.msra.mxu0 %v688
    %864 = vmatprep.subr.mxu0 0.0
    %865 = vmatpush1.msra.mxu0 0.0
    %866 = vmatprep.subr.mxu0 0.0
    %867 = vmatpush1.msra.mxu0 0.0
    %868 = vmatprep.subr.mxu0 0.0
    %869 = vmatpush1.msra.mxu0 0.0
    %870 = vmatprep.subr.mxu0 0.0
    %871 = vmatpush1.msra.mxu0 0.0
    %872 = vmatprep.subr.mxu0 0.0
    %873 = vmatpush1.msra.mxu0 0.0
    %874 = vmatprep.subr.mxu0 0.0
    %875 = vmatpush1.msra.mxu0 0.0
    %876 = vmatprep.subr.mxu0 0.0
    %877 = vmatpush1.msra.mxu0 0.0
    %878 = vmatprep.subr.mxu0 0.0
    %879 = vmatpush1.msra.mxu0 0.0
    %880 = vmatprep.subr.mxu0 0.0
    %881 = vmatpush1.msra.mxu0 0.0
    %882 = vmatprep.subr.mxu0 0.0
    %883 = vmatpush1.msra.mxu0 0.0
    %884 = vmatprep.subr.mxu0 0.0
    %885 = vmatpush1.msra.mxu0 0.0
    %886 = vmatprep.subr.mxu0 0.0
    %887 = vmatpush1.msra.mxu0 0.0
    %888 = vmatprep.subr.mxu0 0.0
    %889 = vmatpush1.msra.mxu0 0.0
    %890 = vmatprep.subr.mxu0 0.0
    %891 = vmatpush1.msra.mxu0 0.0
    %892 = vmatprep.subr.mxu0 0.0
    %893 = vmatpush1.msra.mxu0 0.0
    %894 = vmatprep.subr.mxu0 0.0
    %895 = vmatpush1.msra.mxu0 0.0
    %896 = vmatprep.subr.mxu0 0.0
    %897 = vmatpush1.msra.mxu0 0.0
    %898 = vmatprep.subr.mxu0 0.0
    %899 = vmatpush1.msra.mxu0 0.0
    %900 = vmatprep.subr.mxu0 0.0
    %901 = vmatpush1.msra.mxu0 0.0
    %902 = vmatprep.subr.mxu0 0.0
    %903 = vmatpush1.msra.mxu0 0.0
    %904 = vmatprep.subr.mxu0 0.0
    %905 = vmatpush1.msra.mxu0 0.0
    %906 = vmatprep.subr.mxu0 0.0
    %907 = vmatpush1.msra.mxu0 0.0
    %908 = vmatprep.subr.mxu0 0.0
    %909 = vmatpush1.msra.mxu0 0.0
    %910 = vmatprep.subr.mxu0 0.0
    %911 = vmatpush1.msra.mxu0 0.0
    %912 = vmatprep.subr.mxu0 0.0
    %913 = vmatpush1.msra.mxu0 0.0
    %914 = vmatprep.subr.mxu0 0.0
    %915 = vmatpush1.msra.mxu0 0.0
    %916 = vmatprep.subr.mxu0 0.0
    %917 = vmatpush1.msra.mxu0 0.0
    %918 = vmatprep.subr.mxu0 0.0
    %919 = vmatpush1.msra.mxu0 0.0
    %920 = vmatprep.subr.mxu0 0.0
    %921 = vmatpush1.msra.mxu0 0.0
    %922 = vmatprep.subr.mxu0 0.0
    %923 = vmatpush1.msra.mxu0 0.0
    %924 = vmatprep.subr.mxu0 0.0
    %925 = vmatpush1.msra.mxu0 0.0
    %926 = vmatprep.mubr.f32.mxu0 0.0
    %927 = vmatmul.mubr.f32.gmra.mrb[0].mxu0 %v718
    %v928 = vpop.f32.mrb[0].mxu0
    %v929 = vadd.f32 0.0, %v928
    %v930 = vpop.f32.mrb[0].mxu0
    %v931 = vadd.f32 0.0, %v930
    %932 = vdwg.mxu0
    %933 = vmatprep.subr.mxu0 %v691
    %934 = vmatpush1.msra.mxu0 %v690
    %935 = vmatprep.subr.mxu0 0.0
    %936 = vmatpush1.msra.mxu0 0.0
    %937 = vmatprep.subr.mxu0 0.0
    %938 = vmatpush1.msra.mxu0 0.0
    %939 = vmatprep.subr.mxu0 0.0
    %940 = vmatpush1.msra.mxu0 0.0
    %941 = vmatprep.subr.mxu0 0.0
    %942 = vmatpush1.msra.mxu0 0.0
    %943 = vmatprep.subr.mxu0 0.0
    %944 = vmatpush1.msra.mxu0 0.0
    %945 = vmatprep.subr.mxu0 0.0
    %946 = vmatpush1.msra.mxu0 0.0
    %947 = vmatprep.subr.mxu0 0.0
    %948 = vmatpush1.msra.mxu0 0.0
    %949 = vmatprep.subr.mxu0 0.0
    %950 = vmatpush1.msra.mxu0 0.0
    %951 = vmatprep.subr.mxu0 0.0
    %952 = vmatpush1.msra.mxu0 0.0
    %953 = vmatprep.subr.mxu0 0.0
    %954 = vmatpush1.msra.mxu0 0.0
    %955 = vmatprep.subr.mxu0 0.0
    %956 = vmatpush1.msra.mxu0 0.0
    %957 = vmatprep.subr.mxu0 0.0
    %958 = vmatpush1.msra.mxu0 0.0
    %959 = vmatprep.subr.mxu0 0.0
    %960 = vmatpush1.msra.mxu0 0.0
    %961 = vmatprep.subr.mxu0 0.0
    %962 = vmatpush1.msra.mxu0 0.0
    %963 = vmatprep.subr.mxu0 0.0
    %964 = vmatpush1.msra.mxu0 0.0
    %965 = vmatprep.subr.mxu0 0.0
    %966 = vmatpush1.msra.mxu0 0.0
    %967 = vmatprep.subr.mxu0 0.0
    %968 = vmatpush1.msra.mxu0 0.0
    %969 = vmatprep.subr.mxu0 0.0
    %970 = vmatpush1.msra.mxu0 0.0
    %971 = vmatprep.subr.mxu0 0.0
    %972 = vmatpush1.msra.mxu0 0.0
    %973 = vmatprep.subr.mxu0 0.0
    %974 = vmatpush1.msra.mxu0 0.0
    %975 = vmatprep.subr.mxu0 0.0
    %976 = vmatpush1.msra.mxu0 0.0
    %977 = vmatprep.subr.mxu0 0.0
    %978 = vmatpush1.msra.mxu0 0.0
    %979 = vmatprep.subr.mxu0 0.0
    %980 = vmatpush1.msra.mxu0 0.0
    %981 = vmatprep.subr.mxu0 0.0
    %982 = vmatpush1.msra.mxu0 0.0
    %983 = vmatprep.subr.mxu0 0.0
    %984 = vmatpush1.msra.mxu0 0.0
    %985 = vmatprep.subr.mxu0 0.0
    %986 = vmatpush1.msra.mxu0 0.0
    %987 = vmatprep.subr.mxu0 0.0
    %988 = vmatpush1.msra.mxu0 0.0
    %989 = vmatprep.subr.mxu0 0.0
    %990 = vmatpush1.msra.mxu0 0.0
    %991 = vmatprep.subr.mxu0 0.0
    %992 = vmatpush1.msra.mxu0 0.0
    %993 = vmatprep.subr.mxu0 0.0
    %994 = vmatpush1.msra.mxu0 0.0
    %995 = vmatprep.subr.mxu0 0.0
    %996 = vmatpush1.msra.mxu0 0.0
    %997 = vmatprep.mubr.f32.mxu0 0.0
    %998 = vmatmul.mubr.f32.gmra.mrb[0].mxu0 %v718
    %v999 = vpop.f32.mrb[0].mxu0
    %v1000 = vadd.f32 0.0, %v999
    %v1001 = vpop.f32.mrb[0].mxu0
    %v1002 = vadd.f32 0.0, %v1001
    %1003 = vdwg.mxu0
    %1004 = vmatprep.subr.mxu0 %v693
    %1005 = vmatpush1.msra.mxu0 %v692
    %1006 = vmatprep.subr.mxu0 0.0
    %1007 = vmatpush1.msra.mxu0 0.0
    %1008 = vmatprep.subr.mxu0 0.0
    %1009 = vmatpush1.msra.mxu0 0.0
    %1010 = vmatprep.subr.mxu0 0.0
    %1011 = vmatpush1.msra.mxu0 0.0
    %1012 = vmatprep.subr.mxu0 0.0
    %1013 = vmatpush1.msra.mxu0 0.0
    %1014 = vmatprep.subr.mxu0 0.0
    %1015 = vmatpush1.msra.mxu0 0.0
    %1016 = vmatprep.subr.mxu0 0.0
    %1017 = vmatpush1.msra.mxu0 0.0
    %1018 = vmatprep.subr.mxu0 0.0
    %1019 = vmatpush1.msra.mxu0 0.0
    %1020 = vmatprep.subr.mxu0 0.0
    %1021 = vmatpush1.msra.mxu0 0.0
    %1022 = vmatprep.subr.mxu0 0.0
    %1023 = vmatpush1.msra.mxu0 0.0
    %1024 = vmatprep.subr.mxu0 0.0
    %1025 = vmatpush1.msra.mxu0 0.0
    %1026 = vmatprep.subr.mxu0 0.0
    %1027 = vmatpush1.msra.mxu0 0.0
    %1028 = vmatprep.subr.mxu0 0.0
    %1029 = vmatpush1.msra.mxu0 0.0
    %1030 = vmatprep.subr.mxu0 0.0
    %1031 = vmatpush1.msra.mxu0 0.0
    %1032 = vmatprep.subr.mxu0 0.0
    %1033 = vmatpush1.msra.mxu0 0.0
    %1034 = vmatprep.subr.mxu0 0.0
    %1035 = vmatpush1.msra.mxu0 0.0
    %1036 = vmatprep.subr.mxu0 0.0
    %1037 = vmatpush1.msra.mxu0 0.0
    %1038 = vmatprep.subr.mxu0 0.0
    %1039 = vmatpush1.msra.mxu0 0.0
    %1040 = vmatprep.subr.mxu0 0.0
    %1041 = vmatpush1.msra.mxu0 0.0
    %1042 = vmatprep.subr.mxu0 0.0
    %1043 = vmatpush1.msra.mxu0 0.0
    %1044 = vmatprep.subr.mxu0 0.0
    %1045 = vmatpush1.msra.mxu0 0.0
    %1046 = vmatprep.subr.mxu0 0.0
    %1047 = vmatpush1.msra.mxu0 0.0
    %1048 = vmatprep.subr.mxu0 0.0
    %1049 = vmatpush1.msra.mxu0 0.0
    %1050 = vmatprep.subr.mxu0 0.0
    %1051 = vmatpush1.msra.mxu0 0.0
    %1052 = vmatprep.subr.mxu0 0.0
    %1053 = vmatpush1.msra.mxu0 0.0
    %1054 = vmatprep.subr.mxu0 0.0
    %1055 = vmatpush1.msra.mxu0 0.0
    %1056 = vmatprep.subr.mxu0 0.0
    %1057 = vmatpush1.msra.mxu0 0.0
    %1058 = vmatprep.subr.mxu0 0.0
    %1059 = vmatpush1.msra.mxu0 0.0
    %1060 = vmatprep.subr.mxu0 0.0
    %1061 = vmatpush1.msra.mxu0 0.0
    %1062 = vmatprep.subr.mxu0 0.0
    %1063 = vmatpush1.msra.mxu0 0.0
    %1064 = vmatprep.subr.mxu0 0.0
    %1065 = vmatpush1.msra.mxu0 0.0
    %1066 = vmatprep.subr.mxu0 0.0
    %1067 = vmatpush1.msra.mxu0 0.0
    %1068 = vmatprep.mubr.f32.mxu0 0.0
    %1069 = vmatmul.mubr.f32.gmra.mrb[0].mxu0 %v718
    %v1070 = vpop.f32.mrb[0].mxu0
    %v1071 = vadd.f32 0.0, %v1070
    %v1072 = vpop.f32.mrb[0].mxu0
    %v1073 = vadd.f32 0.0, %v1072
    %1074 = vdwg.mxu0
    %1075 = vmatprep.subr.mxu0 %v695
    %1076 = vmatpush1.msra.mxu0 %v694
    %1077 = vmatprep.subr.mxu0 0.0
    %1078 = vmatpush1.msra.mxu0 0.0
    %1079 = vmatprep.subr.mxu0 0.0
    %1080 = vmatpush1.msra.mxu0 0.0
    %1081 = vmatprep.subr.mxu0 0.0
    %1082 = vmatpush1.msra.mxu0 0.0
    %1083 = vmatprep.subr.mxu0 0.0
    %1084 = vmatpush1.msra.mxu0 0.0
    %1085 = vmatprep.subr.mxu0 0.0
    %1086 = vmatpush1.msra.mxu0 0.0
    %1087 = vmatprep.subr.mxu0 0.0
    %1088 = vmatpush1.msra.mxu0 0.0
    %1089 = vmatprep.subr.mxu0 0.0
    %1090 = vmatpush1.msra.mxu0 0.0
    %1091 = vmatprep.subr.mxu0 0.0
    %1092 = vmatpush1.msra.mxu0 0.0
    %1093 = vmatprep.subr.mxu0 0.0
    %1094 = vmatpush1.msra.mxu0 0.0
    %1095 = vmatprep.subr.mxu0 0.0
    %1096 = vmatpush1.msra.mxu0 0.0
    %1097 = vmatprep.subr.mxu0 0.0
    %1098 = vmatpush1.msra.mxu0 0.0
    %1099 = vmatprep.subr.mxu0 0.0
    %1100 = vmatpush1.msra.mxu0 0.0
    %1101 = vmatprep.subr.mxu0 0.0
    %1102 = vmatpush1.msra.mxu0 0.0
    %1103 = vmatprep.subr.mxu0 0.0
    %1104 = vmatpush1.msra.mxu0 0.0
    %1105 = vmatprep.subr.mxu0 0.0
    %1106 = vmatpush1.msra.mxu0 0.0
    %1107 = vmatprep.subr.mxu0 0.0
    %1108 = vmatpush1.msra.mxu0 0.0
    %1109 = vmatprep.subr.mxu0 0.0
    %1110 = vmatpush1.msra.mxu0 0.0
    %1111 = vmatprep.subr.mxu0 0.0
    %1112 = vmatpush1.msra.mxu0 0.0
    %1113 = vmatprep.subr.mxu0 0.0
    %1114 = vmatpush1.msra.mxu0 0.0
    %1115 = vmatprep.subr.mxu0 0.0
    %1116 = vmatpush1.msra.mxu0 0.0
    %1117 = vmatprep.subr.mxu0 0.0
    %1118 = vmatpush1.msra.mxu0 0.0
    %1119 = vmatprep.subr.mxu0 0.0
    %1120 = vmatpush1.msra.mxu0 0.0
    %1121 = vmatprep.subr.mxu0 0.0
    %1122 = vmatpush1.msra.mxu0 0.0
    %1123 = vmatprep.subr.mxu0 0.0
    %1124 = vmatpush1.msra.mxu0 0.0
    %1125 = vmatprep.subr.mxu0 0.0
    %1126 = vmatpush1.msra.mxu0 0.0
    %1127 = vmatprep.subr.mxu0 0.0
    %1128 = vmatpush1.msra.mxu0 0.0
    %1129 = vmatprep.subr.mxu0 0.0
    %1130 = vmatpush1.msra.mxu0 0.0
    %1131 = vmatprep.subr.mxu0 0.0
    %1132 = vmatpush1.msra.mxu0 0.0
    %1133 = vmatprep.subr.mxu0 0.0
    %1134 = vmatpush1.msra.mxu0 0.0
    %1135 = vmatprep.subr.mxu0 0.0
    %1136 = vmatpush1.msra.mxu0 0.0
    %1137 = vmatprep.subr.mxu0 0.0
    %1138 = vmatpush1.msra.mxu0 0.0
    %1139 = vmatprep.mubr.f32.mxu0 0.0
    %1140 = vmatmul.mubr.f32.gmra.mrb[0].mxu0 %v718
    %v1141 = vpop.f32.mrb[0].mxu0
    %v1142 = vadd.f32 0.0, %v1141
    %v1143 = vpop.f32.mrb[0].mxu0
    %v1144 = vadd.f32 0.0, %v1143
    %1145 = vdwg.mxu0
    %1146 = vmatprep.subr.mxu0 %v697
    %1147 = vmatpush1.msra.mxu0 %v696
    %1148 = vmatprep.subr.mxu0 0.0
    %1149 = vmatpush1.msra.mxu0 0.0
    %1150 = vmatprep.subr.mxu0 0.0
    %1151 = vmatpush1.msra.mxu0 0.0
    %1152 = vmatprep.subr.mxu0 0.0
    %1153 = vmatpush1.msra.mxu0 0.0
    %1154 = vmatprep.subr.mxu0 0.0
    %1155 = vmatpush1.msra.mxu0 0.0
    %1156 = vmatprep.subr.mxu0 0.0
    %1157 = vmatpush1.msra.mxu0 0.0
    %1158 = vmatprep.subr.mxu0 0.0
    %1159 = vmatpush1.msra.mxu0 0.0
    %1160 = vmatprep.subr.mxu0 0.0
    %1161 = vmatpush1.msra.mxu0 0.0
    %1162 = vmatprep.subr.mxu0 0.0
    %1163 = vmatpush1.msra.mxu0 0.0
    %1164 = vmatprep.subr.mxu0 0.0
    %1165 = vmatpush1.msra.mxu0 0.0
    %1166 = vmatprep.subr.mxu0 0.0
    %1167 = vmatpush1.msra.mxu0 0.0
    %1168 = vmatprep.subr.mxu0 0.0
    %1169 = vmatpush1.msra.mxu0 0.0
    %1170 = vmatprep.subr.mxu0 0.0
    %1171 = vmatpush1.msra.mxu0 0.0
    %1172 = vmatprep.subr.mxu0 0.0
    %1173 = vmatpush1.msra.mxu0 0.0
    %1174 = vmatprep.subr.mxu0 0.0
    %1175 = vmatpush1.msra.mxu0 0.0
    %1176 = vmatprep.subr.mxu0 0.0
    %1177 = vmatpush1.msra.mxu0 0.0
    %1178 = vmatprep.subr.mxu0 0.0
    %1179 = vmatpush1.msra.mxu0 0.0
    %1180 = vmatprep.subr.mxu0 0.0
    %1181 = vmatpush1.msra.mxu0 0.0
    %1182 = vmatprep.subr.mxu0 0.0
    %1183 = vmatpush1.msra.mxu0 0.0
    %1184 = vmatprep.subr.mxu0 0.0
    %1185 = vmatpush1.msra.mxu0 0.0
    %1186 = vmatprep.subr.mxu0 0.0
    %1187 = vmatpush1.msra.mxu0 0.0
    %1188 = vmatprep.subr.mxu0 0.0
    %1189 = vmatpush1.msra.mxu0 0.0
    %1190 = vmatprep.subr.mxu0 0.0
    %1191 = vmatpush1.msra.mxu0 0.0
    %1192 = vmatprep.subr.mxu0 0.0
    %1193 = vmatpush1.msra.mxu0 0.0
    %1194 = vmatprep.subr.mxu0 0.0
    %1195 = vmatpush1.msra.mxu0 0.0
    %1196 = vmatprep.subr.mxu0 0.0
    %1197 = vmatpush1.msra.mxu0 0.0
    %1198 = vmatprep.subr.mxu0 0.0
    %1199 = vmatpush1.msra.mxu0 0.0
    %1200 = vmatprep.subr.mxu0 0.0
    %1201 = vmatpush1.msra.mxu0 0.0
    %1202 = vmatprep.subr.mxu0 0.0
    %1203 = vmatpush1.msra.mxu0 0.0
    %1204 = vmatprep.subr.mxu0 0.0
    %1205 = vmatpush1.msra.mxu0 0.0
    %1206 = vmatprep.subr.mxu0 0.0
    %1207 = vmatpush1.msra.mxu0 0.0
    %1208 = vmatprep.subr.mxu0 0.0
    %1209 = vmatpush1.msra.mxu0 0.0
    %1210 = vmatprep.mubr.f32.mxu0 0.0
    %1211 = vmatmul.mubr.f32.gmra.mrb[0].mxu0 %v718
    %v1212 = vpop.f32.mrb[0].mxu0
    %v1213 = vadd.f32 0.0, %v1212
    %v1214 = vpop.f32.mrb[0].mxu0
    %v1215 = vadd.f32 0.0, %v1214
    %1216 = vdwg.mxu0
    %1217 = vmatprep.subr.mxu0 %v699
    %1218 = vmatpush1.msra.mxu0 %v698
    %1219 = vmatprep.subr.mxu0 0.0
    %1220 = vmatpush1.msra.mxu0 0.0
    %1221 = vmatprep.subr.mxu0 0.0
    %1222 = vmatpush1.msra.mxu0 0.0
    %1223 = vmatprep.subr.mxu0 0.0
    %1224 = vmatpush1.msra.mxu0 0.0
    %1225 = vmatprep.subr.mxu0 0.0
    %1226 = vmatpush1.msra.mxu0 0.0
    %1227 = vmatprep.subr.mxu0 0.0
    %1228 = vmatpush1.msra.mxu0 0.0
    %1229 = vmatprep.subr.mxu0 0.0
    %1230 = vmatpush1.msra.mxu0 0.0
    %1231 = vmatprep.subr.mxu0 0.0
    %1232 = vmatpush1.msra.mxu0 0.0
    %1233 = vmatprep.subr.mxu0 0.0
    %1234 = vmatpush1.msra.mxu0 0.0
    %1235 = vmatprep.subr.mxu0 0.0
    %1236 = vmatpush1.msra.mxu0 0.0
    %1237 = vmatprep.subr.mxu0 0.0
    %1238 = vmatpush1.msra.mxu0 0.0
    %1239 = vmatprep.subr.mxu0 0.0
    %1240 = vmatpush1.msra.mxu0 0.0
    %1241 = vmatprep.subr.mxu0 0.0
    %1242 = vmatpush1.msra.mxu0 0.0
    %1243 = vmatprep.subr.mxu0 0.0
    %1244 = vmatpush1.msra.mxu0 0.0
    %1245 = vmatprep.subr.mxu0 0.0
    %1246 = vmatpush1.msra.mxu0 0.0
    %1247 = vmatprep.subr.mxu0 0.0
    %1248 = vmatpush1.msra.mxu0 0.0
    %1249 = vmatprep.subr.mxu0 0.0
    %1250 = vmatpush1.msra.mxu0 0.0
    %1251 = vmatprep.subr.mxu0 0.0
    %1252 = vmatpush1.msra.mxu0 0.0
    %1253 = vmatprep.subr.mxu0 0.0
    %1254 = vmatpush1.msra.mxu0 0.0
    %1255 = vmatprep.subr.mxu0 0.0
    %1256 = vmatpush1.msra.mxu0 0.0
    %1257 = vmatprep.subr.mxu0 0.0
    %1258 = vmatpush1.msra.mxu0 0.0
    %1259 = vmatprep.subr.mxu0 0.0
    %1260 = vmatpush1.msra.mxu0 0.0
    %1261 = vmatprep.subr.mxu0 0.0
    %1262 = vmatpush1.msra.mxu0 0.0
    %1263 = vmatprep.subr.mxu0 0.0
    %1264 = vmatpush1.msra.mxu0 0.0
    %1265 = vmatprep.subr.mxu0 0.0
    %1266 = vmatpush1.msra.mxu0 0.0
    %1267 = vmatprep.subr.mxu0 0.0
    %1268 = vmatpush1.msra.mxu0 0.0
    %1269 = vmatprep.subr.mxu0 0.0
    %1270 = vmatpush1.msra.mxu0 0.0
    %1271 = vmatprep.subr.mxu0 0.0
    %1272 = vmatpush1.msra.mxu0 0.0
    %1273 = vmatprep.subr.mxu0 0.0
    %1274 = vmatpush1.msra.mxu0 0.0
    %1275 = vmatprep.subr.mxu0 0.0
    %1276 = vmatpush1.msra.mxu0 0.0
    %1277 = vmatprep.subr.mxu0 0.0
    %1278 = vmatpush1.msra.mxu0 0.0
    %1279 = vmatprep.subr.mxu0 0.0
    %1280 = vmatpush1.msra.mxu0 0.0
    %1281 = vmatprep.mubr.f32.mxu0 0.0
    %1282 = vmatmul.mubr.f32.gmra.mrb[0].mxu0 %v718
    %v1283 = vpop.f32.mrb[0].mxu0
    %v1284 = vadd.f32 0.0, %v1283
    %v1285 = vpop.f32.mrb[0].mxu0
    %v1286 = vadd.f32 0.0, %v1285
    %1287 = vdwg.mxu0
    %1288 = vmatprep.subr.mxu0 %v701
    %1289 = vmatpush1.msra.mxu0 %v700
    %1290 = vmatprep.subr.mxu0 0.0
    %1291 = vmatpush1.msra.mxu0 0.0
    %1292 = vmatprep.subr.mxu0 0.0
    %1293 = vmatpush1.msra.mxu0 0.0
    %1294 = vmatprep.subr.mxu0 0.0
    %1295 = vmatpush1.msra.mxu0 0.0
    %1296 = vmatprep.subr.mxu0 0.0
    %1297 = vmatpush1.msra.mxu0 0.0
    %1298 = vmatprep.subr.mxu0 0.0
    %1299 = vmatpush1.msra.mxu0 0.0
    %1300 = vmatprep.subr.mxu0 0.0
    %1301 = vmatpush1.msra.mxu0 0.0
    %1302 = vmatprep.subr.mxu0 0.0
    %1303 = vmatpush1.msra.mxu0 0.0
    %1304 = vmatprep.subr.mxu0 0.0
    %1305 = vmatpush1.msra.mxu0 0.0
    %1306 = vmatprep.subr.mxu0 0.0
    %1307 = vmatpush1.msra.mxu0 0.0
    %1308 = vmatprep.subr.mxu0 0.0
    %1309 = vmatpush1.msra.mxu0 0.0
    %1310 = vmatprep.subr.mxu0 0.0
    %1311 = vmatpush1.msra.mxu0 0.0
    %1312 = vmatprep.subr.mxu0 0.0
    %1313 = vmatpush1.msra.mxu0 0.0
    %1314 = vmatprep.subr.mxu0 0.0
    %1315 = vmatpush1.msra.mxu0 0.0
    %1316 = vmatprep.subr.mxu0 0.0
    %1317 = vmatpush1.msra.mxu0 0.0
    %1318 = vmatprep.subr.mxu0 0.0
    %1319 = vmatpush1.msra.mxu0 0.0
    %1320 = vmatprep.subr.mxu0 0.0
    %1321 = vmatpush1.msra.mxu0 0.0
    %1322 = vmatprep.subr.mxu0 0.0
    %1323 = vmatpush1.msra.mxu0 0.0
    %1324 = vmatprep.subr.mxu0 0.0
    %1325 = vmatpush1.msra.mxu0 0.0
    %1326 = vmatprep.subr.mxu0 0.0
    %1327 = vmatpush1.msra.mxu0 0.0
    %1328 = vmatprep.subr.mxu0 0.0
    %1329 = vmatpush1.msra.mxu0 0.0
    %1330 = vmatprep.subr.mxu0 0.0
    %1331 = vmatpush1.msra.mxu0 0.0
    %1332 = vmatprep.subr.mxu0 0.0
    %1333 = vmatpush1.msra.mxu0 0.0
    %1334 = vmatprep.subr.mxu0 0.0
    %1335 = vmatpush1.msra.mxu0 0.0
    %1336 = vmatprep.subr.mxu0 0.0
    %1337 = vmatpush1.msra.mxu0 0.0
    %1338 = vmatprep.subr.mxu0 0.0
    %1339 = vmatpush1.msra.mxu0 0.0
    %1340 = vmatprep.subr.mxu0 0.0
    %1341 = vmatpush1.msra.mxu0 0.0
    %1342 = vmatprep.subr.mxu0 0.0
    %1343 = vmatpush1.msra.mxu0 0.0
    %1344 = vmatprep.subr.mxu0 0.0
    %1345 = vmatpush1.msra.mxu0 0.0
    %1346 = vmatprep.subr.mxu0 0.0
    %1347 = vmatpush1.msra.mxu0 0.0
    %1348 = vmatprep.subr.mxu0 0.0
    %1349 = vmatpush1.msra.mxu0 0.0
    %1350 = vmatprep.subr.mxu0 0.0
    %1351 = vmatpush1.msra.mxu0 0.0
    %1352 = vmatprep.mubr.f32.mxu0 0.0
    %1353 = vmatmul.mubr.f32.gmra.mrb[0].mxu0 %v718
    %v1354 = vpop.f32.mrb[0].mxu0
    %v1355 = vadd.f32 0.0, %v1354
    %v1356 = vpop.f32.mrb[0].mxu0
    %v1357 = vadd.f32 0.0, %v1356
    %1358 = vdwg.mxu0
    %1359 = vmatprep.subr.mxu0 %v703
    %1360 = vmatpush1.msra.mxu0 %v702
    %1361 = vmatprep.subr.mxu0 0.0
    %1362 = vmatpush1.msra.mxu0 0.0
    %1363 = vmatprep.subr.mxu0 0.0
    %1364 = vmatpush1.msra.mxu0 0.0
    %1365 = vmatprep.subr.mxu0 0.0
    %1366 = vmatpush1.msra.mxu0 0.0
    %1367 = vmatprep.subr.mxu0 0.0
    %1368 = vmatpush1.msra.mxu0 0.0
    %1369 = vmatprep.subr.mxu0 0.0
    %1370 = vmatpush1.msra.mxu0 0.0
    %1371 = vmatprep.subr.mxu0 0.0
    %1372 = vmatpush1.msra.mxu0 0.0
    %1373 = vmatprep.subr.mxu0 0.0
    %1374 = vmatpush1.msra.mxu0 0.0
    %1375 = vmatprep.subr.mxu0 0.0
    %1376 = vmatpush1.msra.mxu0 0.0
    %1377 = vmatprep.subr.mxu0 0.0
    %1378 = vmatpush1.msra.mxu0 0.0
    %1379 = vmatprep.subr.mxu0 0.0
    %1380 = vmatpush1.msra.mxu0 0.0
    %1381 = vmatprep.subr.mxu0 0.0
    %1382 = vmatpush1.msra.mxu0 0.0
    %1383 = vmatprep.subr.mxu0 0.0
    %1384 = vmatpush1.msra.mxu0 0.0
    %1385 = vmatprep.subr.mxu0 0.0
    %1386 = vmatpush1.msra.mxu0 0.0
    %1387 = vmatprep.subr.mxu0 0.0
    %1388 = vmatpush1.msra.mxu0 0.0
    %1389 = vmatprep.subr.mxu0 0.0
    %1390 = vmatpush1.msra.mxu0 0.0
    %1391 = vmatprep.subr.mxu0 0.0
    %1392 = vmatpush1.msra.mxu0 0.0
    %1393 = vmatprep.subr.mxu0 0.0
    %1394 = vmatpush1.msra.mxu0 0.0
    %1395 = vmatprep.subr.mxu0 0.0
    %1396 = vmatpush1.msra.mxu0 0.0
    %1397 = vmatprep.subr.mxu0 0.0
    %1398 = vmatpush1.msra.mxu0 0.0
    %1399 = vmatprep.subr.mxu0 0.0
    %1400 = vmatpush1.msra.mxu0 0.0
    %1401 = vmatprep.subr.mxu0 0.0
    %1402 = vmatpush1.msra.mxu0 0.0
    %1403 = vmatprep.subr.mxu0 0.0
    %1404 = vmatpush1.msra.mxu0 0.0
    %1405 = vmatprep.subr.mxu0 0.0
    %1406 = vmatpush1.msra.mxu0 0.0
    %1407 = vmatprep.subr.mxu0 0.0
    %1408 = vmatpush1.msra.mxu0 0.0
    %1409 = vmatprep.subr.mxu0 0.0
    %1410 = vmatpush1.msra.mxu0 0.0
    %1411 = vmatprep.subr.mxu0 0.0
    %1412 = vmatpush1.msra.mxu0 0.0
    %1413 = vmatprep.subr.mxu0 0.0
    %1414 = vmatpush1.msra.mxu0 0.0
    %1415 = vmatprep.subr.mxu0 0.0
    %1416 = vmatpush1.msra.mxu0 0.0
    %1417 = vmatprep.subr.mxu0 0.0
    %1418 = vmatpush1.msra.mxu0 0.0
    %1419 = vmatprep.subr.mxu0 0.0
    %1420 = vmatpush1.msra.mxu0 0.0
    %1421 = vmatprep.subr.mxu0 0.0
    %1422 = vmatpush1.msra.mxu0 0.0
    %1423 = vmatprep.mubr.f32.mxu0 0.0
    %1424 = vmatmul.mubr.f32.gmra.mrb[0].mxu0 %v718
    %v1425 = vpop.f32.mrb[0].mxu0
    %v1426 = vadd.f32 0.0, %v1425
    %v1427 = vpop.f32.mrb[0].mxu0
    %v1428 = vadd.f32 0.0, %v1427
    %1429 = vdwg.mxu0
    %1430 = vmatprep.subr.mxu0 %v705
    %1431 = vmatpush1.msra.mxu0 %v704
    %1432 = vmatprep.subr.mxu0 0.0
    %1433 = vmatpush1.msra.mxu0 0.0
    %1434 = vmatprep.subr.mxu0 0.0
    %1435 = vmatpush1.msra.mxu0 0.0
    %1436 = vmatprep.subr.mxu0 0.0
    %1437 = vmatpush1.msra.mxu0 0.0
    %1438 = vmatprep.subr.mxu0 0.0
    %1439 = vmatpush1.msra.mxu0 0.0
    %1440 = vmatprep.subr.mxu0 0.0
    %1441 = vmatpush1.msra.mxu0 0.0
    %1442 = vmatprep.subr.mxu0 0.0
    %1443 = vmatpush1.msra.mxu0 0.0
    %1444 = vmatprep.subr.mxu0 0.0
    %1445 = vmatpush1.msra.mxu0 0.0
    %1446 = vmatprep.subr.mxu0 0.0
    %1447 = vmatpush1.msra.mxu0 0.0
    %1448 = vmatprep.subr.mxu0 0.0
    %1449 = vmatpush1.msra.mxu0 0.0
    %1450 = vmatprep.subr.mxu0 0.0
    %1451 = vmatpush1.msra.mxu0 0.0
    %1452 = vmatprep.subr.mxu0 0.0
    %1453 = vmatpush1.msra.mxu0 0.0
    %1454 = vmatprep.subr.mxu0 0.0
    %1455 = vmatpush1.msra.mxu0 0.0
    %1456 = vmatprep.subr.mxu0 0.0
    %1457 = vmatpush1.msra.mxu0 0.0
    %1458 = vmatprep.subr.mxu0 0.0
    %1459 = vmatpush1.msra.mxu0 0.0
    %1460 = vmatprep.subr.mxu0 0.0
    %1461 = vmatpush1.msra.mxu0 0.0
    %1462 = vmatprep.subr.mxu0 0.0
    %1463 = vmatpush1.msra.mxu0 0.0
    %1464 = vmatprep.subr.mxu0 0.0
    %1465 = vmatpush1.msra.mxu0 0.0
    %1466 = vmatprep.subr.mxu0 0.0
    %1467 = vmatpush1.msra.mxu0 0.0
    %1468 = vmatprep.subr.mxu0 0.0
    %1469 = vmatpush1.msra.mxu0 0.0
    %1470 = vmatprep.subr.mxu0 0.0
    %1471 = vmatpush1.msra.mxu0 0.0
    %1472 = vmatprep.subr.mxu0 0.0
    %1473 = vmatpush1.msra.mxu0 0.0
    %1474 = vmatprep.subr.mxu0 0.0
    %1475 = vmatpush1.msra.mxu0 0.0
    %1476 = vmatprep.subr.mxu0 0.0
    %1477 = vmatpush1.msra.mxu0 0.0
    %1478 = vmatprep.subr.mxu0 0.0
    %1479 = vmatpush1.msra.mxu0 0.0
    %1480 = vmatprep.subr.mxu0 0.0
    %1481 = vmatpush1.msra.mxu0 0.0
    %1482 = vmatprep.subr.mxu0 0.0
    %1483 = vmatpush1.msra.mxu0 0.0
    %1484 = vmatprep.subr.mxu0 0.0
    %1485 = vmatpush1.msra.mxu0 0.0
    %1486 = vmatprep.subr.mxu0 0.0
    %1487 = vmatpush1.msra.mxu0 0.0
    %1488 = vmatprep.subr.mxu0 0.0
    %1489 = vmatpush1.msra.mxu0 0.0
    %1490 = vmatprep.subr.mxu0 0.0
    %1491 = vmatpush1.msra.mxu0 0.0
    %1492 = vmatprep.subr.mxu0 0.0
    %1493 = vmatpush1.msra.mxu0 0.0
    %1494 = vmatprep.mubr.f32.mxu0 0.0
    %1495 = vmatmul.mubr.f32.gmra.mrb[0].mxu0 %v718
    %v1496 = vpop.f32.mrb[0].mxu0
    %v1497 = vadd.f32 0.0, %v1496
    %v1498 = vpop.f32.mrb[0].mxu0
    %v1499 = vadd.f32 0.0, %v1498
    %1500 = vdwg.mxu0
    %1501 = vmatprep.subr.mxu0 %v707
    %1502 = vmatpush1.msra.mxu0 %v706
    %1503 = vmatprep.subr.mxu0 0.0
    %1504 = vmatpush1.msra.mxu0 0.0
    %1505 = vmatprep.subr.mxu0 0.0
    %1506 = vmatpush1.msra.mxu0 0.0
    %1507 = vmatprep.subr.mxu0 0.0
    %1508 = vmatpush1.msra.mxu0 0.0
    %1509 = vmatprep.subr.mxu0 0.0
    %1510 = vmatpush1.msra.mxu0 0.0
    %1511 = vmatprep.subr.mxu0 0.0
    %1512 = vmatpush1.msra.mxu0 0.0
    %1513 = vmatprep.subr.mxu0 0.0
    %1514 = vmatpush1.msra.mxu0 0.0
    %1515 = vmatprep.subr.mxu0 0.0
    %1516 = vmatpush1.msra.mxu0 0.0
    %1517 = vmatprep.subr.mxu0 0.0
    %1518 = vmatpush1.msra.mxu0 0.0
    %1519 = vmatprep.subr.mxu0 0.0
    %1520 = vmatpush1.msra.mxu0 0.0
    %1521 = vmatprep.subr.mxu0 0.0
    %1522 = vmatpush1.msra.mxu0 0.0
    %1523 = vmatprep.subr.mxu0 0.0
    %1524 = vmatpush1.msra.mxu0 0.0
    %1525 = vmatprep.subr.mxu0 0.0
    %1526 = vmatpush1.msra.mxu0 0.0
    %1527 = vmatprep.subr.mxu0 0.0
    %1528 = vmatpush1.msra.mxu0 0.0
    %1529 = vmatprep.subr.mxu0 0.0
    %1530 = vmatpush1.msra.mxu0 0.0
    %1531 = vmatprep.subr.mxu0 0.0
    %1532 = vmatpush1.msra.mxu0 0.0
    %1533 = vmatprep.subr.mxu0 0.0
    %1534 = vmatpush1.msra.mxu0 0.0
    %1535 = vmatprep.subr.mxu0 0.0
    %1536 = vmatpush1.msra.mxu0 0.0
    %1537 = vmatprep.subr.mxu0 0.0
    %1538 = vmatpush1.msra.mxu0 0.0
    %1539 = vmatprep.subr.mxu0 0.0
    %1540 = vmatpush1.msra.mxu0 0.0
    %1541 = vmatprep.subr.mxu0 0.0
    %1542 = vmatpush1.msra.mxu0 0.0
    %1543 = vmatprep.subr.mxu0 0.0
    %1544 = vmatpush1.msra.mxu0 0.0
    %1545 = vmatprep.subr.mxu0 0.0
    %1546 = vmatpush1.msra.mxu0 0.0
    %1547 = vmatprep.subr.mxu0 0.0
    %1548 = vmatpush1.msra.mxu0 0.0
    %1549 = vmatprep.subr.mxu0 0.0
    %1550 = vmatpush1.msra.mxu0 0.0
    %1551 = vmatprep.subr.mxu0 0.0
    %1552 = vmatpush1.msra.mxu0 0.0
    %1553 = vmatprep.subr.mxu0 0.0
    %1554 = vmatpush1.msra.mxu0 0.0
    %1555 = vmatprep.subr.mxu0 0.0
    %1556 = vmatpush1.msra.mxu0 0.0
    %1557 = vmatprep.subr.mxu0 0.0
    %1558 = vmatpush1.msra.mxu0 0.0
    %1559 = vmatprep.subr.mxu0 0.0
    %1560 = vmatpush1.msra.mxu0 0.0
    %1561 = vmatprep.subr.mxu0 0.0
    %1562 = vmatpush1.msra.mxu0 0.0
    %1563 = vmatprep.subr.mxu0 0.0
    %1564 = vmatpush1.msra.mxu0 0.0
    %1565 = vmatprep.mubr.f32.mxu0 0.0
    %1566 = vmatmul.mubr.f32.gmra.mrb[0].mxu0 %v718
    %v1567 = vpop.f32.mrb[0].mxu0
    %v1568 = vadd.f32 0.0, %v1567
    %v1569 = vpop.f32.mrb[0].mxu0
    %v1570 = vadd.f32 0.0, %v1569
    %1571 = vdwg.mxu0
    %1572 = vmatprep.subr.mxu0 %v709
    %1573 = vmatpush1.msra.mxu0 %v708
    %1574 = vmatprep.subr.mxu0 0.0
    %1575 = vmatpush1.msra.mxu0 0.0
    %1576 = vmatprep.subr.mxu0 0.0
    %1577 = vmatpush1.msra.mxu0 0.0
    %1578 = vmatprep.subr.mxu0 0.0
    %1579 = vmatpush1.msra.mxu0 0.0
    %1580 = vmatprep.subr.mxu0 0.0
    %1581 = vmatpush1.msra.mxu0 0.0
    %1582 = vmatprep.subr.mxu0 0.0
    %1583 = vmatpush1.msra.mxu0 0.0
    %1584 = vmatprep.subr.mxu0 0.0
    %1585 = vmatpush1.msra.mxu0 0.0
    %1586 = vmatprep.subr.mxu0 0.0
    %1587 = vmatpush1.msra.mxu0 0.0
    %1588 = vmatprep.subr.mxu0 0.0
    %1589 = vmatpush1.msra.mxu0 0.0
    %1590 = vmatprep.subr.mxu0 0.0
    %1591 = vmatpush1.msra.mxu0 0.0
    %1592 = vmatprep.subr.mxu0 0.0
    %1593 = vmatpush1.msra.mxu0 0.0
    %1594 = vmatprep.subr.mxu0 0.0
    %1595 = vmatpush1.msra.mxu0 0.0
    %1596 = vmatprep.subr.mxu0 0.0
    %1597 = vmatpush1.msra.mxu0 0.0
    %1598 = vmatprep.subr.mxu0 0.0
    %1599 = vmatpush1.msra.mxu0 0.0
    %1600 = vmatprep.subr.mxu0 0.0
    %1601 = vmatpush1.msra.mxu0 0.0
    %1602 = vmatprep.subr.mxu0 0.0
    %1603 = vmatpush1.msra.mxu0 0.0
    %1604 = vmatprep.subr.mxu0 0.0
    %1605 = vmatpush1.msra.mxu0 0.0
    %1606 = vmatprep.subr.mxu0 0.0
    %1607 = vmatpush1.msra.mxu0 0.0
    %1608 = vmatprep.subr.mxu0 0.0
    %1609 = vmatpush1.msra.mxu0 0.0
    %1610 = vmatprep.subr.mxu0 0.0
    %1611 = vmatpush1.msra.mxu0 0.0
    %1612 = vmatprep.subr.mxu0 0.0
    %1613 = vmatpush1.msra.mxu0 0.0
    %1614 = vmatprep.subr.mxu0 0.0
    %1615 = vmatpush1.msra.mxu0 0.0
    %1616 = vmatprep.subr.mxu0 0.0
    %1617 = vmatpush1.msra.mxu0 0.0
    %1618 = vmatprep.subr.mxu0 0.0
    %1619 = vmatpush1.msra.mxu0 0.0
    %1620 = vmatprep.subr.mxu0 0.0
    %1621 = vmatpush1.msra.mxu0 0.0
    %1622 = vmatprep.subr.mxu0 0.0
    %1623 = vmatpush1.msra.mxu0 0.0
    %1624 = vmatprep.subr.mxu0 0.0
    %1625 = vmatpush1.msra.mxu0 0.0
    %1626 = vmatprep.subr.mxu0 0.0
    %1627 = vmatpush1.msra.mxu0 0.0
    %1628 = vmatprep.subr.mxu0 0.0
    %1629 = vmatpush1.msra.mxu0 0.0
    %1630 = vmatprep.subr.mxu0 0.0
    %1631 = vmatpush1.msra.mxu0 0.0
    %1632 = vmatprep.subr.mxu0 0.0
    %1633 = vmatpush1.msra.mxu0 0.0
    %1634 = vmatprep.subr.mxu0 0.0
    %1635 = vmatpush1.msra.mxu0 0.0
    %1636 = vmatprep.mubr.f32.mxu0 0.0
    %1637 = vmatmul.mubr.f32.gmra.mrb[0].mxu0 %v718
    %v1638 = vpop.f32.mrb[0].mxu0
    %v1639 = vadd.f32 0.0, %v1638
    %v1640 = vpop.f32.mrb[0].mxu0
    %v1641 = vadd.f32 0.0, %v1640
    %1642 = vdwg.mxu0
    %1643 = vmatprep.subr.mxu0 %v711
    %1644 = vmatpush1.msra.mxu0 %v710
    %1645 = vmatprep.subr.mxu0 0.0
    %1646 = vmatpush1.msra.mxu0 0.0
    %1647 = vmatprep.subr.mxu0 0.0
    %1648 = vmatpush1.msra.mxu0 0.0
    %1649 = vmatprep.subr.mxu0 0.0
    %1650 = vmatpush1.msra.mxu0 0.0
    %1651 = vmatprep.subr.mxu0 0.0
    %1652 = vmatpush1.msra.mxu0 0.0
    %1653 = vmatprep.subr.mxu0 0.0
    %1654 = vmatpush1.msra.mxu0 0.0
    %1655 = vmatprep.subr.mxu0 0.0
    %1656 = vmatpush1.msra.mxu0 0.0
    %1657 = vmatprep.subr.mxu0 0.0
    %1658 = vmatpush1.msra.mxu0 0.0
    %1659 = vmatprep.subr.mxu0 0.0
    %1660 = vmatpush1.msra.mxu0 0.0
    %1661 = vmatprep.subr.mxu0 0.0
    %1662 = vmatpush1.msra.mxu0 0.0
    %1663 = vmatprep.subr.mxu0 0.0
    %1664 = vmatpush1.msra.mxu0 0.0
    %1665 = vmatprep.subr.mxu0 0.0
    %1666 = vmatpush1.msra.mxu0 0.0
    %1667 = vmatprep.subr.mxu0 0.0
    %1668 = vmatpush1.msra.mxu0 0.0
    %1669 = vmatprep.subr.mxu0 0.0
    %1670 = vmatpush1.msra.mxu0 0.0
    %1671 = vmatprep.subr.mxu0 0.0
    %1672 = vmatpush1.msra.mxu0 0.0
    %1673 = vmatprep.subr.mxu0 0.0
    %1674 = vmatpush1.msra.mxu0 0.0
    %1675 = vmatprep.subr.mxu0 0.0
    %1676 = vmatpush1.msra.mxu0 0.0
    %1677 = vmatprep.subr.mxu0 0.0
    %1678 = vmatpush1.msra.mxu0 0.0
    %1679 = vmatprep.subr.mxu0 0.0
    %1680 = vmatpush1.msra.mxu0 0.0
    %1681 = vmatprep.subr.mxu0 0.0
    %1682 = vmatpush1.msra.mxu0 0.0
    %1683 = vmatprep.subr.mxu0 0.0
    %1684 = vmatpush1.msra.mxu0 0.0
    %1685 = vmatprep.subr.mxu0 0.0
    %1686 = vmatpush1.msra.mxu0 0.0
    %1687 = vmatprep.subr.mxu0 0.0
    %1688 = vmatpush1.msra.mxu0 0.0
    %1689 = vmatprep.subr.mxu0 0.0
    %1690 = vmatpush1.msra.mxu0 0.0
    %1691 = vmatprep.subr.mxu0 0.0
    %1692 = vmatpush1.msra.mxu0 0.0
    %1693 = vmatprep.subr.mxu0 0.0
    %1694 = vmatpush1.msra.mxu0 0.0
    %1695 = vmatprep.subr.mxu0 0.0
    %1696 = vmatpush1.msra.mxu0 0.0
    %1697 = vmatprep.subr.mxu0 0.0
    %1698 = vmatpush1.msra.mxu0 0.0
    %1699 = vmatprep.subr.mxu0 0.0
    %1700 = vmatpush1.msra.mxu0 0.0
    %1701 = vmatprep.subr.mxu0 0.0
    %1702 = vmatpush1.msra.mxu0 0.0
    %1703 = vmatprep.subr.mxu0 0.0
    %1704 = vmatpush1.msra.mxu0 0.0
    %1705 = vmatprep.subr.mxu0 0.0
    %1706 = vmatpush1.msra.mxu0 0.0
    %1707 = vmatprep.mubr.f32.mxu0 0.0
    %1708 = vmatmul.mubr.f32.gmra.mrb[0].mxu0 %v718
    %v1709 = vpop.f32.mrb[0].mxu0
    %v1710 = vadd.f32 0.0, %v1709
    %v1711 = vpop.f32.mrb[0].mxu0
    %v1712 = vadd.f32 0.0, %v1711
    %1713 = vdwg.mxu0
    %1714 = vmatprep.subr.mxu0 %v713
    %1715 = vmatpush1.msra.mxu0 %v712
    %1716 = vmatprep.subr.mxu0 0.0
    %1717 = vmatpush1.msra.mxu0 0.0
    %1718 = vmatprep.subr.mxu0 0.0
    %1719 = vmatpush1.msra.mxu0 0.0
    %1720 = vmatprep.subr.mxu0 0.0
    %1721 = vmatpush1.msra.mxu0 0.0
    %1722 = vmatprep.subr.mxu0 0.0
    %1723 = vmatpush1.msra.mxu0 0.0
    %1724 = vmatprep.subr.mxu0 0.0
    %1725 = vmatpush1.msra.mxu0 0.0
    %1726 = vmatprep.subr.mxu0 0.0
    %1727 = vmatpush1.msra.mxu0 0.0
    %1728 = vmatprep.subr.mxu0 0.0
    %1729 = vmatpush1.msra.mxu0 0.0
    %1730 = vmatprep.subr.mxu0 0.0
    %1731 = vmatpush1.msra.mxu0 0.0
    %1732 = vmatprep.subr.mxu0 0.0
    %1733 = vmatpush1.msra.mxu0 0.0
    %1734 = vmatprep.subr.mxu0 0.0
    %1735 = vmatpush1.msra.mxu0 0.0
    %1736 = vmatprep.subr.mxu0 0.0
    %1737 = vmatpush1.msra.mxu0 0.0
    %1738 = vmatprep.subr.mxu0 0.0
    %1739 = vmatpush1.msra.mxu0 0.0
    %1740 = vmatprep.subr.mxu0 0.0
    %1741 = vmatpush1.msra.mxu0 0.0
    %1742 = vmatprep.subr.mxu0 0.0
    %1743 = vmatpush1.msra.mxu0 0.0
    %1744 = vmatprep.subr.mxu0 0.0
    %1745 = vmatpush1.msra.mxu0 0.0
    %1746 = vmatprep.subr.mxu0 0.0
    %1747 = vmatpush1.msra.mxu0 0.0
    %1748 = vmatprep.subr.mxu0 0.0
    %1749 = vmatpush1.msra.mxu0 0.0
    %1750 = vmatprep.subr.mxu0 0.0
    %1751 = vmatpush1.msra.mxu0 0.0
    %1752 = vmatprep.subr.mxu0 0.0
    %1753 = vmatpush1.msra.mxu0 0.0
    %1754 = vmatprep.subr.mxu0 0.0
    %1755 = vmatpush1.msra.mxu0 0.0
    %1756 = vmatprep.subr.mxu0 0.0
    %1757 = vmatpush1.msra.mxu0 0.0
    %1758 = vmatprep.subr.mxu0 0.0
    %1759 = vmatpush1.msra.mxu0 0.0
    %1760 = vmatprep.subr.mxu0 0.0
    %1761 = vmatpush1.msra.mxu0 0.0
    %1762 = vmatprep.subr.mxu0 0.0
    %1763 = vmatpush1.msra.mxu0 0.0
    %1764 = vmatprep.subr.mxu0 0.0
    %1765 = vmatpush1.msra.mxu0 0.0
    %1766 = vmatprep.subr.mxu0 0.0
    %1767 = vmatpush1.msra.mxu0 0.0
    %1768 = vmatprep.subr.mxu0 0.0
    %1769 = vmatpush1.msra.mxu0 0.0
    %1770 = vmatprep.subr.mxu0 0.0
    %1771 = vmatpush1.msra.mxu0 0.0
    %1772 = vmatprep.subr.mxu0 0.0
    %1773 = vmatpush1.msra.mxu0 0.0
    %1774 = vmatprep.subr.mxu0 0.0
    %1775 = vmatpush1.msra.mxu0 0.0
    %1776 = vmatprep.subr.mxu0 0.0
    %1777 = vmatpush1.msra.mxu0 0.0
    %1778 = vmatprep.mubr.f32.mxu0 0.0
    %1779 = vmatmul.mubr.f32.gmra.mrb[0].mxu0 %v718
    %v1780 = vpop.f32.mrb[0].mxu0
    %v1781 = vadd.f32 0.0, %v1780
    %v1782 = vpop.f32.mrb[0].mxu0
    %v1783 = vadd.f32 0.0, %v1782
    %1784 = vdwg.mxu0
    %1785 = vmatprep.subr.mxu0 %v715
    %1786 = vmatpush1.msra.mxu0 %v714
    %1787 = vmatprep.subr.mxu0 0.0
    %1788 = vmatpush1.msra.mxu0 0.0
    %1789 = vmatprep.subr.mxu0 0.0
    %1790 = vmatpush1.msra.mxu0 0.0
    %1791 = vmatprep.subr.mxu0 0.0
    %1792 = vmatpush1.msra.mxu0 0.0
    %1793 = vmatprep.subr.mxu0 0.0
    %1794 = vmatpush1.msra.mxu0 0.0
    %1795 = vmatprep.subr.mxu0 0.0
    %1796 = vmatpush1.msra.mxu0 0.0
    %1797 = vmatprep.subr.mxu0 0.0
    %1798 = vmatpush1.msra.mxu0 0.0
    %1799 = vmatprep.subr.mxu0 0.0
    %1800 = vmatpush1.msra.mxu0 0.0
    %1801 = vmatprep.subr.mxu0 0.0
    %1802 = vmatpush1.msra.mxu0 0.0
    %1803 = vmatprep.subr.mxu0 0.0
    %1804 = vmatpush1.msra.mxu0 0.0
    %1805 = vmatprep.subr.mxu0 0.0
    %1806 = vmatpush1.msra.mxu0 0.0
    %1807 = vmatprep.subr.mxu0 0.0
    %1808 = vmatpush1.msra.mxu0 0.0
    %1809 = vmatprep.subr.mxu0 0.0
    %1810 = vmatpush1.msra.mxu0 0.0
    %1811 = vmatprep.subr.mxu0 0.0
    %1812 = vmatpush1.msra.mxu0 0.0
    %1813 = vmatprep.subr.mxu0 0.0
    %1814 = vmatpush1.msra.mxu0 0.0
    %1815 = vmatprep.subr.mxu0 0.0
    %1816 = vmatpush1.msra.mxu0 0.0
    %1817 = vmatprep.subr.mxu0 0.0
    %1818 = vmatpush1.msra.mxu0 0.0
    %1819 = vmatprep.subr.mxu0 0.0
    %1820 = vmatpush1.msra.mxu0 0.0
    %1821 = vmatprep.subr.mxu0 0.0
    %1822 = vmatpush1.msra.mxu0 0.0
    %1823 = vmatprep.subr.mxu0 0.0
    %1824 = vmatpush1.msra.mxu0 0.0
    %1825 = vmatprep.subr.mxu0 0.0
    %1826 = vmatpush1.msra.mxu0 0.0
    %1827 = vmatprep.subr.mxu0 0.0
    %1828 = vmatpush1.msra.mxu0 0.0
    %1829 = vmatprep.subr.mxu0 0.0
    %1830 = vmatpush1.msra.mxu0 0.0
    %1831 = vmatprep.subr.mxu0 0.0
    %1832 = vmatpush1.msra.mxu0 0.0
    %1833 = vmatprep.subr.mxu0 0.0
    %1834 = vmatpush1.msra.mxu0 0.0
    %1835 = vmatprep.subr.mxu0 0.0
    %1836 = vmatpush1.msra.mxu0 0.0
    %1837 = vmatprep.subr.mxu0 0.0
    %1838 = vmatpush1.msra.mxu0 0.0
    %1839 = vmatprep.subr.mxu0 0.0
    %1840 = vmatpush1.msra.mxu0 0.0
    %1841 = vmatprep.subr.mxu0 0.0
    %1842 = vmatpush1.msra.mxu0 0.0
    %1843 = vmatprep.subr.mxu0 0.0
    %1844 = vmatpush1.msra.mxu0 0.0
    %1845 = vmatprep.subr.mxu0 0.0
    %1846 = vmatpush1.msra.mxu0 0.0
    %1847 = vmatprep.subr.mxu0 0.0
    %1848 = vmatpush1.msra.mxu0 0.0
    %1849 = vmatprep.mubr.f32.mxu0 0.0
    %1850 = vmatmul.mubr.f32.gmra.mrb[0].mxu0 %v718
    %v1851 = vpop.f32.mrb[0].mxu0
    %v1852 = vadd.f32 0.0, %v1851
    %v1853 = vpop.f32.mrb[0].mxu0
    %v1854 = vadd.f32 0.0, %v1853
    %1855 = vdwg.mxu0
    %v1856 = vadd.f32 %v652, %v787
    %v1857 = vadd.f32 %v653, %v789
    %v1858 = vadd.f32 %v654, %v858
    %v1859 = vadd.f32 %v655, %v860
    %v1860 = vadd.f32 %v656, %v929
    %v1861 = vadd.f32 %v657, %v931
    %v1862 = vadd.f32 %v658, %v1000
    %v1863 = vadd.f32 %v659, %v1002
    %v1864 = vadd.f32 %v660, %v1071
    %v1865 = vadd.f32 %v661, %v1073
    %v1866 = vadd.f32 %v662, %v1142
    %v1867 = vadd.f32 %v663, %v1144
    %v1868 = vadd.f32 %v664, %v1213
    %v1869 = vadd.f32 %v665, %v1215
    %v1870 = vadd.f32 %v666, %v1284
    %v1871 = vadd.f32 %v667, %v1286
    %v1872 = vadd.f32 %v668, %v1355
    %v1873 = vadd.f32 %v669, %v1357
    %v1874 = vadd.f32 %v670, %v1426
    %v1875 = vadd.f32 %v671, %v1428
    %v1876 = vadd.f32 %v672, %v1497
    %v1877 = vadd.f32 %v673, %v1499
    %v1878 = vadd.f32 %v674, %v1568
    %v1879 = vadd.f32 %v675, %v1570
    %v1880 = vadd.f32 %v676, %v1639
    %v1881 = vadd.f32 %v677, %v1641
    %v1882 = vadd.f32 %v678, %v1710
    %v1883 = vadd.f32 %v679, %v1712
    %v1884 = vadd.f32 %v680, %v1781
    %v1885 = vadd.f32 %v681, %v1783
    %v1886 = vadd.f32 %v682, %v1852
    %v1887 = vadd.f32 %v683, %v1854
    %v1888 = vld [vmem:[#allocation7] sm:$0xff]
    %v1889 = vld [vmem:[#allocation7 + $0x8] sm:$0xff]
    %v1890 = vld [vmem:[#allocation7 + $0x10] sm:$0xff]
    %v1891 = vld [vmem:[#allocation7 + $0x18] sm:$0xff]
    %v1896 = vlaneseq
    %v1897 = vshrl.u32 %v1896, 7
    %v1898 = vsub.s32 0, %v1897
    %v1899 = vrot.slane %v1888, %v1898
    %v1900 = vlaneseq
    %v1901 = vshrl.u32 %v1900, 7
    %v1902 = vsub.s32 1, %v1901
    %v1903 = vrot.slane %v1888, %v1902
    %v1904 = vlaneseq
    %v1905 = vshrl.u32 %v1904, 7
    %v1906 = vsub.s32 2, %v1905
    %v1907 = vrot.slane %v1888, %v1906
    %v1908 = vlaneseq
    %v1909 = vshrl.u32 %v1908, 7
    %v1910 = vsub.s32 3, %v1909
    %v1911 = vrot.slane %v1888, %v1910
    %v1912 = vlaneseq
    %v1913 = vshrl.u32 %v1912, 7
    %v1914 = vsub.s32 4, %v1913
    %v1915 = vrot.slane %v1888, %v1914
    %v1916 = vlaneseq
    %v1917 = vshrl.u32 %v1916, 7
    %v1918 = vsub.s32 5, %v1917
    %v1919 = vrot.slane %v1888, %v1918
    %v1920 = vlaneseq
    %v1921 = vshrl.u32 %v1920, 7
    %v1922 = vsub.s32 6, %v1921
    %v1923 = vrot.slane %v1888, %v1922
    %v1924 = vlaneseq
    %v1925 = vshrl.u32 %v1924, 7
    %v1926 = vsub.s32 7, %v1925
    %v1927 = vrot.slane %v1888, %v1926
    %v1928 = vlaneseq
    %v1929 = vshrl.u32 %v1928, 7
    %v1930 = vsub.s32 0, %v1929
    %v1931 = vrot.slane %v1889, %v1930
    %v1932 = vlaneseq
    %v1933 = vshrl.u32 %v1932, 7
    %v1934 = vsub.s32 1, %v1933
    %v1935 = vrot.slane %v1889, %v1934
    %v1936 = vlaneseq
    %v1937 = vshrl.u32 %v1936, 7
    %v1938 = vsub.s32 2, %v1937
    %v1939 = vrot.slane %v1889, %v1938
    %v1940 = vlaneseq
    %v1941 = vshrl.u32 %v1940, 7
    %v1942 = vsub.s32 3, %v1941
    %v1943 = vrot.slane %v1889, %v1942
    %v1944 = vlaneseq
    %v1945 = vshrl.u32 %v1944, 7
    %v1946 = vsub.s32 4, %v1945
    %v1947 = vrot.slane %v1889, %v1946
    %v1948 = vlaneseq
    %v1949 = vshrl.u32 %v1948, 7
    %v1950 = vsub.s32 5, %v1949
    %v1951 = vrot.slane %v1889, %v1950
    %v1952 = vlaneseq
    %v1953 = vshrl.u32 %v1952, 7
    %v1954 = vsub.s32 6, %v1953
    %v1955 = vrot.slane %v1889, %v1954
    %v1956 = vlaneseq
    %v1957 = vshrl.u32 %v1956, 7
    %v1958 = vsub.s32 7, %v1957
    %v1959 = vrot.slane %v1889, %v1958
    %v1960 = vlaneseq
    %v1961 = vshrl.u32 %v1960, 7
    %v1962 = vsub.s32 0, %v1961
    %v1963 = vrot.slane %v1890, %v1962
    %v1964 = vlaneseq
    %v1965 = vshrl.u32 %v1964, 7
    %v1966 = vsub.s32 1, %v1965
    %v1967 = vrot.slane %v1890, %v1966
    %v1968 = vlaneseq
    %v1969 = vshrl.u32 %v1968, 7
    %v1970 = vsub.s32 2, %v1969
    %v1971 = vrot.slane %v1890, %v1970
    %v1972 = vlaneseq
    %v1973 = vshrl.u32 %v1972, 7
    %v1974 = vsub.s32 3, %v1973
    %v1975 = vrot.slane %v1890, %v1974
    %v1976 = vlaneseq
    %v1977 = vshrl.u32 %v1976, 7
    %v1978 = vsub.s32 4, %v1977
    %v1979 = vrot.slane %v1890, %v1978
    %v1980 = vlaneseq
    %v1981 = vshrl.u32 %v1980, 7
    %v1982 = vsub.s32 5, %v1981
    %v1983 = vrot.slane %v1890, %v1982
    %v1984 = vlaneseq
    %v1985 = vshrl.u32 %v1984, 7
    %v1986 = vsub.s32 6, %v1985
    %v1987 = vrot.slane %v1890, %v1986
    %v1988 = vlaneseq
    %v1989 = vshrl.u32 %v1988, 7
    %v1990 = vsub.s32 7, %v1989
    %v1991 = vrot.slane %v1890, %v1990
    %v1992 = vlaneseq
    %v1993 = vshrl.u32 %v1992, 7
    %v1994 = vsub.s32 0, %v1993
    %v1995 = vrot.slane %v1891, %v1994
    %v1996 = vlaneseq
    %v1997 = vshrl.u32 %v1996, 7
    %v1998 = vsub.s32 1, %v1997
    %v1999 = vrot.slane %v1891, %v1998
    %v2000 = vlaneseq
    %v2001 = vshrl.u32 %v2000, 7
    %v2002 = vsub.s32 2, %v2001
    %v2003 = vrot.slane %v1891, %v2002
    %v2004 = vlaneseq
    %v2005 = vshrl.u32 %v2004, 7
    %v2006 = vsub.s32 3, %v2005
    %v2007 = vrot.slane %v1891, %v2006
    %v2008 = vlaneseq
    %v2009 = vshrl.u32 %v2008, 7
    %v2010 = vsub.s32 4, %v2009
    %v2011 = vrot.slane %v1891, %v2010
    %v2012 = vlaneseq
    %v2013 = vshrl.u32 %v2012, 7
    %v2014 = vsub.s32 5, %v2013
    %v2015 = vrot.slane %v1891, %v2014
    %v2016 = vlaneseq
    %v2017 = vshrl.u32 %v2016, 7
    %v2018 = vsub.s32 6, %v2017
    %v2019 = vrot.slane %v1891, %v2018
    %v2020 = vlaneseq
    %v2021 = vshrl.u32 %v2020, 7
    %v2022 = vsub.s32 7, %v2021
    %v2023 = vrot.slane %v1891, %v2022
    %v2056 = vadd.f32 %v1856, %v1899
    %v2057 = vadd.f32 %v1857, %v1903
    %v2058 = vadd.f32 %v1858, %v1907
    %v2059 = vadd.f32 %v1859, %v1911
    %v2060 = vadd.f32 %v1860, %v1915
    %v2061 = vadd.f32 %v1861, %v1919
    %v2062 = vadd.f32 %v1862, %v1923
    %v2063 = vadd.f32 %v1863, %v1927
    %v2064 = vadd.f32 %v1864, %v1931
    %v2065 = vadd.f32 %v1865, %v1935
    %v2066 = vadd.f32 %v1866, %v1939
    %v2067 = vadd.f32 %v1867, %v1943
    %v2068 = vadd.f32 %v1868, %v1947
    %v2069 = vadd.f32 %v1869, %v1951
    %v2070 = vadd.f32 %v1870, %v1955
    %v2071 = vadd.f32 %v1871, %v1959
    %v2072 = vadd.f32 %v1872, %v1963
    %v2073 = vadd.f32 %v1873, %v1967
    %v2074 = vadd.f32 %v1874, %v1971
    %v2075 = vadd.f32 %v1875, %v1975
    %v2076 = vadd.f32 %v1876, %v1979
    %v2077 = vadd.f32 %v1877, %v1983
    %v2078 = vadd.f32 %v1878, %v1987
    %v2079 = vadd.f32 %v1879, %v1991
    %v2080 = vadd.f32 %v1880, %v1995
    %v2081 = vadd.f32 %v1881, %v1999
    %v2082 = vadd.f32 %v1882, %v2003
    %v2083 = vadd.f32 %v1883, %v2007
    %v2084 = vadd.f32 %v1884, %v2011
    %v2085 = vadd.f32 %v1885, %v2015
    %v2086 = vadd.f32 %v1886, %v2019
    %v2087 = vadd.f32 %v1887, %v2023
    %vm2088 = vcmp.gt.f32.partialorder %v2056, 0.0
    %vm2089 = vcmp.gt.f32.partialorder %v2057, 0.0
    %vm2090 = vcmp.gt.f32.partialorder %v2058, 0.0
    %vm2091 = vcmp.gt.f32.partialorder %v2059, 0.0
    %vm2092 = vcmp.gt.f32.partialorder %v2060, 0.0
    %vm2093 = vcmp.gt.f32.partialorder %v2061, 0.0
    %vm2094 = vcmp.gt.f32.partialorder %v2062, 0.0
    %vm2095 = vcmp.gt.f32.partialorder %v2063, 0.0
    %vm2096 = vcmp.gt.f32.partialorder %v2064, 0.0
    %vm2097 = vcmp.gt.f32.partialorder %v2065, 0.0
    %vm2098 = vcmp.gt.f32.partialorder %v2066, 0.0
    %vm2099 = vcmp.gt.f32.partialorder %v2067, 0.0
    %vm2100 = vcmp.gt.f32.partialorder %v2068, 0.0
    %vm2101 = vcmp.gt.f32.partialorder %v2069, 0.0
    %vm2102 = vcmp.gt.f32.partialorder %v2070, 0.0
    %vm2103 = vcmp.gt.f32.partialorder %v2071, 0.0
    %vm2104 = vcmp.gt.f32.partialorder %v2072, 0.0
    %vm2105 = vcmp.gt.f32.partialorder %v2073, 0.0
    %vm2106 = vcmp.gt.f32.partialorder %v2074, 0.0
    %vm2107 = vcmp.gt.f32.partialorder %v2075, 0.0
    %vm2108 = vcmp.gt.f32.partialorder %v2076, 0.0
    %vm2109 = vcmp.gt.f32.partialorder %v2077, 0.0
    %vm2110 = vcmp.gt.f32.partialorder %v2078, 0.0
    %vm2111 = vcmp.gt.f32.partialorder %v2079, 0.0
    %vm2112 = vcmp.gt.f32.partialorder %v2080, 0.0
    %vm2113 = vcmp.gt.f32.partialorder %v2081, 0.0
    %vm2114 = vcmp.gt.f32.partialorder %v2082, 0.0
    %vm2115 = vcmp.gt.f32.partialorder %v2083, 0.0
    %vm2116 = vcmp.gt.f32.partialorder %v2084, 0.0
    %vm2117 = vcmp.gt.f32.partialorder %v2085, 0.0
    %vm2118 = vcmp.gt.f32.partialorder %v2086, 0.0
    %vm2119 = vcmp.gt.f32.partialorder %v2087, 0.0
    %v2120 = vmul.f32 %v2056, 0.2
    %v2121 = vmul.f32 %v2057, 0.2
    %v2122 = vmul.f32 %v2058, 0.2
    %v2123 = vmul.f32 %v2059, 0.2
    %v2124 = vmul.f32 %v2060, 0.2
    %v2125 = vmul.f32 %v2061, 0.2
    %v2126 = vmul.f32 %v2062, 0.2
    %v2127 = vmul.f32 %v2063, 0.2
    %v2128 = vmul.f32 %v2064, 0.2
    %v2129 = vmul.f32 %v2065, 0.2
    %v2130 = vmul.f32 %v2066, 0.2
    %v2131 = vmul.f32 %v2067, 0.2
    %v2132 = vmul.f32 %v2068, 0.2
    %v2133 = vmul.f32 %v2069, 0.2
    %v2134 = vmul.f32 %v2070, 0.2
    %v2135 = vmul.f32 %v2071, 0.2
    %v2136 = vmul.f32 %v2072, 0.2
    %v2137 = vmul.f32 %v2073, 0.2
    %v2138 = vmul.f32 %v2074, 0.2
    %v2139 = vmul.f32 %v2075, 0.2
    %v2140 = vmul.f32 %v2076, 0.2
    %v2141 = vmul.f32 %v2077, 0.2
    %v2142 = vmul.f32 %v2078, 0.2
    %v2143 = vmul.f32 %v2079, 0.2
    %v2144 = vmul.f32 %v2080, 0.2
    %v2145 = vmul.f32 %v2081, 0.2
    %v2146 = vmul.f32 %v2082, 0.2
    %v2147 = vmul.f32 %v2083, 0.2
    %v2148 = vmul.f32 %v2084, 0.2
    %v2149 = vmul.f32 %v2085, 0.2
    %v2150 = vmul.f32 %v2086, 0.2
    %v2151 = vmul.f32 %v2087, 0.2
    %v2152 = vsel %vm2088, %v2056, %v2120
    %v2153 = vsel %vm2089, %v2057, %v2121
    %v2154 = vsel %vm2090, %v2058, %v2122
    %v2155 = vsel %vm2091, %v2059, %v2123
    %v2156 = vsel %vm2092, %v2060, %v2124
    %v2157 = vsel %vm2093, %v2061, %v2125
    %v2158 = vsel %vm2094, %v2062, %v2126
    %v2159 = vsel %vm2095, %v2063, %v2127
    %v2160 = vsel %vm2096, %v2064, %v2128
    %v2161 = vsel %vm2097, %v2065, %v2129
    %v2162 = vsel %vm2098, %v2066, %v2130
    %v2163 = vsel %vm2099, %v2067, %v2131
    %v2164 = vsel %vm2100, %v2068, %v2132
    %v2165 = vsel %vm2101, %v2069, %v2133
    %v2166 = vsel %vm2102, %v2070, %v2134
    %v2167 = vsel %vm2103, %v2071, %v2135
    %v2168 = vsel %vm2104, %v2072, %v2136
    %v2169 = vsel %vm2105, %v2073, %v2137
    %v2170 = vsel %vm2106, %v2074, %v2138
    %v2171 = vsel %vm2107, %v2075, %v2139
    %v2172 = vsel %vm2108, %v2076, %v2140
    %v2173 = vsel %vm2109, %v2077, %v2141
    %v2174 = vsel %vm2110, %v2078, %v2142
    %v2175 = vsel %vm2111, %v2079, %v2143
    %v2176 = vsel %vm2112, %v2080, %v2144
    %v2177 = vsel %vm2113, %v2081, %v2145
    %v2178 = vsel %vm2114, %v2082, %v2146
    %v2179 = vsel %vm2115, %v2083, %v2147
    %v2180 = vsel %vm2116, %v2084, %v2148
    %v2181 = vsel %vm2117, %v2085, %v2149
    %v2182 = vsel %vm2118, %v2086, %v2150
    %v2183 = vsel %vm2119, %v2087, %v2151
    %v2184 = vpack.c.bf16 %v2152, %v2152
    %v2185 = vpack.c.bf16 %v2153, %v2153
    %v2186 = vpack.c.bf16 %v2154, %v2154
    %v2187 = vpack.c.bf16 %v2155, %v2155
    %v2188 = vpack.c.bf16 %v2156, %v2156
    %v2189 = vpack.c.bf16 %v2157, %v2157
    %v2190 = vpack.c.bf16 %v2158, %v2158
    %v2191 = vpack.c.bf16 %v2159, %v2159
    %v2192 = vpack.c.bf16 %v2160, %v2160
    %v2193 = vpack.c.bf16 %v2161, %v2161
    %v2194 = vpack.c.bf16 %v2162, %v2162
    %v2195 = vpack.c.bf16 %v2163, %v2163
    %v2196 = vpack.c.bf16 %v2164, %v2164
    %v2197 = vpack.c.bf16 %v2165, %v2165
    %v2198 = vpack.c.bf16 %v2166, %v2166
    %v2199 = vpack.c.bf16 %v2167, %v2167
    %v2200 = vpack.c.bf16 %v2168, %v2168
    %v2201 = vpack.c.bf16 %v2169, %v2169
    %v2202 = vpack.c.bf16 %v2170, %v2170
    %v2203 = vpack.c.bf16 %v2171, %v2171
    %v2204 = vpack.c.bf16 %v2172, %v2172
    %v2205 = vpack.c.bf16 %v2173, %v2173
    %v2206 = vpack.c.bf16 %v2174, %v2174
    %v2207 = vpack.c.bf16 %v2175, %v2175
    %v2208 = vpack.c.bf16 %v2176, %v2176
    %v2209 = vpack.c.bf16 %v2177, %v2177
    %v2210 = vpack.c.bf16 %v2178, %v2178
    %v2211 = vpack.c.bf16 %v2179, %v2179
    %v2212 = vpack.c.bf16 %v2180, %v2180
    %v2213 = vpack.c.bf16 %v2181, %v2181
    %v2214 = vpack.c.bf16 %v2182, %v2182
    %v2215 = vpack.c.bf16 %v2183, %v2183
    %v2216 = vld [vmem:[#allocation9] sm:$0xff]
    %v2217 = vld [vmem:[#allocation9 + $0x8] sm:$0xff]
    %v2218 = vld [vmem:[#allocation9 + $0x10] sm:$0xff]
    %v2219 = vld [vmem:[#allocation9 + $0x18] sm:$0xff]
    %v2220 = vld [vmem:[#allocation9 + $0x20] sm:$0xff]
    %v2221 = vld [vmem:[#allocation9 + $0x28] sm:$0xff]
    %v2222 = vld [vmem:[#allocation9 + $0x30] sm:$0xff]
    %v2223 = vld [vmem:[#allocation9 + $0x38] sm:$0xff]
    %v2224 = vld [vmem:[#allocation9 + $0x40] sm:$0xff]
    %v2225 = vld [vmem:[#allocation9 + $0x48] sm:$0xff]
    %v2226 = vld [vmem:[#allocation9 + $0x50] sm:$0xff]
    %v2227 = vld [vmem:[#allocation9 + $0x58] sm:$0xff]
    %v2228 = vld [vmem:[#allocation9 + $0x60] sm:$0xff]
    %v2229 = vld [vmem:[#allocation9 + $0x68] sm:$0xff]
    %v2230 = vld [vmem:[#allocation9 + $0x70] sm:$0xff]
    %v2231 = vld [vmem:[#allocation9 + $0x78] sm:$0xff]
    %v2232 = vld [vmem:[#allocation9 + $0x80] sm:$0xff]
    %v2233 = vld [vmem:[#allocation9 + $0x88] sm:$0xff]
    %v2234 = vld [vmem:[#allocation9 + $0x90] sm:$0xff]
    %v2235 = vld [vmem:[#allocation9 + $0x98] sm:$0xff]
    %v2236 = vld [vmem:[#allocation9 + $0xa0] sm:$0xff]
    %v2237 = vld [vmem:[#allocation9 + $0xa8] sm:$0xff]
    %v2238 = vld [vmem:[#allocation9 + $0xb0] sm:$0xff]
    %v2239 = vld [vmem:[#allocation9 + $0xb8] sm:$0xff]
    %v2240 = vld [vmem:[#allocation9 + $0xc0] sm:$0xff]
    %v2241 = vld [vmem:[#allocation9 + $0xc8] sm:$0xff]
    %v2242 = vld [vmem:[#allocation9 + $0xd0] sm:$0xff]
    %v2243 = vld [vmem:[#allocation9 + $0xd8] sm:$0xff]
    %v2244 = vld [vmem:[#allocation9 + $0xe0] sm:$0xff]
    %v2245 = vld [vmem:[#allocation9 + $0xe8] sm:$0xff]
    %v2246 = vld [vmem:[#allocation9 + $0xf0] sm:$0xff]
    %v2247 = vld [vmem:[#allocation9 + $0xf8] sm:$0xff]
    %v2248 = vld [vmem:[#allocation9 + $0x100] sm:$0xff]
    %v2249 = vld [vmem:[#allocation9 + $0x108] sm:$0xff]
    %v2250 = vld [vmem:[#allocation9 + $0x110] sm:$0xff]
    %v2251 = vld [vmem:[#allocation9 + $0x118] sm:$0xff]
    %v2252 = vld [vmem:[#allocation9 + $0x120] sm:$0xff]
    %v2253 = vld [vmem:[#allocation9 + $0x128] sm:$0xff]
    %v2254 = vld [vmem:[#allocation9 + $0x130] sm:$0xff]
    %v2255 = vld [vmem:[#allocation9 + $0x138] sm:$0xff]
    %v2256 = vld [vmem:[#allocation9 + $0x140] sm:$0xff]
    %v2257 = vld [vmem:[#allocation9 + $0x148] sm:$0xff]
    %v2258 = vld [vmem:[#allocation9 + $0x150] sm:$0xff]
    %v2259 = vld [vmem:[#allocation9 + $0x158] sm:$0xff]
    %v2260 = vld [vmem:[#allocation9 + $0x160] sm:$0xff]
    %v2261 = vld [vmem:[#allocation9 + $0x168] sm:$0xff]
    %v2262 = vld [vmem:[#allocation9 + $0x170] sm:$0xff]
    %v2263 = vld [vmem:[#allocation9 + $0x178] sm:$0xff]
    %v2264 = vld [vmem:[#allocation9 + $0x180] sm:$0xff]
    %v2265 = vld [vmem:[#allocation9 + $0x188] sm:$0xff]
    %v2266 = vld [vmem:[#allocation9 + $0x190] sm:$0xff]
    %v2267 = vld [vmem:[#allocation9 + $0x198] sm:$0xff]
    %v2268 = vld [vmem:[#allocation9 + $0x1a0] sm:$0xff]
    %v2269 = vld [vmem:[#allocation9 + $0x1a8] sm:$0xff]
    %v2270 = vld [vmem:[#allocation9 + $0x1b0] sm:$0xff]
    %v2271 = vld [vmem:[#allocation9 + $0x1b8] sm:$0xff]
    %v2272 = vld [vmem:[#allocation9 + $0x1c0] sm:$0xff]
    %v2273 = vld [vmem:[#allocation9 + $0x1c8] sm:$0xff]
    %v2274 = vld [vmem:[#allocation9 + $0x1d0] sm:$0xff]
    %v2275 = vld [vmem:[#allocation9 + $0x1d8] sm:$0xff]
    %v2276 = vld [vmem:[#allocation9 + $0x1e0] sm:$0xff]
    %v2277 = vld [vmem:[#allocation9 + $0x1e8] sm:$0xff]
    %v2278 = vld [vmem:[#allocation9 + $0x1f0] sm:$0xff]
    %v2279 = vld [vmem:[#allocation9 + $0x1f8] sm:$0xff]
    %v2280 = vld [vmem:[#allocation9 + $0x200] sm:$0xff]
    %v2281 = vld [vmem:[#allocation9 + $0x208] sm:$0xff]
    %v2282 = vld [vmem:[#allocation9 + $0x210] sm:$0xff]
    %v2283 = vld [vmem:[#allocation9 + $0x218] sm:$0xff]
    %v2284 = vld [vmem:[#allocation9 + $0x220] sm:$0xff]
    %v2285 = vld [vmem:[#allocation9 + $0x228] sm:$0xff]
    %v2286 = vld [vmem:[#allocation9 + $0x230] sm:$0xff]
    %v2287 = vld [vmem:[#allocation9 + $0x238] sm:$0xff]
    %v2288 = vld [vmem:[#allocation9 + $0x240] sm:$0xff]
    %v2289 = vld [vmem:[#allocation9 + $0x248] sm:$0xff]
    %v2290 = vld [vmem:[#allocation9 + $0x250] sm:$0xff]
    %v2291 = vld [vmem:[#allocation9 + $0x258] sm:$0xff]
    %v2292 = vld [vmem:[#allocation9 + $0x260] sm:$0xff]
    %v2293 = vld [vmem:[#allocation9 + $0x268] sm:$0xff]
    %v2294 = vld [vmem:[#allocation9 + $0x270] sm:$0xff]
    %v2295 = vld [vmem:[#allocation9 + $0x278] sm:$0xff]
    %v2296 = vld [vmem:[#allocation9 + $0x280] sm:$0xff]
    %v2297 = vld [vmem:[#allocation9 + $0x288] sm:$0xff]
    %v2298 = vld [vmem:[#allocation9 + $0x290] sm:$0xff]
    %v2299 = vld [vmem:[#allocation9 + $0x298] sm:$0xff]
    %v2300 = vld [vmem:[#allocation9 + $0x2a0] sm:$0xff]
    %v2301 = vld [vmem:[#allocation9 + $0x2a8] sm:$0xff]
    %v2302 = vld [vmem:[#allocation9 + $0x2b0] sm:$0xff]
    %v2303 = vld [vmem:[#allocation9 + $0x2b8] sm:$0xff]
    %v2304 = vld [vmem:[#allocation9 + $0x2c0] sm:$0xff]
    %v2305 = vld [vmem:[#allocation9 + $0x2c8] sm:$0xff]
    %v2306 = vld [vmem:[#allocation9 + $0x2d0] sm:$0xff]
    %v2307 = vld [vmem:[#allocation9 + $0x2d8] sm:$0xff]
    %v2308 = vld [vmem:[#allocation9 + $0x2e0] sm:$0xff]
    %v2309 = vld [vmem:[#allocation9 + $0x2e8] sm:$0xff]
    %v2310 = vld [vmem:[#allocation9 + $0x2f0] sm:$0xff]
    %v2311 = vld [vmem:[#allocation9 + $0x2f8] sm:$0xff]
    %v2312 = vld [vmem:[#allocation9 + $0x300] sm:$0xff]
    %v2313 = vld [vmem:[#allocation9 + $0x308] sm:$0xff]
    %v2314 = vld [vmem:[#allocation9 + $0x310] sm:$0xff]
    %v2315 = vld [vmem:[#allocation9 + $0x318] sm:$0xff]
    %v2316 = vld [vmem:[#allocation9 + $0x320] sm:$0xff]
    %v2317 = vld [vmem:[#allocation9 + $0x328] sm:$0xff]
    %v2318 = vld [vmem:[#allocation9 + $0x330] sm:$0xff]
    %v2319 = vld [vmem:[#allocation9 + $0x338] sm:$0xff]
    %v2320 = vld [vmem:[#allocation9 + $0x340] sm:$0xff]
    %v2321 = vld [vmem:[#allocation9 + $0x348] sm:$0xff]
    %v2322 = vld [vmem:[#allocation9 + $0x350] sm:$0xff]
    %v2323 = vld [vmem:[#allocation9 + $0x358] sm:$0xff]
    %v2324 = vld [vmem:[#allocation9 + $0x360] sm:$0xff]
    %v2325 = vld [vmem:[#allocation9 + $0x368] sm:$0xff]
    %v2326 = vld [vmem:[#allocation9 + $0x370] sm:$0xff]
    %v2327 = vld [vmem:[#allocation9 + $0x378] sm:$0xff]
    %v2328 = vld [vmem:[#allocation9 + $0x380] sm:$0xff]
    %v2329 = vld [vmem:[#allocation9 + $0x388] sm:$0xff]
    %v2330 = vld [vmem:[#allocation9 + $0x390] sm:$0xff]
    %v2331 = vld [vmem:[#allocation9 + $0x398] sm:$0xff]
    %v2332 = vld [vmem:[#allocation9 + $0x3a0] sm:$0xff]
    %v2333 = vld [vmem:[#allocation9 + $0x3a8] sm:$0xff]
    %v2334 = vld [vmem:[#allocation9 + $0x3b0] sm:$0xff]
    %v2335 = vld [vmem:[#allocation9 + $0x3b8] sm:$0xff]
    %v2336 = vld [vmem:[#allocation9 + $0x3c0] sm:$0xff]
    %v2337 = vld [vmem:[#allocation9 + $0x3c8] sm:$0xff]
    %v2338 = vld [vmem:[#allocation9 + $0x3d0] sm:$0xff]
    %v2339 = vld [vmem:[#allocation9 + $0x3d8] sm:$0xff]
    %v2340 = vld [vmem:[#allocation9 + $0x3e0] sm:$0xff]
    %v2341 = vld [vmem:[#allocation9 + $0x3e8] sm:$0xff]
    %v2342 = vld [vmem:[#allocation9 + $0x3f0] sm:$0xff]
    %v2343 = vld [vmem:[#allocation9 + $0x3f8] sm:$0xff]
    %v2344 = vld [vmem:[#allocation9 + $0x400] sm:$0xff]
    %v2345 = vld [vmem:[#allocation9 + $0x408] sm:$0xff]
    %v2346 = vld [vmem:[#allocation9 + $0x410] sm:$0xff]
    %v2347 = vld [vmem:[#allocation9 + $0x418] sm:$0xff]
    %v2348 = vld [vmem:[#allocation9 + $0x420] sm:$0xff]
    %v2349 = vld [vmem:[#allocation9 + $0x428] sm:$0xff]
    %v2350 = vld [vmem:[#allocation9 + $0x430] sm:$0xff]
    %v2351 = vld [vmem:[#allocation9 + $0x438] sm:$0xff]
    %v2352 = vld [vmem:[#allocation9 + $0x440] sm:$0xff]
    %v2353 = vld [vmem:[#allocation9 + $0x448] sm:$0xff]
    %v2354 = vld [vmem:[#allocation9 + $0x450] sm:$0xff]
    %v2355 = vld [vmem:[#allocation9 + $0x458] sm:$0xff]
    %v2356 = vld [vmem:[#allocation9 + $0x460] sm:$0xff]
    %v2357 = vld [vmem:[#allocation9 + $0x468] sm:$0xff]
    %v2358 = vld [vmem:[#allocation9 + $0x470] sm:$0xff]
    %v2359 = vld [vmem:[#allocation9 + $0x478] sm:$0xff]
    %v2360 = vld [vmem:[#allocation9 + $0x480] sm:$0xff]
    %v2361 = vld [vmem:[#allocation9 + $0x488] sm:$0xff]
    %v2362 = vld [vmem:[#allocation9 + $0x490] sm:$0xff]
    %v2363 = vld [vmem:[#allocation9 + $0x498] sm:$0xff]
    %v2364 = vld [vmem:[#allocation9 + $0x4a0] sm:$0xff]
    %v2365 = vld [vmem:[#allocation9 + $0x4a8] sm:$0xff]
    %v2366 = vld [vmem:[#allocation9 + $0x4b0] sm:$0xff]
    %v2367 = vld [vmem:[#allocation9 + $0x4b8] sm:$0xff]
    %v2368 = vld [vmem:[#allocation9 + $0x4c0] sm:$0xff]
    %v2369 = vld [vmem:[#allocation9 + $0x4c8] sm:$0xff]
    %v2370 = vld [vmem:[#allocation9 + $0x4d0] sm:$0xff]
    %v2371 = vld [vmem:[#allocation9 + $0x4d8] sm:$0xff]
    %v2372 = vld [vmem:[#allocation9 + $0x4e0] sm:$0xff]
    %v2373 = vld [vmem:[#allocation9 + $0x4e8] sm:$0xff]
    %v2374 = vld [vmem:[#allocation9 + $0x4f0] sm:$0xff]
    %v2375 = vld [vmem:[#allocation9 + $0x4f8] sm:$0xff]
    %v2376 = vld [vmem:[#allocation9 + $0x500] sm:$0xff]
    %v2377 = vld [vmem:[#allocation9 + $0x508] sm:$0xff]
    %v2378 = vld [vmem:[#allocation9 + $0x510] sm:$0xff]
    %v2379 = vld [vmem:[#allocation9 + $0x518] sm:$0xff]
    %v2380 = vld [vmem:[#allocation9 + $0x520] sm:$0xff]
    %v2381 = vld [vmem:[#allocation9 + $0x528] sm:$0xff]
    %v2382 = vld [vmem:[#allocation9 + $0x530] sm:$0xff]
    %v2383 = vld [vmem:[#allocation9 + $0x538] sm:$0xff]
    %v2384 = vld [vmem:[#allocation9 + $0x540] sm:$0xff]
    %v2385 = vld [vmem:[#allocation9 + $0x548] sm:$0xff]
    %v2386 = vld [vmem:[#allocation9 + $0x550] sm:$0xff]
    %v2387 = vld [vmem:[#allocation9 + $0x558] sm:$0xff]
    %v2388 = vld [vmem:[#allocation9 + $0x560] sm:$0xff]
    %v2389 = vld [vmem:[#allocation9 + $0x568] sm:$0xff]
    %v2390 = vld [vmem:[#allocation9 + $0x570] sm:$0xff]
    %v2391 = vld [vmem:[#allocation9 + $0x578] sm:$0xff]
    %v2392 = vld [vmem:[#allocation9 + $0x580] sm:$0xff]
    %v2393 = vld [vmem:[#allocation9 + $0x588] sm:$0xff]
    %v2394 = vld [vmem:[#allocation9 + $0x590] sm:$0xff]
    %v2395 = vld [vmem:[#allocation9 + $0x598] sm:$0xff]
    %v2396 = vld [vmem:[#allocation9 + $0x5a0] sm:$0xff]
    %v2397 = vld [vmem:[#allocation9 + $0x5a8] sm:$0xff]
    %v2398 = vld [vmem:[#allocation9 + $0x5b0] sm:$0xff]
    %v2399 = vld [vmem:[#allocation9 + $0x5b8] sm:$0xff]
    %v2400 = vld [vmem:[#allocation9 + $0x5c0] sm:$0xff]
    %v2401 = vld [vmem:[#allocation9 + $0x5c8] sm:$0xff]
    %v2402 = vld [vmem:[#allocation9 + $0x5d0] sm:$0xff]
    %v2403 = vld [vmem:[#allocation9 + $0x5d8] sm:$0xff]
    %v2404 = vld [vmem:[#allocation9 + $0x5e0] sm:$0xff]
    %v2405 = vld [vmem:[#allocation9 + $0x5e8] sm:$0xff]
    %v2406 = vld [vmem:[#allocation9 + $0x5f0] sm:$0xff]
    %v2407 = vld [vmem:[#allocation9 + $0x5f8] sm:$0xff]
    %v2408 = vld [vmem:[#allocation9 + $0x600] sm:$0xff]
    %v2409 = vld [vmem:[#allocation9 + $0x608] sm:$0xff]
    %v2410 = vld [vmem:[#allocation9 + $0x610] sm:$0xff]
    %v2411 = vld [vmem:[#allocation9 + $0x618] sm:$0xff]
    %v2412 = vld [vmem:[#allocation9 + $0x620] sm:$0xff]
    %v2413 = vld [vmem:[#allocation9 + $0x628] sm:$0xff]
    %v2414 = vld [vmem:[#allocation9 + $0x630] sm:$0xff]
    %v2415 = vld [vmem:[#allocation9 + $0x638] sm:$0xff]
    %v2416 = vld [vmem:[#allocation9 + $0x640] sm:$0xff]
    %v2417 = vld [vmem:[#allocation9 + $0x648] sm:$0xff]
    %v2418 = vld [vmem:[#allocation9 + $0x650] sm:$0xff]
    %v2419 = vld [vmem:[#allocation9 + $0x658] sm:$0xff]
    %v2420 = vld [vmem:[#allocation9 + $0x660] sm:$0xff]
    %v2421 = vld [vmem:[#allocation9 + $0x668] sm:$0xff]
    %v2422 = vld [vmem:[#allocation9 + $0x670] sm:$0xff]
    %v2423 = vld [vmem:[#allocation9 + $0x678] sm:$0xff]
    %v2424 = vld [vmem:[#allocation9 + $0x680] sm:$0xff]
    %v2425 = vld [vmem:[#allocation9 + $0x688] sm:$0xff]
    %v2426 = vld [vmem:[#allocation9 + $0x690] sm:$0xff]
    %v2427 = vld [vmem:[#allocation9 + $0x698] sm:$0xff]
    %v2428 = vld [vmem:[#allocation9 + $0x6a0] sm:$0xff]
    %v2429 = vld [vmem:[#allocation9 + $0x6a8] sm:$0xff]
    %v2430 = vld [vmem:[#allocation9 + $0x6b0] sm:$0xff]
    %v2431 = vld [vmem:[#allocation9 + $0x6b8] sm:$0xff]
    %v2432 = vld [vmem:[#allocation9 + $0x6c0] sm:$0xff]
    %v2433 = vld [vmem:[#allocation9 + $0x6c8] sm:$0xff]
    %v2434 = vld [vmem:[#allocation9 + $0x6d0] sm:$0xff]
    %v2435 = vld [vmem:[#allocation9 + $0x6d8] sm:$0xff]
    %v2436 = vld [vmem:[#allocation9 + $0x6e0] sm:$0xff]
    %v2437 = vld [vmem:[#allocation9 + $0x6e8] sm:$0xff]
    %v2438 = vld [vmem:[#allocation9 + $0x6f0] sm:$0xff]
    %v2439 = vld [vmem:[#allocation9 + $0x6f8] sm:$0xff]
    %v2440 = vld [vmem:[#allocation9 + $0x700] sm:$0xff]
    %v2441 = vld [vmem:[#allocation9 + $0x708] sm:$0xff]
    %v2442 = vld [vmem:[#allocation9 + $0x710] sm:$0xff]
    %v2443 = vld [vmem:[#allocation9 + $0x718] sm:$0xff]
    %v2444 = vld [vmem:[#allocation9 + $0x720] sm:$0xff]
    %v2445 = vld [vmem:[#allocation9 + $0x728] sm:$0xff]
    %v2446 = vld [vmem:[#allocation9 + $0x730] sm:$0xff]
    %v2447 = vld [vmem:[#allocation9 + $0x738] sm:$0xff]
    %v2448 = vld [vmem:[#allocation9 + $0x740] sm:$0xff]
    %v2449 = vld [vmem:[#allocation9 + $0x748] sm:$0xff]
    %v2450 = vld [vmem:[#allocation9 + $0x750] sm:$0xff]
    %v2451 = vld [vmem:[#allocation9 + $0x758] sm:$0xff]
    %v2452 = vld [vmem:[#allocation9 + $0x760] sm:$0xff]
    %v2453 = vld [vmem:[#allocation9 + $0x768] sm:$0xff]
    %v2454 = vld [vmem:[#allocation9 + $0x770] sm:$0xff]
    %v2455 = vld [vmem:[#allocation9 + $0x778] sm:$0xff]
    %v2456 = vld [vmem:[#allocation9 + $0x780] sm:$0xff]
    %v2457 = vld [vmem:[#allocation9 + $0x788] sm:$0xff]
    %v2458 = vld [vmem:[#allocation9 + $0x790] sm:$0xff]
    %v2459 = vld [vmem:[#allocation9 + $0x798] sm:$0xff]
    %v2460 = vld [vmem:[#allocation9 + $0x7a0] sm:$0xff]
    %v2461 = vld [vmem:[#allocation9 + $0x7a8] sm:$0xff]
    %v2462 = vld [vmem:[#allocation9 + $0x7b0] sm:$0xff]
    %v2463 = vld [vmem:[#allocation9 + $0x7b8] sm:$0xff]
    %v2464 = vld [vmem:[#allocation9 + $0x7c0] sm:$0xff]
    %v2465 = vld [vmem:[#allocation9 + $0x7c8] sm:$0xff]
    %v2466 = vld [vmem:[#allocation9 + $0x7d0] sm:$0xff]
    %v2467 = vld [vmem:[#allocation9 + $0x7d8] sm:$0xff]
    %v2468 = vld [vmem:[#allocation9 + $0x7e0] sm:$0xff]
    %v2469 = vld [vmem:[#allocation9 + $0x7e8] sm:$0xff]
    %v2470 = vld [vmem:[#allocation9 + $0x7f0] sm:$0xff]
    %v2471 = vld [vmem:[#allocation9 + $0x7f8] sm:$0xff]
    %v2472 = vld [vmem:[#allocation9 + $0x800] sm:$0xff]
    %v2473 = vld [vmem:[#allocation9 + $0x808] sm:$0xff]
    %v2474 = vld [vmem:[#allocation9 + $0x810] sm:$0xff]
    %v2475 = vld [vmem:[#allocation9 + $0x818] sm:$0xff]
    %v2476 = vld [vmem:[#allocation9 + $0x820] sm:$0xff]
    %v2477 = vld [vmem:[#allocation9 + $0x828] sm:$0xff]
    %v2478 = vld [vmem:[#allocation9 + $0x830] sm:$0xff]
    %v2479 = vld [vmem:[#allocation9 + $0x838] sm:$0xff]
    %v2480 = vld [vmem:[#allocation9 + $0x840] sm:$0xff]
    %v2481 = vld [vmem:[#allocation9 + $0x848] sm:$0xff]
    %v2482 = vld [vmem:[#allocation9 + $0x850] sm:$0xff]
    %v2483 = vld [vmem:[#allocation9 + $0x858] sm:$0xff]
    %v2484 = vld [vmem:[#allocation9 + $0x860] sm:$0xff]
    %v2485 = vld [vmem:[#allocation9 + $0x868] sm:$0xff]
    %v2486 = vld [vmem:[#allocation9 + $0x870] sm:$0xff]
    %v2487 = vld [vmem:[#allocation9 + $0x878] sm:$0xff]
    %v2488 = vld [vmem:[#allocation9 + $0x880] sm:$0xff]
    %v2489 = vld [vmem:[#allocation9 + $0x888] sm:$0xff]
    %v2490 = vld [vmem:[#allocation9 + $0x890] sm:$0xff]
    %v2491 = vld [vmem:[#allocation9 + $0x898] sm:$0xff]
    %v2492 = vld [vmem:[#allocation9 + $0x8a0] sm:$0xff]
    %v2493 = vld [vmem:[#allocation9 + $0x8a8] sm:$0xff]
    %v2494 = vld [vmem:[#allocation9 + $0x8b0] sm:$0xff]
    %v2495 = vld [vmem:[#allocation9 + $0x8b8] sm:$0xff]
    %v2496 = vld [vmem:[#allocation9 + $0x8c0] sm:$0xff]
    %v2497 = vld [vmem:[#allocation9 + $0x8c8] sm:$0xff]
    %v2498 = vld [vmem:[#allocation9 + $0x8d0] sm:$0xff]
    %v2499 = vld [vmem:[#allocation9 + $0x8d8] sm:$0xff]
    %v2500 = vld [vmem:[#allocation9 + $0x8e0] sm:$0xff]
    %v2501 = vld [vmem:[#allocation9 + $0x8e8] sm:$0xff]
    %v2502 = vld [vmem:[#allocation9 + $0x8f0] sm:$0xff]
    %v2503 = vld [vmem:[#allocation9 + $0x8f8] sm:$0xff]
    %v2504 = vld [vmem:[#allocation9 + $0x900] sm:$0xff]
    %v2505 = vld [vmem:[#allocation9 + $0x908] sm:$0xff]
    %v2506 = vld [vmem:[#allocation9 + $0x910] sm:$0xff]
    %v2507 = vld [vmem:[#allocation9 + $0x918] sm:$0xff]
    %v2508 = vld [vmem:[#allocation9 + $0x920] sm:$0xff]
    %v2509 = vld [vmem:[#allocation9 + $0x928] sm:$0xff]
    %v2510 = vld [vmem:[#allocation9 + $0x930] sm:$0xff]
    %v2511 = vld [vmem:[#allocation9 + $0x938] sm:$0xff]
    %v2512 = vld [vmem:[#allocation9 + $0x940] sm:$0xff]
    %v2513 = vld [vmem:[#allocation9 + $0x948] sm:$0xff]
    %v2514 = vld [vmem:[#allocation9 + $0x950] sm:$0xff]
    %v2515 = vld [vmem:[#allocation9 + $0x958] sm:$0xff]
    %v2516 = vld [vmem:[#allocation9 + $0x960] sm:$0xff]
    %v2517 = vld [vmem:[#allocation9 + $0x968] sm:$0xff]
    %v2518 = vld [vmem:[#allocation9 + $0x970] sm:$0xff]
    %v2519 = vld [vmem:[#allocation9 + $0x978] sm:$0xff]
    %v2520 = vld [vmem:[#allocation9 + $0x980] sm:$0xff]
    %v2521 = vld [vmem:[#allocation9 + $0x988] sm:$0xff]
    %v2522 = vld [vmem:[#allocation9 + $0x990] sm:$0xff]
    %v2523 = vld [vmem:[#allocation9 + $0x998] sm:$0xff]
    %v2524 = vld [vmem:[#allocation9 + $0x9a0] sm:$0xff]
    %v2525 = vld [vmem:[#allocation9 + $0x9a8] sm:$0xff]
    %v2526 = vld [vmem:[#allocation9 + $0x9b0] sm:$0xff]
    %v2527 = vld [vmem:[#allocation9 + $0x9b8] sm:$0xff]
    %v2528 = vld [vmem:[#allocation9 + $0x9c0] sm:$0xff]
    %v2529 = vld [vmem:[#allocation9 + $0x9c8] sm:$0xff]
    %v2530 = vld [vmem:[#allocation9 + $0x9d0] sm:$0xff]
    %v2531 = vld [vmem:[#allocation9 + $0x9d8] sm:$0xff]
    %v2532 = vld [vmem:[#allocation9 + $0x9e0] sm:$0xff]
    %v2533 = vld [vmem:[#allocation9 + $0x9e8] sm:$0xff]
    %v2534 = vld [vmem:[#allocation9 + $0x9f0] sm:$0xff]
    %v2535 = vld [vmem:[#allocation9 + $0x9f8] sm:$0xff]
    %v2536 = vld [vmem:[#allocation9 + $0xa00] sm:$0xff]
    %v2537 = vld [vmem:[#allocation9 + $0xa08] sm:$0xff]
    %v2538 = vld [vmem:[#allocation9 + $0xa10] sm:$0xff]
    %v2539 = vld [vmem:[#allocation9 + $0xa18] sm:$0xff]
    %v2540 = vld [vmem:[#allocation9 + $0xa20] sm:$0xff]
    %v2541 = vld [vmem:[#allocation9 + $0xa28] sm:$0xff]
    %v2542 = vld [vmem:[#allocation9 + $0xa30] sm:$0xff]
    %v2543 = vld [vmem:[#allocation9 + $0xa38] sm:$0xff]
    %v2544 = vld [vmem:[#allocation9 + $0xa40] sm:$0xff]
    %v2545 = vld [vmem:[#allocation9 + $0xa48] sm:$0xff]
    %v2546 = vld [vmem:[#allocation9 + $0xa50] sm:$0xff]
    %v2547 = vld [vmem:[#allocation9 + $0xa58] sm:$0xff]
    %v2548 = vld [vmem:[#allocation9 + $0xa60] sm:$0xff]
    %v2549 = vld [vmem:[#allocation9 + $0xa68] sm:$0xff]
    %v2550 = vld [vmem:[#allocation9 + $0xa70] sm:$0xff]
    %v2551 = vld [vmem:[#allocation9 + $0xa78] sm:$0xff]
    %v2552 = vld [vmem:[#allocation9 + $0xa80] sm:$0xff]
    %v2553 = vld [vmem:[#allocation9 + $0xa88] sm:$0xff]
    %v2554 = vld [vmem:[#allocation9 + $0xa90] sm:$0xff]
    %v2555 = vld [vmem:[#allocation9 + $0xa98] sm:$0xff]
    %v2556 = vld [vmem:[#allocation9 + $0xaa0] sm:$0xff]
    %v2557 = vld [vmem:[#allocation9 + $0xaa8] sm:$0xff]
    %v2558 = vld [vmem:[#allocation9 + $0xab0] sm:$0xff]
    %v2559 = vld [vmem:[#allocation9 + $0xab8] sm:$0xff]
    %v2560 = vld [vmem:[#allocation9 + $0xac0] sm:$0xff]
    %v2561 = vld [vmem:[#allocation9 + $0xac8] sm:$0xff]
    %v2562 = vld [vmem:[#allocation9 + $0xad0] sm:$0xff]
    %v2563 = vld [vmem:[#allocation9 + $0xad8] sm:$0xff]
    %v2564 = vld [vmem:[#allocation9 + $0xae0] sm:$0xff]
    %v2565 = vld [vmem:[#allocation9 + $0xae8] sm:$0xff]
    %v2566 = vld [vmem:[#allocation9 + $0xaf0] sm:$0xff]
    %v2567 = vld [vmem:[#allocation9 + $0xaf8] sm:$0xff]
    %v2568 = vld [vmem:[#allocation9 + $0xb00] sm:$0xff]
    %v2569 = vld [vmem:[#allocation9 + $0xb08] sm:$0xff]
    %v2570 = vld [vmem:[#allocation9 + $0xb10] sm:$0xff]
    %v2571 = vld [vmem:[#allocation9 + $0xb18] sm:$0xff]
    %v2572 = vld [vmem:[#allocation9 + $0xb20] sm:$0xff]
    %v2573 = vld [vmem:[#allocation9 + $0xb28] sm:$0xff]
    %v2574 = vld [vmem:[#allocation9 + $0xb30] sm:$0xff]
    %v2575 = vld [vmem:[#allocation9 + $0xb38] sm:$0xff]
    %v2576 = vld [vmem:[#allocation9 + $0xb40] sm:$0xff]
    %v2577 = vld [vmem:[#allocation9 + $0xb48] sm:$0xff]
    %v2578 = vld [vmem:[#allocation9 + $0xb50] sm:$0xff]
    %v2579 = vld [vmem:[#allocation9 + $0xb58] sm:$0xff]
    %v2580 = vld [vmem:[#allocation9 + $0xb60] sm:$0xff]
    %v2581 = vld [vmem:[#allocation9 + $0xb68] sm:$0xff]
    %v2582 = vld [vmem:[#allocation9 + $0xb70] sm:$0xff]
    %v2583 = vld [vmem:[#allocation9 + $0xb78] sm:$0xff]
    %v2584 = vld [vmem:[#allocation9 + $0xb80] sm:$0xff]
    %v2585 = vld [vmem:[#allocation9 + $0xb88] sm:$0xff]
    %v2586 = vld [vmem:[#allocation9 + $0xb90] sm:$0xff]
    %v2587 = vld [vmem:[#allocation9 + $0xb98] sm:$0xff]
    %v2588 = vld [vmem:[#allocation9 + $0xba0] sm:$0xff]
    %v2589 = vld [vmem:[#allocation9 + $0xba8] sm:$0xff]
    %v2590 = vld [vmem:[#allocation9 + $0xbb0] sm:$0xff]
    %v2591 = vld [vmem:[#allocation9 + $0xbb8] sm:$0xff]
    %v2592 = vld [vmem:[#allocation9 + $0xbc0] sm:$0xff]
    %v2593 = vld [vmem:[#allocation9 + $0xbc8] sm:$0xff]
    %v2594 = vld [vmem:[#allocation9 + $0xbd0] sm:$0xff]
    %v2595 = vld [vmem:[#allocation9 + $0xbd8] sm:$0xff]
    %v2596 = vld [vmem:[#allocation9 + $0xbe0] sm:$0xff]
    %v2597 = vld [vmem:[#allocation9 + $0xbe8] sm:$0xff]
    %v2598 = vld [vmem:[#allocation9 + $0xbf0] sm:$0xff]
    %v2599 = vld [vmem:[#allocation9 + $0xbf8] sm:$0xff]
    %v2600 = vld [vmem:[#allocation9 + $0xc00] sm:$0xff]
    %v2601 = vld [vmem:[#allocation9 + $0xc08] sm:$0xff]
    %v2602 = vld [vmem:[#allocation9 + $0xc10] sm:$0xff]
    %v2603 = vld [vmem:[#allocation9 + $0xc18] sm:$0xff]
    %v2604 = vld [vmem:[#allocation9 + $0xc20] sm:$0xff]
    %v2605 = vld [vmem:[#allocation9 + $0xc28] sm:$0xff]
    %v2606 = vld [vmem:[#allocation9 + $0xc30] sm:$0xff]
    %v2607 = vld [vmem:[#allocation9 + $0xc38] sm:$0xff]
    %v2608 = vld [vmem:[#allocation9 + $0xc40] sm:$0xff]
    %v2609 = vld [vmem:[#allocation9 + $0xc48] sm:$0xff]
    %v2610 = vld [vmem:[#allocation9 + $0xc50] sm:$0xff]
    %v2611 = vld [vmem:[#allocation9 + $0xc58] sm:$0xff]
    %v2612 = vld [vmem:[#allocation9 + $0xc60] sm:$0xff]
    %v2613 = vld [vmem:[#allocation9 + $0xc68] sm:$0xff]
    %v2614 = vld [vmem:[#allocation9 + $0xc70] sm:$0xff]
    %v2615 = vld [vmem:[#allocation9 + $0xc78] sm:$0xff]
    %v2616 = vld [vmem:[#allocation9 + $0xc80] sm:$0xff]
    %v2617 = vld [vmem:[#allocation9 + $0xc88] sm:$0xff]
    %v2618 = vld [vmem:[#allocation9 + $0xc90] sm:$0xff]
    %v2619 = vld [vmem:[#allocation9 + $0xc98] sm:$0xff]
    %v2620 = vld [vmem:[#allocation9 + $0xca0] sm:$0xff]
    %v2621 = vld [vmem:[#allocation9 + $0xca8] sm:$0xff]
    %v2622 = vld [vmem:[#allocation9 + $0xcb0] sm:$0xff]
    %v2623 = vld [vmem:[#allocation9 + $0xcb8] sm:$0xff]
    %v2624 = vld [vmem:[#allocation9 + $0xcc0] sm:$0xff]
    %v2625 = vld [vmem:[#allocation9 + $0xcc8] sm:$0xff]
    %v2626 = vld [vmem:[#allocation9 + $0xcd0] sm:$0xff]
    %v2627 = vld [vmem:[#allocation9 + $0xcd8] sm:$0xff]
    %v2628 = vld [vmem:[#allocation9 + $0xce0] sm:$0xff]
    %v2629 = vld [vmem:[#allocation9 + $0xce8] sm:$0xff]
    %v2630 = vld [vmem:[#allocation9 + $0xcf0] sm:$0xff]
    %v2631 = vld [vmem:[#allocation9 + $0xcf8] sm:$0xff]
    %v2632 = vld [vmem:[#allocation9 + $0xd00] sm:$0xff]
    %v2633 = vld [vmem:[#allocation9 + $0xd08] sm:$0xff]
    %v2634 = vld [vmem:[#allocation9 + $0xd10] sm:$0xff]
    %v2635 = vld [vmem:[#allocation9 + $0xd18] sm:$0xff]
    %v2636 = vld [vmem:[#allocation9 + $0xd20] sm:$0xff]
    %v2637 = vld [vmem:[#allocation9 + $0xd28] sm:$0xff]
    %v2638 = vld [vmem:[#allocation9 + $0xd30] sm:$0xff]
    %v2639 = vld [vmem:[#allocation9 + $0xd38] sm:$0xff]
    %v2640 = vld [vmem:[#allocation9 + $0xd40] sm:$0xff]
    %v2641 = vld [vmem:[#allocation9 + $0xd48] sm:$0xff]
    %v2642 = vld [vmem:[#allocation9 + $0xd50] sm:$0xff]
    %v2643 = vld [vmem:[#allocation9 + $0xd58] sm:$0xff]
    %v2644 = vld [vmem:[#allocation9 + $0xd60] sm:$0xff]
    %v2645 = vld [vmem:[#allocation9 + $0xd68] sm:$0xff]
    %v2646 = vld [vmem:[#allocation9 + $0xd70] sm:$0xff]
    %v2647 = vld [vmem:[#allocation9 + $0xd78] sm:$0xff]
    %v2648 = vld [vmem:[#allocation9 + $0xd80] sm:$0xff]
    %v2649 = vld [vmem:[#allocation9 + $0xd88] sm:$0xff]
    %v2650 = vld [vmem:[#allocation9 + $0xd90] sm:$0xff]
    %v2651 = vld [vmem:[#allocation9 + $0xd98] sm:$0xff]
    %v2652 = vld [vmem:[#allocation9 + $0xda0] sm:$0xff]
    %v2653 = vld [vmem:[#allocation9 + $0xda8] sm:$0xff]
    %v2654 = vld [vmem:[#allocation9 + $0xdb0] sm:$0xff]
    %v2655 = vld [vmem:[#allocation9 + $0xdb8] sm:$0xff]
    %v2656 = vld [vmem:[#allocation9 + $0xdc0] sm:$0xff]
    %v2657 = vld [vmem:[#allocation9 + $0xdc8] sm:$0xff]
    %v2658 = vld [vmem:[#allocation9 + $0xdd0] sm:$0xff]
    %v2659 = vld [vmem:[#allocation9 + $0xdd8] sm:$0xff]
    %v2660 = vld [vmem:[#allocation9 + $0xde0] sm:$0xff]
    %v2661 = vld [vmem:[#allocation9 + $0xde8] sm:$0xff]
    %v2662 = vld [vmem:[#allocation9 + $0xdf0] sm:$0xff]
    %v2663 = vld [vmem:[#allocation9 + $0xdf8] sm:$0xff]
    %v2664 = vld [vmem:[#allocation9 + $0xe00] sm:$0xff]
    %v2665 = vld [vmem:[#allocation9 + $0xe08] sm:$0xff]
    %v2666 = vld [vmem:[#allocation9 + $0xe10] sm:$0xff]
    %v2667 = vld [vmem:[#allocation9 + $0xe18] sm:$0xff]
    %v2668 = vld [vmem:[#allocation9 + $0xe20] sm:$0xff]
    %v2669 = vld [vmem:[#allocation9 + $0xe28] sm:$0xff]
    %v2670 = vld [vmem:[#allocation9 + $0xe30] sm:$0xff]
    %v2671 = vld [vmem:[#allocation9 + $0xe38] sm:$0xff]
    %v2672 = vld [vmem:[#allocation9 + $0xe40] sm:$0xff]
    %v2673 = vld [vmem:[#allocation9 + $0xe48] sm:$0xff]
    %v2674 = vld [vmem:[#allocation9 + $0xe50] sm:$0xff]
    %v2675 = vld [vmem:[#allocation9 + $0xe58] sm:$0xff]
    %v2676 = vld [vmem:[#allocation9 + $0xe60] sm:$0xff]
    %v2677 = vld [vmem:[#allocation9 + $0xe68] sm:$0xff]
    %v2678 = vld [vmem:[#allocation9 + $0xe70] sm:$0xff]
    %v2679 = vld [vmem:[#allocation9 + $0xe78] sm:$0xff]
    %v2680 = vld [vmem:[#allocation9 + $0xe80] sm:$0xff]
    %v2681 = vld [vmem:[#allocation9 + $0xe88] sm:$0xff]
    %v2682 = vld [vmem:[#allocation9 + $0xe90] sm:$0xff]
    %v2683 = vld [vmem:[#allocation9 + $0xe98] sm:$0xff]
    %v2684 = vld [vmem:[#allocation9 + $0xea0] sm:$0xff]
    %v2685 = vld [vmem:[#allocation9 + $0xea8] sm:$0xff]
    %v2686 = vld [vmem:[#allocation9 + $0xeb0] sm:$0xff]
    %v2687 = vld [vmem:[#allocation9 + $0xeb8] sm:$0xff]
    %v2688 = vld [vmem:[#allocation9 + $0xec0] sm:$0xff]
    %v2689 = vld [vmem:[#allocation9 + $0xec8] sm:$0xff]
    %v2690 = vld [vmem:[#allocation9 + $0xed0] sm:$0xff]
    %v2691 = vld [vmem:[#allocation9 + $0xed8] sm:$0xff]
    %v2692 = vld [vmem:[#allocation9 + $0xee0] sm:$0xff]
    %v2693 = vld [vmem:[#allocation9 + $0xee8] sm:$0xff]
    %v2694 = vld [vmem:[#allocation9 + $0xef0] sm:$0xff]
    %v2695 = vld [vmem:[#allocation9 + $0xef8] sm:$0xff]
    %v2696 = vld [vmem:[#allocation9 + $0xf00] sm:$0xff]
    %v2697 = vld [vmem:[#allocation9 + $0xf08] sm:$0xff]
    %v2698 = vld [vmem:[#allocation9 + $0xf10] sm:$0xff]
    %v2699 = vld [vmem:[#allocation9 + $0xf18] sm:$0xff]
    %v2700 = vld [vmem:[#allocation9 + $0xf20] sm:$0xff]
    %v2701 = vld [vmem:[#allocation9 + $0xf28] sm:$0xff]
    %v2702 = vld [vmem:[#allocation9 + $0xf30] sm:$0xff]
    %v2703 = vld [vmem:[#allocation9 + $0xf38] sm:$0xff]
    %v2704 = vld [vmem:[#allocation9 + $0xf40] sm:$0xff]
    %v2705 = vld [vmem:[#allocation9 + $0xf48] sm:$0xff]
    %v2706 = vld [vmem:[#allocation9 + $0xf50] sm:$0xff]
    %v2707 = vld [vmem:[#allocation9 + $0xf58] sm:$0xff]
    %v2708 = vld [vmem:[#allocation9 + $0xf60] sm:$0xff]
    %v2709 = vld [vmem:[#allocation9 + $0xf68] sm:$0xff]
    %v2710 = vld [vmem:[#allocation9 + $0xf70] sm:$0xff]
    %v2711 = vld [vmem:[#allocation9 + $0xf78] sm:$0xff]
    %v2712 = vld [vmem:[#allocation9 + $0xf80] sm:$0xff]
    %v2713 = vld [vmem:[#allocation9 + $0xf88] sm:$0xff]
    %v2714 = vld [vmem:[#allocation9 + $0xf90] sm:$0xff]
    %v2715 = vld [vmem:[#allocation9 + $0xf98] sm:$0xff]
    %v2716 = vld [vmem:[#allocation9 + $0xfa0] sm:$0xff]
    %v2717 = vld [vmem:[#allocation9 + $0xfa8] sm:$0xff]
    %v2718 = vld [vmem:[#allocation9 + $0xfb0] sm:$0xff]
    %v2719 = vld [vmem:[#allocation9 + $0xfb8] sm:$0xff]
    %v2720 = vld [vmem:[#allocation9 + $0xfc0] sm:$0xff]
    %v2721 = vld [vmem:[#allocation9 + $0xfc8] sm:$0xff]
    %v2722 = vld [vmem:[#allocation9 + $0xfd0] sm:$0xff]
    %v2723 = vld [vmem:[#allocation9 + $0xfd8] sm:$0xff]
    %v2724 = vld [vmem:[#allocation9 + $0xfe0] sm:$0xff]
    %v2725 = vld [vmem:[#allocation9 + $0xfe8] sm:$0xff]
    %v2726 = vld [vmem:[#allocation9 + $0xff0] sm:$0xff]
    %v2727 = vld [vmem:[#allocation9 + $0xff8] sm:$0xff]
    %v2728 = vld [vmem:[#allocation9 + $0x1000] sm:$0xff]
    %v2729 = vld [vmem:[#allocation9 + $0x1008] sm:$0xff]
    %v2730 = vld [vmem:[#allocation9 + $0x1010] sm:$0xff]
    %v2731 = vld [vmem:[#allocation9 + $0x1018] sm:$0xff]
    %v2732 = vld [vmem:[#allocation9 + $0x1020] sm:$0xff]
    %v2733 = vld [vmem:[#allocation9 + $0x1028] sm:$0xff]
    %v2734 = vld [vmem:[#allocation9 + $0x1030] sm:$0xff]
    %v2735 = vld [vmem:[#allocation9 + $0x1038] sm:$0xff]
    %v2736 = vld [vmem:[#allocation9 + $0x1040] sm:$0xff]
    %v2737 = vld [vmem:[#allocation9 + $0x1048] sm:$0xff]
    %v2738 = vld [vmem:[#allocation9 + $0x1050] sm:$0xff]
    %v2739 = vld [vmem:[#allocation9 + $0x1058] sm:$0xff]
    %v2740 = vld [vmem:[#allocation9 + $0x1060] sm:$0xff]
    %v2741 = vld [vmem:[#allocation9 + $0x1068] sm:$0xff]
    %v2742 = vld [vmem:[#allocation9 + $0x1070] sm:$0xff]
    %v2743 = vld [vmem:[#allocation9 + $0x1078] sm:$0xff]
    %v2744 = vld [vmem:[#allocation9 + $0x1080] sm:$0xff]
    %v2745 = vld [vmem:[#allocation9 + $0x1088] sm:$0xff]
    %v2746 = vld [vmem:[#allocation9 + $0x1090] sm:$0xff]
    %v2747 = vld [vmem:[#allocation9 + $0x1098] sm:$0xff]
    %v2748 = vld [vmem:[#allocation9 + $0x10a0] sm:$0xff]
    %v2749 = vld [vmem:[#allocation9 + $0x10a8] sm:$0xff]
    %v2750 = vld [vmem:[#allocation9 + $0x10b0] sm:$0xff]
    %v2751 = vld [vmem:[#allocation9 + $0x10b8] sm:$0xff]
    %v2752 = vld [vmem:[#allocation9 + $0x10c0] sm:$0xff]
    %v2753 = vld [vmem:[#allocation9 + $0x10c8] sm:$0xff]
    %v2754 = vld [vmem:[#allocation9 + $0x10d0] sm:$0xff]
    %v2755 = vld [vmem:[#allocation9 + $0x10d8] sm:$0xff]
    %v2756 = vld [vmem:[#allocation9 + $0x10e0] sm:$0xff]
    %v2757 = vld [vmem:[#allocation9 + $0x10e8] sm:$0xff]
    %v2758 = vld [vmem:[#allocation9 + $0x10f0] sm:$0xff]
    %v2759 = vld [vmem:[#allocation9 + $0x10f8] sm:$0xff]
    %v2760 = vld [vmem:[#allocation9 + $0x1100] sm:$0xff]
    %v2761 = vld [vmem:[#allocation9 + $0x1108] sm:$0xff]
    %v2762 = vld [vmem:[#allocation9 + $0x1110] sm:$0xff]
    %v2763 = vld [vmem:[#allocation9 + $0x1118] sm:$0xff]
    %v2764 = vld [vmem:[#allocation9 + $0x1120] sm:$0xff]
    %v2765 = vld [vmem:[#allocation9 + $0x1128] sm:$0xff]
    %v2766 = vld [vmem:[#allocation9 + $0x1130] sm:$0xff]
    %v2767 = vld [vmem:[#allocation9 + $0x1138] sm:$0xff]
    %v2768 = vld [vmem:[#allocation9 + $0x1140] sm:$0xff]
    %v2769 = vld [vmem:[#allocation9 + $0x1148] sm:$0xff]
    %v2770 = vld [vmem:[#allocation9 + $0x1150] sm:$0xff]
    %v2771 = vld [vmem:[#allocation9 + $0x1158] sm:$0xff]
    %v2772 = vld [vmem:[#allocation9 + $0x1160] sm:$0xff]
    %v2773 = vld [vmem:[#allocation9 + $0x1168] sm:$0xff]
    %v2774 = vld [vmem:[#allocation9 + $0x1170] sm:$0xff]
    %v2775 = vld [vmem:[#allocation9 + $0x1178] sm:$0xff]
    %v2776 = vld [vmem:[#allocation9 + $0x1180] sm:$0xff]
    %v2777 = vld [vmem:[#allocation9 + $0x1188] sm:$0xff]
    %v2778 = vld [vmem:[#allocation9 + $0x1190] sm:$0xff]
    %v2779 = vld [vmem:[#allocation9 + $0x1198] sm:$0xff]
    %v2780 = vld [vmem:[#allocation9 + $0x11a0] sm:$0xff]
    %v2781 = vld [vmem:[#allocation9 + $0x11a8] sm:$0xff]
    %v2782 = vld [vmem:[#allocation9 + $0x11b0] sm:$0xff]
    %v2783 = vld [vmem:[#allocation9 + $0x11b8] sm:$0xff]
    %v2784 = vld [vmem:[#allocation9 + $0x11c0] sm:$0xff]
    %v2785 = vld [vmem:[#allocation9 + $0x11c8] sm:$0xff]
    %v2786 = vld [vmem:[#allocation9 + $0x11d0] sm:$0xff]
    %v2787 = vld [vmem:[#allocation9 + $0x11d8] sm:$0xff]
    %v2788 = vld [vmem:[#allocation9 + $0x11e0] sm:$0xff]
    %v2789 = vld [vmem:[#allocation9 + $0x11e8] sm:$0xff]
    %v2790 = vld [vmem:[#allocation9 + $0x11f0] sm:$0xff]
    %v2791 = vld [vmem:[#allocation9 + $0x11f8] sm:$0xff]
    %v2792 = vld [vmem:[#allocation9 + $0x1200] sm:$0xff]
    %v2793 = vld [vmem:[#allocation9 + $0x1208] sm:$0xff]
    %v2794 = vld [vmem:[#allocation9 + $0x1210] sm:$0xff]
    %v2795 = vld [vmem:[#allocation9 + $0x1218] sm:$0xff]
    %v2796 = vld [vmem:[#allocation9 + $0x1220] sm:$0xff]
    %v2797 = vld [vmem:[#allocation9 + $0x1228] sm:$0xff]
    %v2798 = vld [vmem:[#allocation9 + $0x1230] sm:$0xff]
    %v2799 = vld [vmem:[#allocation9 + $0x1238] sm:$0xff]
    %v2800 = vld [vmem:[#allocation9 + $0x1240] sm:$0xff]
    %v2801 = vld [vmem:[#allocation9 + $0x1248] sm:$0xff]
    %v2802 = vld [vmem:[#allocation9 + $0x1250] sm:$0xff]
    %v2803 = vld [vmem:[#allocation9 + $0x1258] sm:$0xff]
    %v2804 = vld [vmem:[#allocation9 + $0x1260] sm:$0xff]
    %v2805 = vld [vmem:[#allocation9 + $0x1268] sm:$0xff]
    %v2806 = vld [vmem:[#allocation9 + $0x1270] sm:$0xff]
    %v2807 = vld [vmem:[#allocation9 + $0x1278] sm:$0xff]
    %v2808 = vld [vmem:[#allocation9 + $0x1280] sm:$0xff]
    %v2809 = vld [vmem:[#allocation9 + $0x1288] sm:$0xff]
    %v2810 = vld [vmem:[#allocation9 + $0x1290] sm:$0xff]
    %v2811 = vld [vmem:[#allocation9 + $0x1298] sm:$0xff]
    %v2812 = vld [vmem:[#allocation9 + $0x12a0] sm:$0xff]
    %v2813 = vld [vmem:[#allocation9 + $0x12a8] sm:$0xff]
    %v2814 = vld [vmem:[#allocation9 + $0x12b0] sm:$0xff]
    %v2815 = vld [vmem:[#allocation9 + $0x12b8] sm:$0xff]
    %v2816 = vld [vmem:[#allocation9 + $0x12c0] sm:$0xff]
    %v2817 = vld [vmem:[#allocation9 + $0x12c8] sm:$0xff]
    %v2818 = vld [vmem:[#allocation9 + $0x12d0] sm:$0xff]
    %v2819 = vld [vmem:[#allocation9 + $0x12d8] sm:$0xff]
    %v2820 = vld [vmem:[#allocation9 + $0x12e0] sm:$0xff]
    %v2821 = vld [vmem:[#allocation9 + $0x12e8] sm:$0xff]
    %v2822 = vld [vmem:[#allocation9 + $0x12f0] sm:$0xff]
    %v2823 = vld [vmem:[#allocation9 + $0x12f8] sm:$0xff]
    %v2824 = vld [vmem:[#allocation9 + $0x1300] sm:$0xff]
    %v2825 = vld [vmem:[#allocation9 + $0x1308] sm:$0xff]
    %v2826 = vld [vmem:[#allocation9 + $0x1310] sm:$0xff]
    %v2827 = vld [vmem:[#allocation9 + $0x1318] sm:$0xff]
    %v2828 = vld [vmem:[#allocation9 + $0x1320] sm:$0xff]
    %v2829 = vld [vmem:[#allocation9 + $0x1328] sm:$0xff]
    %v2830 = vld [vmem:[#allocation9 + $0x1330] sm:$0xff]
    %v2831 = vld [vmem:[#allocation9 + $0x1338] sm:$0xff]
    %v2832 = vld [vmem:[#allocation9 + $0x1340] sm:$0xff]
    %v2833 = vld [vmem:[#allocation9 + $0x1348] sm:$0xff]
    %v2834 = vld [vmem:[#allocation9 + $0x1350] sm:$0xff]
    %v2835 = vld [vmem:[#allocation9 + $0x1358] sm:$0xff]
    %v2836 = vld [vmem:[#allocation9 + $0x1360] sm:$0xff]
    %v2837 = vld [vmem:[#allocation9 + $0x1368] sm:$0xff]
    %v2838 = vld [vmem:[#allocation9 + $0x1370] sm:$0xff]
    %v2839 = vld [vmem:[#allocation9 + $0x1378] sm:$0xff]
    %v2840 = vld [vmem:[#allocation9 + $0x1380] sm:$0xff]
    %v2841 = vld [vmem:[#allocation9 + $0x1388] sm:$0xff]
    %v2842 = vld [vmem:[#allocation9 + $0x1390] sm:$0xff]
    %v2843 = vld [vmem:[#allocation9 + $0x1398] sm:$0xff]
    %v2844 = vld [vmem:[#allocation9 + $0x13a0] sm:$0xff]
    %v2845 = vld [vmem:[#allocation9 + $0x13a8] sm:$0xff]
    %v2846 = vld [vmem:[#allocation9 + $0x13b0] sm:$0xff]
    %v2847 = vld [vmem:[#allocation9 + $0x13b8] sm:$0xff]
    %v2848 = vld [vmem:[#allocation9 + $0x13c0] sm:$0xff]
    %v2849 = vld [vmem:[#allocation9 + $0x13c8] sm:$0xff]
    %v2850 = vld [vmem:[#allocation9 + $0x13d0] sm:$0xff]
    %v2851 = vld [vmem:[#allocation9 + $0x13d8] sm:$0xff]
    %v2852 = vld [vmem:[#allocation9 + $0x13e0] sm:$0xff]
    %v2853 = vld [vmem:[#allocation9 + $0x13e8] sm:$0xff]
    %v2854 = vld [vmem:[#allocation9 + $0x13f0] sm:$0xff]
    %v2855 = vld [vmem:[#allocation9 + $0x13f8] sm:$0xff]
    %v2856 = vld [vmem:[#allocation9 + $0x1400] sm:$0xff]
    %v2857 = vld [vmem:[#allocation9 + $0x1408] sm:$0xff]
    %v2858 = vld [vmem:[#allocation9 + $0x1410] sm:$0xff]
    %v2859 = vld [vmem:[#allocation9 + $0x1418] sm:$0xff]
    %v2860 = vld [vmem:[#allocation9 + $0x1420] sm:$0xff]
    %v2861 = vld [vmem:[#allocation9 + $0x1428] sm:$0xff]
    %v2862 = vld [vmem:[#allocation9 + $0x1430] sm:$0xff]
    %v2863 = vld [vmem:[#allocation9 + $0x1438] sm:$0xff]
    %v2864 = vld [vmem:[#allocation9 + $0x1440] sm:$0xff]
    %v2865 = vld [vmem:[#allocation9 + $0x1448] sm:$0xff]
    %v2866 = vld [vmem:[#allocation9 + $0x1450] sm:$0xff]
    %v2867 = vld [vmem:[#allocation9 + $0x1458] sm:$0xff]
    %v2868 = vld [vmem:[#allocation9 + $0x1460] sm:$0xff]
    %v2869 = vld [vmem:[#allocation9 + $0x1468] sm:$0xff]
    %v2870 = vld [vmem:[#allocation9 + $0x1470] sm:$0xff]
    %v2871 = vld [vmem:[#allocation9 + $0x1478] sm:$0xff]
    %v2872 = vld [vmem:[#allocation9 + $0x1480] sm:$0xff]
    %v2873 = vld [vmem:[#allocation9 + $0x1488] sm:$0xff]
    %v2874 = vld [vmem:[#allocation9 + $0x1490] sm:$0xff]
    %v2875 = vld [vmem:[#allocation9 + $0x1498] sm:$0xff]
    %v2876 = vld [vmem:[#allocation9 + $0x14a0] sm:$0xff]
    %v2877 = vld [vmem:[#allocation9 + $0x14a8] sm:$0xff]
    %v2878 = vld [vmem:[#allocation9 + $0x14b0] sm:$0xff]
    %v2879 = vld [vmem:[#allocation9 + $0x14b8] sm:$0xff]
    %v2880 = vld [vmem:[#allocation9 + $0x14c0] sm:$0xff]
    %v2881 = vld [vmem:[#allocation9 + $0x14c8] sm:$0xff]
    %v2882 = vld [vmem:[#allocation9 + $0x14d0] sm:$0xff]
    %v2883 = vld [vmem:[#allocation9 + $0x14d8] sm:$0xff]
    %v2884 = vld [vmem:[#allocation9 + $0x14e0] sm:$0xff]
    %v2885 = vld [vmem:[#allocation9 + $0x14e8] sm:$0xff]
    %v2886 = vld [vmem:[#allocation9 + $0x14f0] sm:$0xff]
    %v2887 = vld [vmem:[#allocation9 + $0x14f8] sm:$0xff]
    %v2888 = vld [vmem:[#allocation9 + $0x1500] sm:$0xff]
    %v2889 = vld [vmem:[#allocation9 + $0x1508] sm:$0xff]
    %v2890 = vld [vmem:[#allocation9 + $0x1510] sm:$0xff]
    %v2891 = vld [vmem:[#allocation9 + $0x1518] sm:$0xff]
    %v2892 = vld [vmem:[#allocation9 + $0x1520] sm:$0xff]
    %v2893 = vld [vmem:[#allocation9 + $0x1528] sm:$0xff]
    %v2894 = vld [vmem:[#allocation9 + $0x1530] sm:$0xff]
    %v2895 = vld [vmem:[#allocation9 + $0x1538] sm:$0xff]
    %v2896 = vld [vmem:[#allocation9 + $0x1540] sm:$0xff]
    %v2897 = vld [vmem:[#allocation9 + $0x1548] sm:$0xff]
    %v2898 = vld [vmem:[#allocation9 + $0x1550] sm:$0xff]
    %v2899 = vld [vmem:[#allocation9 + $0x1558] sm:$0xff]
    %v2900 = vld [vmem:[#allocation9 + $0x1560] sm:$0xff]
    %v2901 = vld [vmem:[#allocation9 + $0x1568] sm:$0xff]
    %v2902 = vld [vmem:[#allocation9 + $0x1570] sm:$0xff]
    %v2903 = vld [vmem:[#allocation9 + $0x1578] sm:$0xff]
    %v2904 = vld [vmem:[#allocation9 + $0x1580] sm:$0xff]
    %v2905 = vld [vmem:[#allocation9 + $0x1588] sm:$0xff]
    %v2906 = vld [vmem:[#allocation9 + $0x1590] sm:$0xff]
    %v2907 = vld [vmem:[#allocation9 + $0x1598] sm:$0xff]
    %v2908 = vld [vmem:[#allocation9 + $0x15a0] sm:$0xff]
    %v2909 = vld [vmem:[#allocation9 + $0x15a8] sm:$0xff]
    %v2910 = vld [vmem:[#allocation9 + $0x15b0] sm:$0xff]
    %v2911 = vld [vmem:[#allocation9 + $0x15b8] sm:$0xff]
    %v2912 = vld [vmem:[#allocation9 + $0x15c0] sm:$0xff]
    %v2913 = vld [vmem:[#allocation9 + $0x15c8] sm:$0xff]
    %v2914 = vld [vmem:[#allocation9 + $0x15d0] sm:$0xff]
    %v2915 = vld [vmem:[#allocation9 + $0x15d8] sm:$0xff]
    %v2916 = vld [vmem:[#allocation9 + $0x15e0] sm:$0xff]
    %v2917 = vld [vmem:[#allocation9 + $0x15e8] sm:$0xff]
    %v2918 = vld [vmem:[#allocation9 + $0x15f0] sm:$0xff]
    %v2919 = vld [vmem:[#allocation9 + $0x15f8] sm:$0xff]
    %v2920 = vld [vmem:[#allocation9 + $0x1600] sm:$0xff]
    %v2921 = vld [vmem:[#allocation9 + $0x1608] sm:$0xff]
    %v2922 = vld [vmem:[#allocation9 + $0x1610] sm:$0xff]
    %v2923 = vld [vmem:[#allocation9 + $0x1618] sm:$0xff]
    %v2924 = vld [vmem:[#allocation9 + $0x1620] sm:$0xff]
    %v2925 = vld [vmem:[#allocation9 + $0x1628] sm:$0xff]
    %v2926 = vld [vmem:[#allocation9 + $0x1630] sm:$0xff]
    %v2927 = vld [vmem:[#allocation9 + $0x1638] sm:$0xff]
    %v2928 = vld [vmem:[#allocation9 + $0x1640] sm:$0xff]
    %v2929 = vld [vmem:[#allocation9 + $0x1648] sm:$0xff]
    %v2930 = vld [vmem:[#allocation9 + $0x1650] sm:$0xff]
    %v2931 = vld [vmem:[#allocation9 + $0x1658] sm:$0xff]
    %v2932 = vld [vmem:[#allocation9 + $0x1660] sm:$0xff]
    %v2933 = vld [vmem:[#allocation9 + $0x1668] sm:$0xff]
    %v2934 = vld [vmem:[#allocation9 + $0x1670] sm:$0xff]
    %v2935 = vld [vmem:[#allocation9 + $0x1678] sm:$0xff]
    %v2936 = vld [vmem:[#allocation9 + $0x1680] sm:$0xff]
    %v2937 = vld [vmem:[#allocation9 + $0x1688] sm:$0xff]
    %v2938 = vld [vmem:[#allocation9 + $0x1690] sm:$0xff]
    %v2939 = vld [vmem:[#allocation9 + $0x1698] sm:$0xff]
    %v2940 = vld [vmem:[#allocation9 + $0x16a0] sm:$0xff]
    %v2941 = vld [vmem:[#allocation9 + $0x16a8] sm:$0xff]
    %v2942 = vld [vmem:[#allocation9 + $0x16b0] sm:$0xff]
    %v2943 = vld [vmem:[#allocation9 + $0x16b8] sm:$0xff]
    %v2944 = vld [vmem:[#allocation9 + $0x16c0] sm:$0xff]
    %v2945 = vld [vmem:[#allocation9 + $0x16c8] sm:$0xff]
    %v2946 = vld [vmem:[#allocation9 + $0x16d0] sm:$0xff]
    %v2947 = vld [vmem:[#allocation9 + $0x16d8] sm:$0xff]
    %v2948 = vld [vmem:[#allocation9 + $0x16e0] sm:$0xff]
    %v2949 = vld [vmem:[#allocation9 + $0x16e8] sm:$0xff]
    %v2950 = vld [vmem:[#allocation9 + $0x16f0] sm:$0xff]
    %v2951 = vld [vmem:[#allocation9 + $0x16f8] sm:$0xff]
    %v2952 = vld [vmem:[#allocation9 + $0x1700] sm:$0xff]
    %v2953 = vld [vmem:[#allocation9 + $0x1708] sm:$0xff]
    %v2954 = vld [vmem:[#allocation9 + $0x1710] sm:$0xff]
    %v2955 = vld [vmem:[#allocation9 + $0x1718] sm:$0xff]
    %v2956 = vld [vmem:[#allocation9 + $0x1720] sm:$0xff]
    %v2957 = vld [vmem:[#allocation9 + $0x1728] sm:$0xff]
    %v2958 = vld [vmem:[#allocation9 + $0x1730] sm:$0xff]
    %v2959 = vld [vmem:[#allocation9 + $0x1738] sm:$0xff]
    %v2960 = vld [vmem:[#allocation9 + $0x1740] sm:$0xff]
    %v2961 = vld [vmem:[#allocation9 + $0x1748] sm:$0xff]
    %v2962 = vld [vmem:[#allocation9 + $0x1750] sm:$0xff]
    %v2963 = vld [vmem:[#allocation9 + $0x1758] sm:$0xff]
    %v2964 = vld [vmem:[#allocation9 + $0x1760] sm:$0xff]
    %v2965 = vld [vmem:[#allocation9 + $0x1768] sm:$0xff]
    %v2966 = vld [vmem:[#allocation9 + $0x1770] sm:$0xff]
    %v2967 = vld [vmem:[#allocation9 + $0x1778] sm:$0xff]
    %v2968 = vld [vmem:[#allocation9 + $0x1780] sm:$0xff]
    %v2969 = vld [vmem:[#allocation9 + $0x1788] sm:$0xff]
    %v2970 = vld [vmem:[#allocation9 + $0x1790] sm:$0xff]
    %v2971 = vld [vmem:[#allocation9 + $0x1798] sm:$0xff]
    %v2972 = vld [vmem:[#allocation9 + $0x17a0] sm:$0xff]
    %v2973 = vld [vmem:[#allocation9 + $0x17a8] sm:$0xff]
    %v2974 = vld [vmem:[#allocation9 + $0x17b0] sm:$0xff]
    %v2975 = vld [vmem:[#allocation9 + $0x17b8] sm:$0xff]
    %v2976 = vld [vmem:[#allocation9 + $0x17c0] sm:$0xff]
    %v2977 = vld [vmem:[#allocation9 + $0x17c8] sm:$0xff]
    %v2978 = vld [vmem:[#allocation9 + $0x17d0] sm:$0xff]
    %v2979 = vld [vmem:[#allocation9 + $0x17d8] sm:$0xff]
    %v2980 = vld [vmem:[#allocation9 + $0x17e0] sm:$0xff]
    %v2981 = vld [vmem:[#allocation9 + $0x17e8] sm:$0xff]
    %v2982 = vld [vmem:[#allocation9 + $0x17f0] sm:$0xff]
    %v2983 = vld [vmem:[#allocation9 + $0x17f8] sm:$0xff]
    %v2984 = vld [vmem:[#allocation9 + $0x1800] sm:$0xff]
    %v2985 = vld [vmem:[#allocation9 + $0x1808] sm:$0xff]
    %v2986 = vld [vmem:[#allocation9 + $0x1810] sm:$0xff]
    %v2987 = vld [vmem:[#allocation9 + $0x1818] sm:$0xff]
    %v2988 = vld [vmem:[#allocation9 + $0x1820] sm:$0xff]
    %v2989 = vld [vmem:[#allocation9 + $0x1828] sm:$0xff]
    %v2990 = vld [vmem:[#allocation9 + $0x1830] sm:$0xff]
    %v2991 = vld [vmem:[#allocation9 + $0x1838] sm:$0xff]
    %v2992 = vld [vmem:[#allocation9 + $0x1840] sm:$0xff]
    %v2993 = vld [vmem:[#allocation9 + $0x1848] sm:$0xff]
    %v2994 = vld [vmem:[#allocation9 + $0x1850] sm:$0xff]
    %v2995 = vld [vmem:[#allocation9 + $0x1858] sm:$0xff]
    %v2996 = vld [vmem:[#allocation9 + $0x1860] sm:$0xff]
    %v2997 = vld [vmem:[#allocation9 + $0x1868] sm:$0xff]
    %v2998 = vld [vmem:[#allocation9 + $0x1870] sm:$0xff]
    %v2999 = vld [vmem:[#allocation9 + $0x1878] sm:$0xff]
    %v3000 = vld [vmem:[#allocation9 + $0x1880] sm:$0xff]
    %v3001 = vld [vmem:[#allocation9 + $0x1888] sm:$0xff]
    %v3002 = vld [vmem:[#allocation9 + $0x1890] sm:$0xff]
    %v3003 = vld [vmem:[#allocation9 + $0x1898] sm:$0xff]
    %v3004 = vld [vmem:[#allocation9 + $0x18a0] sm:$0xff]
    %v3005 = vld [vmem:[#allocation9 + $0x18a8] sm:$0xff]
    %v3006 = vld [vmem:[#allocation9 + $0x18b0] sm:$0xff]
    %v3007 = vld [vmem:[#allocation9 + $0x18b8] sm:$0xff]
    %v3008 = vld [vmem:[#allocation9 + $0x18c0] sm:$0xff]
    %v3009 = vld [vmem:[#allocation9 + $0x18c8] sm:$0xff]
    %v3010 = vld [vmem:[#allocation9 + $0x18d0] sm:$0xff]
    %v3011 = vld [vmem:[#allocation9 + $0x18d8] sm:$0xff]
    %v3012 = vld [vmem:[#allocation9 + $0x18e0] sm:$0xff]
    %v3013 = vld [vmem:[#allocation9 + $0x18e8] sm:$0xff]
    %v3014 = vld [vmem:[#allocation9 + $0x18f0] sm:$0xff]
    %v3015 = vld [vmem:[#allocation9 + $0x18f8] sm:$0xff]
    %v3016 = vld [vmem:[#allocation9 + $0x1900] sm:$0xff]
    %v3017 = vld [vmem:[#allocation9 + $0x1908] sm:$0xff]
    %v3018 = vld [vmem:[#allocation9 + $0x1910] sm:$0xff]
    %v3019 = vld [vmem:[#allocation9 + $0x1918] sm:$0xff]
    %v3020 = vld [vmem:[#allocation9 + $0x1920] sm:$0xff]
    %v3021 = vld [vmem:[#allocation9 + $0x1928] sm:$0xff]
    %v3022 = vld [vmem:[#allocation9 + $0x1930] sm:$0xff]
    %v3023 = vld [vmem:[#allocation9 + $0x1938] sm:$0xff]
    %v3024 = vld [vmem:[#allocation9 + $0x1940] sm:$0xff]
    %v3025 = vld [vmem:[#allocation9 + $0x1948] sm:$0xff]
    %v3026 = vld [vmem:[#allocation9 + $0x1950] sm:$0xff]
    %v3027 = vld [vmem:[#allocation9 + $0x1958] sm:$0xff]
    %v3028 = vld [vmem:[#allocation9 + $0x1960] sm:$0xff]
    %v3029 = vld [vmem:[#allocation9 + $0x1968] sm:$0xff]
    %v3030 = vld [vmem:[#allocation9 + $0x1970] sm:$0xff]
    %v3031 = vld [vmem:[#allocation9 + $0x1978] sm:$0xff]
    %v3032 = vld [vmem:[#allocation9 + $0x1980] sm:$0xff]
    %v3033 = vld [vmem:[#allocation9 + $0x1988] sm:$0xff]
    %v3034 = vld [vmem:[#allocation9 + $0x1990] sm:$0xff]
    %v3035 = vld [vmem:[#allocation9 + $0x1998] sm:$0xff]
    %v3036 = vld [vmem:[#allocation9 + $0x19a0] sm:$0xff]
    %v3037 = vld [vmem:[#allocation9 + $0x19a8] sm:$0xff]
    %v3038 = vld [vmem:[#allocation9 + $0x19b0] sm:$0xff]
    %v3039 = vld [vmem:[#allocation9 + $0x19b8] sm:$0xff]
    %v3040 = vld [vmem:[#allocation9 + $0x19c0] sm:$0xff]
    %v3041 = vld [vmem:[#allocation9 + $0x19c8] sm:$0xff]
    %v3042 = vld [vmem:[#allocation9 + $0x19d0] sm:$0xff]
    %v3043 = vld [vmem:[#allocation9 + $0x19d8] sm:$0xff]
    %v3044 = vld [vmem:[#allocation9 + $0x19e0] sm:$0xff]
    %v3045 = vld [vmem:[#allocation9 + $0x19e8] sm:$0xff]
    %v3046 = vld [vmem:[#allocation9 + $0x19f0] sm:$0xff]
    %v3047 = vld [vmem:[#allocation9 + $0x19f8] sm:$0xff]
    %v3048 = vld [vmem:[#allocation9 + $0x1a00] sm:$0xff]
    %v3049 = vld [vmem:[#allocation9 + $0x1a08] sm:$0xff]
    %v3050 = vld [vmem:[#allocation9 + $0x1a10] sm:$0xff]
    %v3051 = vld [vmem:[#allocation9 + $0x1a18] sm:$0xff]
    %v3052 = vld [vmem:[#allocation9 + $0x1a20] sm:$0xff]
    %v3053 = vld [vmem:[#allocation9 + $0x1a28] sm:$0xff]
    %v3054 = vld [vmem:[#allocation9 + $0x1a30] sm:$0xff]
    %v3055 = vld [vmem:[#allocation9 + $0x1a38] sm:$0xff]
    %v3056 = vld [vmem:[#allocation9 + $0x1a40] sm:$0xff]
    %v3057 = vld [vmem:[#allocation9 + $0x1a48] sm:$0xff]
    %v3058 = vld [vmem:[#allocation9 + $0x1a50] sm:$0xff]
    %v3059 = vld [vmem:[#allocation9 + $0x1a58] sm:$0xff]
    %v3060 = vld [vmem:[#allocation9 + $0x1a60] sm:$0xff]
    %v3061 = vld [vmem:[#allocation9 + $0x1a68] sm:$0xff]
    %v3062 = vld [vmem:[#allocation9 + $0x1a70] sm:$0xff]
    %v3063 = vld [vmem:[#allocation9 + $0x1a78] sm:$0xff]
    %v3064 = vld [vmem:[#allocation9 + $0x1a80] sm:$0xff]
    %v3065 = vld [vmem:[#allocation9 + $0x1a88] sm:$0xff]
    %v3066 = vld [vmem:[#allocation9 + $0x1a90] sm:$0xff]
    %v3067 = vld [vmem:[#allocation9 + $0x1a98] sm:$0xff]
    %v3068 = vld [vmem:[#allocation9 + $0x1aa0] sm:$0xff]
    %v3069 = vld [vmem:[#allocation9 + $0x1aa8] sm:$0xff]
    %v3070 = vld [vmem:[#allocation9 + $0x1ab0] sm:$0xff]
    %v3071 = vld [vmem:[#allocation9 + $0x1ab8] sm:$0xff]
    %v3072 = vld [vmem:[#allocation9 + $0x1ac0] sm:$0xff]
    %v3073 = vld [vmem:[#allocation9 + $0x1ac8] sm:$0xff]
    %v3074 = vld [vmem:[#allocation9 + $0x1ad0] sm:$0xff]
    %v3075 = vld [vmem:[#allocation9 + $0x1ad8] sm:$0xff]
    %v3076 = vld [vmem:[#allocation9 + $0x1ae0] sm:$0xff]
    %v3077 = vld [vmem:[#allocation9 + $0x1ae8] sm:$0xff]
    %v3078 = vld [vmem:[#allocation9 + $0x1af0] sm:$0xff]
    %v3079 = vld [vmem:[#allocation9 + $0x1af8] sm:$0xff]
    %v3080 = vld [vmem:[#allocation9 + $0x1b00] sm:$0xff]
    %v3081 = vld [vmem:[#allocation9 + $0x1b08] sm:$0xff]
    %v3082 = vld [vmem:[#allocation9 + $0x1b10] sm:$0xff]
    %v3083 = vld [vmem:[#allocation9 + $0x1b18] sm:$0xff]
    %v3084 = vld [vmem:[#allocation9 + $0x1b20] sm:$0xff]
    %v3085 = vld [vmem:[#allocation9 + $0x1b28] sm:$0xff]
    %v3086 = vld [vmem:[#allocation9 + $0x1b30] sm:$0xff]
    %v3087 = vld [vmem:[#allocation9 + $0x1b38] sm:$0xff]
    %v3088 = vld [vmem:[#allocation9 + $0x1b40] sm:$0xff]
    %v3089 = vld [vmem:[#allocation9 + $0x1b48] sm:$0xff]
    %v3090 = vld [vmem:[#allocation9 + $0x1b50] sm:$0xff]
    %v3091 = vld [vmem:[#allocation9 + $0x1b58] sm:$0xff]
    %v3092 = vld [vmem:[#allocation9 + $0x1b60] sm:$0xff]
    %v3093 = vld [vmem:[#allocation9 + $0x1b68] sm:$0xff]
    %v3094 = vld [vmem:[#allocation9 + $0x1b70] sm:$0xff]
    %v3095 = vld [vmem:[#allocation9 + $0x1b78] sm:$0xff]
    %v3096 = vld [vmem:[#allocation9 + $0x1b80] sm:$0xff]
    %v3097 = vld [vmem:[#allocation9 + $0x1b88] sm:$0xff]
    %v3098 = vld [vmem:[#allocation9 + $0x1b90] sm:$0xff]
    %v3099 = vld [vmem:[#allocation9 + $0x1b98] sm:$0xff]
    %v3100 = vld [vmem:[#allocation9 + $0x1ba0] sm:$0xff]
    %v3101 = vld [vmem:[#allocation9 + $0x1ba8] sm:$0xff]
    %v3102 = vld [vmem:[#allocation9 + $0x1bb0] sm:$0xff]
    %v3103 = vld [vmem:[#allocation9 + $0x1bb8] sm:$0xff]
    %v3104 = vld [vmem:[#allocation9 + $0x1bc0] sm:$0xff]
    %v3105 = vld [vmem:[#allocation9 + $0x1bc8] sm:$0xff]
    %v3106 = vld [vmem:[#allocation9 + $0x1bd0] sm:$0xff]
    %v3107 = vld [vmem:[#allocation9 + $0x1bd8] sm:$0xff]
    %v3108 = vld [vmem:[#allocation9 + $0x1be0] sm:$0xff]
    %v3109 = vld [vmem:[#allocation9 + $0x1be8] sm:$0xff]
    %v3110 = vld [vmem:[#allocation9 + $0x1bf0] sm:$0xff]
    %v3111 = vld [vmem:[#allocation9 + $0x1bf8] sm:$0xff]
    %v3112 = vld [vmem:[#allocation9 + $0x1c00] sm:$0xff]
    %v3113 = vld [vmem:[#allocation9 + $0x1c08] sm:$0xff]
    %v3114 = vld [vmem:[#allocation9 + $0x1c10] sm:$0xff]
    %v3115 = vld [vmem:[#allocation9 + $0x1c18] sm:$0xff]
    %v3116 = vld [vmem:[#allocation9 + $0x1c20] sm:$0xff]
    %v3117 = vld [vmem:[#allocation9 + $0x1c28] sm:$0xff]
    %v3118 = vld [vmem:[#allocation9 + $0x1c30] sm:$0xff]
    %v3119 = vld [vmem:[#allocation9 + $0x1c38] sm:$0xff]
    %v3120 = vld [vmem:[#allocation9 + $0x1c40] sm:$0xff]
    %v3121 = vld [vmem:[#allocation9 + $0x1c48] sm:$0xff]
    %v3122 = vld [vmem:[#allocation9 + $0x1c50] sm:$0xff]
    %v3123 = vld [vmem:[#allocation9 + $0x1c58] sm:$0xff]
    %v3124 = vld [vmem:[#allocation9 + $0x1c60] sm:$0xff]
    %v3125 = vld [vmem:[#allocation9 + $0x1c68] sm:$0xff]
    %v3126 = vld [vmem:[#allocation9 + $0x1c70] sm:$0xff]
    %v3127 = vld [vmem:[#allocation9 + $0x1c78] sm:$0xff]
    %v3128 = vld [vmem:[#allocation9 + $0x1c80] sm:$0xff]
    %v3129 = vld [vmem:[#allocation9 + $0x1c88] sm:$0xff]
    %v3130 = vld [vmem:[#allocation9 + $0x1c90] sm:$0xff]
    %v3131 = vld [vmem:[#allocation9 + $0x1c98] sm:$0xff]
    %v3132 = vld [vmem:[#allocation9 + $0x1ca0] sm:$0xff]
    %v3133 = vld [vmem:[#allocation9 + $0x1ca8] sm:$0xff]
    %v3134 = vld [vmem:[#allocation9 + $0x1cb0] sm:$0xff]
    %v3135 = vld [vmem:[#allocation9 + $0x1cb8] sm:$0xff]
    %v3136 = vld [vmem:[#allocation9 + $0x1cc0] sm:$0xff]
    %v3137 = vld [vmem:[#allocation9 + $0x1cc8] sm:$0xff]
    %v3138 = vld [vmem:[#allocation9 + $0x1cd0] sm:$0xff]
    %v3139 = vld [vmem:[#allocation9 + $0x1cd8] sm:$0xff]
    %v3140 = vld [vmem:[#allocation9 + $0x1ce0] sm:$0xff]
    %v3141 = vld [vmem:[#allocation9 + $0x1ce8] sm:$0xff]
    %v3142 = vld [vmem:[#allocation9 + $0x1cf0] sm:$0xff]
    %v3143 = vld [vmem:[#allocation9 + $0x1cf8] sm:$0xff]
    %v3144 = vld [vmem:[#allocation9 + $0x1d00] sm:$0xff]
    %v3145 = vld [vmem:[#allocation9 + $0x1d08] sm:$0xff]
    %v3146 = vld [vmem:[#allocation9 + $0x1d10] sm:$0xff]
    %v3147 = vld [vmem:[#allocation9 + $0x1d18] sm:$0xff]
    %v3148 = vld [vmem:[#allocation9 + $0x1d20] sm:$0xff]
    %v3149 = vld [vmem:[#allocation9 + $0x1d28] sm:$0xff]
    %v3150 = vld [vmem:[#allocation9 + $0x1d30] sm:$0xff]
    %v3151 = vld [vmem:[#allocation9 + $0x1d38] sm:$0xff]
    %v3152 = vld [vmem:[#allocation9 + $0x1d40] sm:$0xff]
    %v3153 = vld [vmem:[#allocation9 + $0x1d48] sm:$0xff]
    %v3154 = vld [vmem:[#allocation9 + $0x1d50] sm:$0xff]
    %v3155 = vld [vmem:[#allocation9 + $0x1d58] sm:$0xff]
    %v3156 = vld [vmem:[#allocation9 + $0x1d60] sm:$0xff]
    %v3157 = vld [vmem:[#allocation9 + $0x1d68] sm:$0xff]
    %v3158 = vld [vmem:[#allocation9 + $0x1d70] sm:$0xff]
    %v3159 = vld [vmem:[#allocation9 + $0x1d78] sm:$0xff]
    %v3160 = vld [vmem:[#allocation9 + $0x1d80] sm:$0xff]
    %v3161 = vld [vmem:[#allocation9 + $0x1d88] sm:$0xff]
    %v3162 = vld [vmem:[#allocation9 + $0x1d90] sm:$0xff]
    %v3163 = vld [vmem:[#allocation9 + $0x1d98] sm:$0xff]
    %v3164 = vld [vmem:[#allocation9 + $0x1da0] sm:$0xff]
    %v3165 = vld [vmem:[#allocation9 + $0x1da8] sm:$0xff]
    %v3166 = vld [vmem:[#allocation9 + $0x1db0] sm:$0xff]
    %v3167 = vld [vmem:[#allocation9 + $0x1db8] sm:$0xff]
    %v3168 = vld [vmem:[#allocation9 + $0x1dc0] sm:$0xff]
    %v3169 = vld [vmem:[#allocation9 + $0x1dc8] sm:$0xff]
    %v3170 = vld [vmem:[#allocation9 + $0x1dd0] sm:$0xff]
    %v3171 = vld [vmem:[#allocation9 + $0x1dd8] sm:$0xff]
    %v3172 = vld [vmem:[#allocation9 + $0x1de0] sm:$0xff]
    %v3173 = vld [vmem:[#allocation9 + $0x1de8] sm:$0xff]
    %v3174 = vld [vmem:[#allocation9 + $0x1df0] sm:$0xff]
    %v3175 = vld [vmem:[#allocation9 + $0x1df8] sm:$0xff]
    %v3176 = vld [vmem:[#allocation9 + $0x1e00] sm:$0xff]
    %v3177 = vld [vmem:[#allocation9 + $0x1e08] sm:$0xff]
    %v3178 = vld [vmem:[#allocation9 + $0x1e10] sm:$0xff]
    %v3179 = vld [vmem:[#allocation9 + $0x1e18] sm:$0xff]
    %v3180 = vld [vmem:[#allocation9 + $0x1e20] sm:$0xff]
    %v3181 = vld [vmem:[#allocation9 + $0x1e28] sm:$0xff]
    %v3182 = vld [vmem:[#allocation9 + $0x1e30] sm:$0xff]
    %v3183 = vld [vmem:[#allocation9 + $0x1e38] sm:$0xff]
    %v3184 = vld [vmem:[#allocation9 + $0x1e40] sm:$0xff]
    %v3185 = vld [vmem:[#allocation9 + $0x1e48] sm:$0xff]
    %v3186 = vld [vmem:[#allocation9 + $0x1e50] sm:$0xff]
    %v3187 = vld [vmem:[#allocation9 + $0x1e58] sm:$0xff]
    %v3188 = vld [vmem:[#allocation9 + $0x1e60] sm:$0xff]
    %v3189 = vld [vmem:[#allocation9 + $0x1e68] sm:$0xff]
    %v3190 = vld [vmem:[#allocation9 + $0x1e70] sm:$0xff]
    %v3191 = vld [vmem:[#allocation9 + $0x1e78] sm:$0xff]
    %v3192 = vld [vmem:[#allocation9 + $0x1e80] sm:$0xff]
    %v3193 = vld [vmem:[#allocation9 + $0x1e88] sm:$0xff]
    %v3194 = vld [vmem:[#allocation9 + $0x1e90] sm:$0xff]
    %v3195 = vld [vmem:[#allocation9 + $0x1e98] sm:$0xff]
    %v3196 = vld [vmem:[#allocation9 + $0x1ea0] sm:$0xff]
    %v3197 = vld [vmem:[#allocation9 + $0x1ea8] sm:$0xff]
    %v3198 = vld [vmem:[#allocation9 + $0x1eb0] sm:$0xff]
    %v3199 = vld [vmem:[#allocation9 + $0x1eb8] sm:$0xff]
    %v3200 = vld [vmem:[#allocation9 + $0x1ec0] sm:$0xff]
    %v3201 = vld [vmem:[#allocation9 + $0x1ec8] sm:$0xff]
    %v3202 = vld [vmem:[#allocation9 + $0x1ed0] sm:$0xff]
    %v3203 = vld [vmem:[#allocation9 + $0x1ed8] sm:$0xff]
    %v3204 = vld [vmem:[#allocation9 + $0x1ee0] sm:$0xff]
    %v3205 = vld [vmem:[#allocation9 + $0x1ee8] sm:$0xff]
    %v3206 = vld [vmem:[#allocation9 + $0x1ef0] sm:$0xff]
    %v3207 = vld [vmem:[#allocation9 + $0x1ef8] sm:$0xff]
    %v3208 = vld [vmem:[#allocation9 + $0x1f00] sm:$0xff]
    %v3209 = vld [vmem:[#allocation9 + $0x1f08] sm:$0xff]
    %v3210 = vld [vmem:[#allocation9 + $0x1f10] sm:$0xff]
    %v3211 = vld [vmem:[#allocation9 + $0x1f18] sm:$0xff]
    %v3212 = vld [vmem:[#allocation9 + $0x1f20] sm:$0xff]
    %v3213 = vld [vmem:[#allocation9 + $0x1f28] sm:$0xff]
    %v3214 = vld [vmem:[#allocation9 + $0x1f30] sm:$0xff]
    %v3215 = vld [vmem:[#allocation9 + $0x1f38] sm:$0xff]
    %v3216 = vld [vmem:[#allocation9 + $0x1f40] sm:$0xff]
    %v3217 = vld [vmem:[#allocation9 + $0x1f48] sm:$0xff]
    %v3218 = vld [vmem:[#allocation9 + $0x1f50] sm:$0xff]
    %v3219 = vld [vmem:[#allocation9 + $0x1f58] sm:$0xff]
    %v3220 = vld [vmem:[#allocation9 + $0x1f60] sm:$0xff]
    %v3221 = vld [vmem:[#allocation9 + $0x1f68] sm:$0xff]
    %v3222 = vld [vmem:[#allocation9 + $0x1f70] sm:$0xff]
    %v3223 = vld [vmem:[#allocation9 + $0x1f78] sm:$0xff]
    %v3224 = vld [vmem:[#allocation9 + $0x1f80] sm:$0xff]
    %v3225 = vld [vmem:[#allocation9 + $0x1f88] sm:$0xff]
    %v3226 = vld [vmem:[#allocation9 + $0x1f90] sm:$0xff]
    %v3227 = vld [vmem:[#allocation9 + $0x1f98] sm:$0xff]
    %v3228 = vld [vmem:[#allocation9 + $0x1fa0] sm:$0xff]
    %v3229 = vld [vmem:[#allocation9 + $0x1fa8] sm:$0xff]
    %v3230 = vld [vmem:[#allocation9 + $0x1fb0] sm:$0xff]
    %v3231 = vld [vmem:[#allocation9 + $0x1fb8] sm:$0xff]
    %v3232 = vld [vmem:[#allocation9 + $0x1fc0] sm:$0xff]
    %v3233 = vld [vmem:[#allocation9 + $0x1fc8] sm:$0xff]
    %v3234 = vld [vmem:[#allocation9 + $0x1fd0] sm:$0xff]
    %v3235 = vld [vmem:[#allocation9 + $0x1fd8] sm:$0xff]
    %v3236 = vld [vmem:[#allocation9 + $0x1fe0] sm:$0xff]
    %v3237 = vld [vmem:[#allocation9 + $0x1fe8] sm:$0xff]
    %v3238 = vld [vmem:[#allocation9 + $0x1ff0] sm:$0xff]
    %v3239 = vld [vmem:[#allocation9 + $0x1ff8] sm:$0xff]
    %v3240 = vld [vmem:[#allocation10] sm:$0xf]
    %v3242 = vlaneseq
    %v3243 = vshrl.u32 %v3242, 7
    %v3244 = vsub.s32 0, %v3243
    %v3245 = vrot.slane %v3240, %v3244
    %v3246 = vlaneseq
    %v3247 = vshrl.u32 %v3246, 7
    %v3248 = vsub.s32 1, %v3247
    %v3249 = vrot.slane %v3240, %v3248
    %v3250 = vlaneseq
    %v3251 = vshrl.u32 %v3250, 7
    %v3252 = vsub.s32 2, %v3251
    %v3253 = vrot.slane %v3240, %v3252
    %v3254 = vlaneseq
    %v3255 = vshrl.u32 %v3254, 7
    %v3256 = vsub.s32 3, %v3255
    %v3257 = vrot.slane %v3240, %v3256
    %v4286 = vunpack.c.l.b16 %v2216
    %v4287 = vunpack.c.h.b16 %v2216
    %v4288 = vunpack.c.l.b16 %v2217
    %v4289 = vunpack.c.h.b16 %v2217
    %v4290 = vunpack.c.l.b16 %v2218
    %v4291 = vunpack.c.h.b16 %v2218
    %v4292 = vunpack.c.l.b16 %v2219
    %v4293 = vunpack.c.h.b16 %v2219
    %v4294 = vunpack.c.l.b16 %v2220
    %v4295 = vunpack.c.h.b16 %v2220
    %v4296 = vunpack.c.l.b16 %v2221
    %v4297 = vunpack.c.h.b16 %v2221
    %v4298 = vunpack.c.l.b16 %v2222
    %v4299 = vunpack.c.h.b16 %v2222
    %v4300 = vunpack.c.l.b16 %v2223
    %v4301 = vunpack.c.h.b16 %v2223
    %v4302 = vunpack.c.l.b16 %v2224
    %v4303 = vunpack.c.h.b16 %v2224
    %v4304 = vunpack.c.l.b16 %v2225
    %v4305 = vunpack.c.h.b16 %v2225
    %v4306 = vunpack.c.l.b16 %v2226
    %v4307 = vunpack.c.h.b16 %v2226
    %v4308 = vunpack.c.l.b16 %v2227
    %v4309 = vunpack.c.h.b16 %v2227
    %v4310 = vunpack.c.l.b16 %v2228
    %v4311 = vunpack.c.h.b16 %v2228
    %v4312 = vunpack.c.l.b16 %v2229
    %v4313 = vunpack.c.h.b16 %v2229
    %v4314 = vunpack.c.l.b16 %v2230
    %v4315 = vunpack.c.h.b16 %v2230
    %v4316 = vunpack.c.l.b16 %v2231
    %v4317 = vunpack.c.h.b16 %v2231
    %v4318 = vunpack.c.l.b16 %v2232
    %v4319 = vunpack.c.h.b16 %v2232
    %v4320 = vunpack.c.l.b16 %v2233
    %v4321 = vunpack.c.h.b16 %v2233
    %v4322 = vunpack.c.l.b16 %v2234
    %v4323 = vunpack.c.h.b16 %v2234
    %v4324 = vunpack.c.l.b16 %v2235
    %v4325 = vunpack.c.h.b16 %v2235
    %v4326 = vunpack.c.l.b16 %v2236
    %v4327 = vunpack.c.h.b16 %v2236
    %v4328 = vunpack.c.l.b16 %v2237
    %v4329 = vunpack.c.h.b16 %v2237
    %v4330 = vunpack.c.l.b16 %v2238
    %v4331 = vunpack.c.h.b16 %v2238
    %v4332 = vunpack.c.l.b16 %v2239
    %v4333 = vunpack.c.h.b16 %v2239
    %v4334 = vunpack.c.l.b16 %v2240
    %v4335 = vunpack.c.h.b16 %v2240
    %v4336 = vunpack.c.l.b16 %v2241
    %v4337 = vunpack.c.h.b16 %v2241
    %v4338 = vunpack.c.l.b16 %v2242
    %v4339 = vunpack.c.h.b16 %v2242
    %v4340 = vunpack.c.l.b16 %v2243
    %v4341 = vunpack.c.h.b16 %v2243
    %v4342 = vunpack.c.l.b16 %v2244
    %v4343 = vunpack.c.h.b16 %v2244
    %v4344 = vunpack.c.l.b16 %v2245
    %v4345 = vunpack.c.h.b16 %v2245
    %v4346 = vunpack.c.l.b16 %v2246
    %v4347 = vunpack.c.h.b16 %v2246
    %v4348 = vunpack.c.l.b16 %v2247
    %v4349 = vunpack.c.h.b16 %v2247
    %v4350 = vunpack.c.l.b16 %v2248
    %v4351 = vunpack.c.h.b16 %v2248
    %v4352 = vunpack.c.l.b16 %v2249
    %v4353 = vunpack.c.h.b16 %v2249
    %v4354 = vunpack.c.l.b16 %v2250
    %v4355 = vunpack.c.h.b16 %v2250
    %v4356 = vunpack.c.l.b16 %v2251
    %v4357 = vunpack.c.h.b16 %v2251
    %v4358 = vunpack.c.l.b16 %v2252
    %v4359 = vunpack.c.h.b16 %v2252
    %v4360 = vunpack.c.l.b16 %v2253
    %v4361 = vunpack.c.h.b16 %v2253
    %v4362 = vunpack.c.l.b16 %v2254
    %v4363 = vunpack.c.h.b16 %v2254
    %v4364 = vunpack.c.l.b16 %v2255
    %v4365 = vunpack.c.h.b16 %v2255
    %v4366 = vunpack.c.l.b16 %v2256
    %v4367 = vunpack.c.h.b16 %v2256
    %v4368 = vunpack.c.l.b16 %v2257
    %v4369 = vunpack.c.h.b16 %v2257
    %v4370 = vunpack.c.l.b16 %v2258
    %v4371 = vunpack.c.h.b16 %v2258
    %v4372 = vunpack.c.l.b16 %v2259
    %v4373 = vunpack.c.h.b16 %v2259
    %v4374 = vunpack.c.l.b16 %v2260
    %v4375 = vunpack.c.h.b16 %v2260
    %v4376 = vunpack.c.l.b16 %v2261
    %v4377 = vunpack.c.h.b16 %v2261
    %v4378 = vunpack.c.l.b16 %v2262
    %v4379 = vunpack.c.h.b16 %v2262
    %v4380 = vunpack.c.l.b16 %v2263
    %v4381 = vunpack.c.h.b16 %v2263
    %v4382 = vunpack.c.l.b16 %v2264
    %v4383 = vunpack.c.h.b16 %v2264
    %v4384 = vunpack.c.l.b16 %v2265
    %v4385 = vunpack.c.h.b16 %v2265
    %v4386 = vunpack.c.l.b16 %v2266
    %v4387 = vunpack.c.h.b16 %v2266
    %v4388 = vunpack.c.l.b16 %v2267
    %v4389 = vunpack.c.h.b16 %v2267
    %v4390 = vunpack.c.l.b16 %v2268
    %v4391 = vunpack.c.h.b16 %v2268
    %v4392 = vunpack.c.l.b16 %v2269
    %v4393 = vunpack.c.h.b16 %v2269
    %v4394 = vunpack.c.l.b16 %v2270
    %v4395 = vunpack.c.h.b16 %v2270
    %v4396 = vunpack.c.l.b16 %v2271
    %v4397 = vunpack.c.h.b16 %v2271
    %v4398 = vunpack.c.l.b16 %v2272
    %v4399 = vunpack.c.h.b16 %v2272
    %v4400 = vunpack.c.l.b16 %v2273
    %v4401 = vunpack.c.h.b16 %v2273
    %v4402 = vunpack.c.l.b16 %v2274
    %v4403 = vunpack.c.h.b16 %v2274
    %v4404 = vunpack.c.l.b16 %v2275
    %v4405 = vunpack.c.h.b16 %v2275
    %v4406 = vunpack.c.l.b16 %v2276
    %v4407 = vunpack.c.h.b16 %v2276
    %v4408 = vunpack.c.l.b16 %v2277
    %v4409 = vunpack.c.h.b16 %v2277
    %v4410 = vunpack.c.l.b16 %v2278
    %v4411 = vunpack.c.h.b16 %v2278
    %v4412 = vunpack.c.l.b16 %v2279
    %v4413 = vunpack.c.h.b16 %v2279
    %v4414 = vunpack.c.l.b16 %v2280
    %v4415 = vunpack.c.h.b16 %v2280
    %v4416 = vunpack.c.l.b16 %v2281
    %v4417 = vunpack.c.h.b16 %v2281
    %v4418 = vunpack.c.l.b16 %v2282
    %v4419 = vunpack.c.h.b16 %v2282
    %v4420 = vunpack.c.l.b16 %v2283
    %v4421 = vunpack.c.h.b16 %v2283
    %v4422 = vunpack.c.l.b16 %v2284
    %v4423 = vunpack.c.h.b16 %v2284
    %v4424 = vunpack.c.l.b16 %v2285
    %v4425 = vunpack.c.h.b16 %v2285
    %v4426 = vunpack.c.l.b16 %v2286
    %v4427 = vunpack.c.h.b16 %v2286
    %v4428 = vunpack.c.l.b16 %v2287
    %v4429 = vunpack.c.h.b16 %v2287
    %v4430 = vunpack.c.l.b16 %v2288
    %v4431 = vunpack.c.h.b16 %v2288
    %v4432 = vunpack.c.l.b16 %v2289
    %v4433 = vunpack.c.h.b16 %v2289
    %v4434 = vunpack.c.l.b16 %v2290
    %v4435 = vunpack.c.h.b16 %v2290
    %v4436 = vunpack.c.l.b16 %v2291
    %v4437 = vunpack.c.h.b16 %v2291
    %v4438 = vunpack.c.l.b16 %v2292
    %v4439 = vunpack.c.h.b16 %v2292
    %v4440 = vunpack.c.l.b16 %v2293
    %v4441 = vunpack.c.h.b16 %v2293
    %v4442 = vunpack.c.l.b16 %v2294
    %v4443 = vunpack.c.h.b16 %v2294
    %v4444 = vunpack.c.l.b16 %v2295
    %v4445 = vunpack.c.h.b16 %v2295
    %v4446 = vunpack.c.l.b16 %v2296
    %v4447 = vunpack.c.h.b16 %v2296
    %v4448 = vunpack.c.l.b16 %v2297
    %v4449 = vunpack.c.h.b16 %v2297
    %v4450 = vunpack.c.l.b16 %v2298
    %v4451 = vunpack.c.h.b16 %v2298
    %v4452 = vunpack.c.l.b16 %v2299
    %v4453 = vunpack.c.h.b16 %v2299
    %v4454 = vunpack.c.l.b16 %v2300
    %v4455 = vunpack.c.h.b16 %v2300
    %v4456 = vunpack.c.l.b16 %v2301
    %v4457 = vunpack.c.h.b16 %v2301
    %v4458 = vunpack.c.l.b16 %v2302
    %v4459 = vunpack.c.h.b16 %v2302
    %v4460 = vunpack.c.l.b16 %v2303
    %v4461 = vunpack.c.h.b16 %v2303
    %v4462 = vunpack.c.l.b16 %v2304
    %v4463 = vunpack.c.h.b16 %v2304
    %v4464 = vunpack.c.l.b16 %v2305
    %v4465 = vunpack.c.h.b16 %v2305
    %v4466 = vunpack.c.l.b16 %v2306
    %v4467 = vunpack.c.h.b16 %v2306
    %v4468 = vunpack.c.l.b16 %v2307
    %v4469 = vunpack.c.h.b16 %v2307
    %v4470 = vunpack.c.l.b16 %v2308
    %v4471 = vunpack.c.h.b16 %v2308
    %v4472 = vunpack.c.l.b16 %v2309
    %v4473 = vunpack.c.h.b16 %v2309
    %v4474 = vunpack.c.l.b16 %v2310
    %v4475 = vunpack.c.h.b16 %v2310
    %v4476 = vunpack.c.l.b16 %v2311
    %v4477 = vunpack.c.h.b16 %v2311
    %v4478 = vunpack.c.l.b16 %v2312
    %v4479 = vunpack.c.h.b16 %v2312
    %v4480 = vunpack.c.l.b16 %v2313
    %v4481 = vunpack.c.h.b16 %v2313
    %v4482 = vunpack.c.l.b16 %v2314
    %v4483 = vunpack.c.h.b16 %v2314
    %v4484 = vunpack.c.l.b16 %v2315
    %v4485 = vunpack.c.h.b16 %v2315
    %v4486 = vunpack.c.l.b16 %v2316
    %v4487 = vunpack.c.h.b16 %v2316
    %v4488 = vunpack.c.l.b16 %v2317
    %v4489 = vunpack.c.h.b16 %v2317
    %v4490 = vunpack.c.l.b16 %v2318
    %v4491 = vunpack.c.h.b16 %v2318
    %v4492 = vunpack.c.l.b16 %v2319
    %v4493 = vunpack.c.h.b16 %v2319
    %v4494 = vunpack.c.l.b16 %v2320
    %v4495 = vunpack.c.h.b16 %v2320
    %v4496 = vunpack.c.l.b16 %v2321
    %v4497 = vunpack.c.h.b16 %v2321
    %v4498 = vunpack.c.l.b16 %v2322
    %v4499 = vunpack.c.h.b16 %v2322
    %v4500 = vunpack.c.l.b16 %v2323
    %v4501 = vunpack.c.h.b16 %v2323
    %v4502 = vunpack.c.l.b16 %v2324
    %v4503 = vunpack.c.h.b16 %v2324
    %v4504 = vunpack.c.l.b16 %v2325
    %v4505 = vunpack.c.h.b16 %v2325
    %v4506 = vunpack.c.l.b16 %v2326
    %v4507 = vunpack.c.h.b16 %v2326
    %v4508 = vunpack.c.l.b16 %v2327
    %v4509 = vunpack.c.h.b16 %v2327
    %v4510 = vunpack.c.l.b16 %v2328
    %v4511 = vunpack.c.h.b16 %v2328
    %v4512 = vunpack.c.l.b16 %v2329
    %v4513 = vunpack.c.h.b16 %v2329
    %v4514 = vunpack.c.l.b16 %v2330
    %v4515 = vunpack.c.h.b16 %v2330
    %v4516 = vunpack.c.l.b16 %v2331
    %v4517 = vunpack.c.h.b16 %v2331
    %v4518 = vunpack.c.l.b16 %v2332
    %v4519 = vunpack.c.h.b16 %v2332
    %v4520 = vunpack.c.l.b16 %v2333
    %v4521 = vunpack.c.h.b16 %v2333
    %v4522 = vunpack.c.l.b16 %v2334
    %v4523 = vunpack.c.h.b16 %v2334
    %v4524 = vunpack.c.l.b16 %v2335
    %v4525 = vunpack.c.h.b16 %v2335
    %v4526 = vunpack.c.l.b16 %v2336
    %v4527 = vunpack.c.h.b16 %v2336
    %v4528 = vunpack.c.l.b16 %v2337
    %v4529 = vunpack.c.h.b16 %v2337
    %v4530 = vunpack.c.l.b16 %v2338
    %v4531 = vunpack.c.h.b16 %v2338
    %v4532 = vunpack.c.l.b16 %v2339
    %v4533 = vunpack.c.h.b16 %v2339
    %v4534 = vunpack.c.l.b16 %v2340
    %v4535 = vunpack.c.h.b16 %v2340
    %v4536 = vunpack.c.l.b16 %v2341
    %v4537 = vunpack.c.h.b16 %v2341
    %v4538 = vunpack.c.l.b16 %v2342
    %v4539 = vunpack.c.h.b16 %v2342
    %v4540 = vunpack.c.l.b16 %v2343
    %v4541 = vunpack.c.h.b16 %v2343
    %v4542 = vunpack.c.l.b16 %v2344
    %v4543 = vunpack.c.h.b16 %v2344
    %v4544 = vunpack.c.l.b16 %v2345
    %v4545 = vunpack.c.h.b16 %v2345
    %v4546 = vunpack.c.l.b16 %v2346
    %v4547 = vunpack.c.h.b16 %v2346
    %v4548 = vunpack.c.l.b16 %v2347
    %v4549 = vunpack.c.h.b16 %v2347
    %v4550 = vunpack.c.l.b16 %v2348
    %v4551 = vunpack.c.h.b16 %v2348
    %v4552 = vunpack.c.l.b16 %v2349
    %v4553 = vunpack.c.h.b16 %v2349
    %v4554 = vunpack.c.l.b16 %v2350
    %v4555 = vunpack.c.h.b16 %v2350
    %v4556 = vunpack.c.l.b16 %v2351
    %v4557 = vunpack.c.h.b16 %v2351
    %v4558 = vunpack.c.l.b16 %v2352
    %v4559 = vunpack.c.h.b16 %v2352
    %v4560 = vunpack.c.l.b16 %v2353
    %v4561 = vunpack.c.h.b16 %v2353
    %v4562 = vunpack.c.l.b16 %v2354
    %v4563 = vunpack.c.h.b16 %v2354
    %v4564 = vunpack.c.l.b16 %v2355
    %v4565 = vunpack.c.h.b16 %v2355
    %v4566 = vunpack.c.l.b16 %v2356
    %v4567 = vunpack.c.h.b16 %v2356
    %v4568 = vunpack.c.l.b16 %v2357
    %v4569 = vunpack.c.h.b16 %v2357
    %v4570 = vunpack.c.l.b16 %v2358
    %v4571 = vunpack.c.h.b16 %v2358
    %v4572 = vunpack.c.l.b16 %v2359
    %v4573 = vunpack.c.h.b16 %v2359
    %v4574 = vunpack.c.l.b16 %v2360
    %v4575 = vunpack.c.h.b16 %v2360
    %v4576 = vunpack.c.l.b16 %v2361
    %v4577 = vunpack.c.h.b16 %v2361
    %v4578 = vunpack.c.l.b16 %v2362
    %v4579 = vunpack.c.h.b16 %v2362
    %v4580 = vunpack.c.l.b16 %v2363
    %v4581 = vunpack.c.h.b16 %v2363
    %v4582 = vunpack.c.l.b16 %v2364
    %v4583 = vunpack.c.h.b16 %v2364
    %v4584 = vunpack.c.l.b16 %v2365
    %v4585 = vunpack.c.h.b16 %v2365
    %v4586 = vunpack.c.l.b16 %v2366
    %v4587 = vunpack.c.h.b16 %v2366
    %v4588 = vunpack.c.l.b16 %v2367
    %v4589 = vunpack.c.h.b16 %v2367
    %v4590 = vunpack.c.l.b16 %v2368
    %v4591 = vunpack.c.h.b16 %v2368
    %v4592 = vunpack.c.l.b16 %v2369
    %v4593 = vunpack.c.h.b16 %v2369
    %v4594 = vunpack.c.l.b16 %v2370
    %v4595 = vunpack.c.h.b16 %v2370
    %v4596 = vunpack.c.l.b16 %v2371
    %v4597 = vunpack.c.h.b16 %v2371
    %v4598 = vunpack.c.l.b16 %v2372
    %v4599 = vunpack.c.h.b16 %v2372
    %v4600 = vunpack.c.l.b16 %v2373
    %v4601 = vunpack.c.h.b16 %v2373
    %v4602 = vunpack.c.l.b16 %v2374
    %v4603 = vunpack.c.h.b16 %v2374
    %v4604 = vunpack.c.l.b16 %v2375
    %v4605 = vunpack.c.h.b16 %v2375
    %v4606 = vunpack.c.l.b16 %v2376
    %v4607 = vunpack.c.h.b16 %v2376
    %v4608 = vunpack.c.l.b16 %v2377
    %v4609 = vunpack.c.h.b16 %v2377
    %v4610 = vunpack.c.l.b16 %v2378
    %v4611 = vunpack.c.h.b16 %v2378
    %v4612 = vunpack.c.l.b16 %v2379
    %v4613 = vunpack.c.h.b16 %v2379
    %v4614 = vunpack.c.l.b16 %v2380
    %v4615 = vunpack.c.h.b16 %v2380
    %v4616 = vunpack.c.l.b16 %v2381
    %v4617 = vunpack.c.h.b16 %v2381
    %v4618 = vunpack.c.l.b16 %v2382
    %v4619 = vunpack.c.h.b16 %v2382
    %v4620 = vunpack.c.l.b16 %v2383
    %v4621 = vunpack.c.h.b16 %v2383
    %v4622 = vunpack.c.l.b16 %v2384
    %v4623 = vunpack.c.h.b16 %v2384
    %v4624 = vunpack.c.l.b16 %v2385
    %v4625 = vunpack.c.h.b16 %v2385
    %v4626 = vunpack.c.l.b16 %v2386
    %v4627 = vunpack.c.h.b16 %v2386
    %v4628 = vunpack.c.l.b16 %v2387
    %v4629 = vunpack.c.h.b16 %v2387
    %v4630 = vunpack.c.l.b16 %v2388
    %v4631 = vunpack.c.h.b16 %v2388
    %v4632 = vunpack.c.l.b16 %v2389
    %v4633 = vunpack.c.h.b16 %v2389
    %v4634 = vunpack.c.l.b16 %v2390
    %v4635 = vunpack.c.h.b16 %v2390
    %v4636 = vunpack.c.l.b16 %v2391
    %v4637 = vunpack.c.h.b16 %v2391
    %v4638 = vunpack.c.l.b16 %v2392
    %v4639 = vunpack.c.h.b16 %v2392
    %v4640 = vunpack.c.l.b16 %v2393
    %v4641 = vunpack.c.h.b16 %v2393
    %v4642 = vunpack.c.l.b16 %v2394
    %v4643 = vunpack.c.h.b16 %v2394
    %v4644 = vunpack.c.l.b16 %v2395
    %v4645 = vunpack.c.h.b16 %v2395
    %v4646 = vunpack.c.l.b16 %v2396
    %v4647 = vunpack.c.h.b16 %v2396
    %v4648 = vunpack.c.l.b16 %v2397
    %v4649 = vunpack.c.h.b16 %v2397
    %v4650 = vunpack.c.l.b16 %v2398
    %v4651 = vunpack.c.h.b16 %v2398
    %v4652 = vunpack.c.l.b16 %v2399
    %v4653 = vunpack.c.h.b16 %v2399
    %v4654 = vunpack.c.l.b16 %v2400
    %v4655 = vunpack.c.h.b16 %v2400
    %v4656 = vunpack.c.l.b16 %v2401
    %v4657 = vunpack.c.h.b16 %v2401
    %v4658 = vunpack.c.l.b16 %v2402
    %v4659 = vunpack.c.h.b16 %v2402
    %v4660 = vunpack.c.l.b16 %v2403
    %v4661 = vunpack.c.h.b16 %v2403
    %v4662 = vunpack.c.l.b16 %v2404
    %v4663 = vunpack.c.h.b16 %v2404
    %v4664 = vunpack.c.l.b16 %v2405
    %v4665 = vunpack.c.h.b16 %v2405
    %v4666 = vunpack.c.l.b16 %v2406
    %v4667 = vunpack.c.h.b16 %v2406
    %v4668 = vunpack.c.l.b16 %v2407
    %v4669 = vunpack.c.h.b16 %v2407
    %v4670 = vunpack.c.l.b16 %v2408
    %v4671 = vunpack.c.h.b16 %v2408
    %v4672 = vunpack.c.l.b16 %v2409
    %v4673 = vunpack.c.h.b16 %v2409
    %v4674 = vunpack.c.l.b16 %v2410
    %v4675 = vunpack.c.h.b16 %v2410
    %v4676 = vunpack.c.l.b16 %v2411
    %v4677 = vunpack.c.h.b16 %v2411
    %v4678 = vunpack.c.l.b16 %v2412
    %v4679 = vunpack.c.h.b16 %v2412
    %v4680 = vunpack.c.l.b16 %v2413
    %v4681 = vunpack.c.h.b16 %v2413
    %v4682 = vunpack.c.l.b16 %v2414
    %v4683 = vunpack.c.h.b16 %v2414
    %v4684 = vunpack.c.l.b16 %v2415
    %v4685 = vunpack.c.h.b16 %v2415
    %v4686 = vunpack.c.l.b16 %v2416
    %v4687 = vunpack.c.h.b16 %v2416
    %v4688 = vunpack.c.l.b16 %v2417
    %v4689 = vunpack.c.h.b16 %v2417
    %v4690 = vunpack.c.l.b16 %v2418
    %v4691 = vunpack.c.h.b16 %v2418
    %v4692 = vunpack.c.l.b16 %v2419
    %v4693 = vunpack.c.h.b16 %v2419
    %v4694 = vunpack.c.l.b16 %v2420
    %v4695 = vunpack.c.h.b16 %v2420
    %v4696 = vunpack.c.l.b16 %v2421
    %v4697 = vunpack.c.h.b16 %v2421
    %v4698 = vunpack.c.l.b16 %v2422
    %v4699 = vunpack.c.h.b16 %v2422
    %v4700 = vunpack.c.l.b16 %v2423
    %v4701 = vunpack.c.h.b16 %v2423
    %v4702 = vunpack.c.l.b16 %v2424
    %v4703 = vunpack.c.h.b16 %v2424
    %v4704 = vunpack.c.l.b16 %v2425
    %v4705 = vunpack.c.h.b16 %v2425
    %v4706 = vunpack.c.l.b16 %v2426
    %v4707 = vunpack.c.h.b16 %v2426
    %v4708 = vunpack.c.l.b16 %v2427
    %v4709 = vunpack.c.h.b16 %v2427
    %v4710 = vunpack.c.l.b16 %v2428
    %v4711 = vunpack.c.h.b16 %v2428
    %v4712 = vunpack.c.l.b16 %v2429
    %v4713 = vunpack.c.h.b16 %v2429
    %v4714 = vunpack.c.l.b16 %v2430
    %v4715 = vunpack.c.h.b16 %v2430
    %v4716 = vunpack.c.l.b16 %v2431
    %v4717 = vunpack.c.h.b16 %v2431
    %v4718 = vunpack.c.l.b16 %v2432
    %v4719 = vunpack.c.h.b16 %v2432
    %v4720 = vunpack.c.l.b16 %v2433
    %v4721 = vunpack.c.h.b16 %v2433
    %v4722 = vunpack.c.l.b16 %v2434
    %v4723 = vunpack.c.h.b16 %v2434
    %v4724 = vunpack.c.l.b16 %v2435
    %v4725 = vunpack.c.h.b16 %v2435
    %v4726 = vunpack.c.l.b16 %v2436
    %v4727 = vunpack.c.h.b16 %v2436
    %v4728 = vunpack.c.l.b16 %v2437
    %v4729 = vunpack.c.h.b16 %v2437
    %v4730 = vunpack.c.l.b16 %v2438
    %v4731 = vunpack.c.h.b16 %v2438
    %v4732 = vunpack.c.l.b16 %v2439
    %v4733 = vunpack.c.h.b16 %v2439
    %v4734 = vunpack.c.l.b16 %v2440
    %v4735 = vunpack.c.h.b16 %v2440
    %v4736 = vunpack.c.l.b16 %v2441
    %v4737 = vunpack.c.h.b16 %v2441
    %v4738 = vunpack.c.l.b16 %v2442
    %v4739 = vunpack.c.h.b16 %v2442
    %v4740 = vunpack.c.l.b16 %v2443
    %v4741 = vunpack.c.h.b16 %v2443
    %v4742 = vunpack.c.l.b16 %v2444
    %v4743 = vunpack.c.h.b16 %v2444
    %v4744 = vunpack.c.l.b16 %v2445
    %v4745 = vunpack.c.h.b16 %v2445
    %v4746 = vunpack.c.l.b16 %v2446
    %v4747 = vunpack.c.h.b16 %v2446
    %v4748 = vunpack.c.l.b16 %v2447
    %v4749 = vunpack.c.h.b16 %v2447
    %v4750 = vunpack.c.l.b16 %v2448
    %v4751 = vunpack.c.h.b16 %v2448
    %v4752 = vunpack.c.l.b16 %v2449
    %v4753 = vunpack.c.h.b16 %v2449
    %v4754 = vunpack.c.l.b16 %v2450
    %v4755 = vunpack.c.h.b16 %v2450
    %v4756 = vunpack.c.l.b16 %v2451
    %v4757 = vunpack.c.h.b16 %v2451
    %v4758 = vunpack.c.l.b16 %v2452
    %v4759 = vunpack.c.h.b16 %v2452
    %v4760 = vunpack.c.l.b16 %v2453
    %v4761 = vunpack.c.h.b16 %v2453
    %v4762 = vunpack.c.l.b16 %v2454
    %v4763 = vunpack.c.h.b16 %v2454
    %v4764 = vunpack.c.l.b16 %v2455
    %v4765 = vunpack.c.h.b16 %v2455
    %v4766 = vunpack.c.l.b16 %v2456
    %v4767 = vunpack.c.h.b16 %v2456
    %v4768 = vunpack.c.l.b16 %v2457
    %v4769 = vunpack.c.h.b16 %v2457
    %v4770 = vunpack.c.l.b16 %v2458
    %v4771 = vunpack.c.h.b16 %v2458
    %v4772 = vunpack.c.l.b16 %v2459
    %v4773 = vunpack.c.h.b16 %v2459
    %v4774 = vunpack.c.l.b16 %v2460
    %v4775 = vunpack.c.h.b16 %v2460
    %v4776 = vunpack.c.l.b16 %v2461
    %v4777 = vunpack.c.h.b16 %v2461
    %v4778 = vunpack.c.l.b16 %v2462
    %v4779 = vunpack.c.h.b16 %v2462
    %v4780 = vunpack.c.l.b16 %v2463
    %v4781 = vunpack.c.h.b16 %v2463
    %v4782 = vunpack.c.l.b16 %v2464
    %v4783 = vunpack.c.h.b16 %v2464
    %v4784 = vunpack.c.l.b16 %v2465
    %v4785 = vunpack.c.h.b16 %v2465
    %v4786 = vunpack.c.l.b16 %v2466
    %v4787 = vunpack.c.h.b16 %v2466
    %v4788 = vunpack.c.l.b16 %v2467
    %v4789 = vunpack.c.h.b16 %v2467
    %v4790 = vunpack.c.l.b16 %v2468
    %v4791 = vunpack.c.h.b16 %v2468
    %v4792 = vunpack.c.l.b16 %v2469
    %v4793 = vunpack.c.h.b16 %v2469
    %v4794 = vunpack.c.l.b16 %v2470
    %v4795 = vunpack.c.h.b16 %v2470
    %v4796 = vunpack.c.l.b16 %v2471
    %v4797 = vunpack.c.h.b16 %v2471
    %v4798 = vunpack.c.l.b16 %v2472
    %v4799 = vunpack.c.h.b16 %v2472
    %v4800 = vunpack.c.l.b16 %v2473
    %v4801 = vunpack.c.h.b16 %v2473
    %v4802 = vunpack.c.l.b16 %v2474
    %v4803 = vunpack.c.h.b16 %v2474
    %v4804 = vunpack.c.l.b16 %v2475
    %v4805 = vunpack.c.h.b16 %v2475
    %v4806 = vunpack.c.l.b16 %v2476
    %v4807 = vunpack.c.h.b16 %v2476
    %v4808 = vunpack.c.l.b16 %v2477
    %v4809 = vunpack.c.h.b16 %v2477
    %v4810 = vunpack.c.l.b16 %v2478
    %v4811 = vunpack.c.h.b16 %v2478
    %v4812 = vunpack.c.l.b16 %v2479
    %v4813 = vunpack.c.h.b16 %v2479
    %v4814 = vunpack.c.l.b16 %v2480
    %v4815 = vunpack.c.h.b16 %v2480
    %v4816 = vunpack.c.l.b16 %v2481
    %v4817 = vunpack.c.h.b16 %v2481
    %v4818 = vunpack.c.l.b16 %v2482
    %v4819 = vunpack.c.h.b16 %v2482
    %v4820 = vunpack.c.l.b16 %v2483
    %v4821 = vunpack.c.h.b16 %v2483
    %v4822 = vunpack.c.l.b16 %v2484
    %v4823 = vunpack.c.h.b16 %v2484
    %v4824 = vunpack.c.l.b16 %v2485
    %v4825 = vunpack.c.h.b16 %v2485
    %v4826 = vunpack.c.l.b16 %v2486
    %v4827 = vunpack.c.h.b16 %v2486
    %v4828 = vunpack.c.l.b16 %v2487
    %v4829 = vunpack.c.h.b16 %v2487
    %v4830 = vunpack.c.l.b16 %v2488
    %v4831 = vunpack.c.h.b16 %v2488
    %v4832 = vunpack.c.l.b16 %v2489
    %v4833 = vunpack.c.h.b16 %v2489
    %v4834 = vunpack.c.l.b16 %v2490
    %v4835 = vunpack.c.h.b16 %v2490
    %v4836 = vunpack.c.l.b16 %v2491
    %v4837 = vunpack.c.h.b16 %v2491
    %v4838 = vunpack.c.l.b16 %v2492
    %v4839 = vunpack.c.h.b16 %v2492
    %v4840 = vunpack.c.l.b16 %v2493
    %v4841 = vunpack.c.h.b16 %v2493
    %v4842 = vunpack.c.l.b16 %v2494
    %v4843 = vunpack.c.h.b16 %v2494
    %v4844 = vunpack.c.l.b16 %v2495
    %v4845 = vunpack.c.h.b16 %v2495
    %v4846 = vunpack.c.l.b16 %v2496
    %v4847 = vunpack.c.h.b16 %v2496
    %v4848 = vunpack.c.l.b16 %v2497
    %v4849 = vunpack.c.h.b16 %v2497
    %v4850 = vunpack.c.l.b16 %v2498
    %v4851 = vunpack.c.h.b16 %v2498
    %v4852 = vunpack.c.l.b16 %v2499
    %v4853 = vunpack.c.h.b16 %v2499
    %v4854 = vunpack.c.l.b16 %v2500
    %v4855 = vunpack.c.h.b16 %v2500
    %v4856 = vunpack.c.l.b16 %v2501
    %v4857 = vunpack.c.h.b16 %v2501
    %v4858 = vunpack.c.l.b16 %v2502
    %v4859 = vunpack.c.h.b16 %v2502
    %v4860 = vunpack.c.l.b16 %v2503
    %v4861 = vunpack.c.h.b16 %v2503
    %v4862 = vunpack.c.l.b16 %v2504
    %v4863 = vunpack.c.h.b16 %v2504
    %v4864 = vunpack.c.l.b16 %v2505
    %v4865 = vunpack.c.h.b16 %v2505
    %v4866 = vunpack.c.l.b16 %v2506
    %v4867 = vunpack.c.h.b16 %v2506
    %v4868 = vunpack.c.l.b16 %v2507
    %v4869 = vunpack.c.h.b16 %v2507
    %v4870 = vunpack.c.l.b16 %v2508
    %v4871 = vunpack.c.h.b16 %v2508
    %v4872 = vunpack.c.l.b16 %v2509
    %v4873 = vunpack.c.h.b16 %v2509
    %v4874 = vunpack.c.l.b16 %v2510
    %v4875 = vunpack.c.h.b16 %v2510
    %v4876 = vunpack.c.l.b16 %v2511
    %v4877 = vunpack.c.h.b16 %v2511
    %v4878 = vunpack.c.l.b16 %v2512
    %v4879 = vunpack.c.h.b16 %v2512
    %v4880 = vunpack.c.l.b16 %v2513
    %v4881 = vunpack.c.h.b16 %v2513
    %v4882 = vunpack.c.l.b16 %v2514
    %v4883 = vunpack.c.h.b16 %v2514
    %v4884 = vunpack.c.l.b16 %v2515
    %v4885 = vunpack.c.h.b16 %v2515
    %v4886 = vunpack.c.l.b16 %v2516
    %v4887 = vunpack.c.h.b16 %v2516
    %v4888 = vunpack.c.l.b16 %v2517
    %v4889 = vunpack.c.h.b16 %v2517
    %v4890 = vunpack.c.l.b16 %v2518
    %v4891 = vunpack.c.h.b16 %v2518
    %v4892 = vunpack.c.l.b16 %v2519
    %v4893 = vunpack.c.h.b16 %v2519
    %v4894 = vunpack.c.l.b16 %v2520
    %v4895 = vunpack.c.h.b16 %v2520
    %v4896 = vunpack.c.l.b16 %v2521
    %v4897 = vunpack.c.h.b16 %v2521
    %v4898 = vunpack.c.l.b16 %v2522
    %v4899 = vunpack.c.h.b16 %v2522
    %v4900 = vunpack.c.l.b16 %v2523
    %v4901 = vunpack.c.h.b16 %v2523
    %v4902 = vunpack.c.l.b16 %v2524
    %v4903 = vunpack.c.h.b16 %v2524
    %v4904 = vunpack.c.l.b16 %v2525
    %v4905 = vunpack.c.h.b16 %v2525
    %v4906 = vunpack.c.l.b16 %v2526
    %v4907 = vunpack.c.h.b16 %v2526
    %v4908 = vunpack.c.l.b16 %v2527
    %v4909 = vunpack.c.h.b16 %v2527
    %v4910 = vunpack.c.l.b16 %v2528
    %v4911 = vunpack.c.h.b16 %v2528
    %v4912 = vunpack.c.l.b16 %v2529
    %v4913 = vunpack.c.h.b16 %v2529
    %v4914 = vunpack.c.l.b16 %v2530
    %v4915 = vunpack.c.h.b16 %v2530
    %v4916 = vunpack.c.l.b16 %v2531
    %v4917 = vunpack.c.h.b16 %v2531
    %v4918 = vunpack.c.l.b16 %v2532
    %v4919 = vunpack.c.h.b16 %v2532
    %v4920 = vunpack.c.l.b16 %v2533
    %v4921 = vunpack.c.h.b16 %v2533
    %v4922 = vunpack.c.l.b16 %v2534
    %v4923 = vunpack.c.h.b16 %v2534
    %v4924 = vunpack.c.l.b16 %v2535
    %v4925 = vunpack.c.h.b16 %v2535
    %v4926 = vunpack.c.l.b16 %v2536
    %v4927 = vunpack.c.h.b16 %v2536
    %v4928 = vunpack.c.l.b16 %v2537
    %v4929 = vunpack.c.h.b16 %v2537
    %v4930 = vunpack.c.l.b16 %v2538
    %v4931 = vunpack.c.h.b16 %v2538
    %v4932 = vunpack.c.l.b16 %v2539
    %v4933 = vunpack.c.h.b16 %v2539
    %v4934 = vunpack.c.l.b16 %v2540
    %v4935 = vunpack.c.h.b16 %v2540
    %v4936 = vunpack.c.l.b16 %v2541
    %v4937 = vunpack.c.h.b16 %v2541
    %v4938 = vunpack.c.l.b16 %v2542
    %v4939 = vunpack.c.h.b16 %v2542
    %v4940 = vunpack.c.l.b16 %v2543
    %v4941 = vunpack.c.h.b16 %v2543
    %v4942 = vunpack.c.l.b16 %v2544
    %v4943 = vunpack.c.h.b16 %v2544
    %v4944 = vunpack.c.l.b16 %v2545
    %v4945 = vunpack.c.h.b16 %v2545
    %v4946 = vunpack.c.l.b16 %v2546
    %v4947 = vunpack.c.h.b16 %v2546
    %v4948 = vunpack.c.l.b16 %v2547
    %v4949 = vunpack.c.h.b16 %v2547
    %v4950 = vunpack.c.l.b16 %v2548
    %v4951 = vunpack.c.h.b16 %v2548
    %v4952 = vunpack.c.l.b16 %v2549
    %v4953 = vunpack.c.h.b16 %v2549
    %v4954 = vunpack.c.l.b16 %v2550
    %v4955 = vunpack.c.h.b16 %v2550
    %v4956 = vunpack.c.l.b16 %v2551
    %v4957 = vunpack.c.h.b16 %v2551
    %v4958 = vunpack.c.l.b16 %v2552
    %v4959 = vunpack.c.h.b16 %v2552
    %v4960 = vunpack.c.l.b16 %v2553
    %v4961 = vunpack.c.h.b16 %v2553
    %v4962 = vunpack.c.l.b16 %v2554
    %v4963 = vunpack.c.h.b16 %v2554
    %v4964 = vunpack.c.l.b16 %v2555
    %v4965 = vunpack.c.h.b16 %v2555
    %v4966 = vunpack.c.l.b16 %v2556
    %v4967 = vunpack.c.h.b16 %v2556
    %v4968 = vunpack.c.l.b16 %v2557
    %v4969 = vunpack.c.h.b16 %v2557
    %v4970 = vunpack.c.l.b16 %v2558
    %v4971 = vunpack.c.h.b16 %v2558
    %v4972 = vunpack.c.l.b16 %v2559
    %v4973 = vunpack.c.h.b16 %v2559
    %v4974 = vunpack.c.l.b16 %v2560
    %v4975 = vunpack.c.h.b16 %v2560
    %v4976 = vunpack.c.l.b16 %v2561
    %v4977 = vunpack.c.h.b16 %v2561
    %v4978 = vunpack.c.l.b16 %v2562
    %v4979 = vunpack.c.h.b16 %v2562
    %v4980 = vunpack.c.l.b16 %v2563
    %v4981 = vunpack.c.h.b16 %v2563
    %v4982 = vunpack.c.l.b16 %v2564
    %v4983 = vunpack.c.h.b16 %v2564
    %v4984 = vunpack.c.l.b16 %v2565
    %v4985 = vunpack.c.h.b16 %v2565
    %v4986 = vunpack.c.l.b16 %v2566
    %v4987 = vunpack.c.h.b16 %v2566
    %v4988 = vunpack.c.l.b16 %v2567
    %v4989 = vunpack.c.h.b16 %v2567
    %v4990 = vunpack.c.l.b16 %v2568
    %v4991 = vunpack.c.h.b16 %v2568
    %v4992 = vunpack.c.l.b16 %v2569
    %v4993 = vunpack.c.h.b16 %v2569
    %v4994 = vunpack.c.l.b16 %v2570
    %v4995 = vunpack.c.h.b16 %v2570
    %v4996 = vunpack.c.l.b16 %v2571
    %v4997 = vunpack.c.h.b16 %v2571
    %v4998 = vunpack.c.l.b16 %v2572
    %v4999 = vunpack.c.h.b16 %v2572
    %v5000 = vunpack.c.l.b16 %v2573
    %v5001 = vunpack.c.h.b16 %v2573
    %v5002 = vunpack.c.l.b16 %v2574
    %v5003 = vunpack.c.h.b16 %v2574
    %v5004 = vunpack.c.l.b16 %v2575
    %v5005 = vunpack.c.h.b16 %v2575
    %v5006 = vunpack.c.l.b16 %v2576
    %v5007 = vunpack.c.h.b16 %v2576
    %v5008 = vunpack.c.l.b16 %v2577
    %v5009 = vunpack.c.h.b16 %v2577
    %v5010 = vunpack.c.l.b16 %v2578
    %v5011 = vunpack.c.h.b16 %v2578
    %v5012 = vunpack.c.l.b16 %v2579
    %v5013 = vunpack.c.h.b16 %v2579
    %v5014 = vunpack.c.l.b16 %v2580
    %v5015 = vunpack.c.h.b16 %v2580
    %v5016 = vunpack.c.l.b16 %v2581
    %v5017 = vunpack.c.h.b16 %v2581
    %v5018 = vunpack.c.l.b16 %v2582
    %v5019 = vunpack.c.h.b16 %v2582
    %v5020 = vunpack.c.l.b16 %v2583
    %v5021 = vunpack.c.h.b16 %v2583
    %v5022 = vunpack.c.l.b16 %v2584
    %v5023 = vunpack.c.h.b16 %v2584
    %v5024 = vunpack.c.l.b16 %v2585
    %v5025 = vunpack.c.h.b16 %v2585
    %v5026 = vunpack.c.l.b16 %v2586
    %v5027 = vunpack.c.h.b16 %v2586
    %v5028 = vunpack.c.l.b16 %v2587
    %v5029 = vunpack.c.h.b16 %v2587
    %v5030 = vunpack.c.l.b16 %v2588
    %v5031 = vunpack.c.h.b16 %v2588
    %v5032 = vunpack.c.l.b16 %v2589
    %v5033 = vunpack.c.h.b16 %v2589
    %v5034 = vunpack.c.l.b16 %v2590
    %v5035 = vunpack.c.h.b16 %v2590
    %v5036 = vunpack.c.l.b16 %v2591
    %v5037 = vunpack.c.h.b16 %v2591
    %v5038 = vunpack.c.l.b16 %v2592
    %v5039 = vunpack.c.h.b16 %v2592
    %v5040 = vunpack.c.l.b16 %v2593
    %v5041 = vunpack.c.h.b16 %v2593
    %v5042 = vunpack.c.l.b16 %v2594
    %v5043 = vunpack.c.h.b16 %v2594
    %v5044 = vunpack.c.l.b16 %v2595
    %v5045 = vunpack.c.h.b16 %v2595
    %v5046 = vunpack.c.l.b16 %v2596
    %v5047 = vunpack.c.h.b16 %v2596
    %v5048 = vunpack.c.l.b16 %v2597
    %v5049 = vunpack.c.h.b16 %v2597
    %v5050 = vunpack.c.l.b16 %v2598
    %v5051 = vunpack.c.h.b16 %v2598
    %v5052 = vunpack.c.l.b16 %v2599
    %v5053 = vunpack.c.h.b16 %v2599
    %v5054 = vunpack.c.l.b16 %v2600
    %v5055 = vunpack.c.h.b16 %v2600
    %v5056 = vunpack.c.l.b16 %v2601
    %v5057 = vunpack.c.h.b16 %v2601
    %v5058 = vunpack.c.l.b16 %v2602
    %v5059 = vunpack.c.h.b16 %v2602
    %v5060 = vunpack.c.l.b16 %v2603
    %v5061 = vunpack.c.h.b16 %v2603
    %v5062 = vunpack.c.l.b16 %v2604
    %v5063 = vunpack.c.h.b16 %v2604
    %v5064 = vunpack.c.l.b16 %v2605
    %v5065 = vunpack.c.h.b16 %v2605
    %v5066 = vunpack.c.l.b16 %v2606
    %v5067 = vunpack.c.h.b16 %v2606
    %v5068 = vunpack.c.l.b16 %v2607
    %v5069 = vunpack.c.h.b16 %v2607
    %v5070 = vunpack.c.l.b16 %v2608
    %v5071 = vunpack.c.h.b16 %v2608
    %v5072 = vunpack.c.l.b16 %v2609
    %v5073 = vunpack.c.h.b16 %v2609
    %v5074 = vunpack.c.l.b16 %v2610
    %v5075 = vunpack.c.h.b16 %v2610
    %v5076 = vunpack.c.l.b16 %v2611
    %v5077 = vunpack.c.h.b16 %v2611
    %v5078 = vunpack.c.l.b16 %v2612
    %v5079 = vunpack.c.h.b16 %v2612
    %v5080 = vunpack.c.l.b16 %v2613
    %v5081 = vunpack.c.h.b16 %v2613
    %v5082 = vunpack.c.l.b16 %v2614
    %v5083 = vunpack.c.h.b16 %v2614
    %v5084 = vunpack.c.l.b16 %v2615
    %v5085 = vunpack.c.h.b16 %v2615
    %v5086 = vunpack.c.l.b16 %v2616
    %v5087 = vunpack.c.h.b16 %v2616
    %v5088 = vunpack.c.l.b16 %v2617
    %v5089 = vunpack.c.h.b16 %v2617
    %v5090 = vunpack.c.l.b16 %v2618
    %v5091 = vunpack.c.h.b16 %v2618
    %v5092 = vunpack.c.l.b16 %v2619
    %v5093 = vunpack.c.h.b16 %v2619
    %v5094 = vunpack.c.l.b16 %v2620
    %v5095 = vunpack.c.h.b16 %v2620
    %v5096 = vunpack.c.l.b16 %v2621
    %v5097 = vunpack.c.h.b16 %v2621
    %v5098 = vunpack.c.l.b16 %v2622
    %v5099 = vunpack.c.h.b16 %v2622
    %v5100 = vunpack.c.l.b16 %v2623
    %v5101 = vunpack.c.h.b16 %v2623
    %v5102 = vunpack.c.l.b16 %v2624
    %v5103 = vunpack.c.h.b16 %v2624
    %v5104 = vunpack.c.l.b16 %v2625
    %v5105 = vunpack.c.h.b16 %v2625
    %v5106 = vunpack.c.l.b16 %v2626
    %v5107 = vunpack.c.h.b16 %v2626
    %v5108 = vunpack.c.l.b16 %v2627
    %v5109 = vunpack.c.h.b16 %v2627
    %v5110 = vunpack.c.l.b16 %v2628
    %v5111 = vunpack.c.h.b16 %v2628
    %v5112 = vunpack.c.l.b16 %v2629
    %v5113 = vunpack.c.h.b16 %v2629
    %v5114 = vunpack.c.l.b16 %v2630
    %v5115 = vunpack.c.h.b16 %v2630
    %v5116 = vunpack.c.l.b16 %v2631
    %v5117 = vunpack.c.h.b16 %v2631
    %v5118 = vunpack.c.l.b16 %v2632
    %v5119 = vunpack.c.h.b16 %v2632
    %v5120 = vunpack.c.l.b16 %v2633
    %v5121 = vunpack.c.h.b16 %v2633
    %v5122 = vunpack.c.l.b16 %v2634
    %v5123 = vunpack.c.h.b16 %v2634
    %v5124 = vunpack.c.l.b16 %v2635
    %v5125 = vunpack.c.h.b16 %v2635
    %v5126 = vunpack.c.l.b16 %v2636
    %v5127 = vunpack.c.h.b16 %v2636
    %v5128 = vunpack.c.l.b16 %v2637
    %v5129 = vunpack.c.h.b16 %v2637
    %v5130 = vunpack.c.l.b16 %v2638
    %v5131 = vunpack.c.h.b16 %v2638
    %v5132 = vunpack.c.l.b16 %v2639
    %v5133 = vunpack.c.h.b16 %v2639
    %v5134 = vunpack.c.l.b16 %v2640
    %v5135 = vunpack.c.h.b16 %v2640
    %v5136 = vunpack.c.l.b16 %v2641
    %v5137 = vunpack.c.h.b16 %v2641
    %v5138 = vunpack.c.l.b16 %v2642
    %v5139 = vunpack.c.h.b16 %v2642
    %v5140 = vunpack.c.l.b16 %v2643
    %v5141 = vunpack.c.h.b16 %v2643
    %v5142 = vunpack.c.l.b16 %v2644
    %v5143 = vunpack.c.h.b16 %v2644
    %v5144 = vunpack.c.l.b16 %v2645
    %v5145 = vunpack.c.h.b16 %v2645
    %v5146 = vunpack.c.l.b16 %v2646
    %v5147 = vunpack.c.h.b16 %v2646
    %v5148 = vunpack.c.l.b16 %v2647
    %v5149 = vunpack.c.h.b16 %v2647
    %v5150 = vunpack.c.l.b16 %v2648
    %v5151 = vunpack.c.h.b16 %v2648
    %v5152 = vunpack.c.l.b16 %v2649
    %v5153 = vunpack.c.h.b16 %v2649
    %v5154 = vunpack.c.l.b16 %v2650
    %v5155 = vunpack.c.h.b16 %v2650
    %v5156 = vunpack.c.l.b16 %v2651
    %v5157 = vunpack.c.h.b16 %v2651
    %v5158 = vunpack.c.l.b16 %v2652
    %v5159 = vunpack.c.h.b16 %v2652
    %v5160 = vunpack.c.l.b16 %v2653
    %v5161 = vunpack.c.h.b16 %v2653
    %v5162 = vunpack.c.l.b16 %v2654
    %v5163 = vunpack.c.h.b16 %v2654
    %v5164 = vunpack.c.l.b16 %v2655
    %v5165 = vunpack.c.h.b16 %v2655
    %v5166 = vunpack.c.l.b16 %v2656
    %v5167 = vunpack.c.h.b16 %v2656
    %v5168 = vunpack.c.l.b16 %v2657
    %v5169 = vunpack.c.h.b16 %v2657
    %v5170 = vunpack.c.l.b16 %v2658
    %v5171 = vunpack.c.h.b16 %v2658
    %v5172 = vunpack.c.l.b16 %v2659
    %v5173 = vunpack.c.h.b16 %v2659
    %v5174 = vunpack.c.l.b16 %v2660
    %v5175 = vunpack.c.h.b16 %v2660
    %v5176 = vunpack.c.l.b16 %v2661
    %v5177 = vunpack.c.h.b16 %v2661
    %v5178 = vunpack.c.l.b16 %v2662
    %v5179 = vunpack.c.h.b16 %v2662
    %v5180 = vunpack.c.l.b16 %v2663
    %v5181 = vunpack.c.h.b16 %v2663
    %v5182 = vunpack.c.l.b16 %v2664
    %v5183 = vunpack.c.h.b16 %v2664
    %v5184 = vunpack.c.l.b16 %v2665
    %v5185 = vunpack.c.h.b16 %v2665
    %v5186 = vunpack.c.l.b16 %v2666
    %v5187 = vunpack.c.h.b16 %v2666
    %v5188 = vunpack.c.l.b16 %v2667
    %v5189 = vunpack.c.h.b16 %v2667
    %v5190 = vunpack.c.l.b16 %v2668
    %v5191 = vunpack.c.h.b16 %v2668
    %v5192 = vunpack.c.l.b16 %v2669
    %v5193 = vunpack.c.h.b16 %v2669
    %v5194 = vunpack.c.l.b16 %v2670
    %v5195 = vunpack.c.h.b16 %v2670
    %v5196 = vunpack.c.l.b16 %v2671
    %v5197 = vunpack.c.h.b16 %v2671
    %v5198 = vunpack.c.l.b16 %v2672
    %v5199 = vunpack.c.h.b16 %v2672
    %v5200 = vunpack.c.l.b16 %v2673
    %v5201 = vunpack.c.h.b16 %v2673
    %v5202 = vunpack.c.l.b16 %v2674
    %v5203 = vunpack.c.h.b16 %v2674
    %v5204 = vunpack.c.l.b16 %v2675
    %v5205 = vunpack.c.h.b16 %v2675
    %v5206 = vunpack.c.l.b16 %v2676
    %v5207 = vunpack.c.h.b16 %v2676
    %v5208 = vunpack.c.l.b16 %v2677
    %v5209 = vunpack.c.h.b16 %v2677
    %v5210 = vunpack.c.l.b16 %v2678
    %v5211 = vunpack.c.h.b16 %v2678
    %v5212 = vunpack.c.l.b16 %v2679
    %v5213 = vunpack.c.h.b16 %v2679
    %v5214 = vunpack.c.l.b16 %v2680
    %v5215 = vunpack.c.h.b16 %v2680
    %v5216 = vunpack.c.l.b16 %v2681
    %v5217 = vunpack.c.h.b16 %v2681
    %v5218 = vunpack.c.l.b16 %v2682
    %v5219 = vunpack.c.h.b16 %v2682
    %v5220 = vunpack.c.l.b16 %v2683
    %v5221 = vunpack.c.h.b16 %v2683
    %v5222 = vunpack.c.l.b16 %v2684
    %v5223 = vunpack.c.h.b16 %v2684
    %v5224 = vunpack.c.l.b16 %v2685
    %v5225 = vunpack.c.h.b16 %v2685
    %v5226 = vunpack.c.l.b16 %v2686
    %v5227 = vunpack.c.h.b16 %v2686
    %v5228 = vunpack.c.l.b16 %v2687
    %v5229 = vunpack.c.h.b16 %v2687
    %v5230 = vunpack.c.l.b16 %v2688
    %v5231 = vunpack.c.h.b16 %v2688
    %v5232 = vunpack.c.l.b16 %v2689
    %v5233 = vunpack.c.h.b16 %v2689
    %v5234 = vunpack.c.l.b16 %v2690
    %v5235 = vunpack.c.h.b16 %v2690
    %v5236 = vunpack.c.l.b16 %v2691
    %v5237 = vunpack.c.h.b16 %v2691
    %v5238 = vunpack.c.l.b16 %v2692
    %v5239 = vunpack.c.h.b16 %v2692
    %v5240 = vunpack.c.l.b16 %v2693
    %v5241 = vunpack.c.h.b16 %v2693
    %v5242 = vunpack.c.l.b16 %v2694
    %v5243 = vunpack.c.h.b16 %v2694
    %v5244 = vunpack.c.l.b16 %v2695
    %v5245 = vunpack.c.h.b16 %v2695
    %v5246 = vunpack.c.l.b16 %v2696
    %v5247 = vunpack.c.h.b16 %v2696
    %v5248 = vunpack.c.l.b16 %v2697
    %v5249 = vunpack.c.h.b16 %v2697
    %v5250 = vunpack.c.l.b16 %v2698
    %v5251 = vunpack.c.h.b16 %v2698
    %v5252 = vunpack.c.l.b16 %v2699
    %v5253 = vunpack.c.h.b16 %v2699
    %v5254 = vunpack.c.l.b16 %v2700
    %v5255 = vunpack.c.h.b16 %v2700
    %v5256 = vunpack.c.l.b16 %v2701
    %v5257 = vunpack.c.h.b16 %v2701
    %v5258 = vunpack.c.l.b16 %v2702
    %v5259 = vunpack.c.h.b16 %v2702
    %v5260 = vunpack.c.l.b16 %v2703
    %v5261 = vunpack.c.h.b16 %v2703
    %v5262 = vunpack.c.l.b16 %v2704
    %v5263 = vunpack.c.h.b16 %v2704
    %v5264 = vunpack.c.l.b16 %v2705
    %v5265 = vunpack.c.h.b16 %v2705
    %v5266 = vunpack.c.l.b16 %v2706
    %v5267 = vunpack.c.h.b16 %v2706
    %v5268 = vunpack.c.l.b16 %v2707
    %v5269 = vunpack.c.h.b16 %v2707
    %v5270 = vunpack.c.l.b16 %v2708
    %v5271 = vunpack.c.h.b16 %v2708
    %v5272 = vunpack.c.l.b16 %v2709
    %v5273 = vunpack.c.h.b16 %v2709
    %v5274 = vunpack.c.l.b16 %v2710
    %v5275 = vunpack.c.h.b16 %v2710
    %v5276 = vunpack.c.l.b16 %v2711
    %v5277 = vunpack.c.h.b16 %v2711
    %v5278 = vunpack.c.l.b16 %v2712
    %v5279 = vunpack.c.h.b16 %v2712
    %v5280 = vunpack.c.l.b16 %v2713
    %v5281 = vunpack.c.h.b16 %v2713
    %v5282 = vunpack.c.l.b16 %v2714
    %v5283 = vunpack.c.h.b16 %v2714
    %v5284 = vunpack.c.l.b16 %v2715
    %v5285 = vunpack.c.h.b16 %v2715
    %v5286 = vunpack.c.l.b16 %v2716
    %v5287 = vunpack.c.h.b16 %v2716
    %v5288 = vunpack.c.l.b16 %v2717
    %v5289 = vunpack.c.h.b16 %v2717
    %v5290 = vunpack.c.l.b16 %v2718
    %v5291 = vunpack.c.h.b16 %v2718
    %v5292 = vunpack.c.l.b16 %v2719
    %v5293 = vunpack.c.h.b16 %v2719
    %v5294 = vunpack.c.l.b16 %v2720
    %v5295 = vunpack.c.h.b16 %v2720
    %v5296 = vunpack.c.l.b16 %v2721
    %v5297 = vunpack.c.h.b16 %v2721
    %v5298 = vunpack.c.l.b16 %v2722
    %v5299 = vunpack.c.h.b16 %v2722
    %v5300 = vunpack.c.l.b16 %v2723
    %v5301 = vunpack.c.h.b16 %v2723
    %v5302 = vunpack.c.l.b16 %v2724
    %v5303 = vunpack.c.h.b16 %v2724
    %v5304 = vunpack.c.l.b16 %v2725
    %v5305 = vunpack.c.h.b16 %v2725
    %v5306 = vunpack.c.l.b16 %v2726
    %v5307 = vunpack.c.h.b16 %v2726
    %v5308 = vunpack.c.l.b16 %v2727
    %v5309 = vunpack.c.h.b16 %v2727
    %v5310 = vunpack.c.l.b16 %v2728
    %v5311 = vunpack.c.h.b16 %v2728
    %v5312 = vunpack.c.l.b16 %v2729
    %v5313 = vunpack.c.h.b16 %v2729
    %v5314 = vunpack.c.l.b16 %v2730
    %v5315 = vunpack.c.h.b16 %v2730
    %v5316 = vunpack.c.l.b16 %v2731
    %v5317 = vunpack.c.h.b16 %v2731
    %v5318 = vunpack.c.l.b16 %v2732
    %v5319 = vunpack.c.h.b16 %v2732
    %v5320 = vunpack.c.l.b16 %v2733
    %v5321 = vunpack.c.h.b16 %v2733
    %v5322 = vunpack.c.l.b16 %v2734
    %v5323 = vunpack.c.h.b16 %v2734
    %v5324 = vunpack.c.l.b16 %v2735
    %v5325 = vunpack.c.h.b16 %v2735
    %v5326 = vunpack.c.l.b16 %v2736
    %v5327 = vunpack.c.h.b16 %v2736
    %v5328 = vunpack.c.l.b16 %v2737
    %v5329 = vunpack.c.h.b16 %v2737
    %v5330 = vunpack.c.l.b16 %v2738
    %v5331 = vunpack.c.h.b16 %v2738
    %v5332 = vunpack.c.l.b16 %v2739
    %v5333 = vunpack.c.h.b16 %v2739
    %v5334 = vunpack.c.l.b16 %v2740
    %v5335 = vunpack.c.h.b16 %v2740
    %v5336 = vunpack.c.l.b16 %v2741
    %v5337 = vunpack.c.h.b16 %v2741
    %v5338 = vunpack.c.l.b16 %v2742
    %v5339 = vunpack.c.h.b16 %v2742
    %v5340 = vunpack.c.l.b16 %v2743
    %v5341 = vunpack.c.h.b16 %v2743
    %v5342 = vunpack.c.l.b16 %v2744
    %v5343 = vunpack.c.h.b16 %v2744
    %v5344 = vunpack.c.l.b16 %v2745
    %v5345 = vunpack.c.h.b16 %v2745
    %v5346 = vunpack.c.l.b16 %v2746
    %v5347 = vunpack.c.h.b16 %v2746
    %v5348 = vunpack.c.l.b16 %v2747
    %v5349 = vunpack.c.h.b16 %v2747
    %v5350 = vunpack.c.l.b16 %v2748
    %v5351 = vunpack.c.h.b16 %v2748
    %v5352 = vunpack.c.l.b16 %v2749
    %v5353 = vunpack.c.h.b16 %v2749
    %v5354 = vunpack.c.l.b16 %v2750
    %v5355 = vunpack.c.h.b16 %v2750
    %v5356 = vunpack.c.l.b16 %v2751
    %v5357 = vunpack.c.h.b16 %v2751
    %v5358 = vunpack.c.l.b16 %v2752
    %v5359 = vunpack.c.h.b16 %v2752
    %v5360 = vunpack.c.l.b16 %v2753
    %v5361 = vunpack.c.h.b16 %v2753
    %v5362 = vunpack.c.l.b16 %v2754
    %v5363 = vunpack.c.h.b16 %v2754
    %v5364 = vunpack.c.l.b16 %v2755
    %v5365 = vunpack.c.h.b16 %v2755
    %v5366 = vunpack.c.l.b16 %v2756
    %v5367 = vunpack.c.h.b16 %v2756
    %v5368 = vunpack.c.l.b16 %v2757
    %v5369 = vunpack.c.h.b16 %v2757
    %v5370 = vunpack.c.l.b16 %v2758
    %v5371 = vunpack.c.h.b16 %v2758
    %v5372 = vunpack.c.l.b16 %v2759
    %v5373 = vunpack.c.h.b16 %v2759
    %v5374 = vunpack.c.l.b16 %v2760
    %v5375 = vunpack.c.h.b16 %v2760
    %v5376 = vunpack.c.l.b16 %v2761
    %v5377 = vunpack.c.h.b16 %v2761
    %v5378 = vunpack.c.l.b16 %v2762
    %v5379 = vunpack.c.h.b16 %v2762
    %v5380 = vunpack.c.l.b16 %v2763
    %v5381 = vunpack.c.h.b16 %v2763
    %v5382 = vunpack.c.l.b16 %v2764
    %v5383 = vunpack.c.h.b16 %v2764
    %v5384 = vunpack.c.l.b16 %v2765
    %v5385 = vunpack.c.h.b16 %v2765
    %v5386 = vunpack.c.l.b16 %v2766
    %v5387 = vunpack.c.h.b16 %v2766
    %v5388 = vunpack.c.l.b16 %v2767
    %v5389 = vunpack.c.h.b16 %v2767
    %v5390 = vunpack.c.l.b16 %v2768
    %v5391 = vunpack.c.h.b16 %v2768
    %v5392 = vunpack.c.l.b16 %v2769
    %v5393 = vunpack.c.h.b16 %v2769
    %v5394 = vunpack.c.l.b16 %v2770
    %v5395 = vunpack.c.h.b16 %v2770
    %v5396 = vunpack.c.l.b16 %v2771
    %v5397 = vunpack.c.h.b16 %v2771
    %v5398 = vunpack.c.l.b16 %v2772
    %v5399 = vunpack.c.h.b16 %v2772
    %v5400 = vunpack.c.l.b16 %v2773
    %v5401 = vunpack.c.h.b16 %v2773
    %v5402 = vunpack.c.l.b16 %v2774
    %v5403 = vunpack.c.h.b16 %v2774
    %v5404 = vunpack.c.l.b16 %v2775
    %v5405 = vunpack.c.h.b16 %v2775
    %v5406 = vunpack.c.l.b16 %v2776
    %v5407 = vunpack.c.h.b16 %v2776
    %v5408 = vunpack.c.l.b16 %v2777
    %v5409 = vunpack.c.h.b16 %v2777
    %v5410 = vunpack.c.l.b16 %v2778
    %v5411 = vunpack.c.h.b16 %v2778
    %v5412 = vunpack.c.l.b16 %v2779
    %v5413 = vunpack.c.h.b16 %v2779
    %v5414 = vunpack.c.l.b16 %v2780
    %v5415 = vunpack.c.h.b16 %v2780
    %v5416 = vunpack.c.l.b16 %v2781
    %v5417 = vunpack.c.h.b16 %v2781
    %v5418 = vunpack.c.l.b16 %v2782
    %v5419 = vunpack.c.h.b16 %v2782
    %v5420 = vunpack.c.l.b16 %v2783
    %v5421 = vunpack.c.h.b16 %v2783
    %v5422 = vunpack.c.l.b16 %v2784
    %v5423 = vunpack.c.h.b16 %v2784
    %v5424 = vunpack.c.l.b16 %v2785
    %v5425 = vunpack.c.h.b16 %v2785
    %v5426 = vunpack.c.l.b16 %v2786
    %v5427 = vunpack.c.h.b16 %v2786
    %v5428 = vunpack.c.l.b16 %v2787
    %v5429 = vunpack.c.h.b16 %v2787
    %v5430 = vunpack.c.l.b16 %v2788
    %v5431 = vunpack.c.h.b16 %v2788
    %v5432 = vunpack.c.l.b16 %v2789
    %v5433 = vunpack.c.h.b16 %v2789
    %v5434 = vunpack.c.l.b16 %v2790
    %v5435 = vunpack.c.h.b16 %v2790
    %v5436 = vunpack.c.l.b16 %v2791
    %v5437 = vunpack.c.h.b16 %v2791
    %v5438 = vunpack.c.l.b16 %v2792
    %v5439 = vunpack.c.h.b16 %v2792
    %v5440 = vunpack.c.l.b16 %v2793
    %v5441 = vunpack.c.h.b16 %v2793
    %v5442 = vunpack.c.l.b16 %v2794
    %v5443 = vunpack.c.h.b16 %v2794
    %v5444 = vunpack.c.l.b16 %v2795
    %v5445 = vunpack.c.h.b16 %v2795
    %v5446 = vunpack.c.l.b16 %v2796
    %v5447 = vunpack.c.h.b16 %v2796
    %v5448 = vunpack.c.l.b16 %v2797
    %v5449 = vunpack.c.h.b16 %v2797
    %v5450 = vunpack.c.l.b16 %v2798
    %v5451 = vunpack.c.h.b16 %v2798
    %v5452 = vunpack.c.l.b16 %v2799
    %v5453 = vunpack.c.h.b16 %v2799
    %v5454 = vunpack.c.l.b16 %v2800
    %v5455 = vunpack.c.h.b16 %v2800
    %v5456 = vunpack.c.l.b16 %v2801
    %v5457 = vunpack.c.h.b16 %v2801
    %v5458 = vunpack.c.l.b16 %v2802
    %v5459 = vunpack.c.h.b16 %v2802
    %v5460 = vunpack.c.l.b16 %v2803
    %v5461 = vunpack.c.h.b16 %v2803
    %v5462 = vunpack.c.l.b16 %v2804
    %v5463 = vunpack.c.h.b16 %v2804
    %v5464 = vunpack.c.l.b16 %v2805
    %v5465 = vunpack.c.h.b16 %v2805
    %v5466 = vunpack.c.l.b16 %v2806
    %v5467 = vunpack.c.h.b16 %v2806
    %v5468 = vunpack.c.l.b16 %v2807
    %v5469 = vunpack.c.h.b16 %v2807
    %v5470 = vunpack.c.l.b16 %v2808
    %v5471 = vunpack.c.h.b16 %v2808
    %v5472 = vunpack.c.l.b16 %v2809
    %v5473 = vunpack.c.h.b16 %v2809
    %v5474 = vunpack.c.l.b16 %v2810
    %v5475 = vunpack.c.h.b16 %v2810
    %v5476 = vunpack.c.l.b16 %v2811
    %v5477 = vunpack.c.h.b16 %v2811
    %v5478 = vunpack.c.l.b16 %v2812
    %v5479 = vunpack.c.h.b16 %v2812
    %v5480 = vunpack.c.l.b16 %v2813
    %v5481 = vunpack.c.h.b16 %v2813
    %v5482 = vunpack.c.l.b16 %v2814
    %v5483 = vunpack.c.h.b16 %v2814
    %v5484 = vunpack.c.l.b16 %v2815
    %v5485 = vunpack.c.h.b16 %v2815
    %v5486 = vunpack.c.l.b16 %v2816
    %v5487 = vunpack.c.h.b16 %v2816
    %v5488 = vunpack.c.l.b16 %v2817
    %v5489 = vunpack.c.h.b16 %v2817
    %v5490 = vunpack.c.l.b16 %v2818
    %v5491 = vunpack.c.h.b16 %v2818
    %v5492 = vunpack.c.l.b16 %v2819
    %v5493 = vunpack.c.h.b16 %v2819
    %v5494 = vunpack.c.l.b16 %v2820
    %v5495 = vunpack.c.h.b16 %v2820
    %v5496 = vunpack.c.l.b16 %v2821
    %v5497 = vunpack.c.h.b16 %v2821
    %v5498 = vunpack.c.l.b16 %v2822
    %v5499 = vunpack.c.h.b16 %v2822
    %v5500 = vunpack.c.l.b16 %v2823
    %v5501 = vunpack.c.h.b16 %v2823
    %v5502 = vunpack.c.l.b16 %v2824
    %v5503 = vunpack.c.h.b16 %v2824
    %v5504 = vunpack.c.l.b16 %v2825
    %v5505 = vunpack.c.h.b16 %v2825
    %v5506 = vunpack.c.l.b16 %v2826
    %v5507 = vunpack.c.h.b16 %v2826
    %v5508 = vunpack.c.l.b16 %v2827
    %v5509 = vunpack.c.h.b16 %v2827
    %v5510 = vunpack.c.l.b16 %v2828
    %v5511 = vunpack.c.h.b16 %v2828
    %v5512 = vunpack.c.l.b16 %v2829
    %v5513 = vunpack.c.h.b16 %v2829
    %v5514 = vunpack.c.l.b16 %v2830
    %v5515 = vunpack.c.h.b16 %v2830
    %v5516 = vunpack.c.l.b16 %v2831
    %v5517 = vunpack.c.h.b16 %v2831
    %v5518 = vunpack.c.l.b16 %v2832
    %v5519 = vunpack.c.h.b16 %v2832
    %v5520 = vunpack.c.l.b16 %v2833
    %v5521 = vunpack.c.h.b16 %v2833
    %v5522 = vunpack.c.l.b16 %v2834
    %v5523 = vunpack.c.h.b16 %v2834
    %v5524 = vunpack.c.l.b16 %v2835
    %v5525 = vunpack.c.h.b16 %v2835
    %v5526 = vunpack.c.l.b16 %v2836
    %v5527 = vunpack.c.h.b16 %v2836
    %v5528 = vunpack.c.l.b16 %v2837
    %v5529 = vunpack.c.h.b16 %v2837
    %v5530 = vunpack.c.l.b16 %v2838
    %v5531 = vunpack.c.h.b16 %v2838
    %v5532 = vunpack.c.l.b16 %v2839
    %v5533 = vunpack.c.h.b16 %v2839
    %v5534 = vunpack.c.l.b16 %v2840
    %v5535 = vunpack.c.h.b16 %v2840
    %v5536 = vunpack.c.l.b16 %v2841
    %v5537 = vunpack.c.h.b16 %v2841
    %v5538 = vunpack.c.l.b16 %v2842
    %v5539 = vunpack.c.h.b16 %v2842
    %v5540 = vunpack.c.l.b16 %v2843
    %v5541 = vunpack.c.h.b16 %v2843
    %v5542 = vunpack.c.l.b16 %v2844
    %v5543 = vunpack.c.h.b16 %v2844
    %v5544 = vunpack.c.l.b16 %v2845
    %v5545 = vunpack.c.h.b16 %v2845
    %v5546 = vunpack.c.l.b16 %v2846
    %v5547 = vunpack.c.h.b16 %v2846
    %v5548 = vunpack.c.l.b16 %v2847
    %v5549 = vunpack.c.h.b16 %v2847
    %v5550 = vunpack.c.l.b16 %v2848
    %v5551 = vunpack.c.h.b16 %v2848
    %v5552 = vunpack.c.l.b16 %v2849
    %v5553 = vunpack.c.h.b16 %v2849
    %v5554 = vunpack.c.l.b16 %v2850
    %v5555 = vunpack.c.h.b16 %v2850
    %v5556 = vunpack.c.l.b16 %v2851
    %v5557 = vunpack.c.h.b16 %v2851
    %v5558 = vunpack.c.l.b16 %v2852
    %v5559 = vunpack.c.h.b16 %v2852
    %v5560 = vunpack.c.l.b16 %v2853
    %v5561 = vunpack.c.h.b16 %v2853
    %v5562 = vunpack.c.l.b16 %v2854
    %v5563 = vunpack.c.h.b16 %v2854
    %v5564 = vunpack.c.l.b16 %v2855
    %v5565 = vunpack.c.h.b16 %v2855
    %v5566 = vunpack.c.l.b16 %v2856
    %v5567 = vunpack.c.h.b16 %v2856
    %v5568 = vunpack.c.l.b16 %v2857
    %v5569 = vunpack.c.h.b16 %v2857
    %v5570 = vunpack.c.l.b16 %v2858
    %v5571 = vunpack.c.h.b16 %v2858
    %v5572 = vunpack.c.l.b16 %v2859
    %v5573 = vunpack.c.h.b16 %v2859
    %v5574 = vunpack.c.l.b16 %v2860
    %v5575 = vunpack.c.h.b16 %v2860
    %v5576 = vunpack.c.l.b16 %v2861
    %v5577 = vunpack.c.h.b16 %v2861
    %v5578 = vunpack.c.l.b16 %v2862
    %v5579 = vunpack.c.h.b16 %v2862
    %v5580 = vunpack.c.l.b16 %v2863
    %v5581 = vunpack.c.h.b16 %v2863
    %v5582 = vunpack.c.l.b16 %v2864
    %v5583 = vunpack.c.h.b16 %v2864
    %v5584 = vunpack.c.l.b16 %v2865
    %v5585 = vunpack.c.h.b16 %v2865
    %v5586 = vunpack.c.l.b16 %v2866
    %v5587 = vunpack.c.h.b16 %v2866
    %v5588 = vunpack.c.l.b16 %v2867
    %v5589 = vunpack.c.h.b16 %v2867
    %v5590 = vunpack.c.l.b16 %v2868
    %v5591 = vunpack.c.h.b16 %v2868
    %v5592 = vunpack.c.l.b16 %v2869
    %v5593 = vunpack.c.h.b16 %v2869
    %v5594 = vunpack.c.l.b16 %v2870
    %v5595 = vunpack.c.h.b16 %v2870
    %v5596 = vunpack.c.l.b16 %v2871
    %v5597 = vunpack.c.h.b16 %v2871
    %v5598 = vunpack.c.l.b16 %v2872
    %v5599 = vunpack.c.h.b16 %v2872
    %v5600 = vunpack.c.l.b16 %v2873
    %v5601 = vunpack.c.h.b16 %v2873
    %v5602 = vunpack.c.l.b16 %v2874
    %v5603 = vunpack.c.h.b16 %v2874
    %v5604 = vunpack.c.l.b16 %v2875
    %v5605 = vunpack.c.h.b16 %v2875
    %v5606 = vunpack.c.l.b16 %v2876
    %v5607 = vunpack.c.h.b16 %v2876
    %v5608 = vunpack.c.l.b16 %v2877
    %v5609 = vunpack.c.h.b16 %v2877
    %v5610 = vunpack.c.l.b16 %v2878
    %v5611 = vunpack.c.h.b16 %v2878
    %v5612 = vunpack.c.l.b16 %v2879
    %v5613 = vunpack.c.h.b16 %v2879
    %v5614 = vunpack.c.l.b16 %v2880
    %v5615 = vunpack.c.h.b16 %v2880
    %v5616 = vunpack.c.l.b16 %v2881
    %v5617 = vunpack.c.h.b16 %v2881
    %v5618 = vunpack.c.l.b16 %v2882
    %v5619 = vunpack.c.h.b16 %v2882
    %v5620 = vunpack.c.l.b16 %v2883
    %v5621 = vunpack.c.h.b16 %v2883
    %v5622 = vunpack.c.l.b16 %v2884
    %v5623 = vunpack.c.h.b16 %v2884
    %v5624 = vunpack.c.l.b16 %v2885
    %v5625 = vunpack.c.h.b16 %v2885
    %v5626 = vunpack.c.l.b16 %v2886
    %v5627 = vunpack.c.h.b16 %v2886
    %v5628 = vunpack.c.l.b16 %v2887
    %v5629 = vunpack.c.h.b16 %v2887
    %v5630 = vunpack.c.l.b16 %v2888
    %v5631 = vunpack.c.h.b16 %v2888
    %v5632 = vunpack.c.l.b16 %v2889
    %v5633 = vunpack.c.h.b16 %v2889
    %v5634 = vunpack.c.l.b16 %v2890
    %v5635 = vunpack.c.h.b16 %v2890
    %v5636 = vunpack.c.l.b16 %v2891
    %v5637 = vunpack.c.h.b16 %v2891
    %v5638 = vunpack.c.l.b16 %v2892
    %v5639 = vunpack.c.h.b16 %v2892
    %v5640 = vunpack.c.l.b16 %v2893
    %v5641 = vunpack.c.h.b16 %v2893
    %v5642 = vunpack.c.l.b16 %v2894
    %v5643 = vunpack.c.h.b16 %v2894
    %v5644 = vunpack.c.l.b16 %v2895
    %v5645 = vunpack.c.h.b16 %v2895
    %v5646 = vunpack.c.l.b16 %v2896
    %v5647 = vunpack.c.h.b16 %v2896
    %v5648 = vunpack.c.l.b16 %v2897
    %v5649 = vunpack.c.h.b16 %v2897
    %v5650 = vunpack.c.l.b16 %v2898
    %v5651 = vunpack.c.h.b16 %v2898
    %v5652 = vunpack.c.l.b16 %v2899
    %v5653 = vunpack.c.h.b16 %v2899
    %v5654 = vunpack.c.l.b16 %v2900
    %v5655 = vunpack.c.h.b16 %v2900
    %v5656 = vunpack.c.l.b16 %v2901
    %v5657 = vunpack.c.h.b16 %v2901
    %v5658 = vunpack.c.l.b16 %v2902
    %v5659 = vunpack.c.h.b16 %v2902
    %v5660 = vunpack.c.l.b16 %v2903
    %v5661 = vunpack.c.h.b16 %v2903
    %v5662 = vunpack.c.l.b16 %v2904
    %v5663 = vunpack.c.h.b16 %v2904
    %v5664 = vunpack.c.l.b16 %v2905
    %v5665 = vunpack.c.h.b16 %v2905
    %v5666 = vunpack.c.l.b16 %v2906
    %v5667 = vunpack.c.h.b16 %v2906
    %v5668 = vunpack.c.l.b16 %v2907
    %v5669 = vunpack.c.h.b16 %v2907
    %v5670 = vunpack.c.l.b16 %v2908
    %v5671 = vunpack.c.h.b16 %v2908
    %v5672 = vunpack.c.l.b16 %v2909
    %v5673 = vunpack.c.h.b16 %v2909
    %v5674 = vunpack.c.l.b16 %v2910
    %v5675 = vunpack.c.h.b16 %v2910
    %v5676 = vunpack.c.l.b16 %v2911
    %v5677 = vunpack.c.h.b16 %v2911
    %v5678 = vunpack.c.l.b16 %v2912
    %v5679 = vunpack.c.h.b16 %v2912
    %v5680 = vunpack.c.l.b16 %v2913
    %v5681 = vunpack.c.h.b16 %v2913
    %v5682 = vunpack.c.l.b16 %v2914
    %v5683 = vunpack.c.h.b16 %v2914
    %v5684 = vunpack.c.l.b16 %v2915
    %v5685 = vunpack.c.h.b16 %v2915
    %v5686 = vunpack.c.l.b16 %v2916
    %v5687 = vunpack.c.h.b16 %v2916
    %v5688 = vunpack.c.l.b16 %v2917
    %v5689 = vunpack.c.h.b16 %v2917
    %v5690 = vunpack.c.l.b16 %v2918
    %v5691 = vunpack.c.h.b16 %v2918
    %v5692 = vunpack.c.l.b16 %v2919
    %v5693 = vunpack.c.h.b16 %v2919
    %v5694 = vunpack.c.l.b16 %v2920
    %v5695 = vunpack.c.h.b16 %v2920
    %v5696 = vunpack.c.l.b16 %v2921
    %v5697 = vunpack.c.h.b16 %v2921
    %v5698 = vunpack.c.l.b16 %v2922
    %v5699 = vunpack.c.h.b16 %v2922
    %v5700 = vunpack.c.l.b16 %v2923
    %v5701 = vunpack.c.h.b16 %v2923
    %v5702 = vunpack.c.l.b16 %v2924
    %v5703 = vunpack.c.h.b16 %v2924
    %v5704 = vunpack.c.l.b16 %v2925
    %v5705 = vunpack.c.h.b16 %v2925
    %v5706 = vunpack.c.l.b16 %v2926
    %v5707 = vunpack.c.h.b16 %v2926
    %v5708 = vunpack.c.l.b16 %v2927
    %v5709 = vunpack.c.h.b16 %v2927
    %v5710 = vunpack.c.l.b16 %v2928
    %v5711 = vunpack.c.h.b16 %v2928
    %v5712 = vunpack.c.l.b16 %v2929
    %v5713 = vunpack.c.h.b16 %v2929
    %v5714 = vunpack.c.l.b16 %v2930
    %v5715 = vunpack.c.h.b16 %v2930
    %v5716 = vunpack.c.l.b16 %v2931
    %v5717 = vunpack.c.h.b16 %v2931
    %v5718 = vunpack.c.l.b16 %v2932
    %v5719 = vunpack.c.h.b16 %v2932
    %v5720 = vunpack.c.l.b16 %v2933
    %v5721 = vunpack.c.h.b16 %v2933
    %v5722 = vunpack.c.l.b16 %v2934
    %v5723 = vunpack.c.h.b16 %v2934
    %v5724 = vunpack.c.l.b16 %v2935
    %v5725 = vunpack.c.h.b16 %v2935
    %v5726 = vunpack.c.l.b16 %v2936
    %v5727 = vunpack.c.h.b16 %v2936
    %v5728 = vunpack.c.l.b16 %v2937
    %v5729 = vunpack.c.h.b16 %v2937
    %v5730 = vunpack.c.l.b16 %v2938
    %v5731 = vunpack.c.h.b16 %v2938
    %v5732 = vunpack.c.l.b16 %v2939
    %v5733 = vunpack.c.h.b16 %v2939
    %v5734 = vunpack.c.l.b16 %v2940
    %v5735 = vunpack.c.h.b16 %v2940
    %v5736 = vunpack.c.l.b16 %v2941
    %v5737 = vunpack.c.h.b16 %v2941
    %v5738 = vunpack.c.l.b16 %v2942
    %v5739 = vunpack.c.h.b16 %v2942
    %v5740 = vunpack.c.l.b16 %v2943
    %v5741 = vunpack.c.h.b16 %v2943
    %v5742 = vunpack.c.l.b16 %v2944
    %v5743 = vunpack.c.h.b16 %v2944
    %v5744 = vunpack.c.l.b16 %v2945
    %v5745 = vunpack.c.h.b16 %v2945
    %v5746 = vunpack.c.l.b16 %v2946
    %v5747 = vunpack.c.h.b16 %v2946
    %v5748 = vunpack.c.l.b16 %v2947
    %v5749 = vunpack.c.h.b16 %v2947
    %v5750 = vunpack.c.l.b16 %v2948
    %v5751 = vunpack.c.h.b16 %v2948
    %v5752 = vunpack.c.l.b16 %v2949
    %v5753 = vunpack.c.h.b16 %v2949
    %v5754 = vunpack.c.l.b16 %v2950
    %v5755 = vunpack.c.h.b16 %v2950
    %v5756 = vunpack.c.l.b16 %v2951
    %v5757 = vunpack.c.h.b16 %v2951
    %v5758 = vunpack.c.l.b16 %v2952
    %v5759 = vunpack.c.h.b16 %v2952
    %v5760 = vunpack.c.l.b16 %v2953
    %v5761 = vunpack.c.h.b16 %v2953
    %v5762 = vunpack.c.l.b16 %v2954
    %v5763 = vunpack.c.h.b16 %v2954
    %v5764 = vunpack.c.l.b16 %v2955
    %v5765 = vunpack.c.h.b16 %v2955
    %v5766 = vunpack.c.l.b16 %v2956
    %v5767 = vunpack.c.h.b16 %v2956
    %v5768 = vunpack.c.l.b16 %v2957
    %v5769 = vunpack.c.h.b16 %v2957
    %v5770 = vunpack.c.l.b16 %v2958
    %v5771 = vunpack.c.h.b16 %v2958
    %v5772 = vunpack.c.l.b16 %v2959
    %v5773 = vunpack.c.h.b16 %v2959
    %v5774 = vunpack.c.l.b16 %v2960
    %v5775 = vunpack.c.h.b16 %v2960
    %v5776 = vunpack.c.l.b16 %v2961
    %v5777 = vunpack.c.h.b16 %v2961
    %v5778 = vunpack.c.l.b16 %v2962
    %v5779 = vunpack.c.h.b16 %v2962
    %v5780 = vunpack.c.l.b16 %v2963
    %v5781 = vunpack.c.h.b16 %v2963
    %v5782 = vunpack.c.l.b16 %v2964
    %v5783 = vunpack.c.h.b16 %v2964
    %v5784 = vunpack.c.l.b16 %v2965
    %v5785 = vunpack.c.h.b16 %v2965
    %v5786 = vunpack.c.l.b16 %v2966
    %v5787 = vunpack.c.h.b16 %v2966
    %v5788 = vunpack.c.l.b16 %v2967
    %v5789 = vunpack.c.h.b16 %v2967
    %v5790 = vunpack.c.l.b16 %v2968
    %v5791 = vunpack.c.h.b16 %v2968
    %v5792 = vunpack.c.l.b16 %v2969
    %v5793 = vunpack.c.h.b16 %v2969
    %v5794 = vunpack.c.l.b16 %v2970
    %v5795 = vunpack.c.h.b16 %v2970
    %v5796 = vunpack.c.l.b16 %v2971
    %v5797 = vunpack.c.h.b16 %v2971
    %v5798 = vunpack.c.l.b16 %v2972
    %v5799 = vunpack.c.h.b16 %v2972
    %v5800 = vunpack.c.l.b16 %v2973
    %v5801 = vunpack.c.h.b16 %v2973
    %v5802 = vunpack.c.l.b16 %v2974
    %v5803 = vunpack.c.h.b16 %v2974
    %v5804 = vunpack.c.l.b16 %v2975
    %v5805 = vunpack.c.h.b16 %v2975
    %v5806 = vunpack.c.l.b16 %v2976
    %v5807 = vunpack.c.h.b16 %v2976
    %v5808 = vunpack.c.l.b16 %v2977
    %v5809 = vunpack.c.h.b16 %v2977
    %v5810 = vunpack.c.l.b16 %v2978
    %v5811 = vunpack.c.h.b16 %v2978
    %v5812 = vunpack.c.l.b16 %v2979
    %v5813 = vunpack.c.h.b16 %v2979
    %v5814 = vunpack.c.l.b16 %v2980
    %v5815 = vunpack.c.h.b16 %v2980
    %v5816 = vunpack.c.l.b16 %v2981
    %v5817 = vunpack.c.h.b16 %v2981
    %v5818 = vunpack.c.l.b16 %v2982
    %v5819 = vunpack.c.h.b16 %v2982
    %v5820 = vunpack.c.l.b16 %v2983
    %v5821 = vunpack.c.h.b16 %v2983
    %v5822 = vunpack.c.l.b16 %v2984
    %v5823 = vunpack.c.h.b16 %v2984
    %v5824 = vunpack.c.l.b16 %v2985
    %v5825 = vunpack.c.h.b16 %v2985
    %v5826 = vunpack.c.l.b16 %v2986
    %v5827 = vunpack.c.h.b16 %v2986
    %v5828 = vunpack.c.l.b16 %v2987
    %v5829 = vunpack.c.h.b16 %v2987
    %v5830 = vunpack.c.l.b16 %v2988
    %v5831 = vunpack.c.h.b16 %v2988
    %v5832 = vunpack.c.l.b16 %v2989
    %v5833 = vunpack.c.h.b16 %v2989
    %v5834 = vunpack.c.l.b16 %v2990
    %v5835 = vunpack.c.h.b16 %v2990
    %v5836 = vunpack.c.l.b16 %v2991
    %v5837 = vunpack.c.h.b16 %v2991
    %v5838 = vunpack.c.l.b16 %v2992
    %v5839 = vunpack.c.h.b16 %v2992
    %v5840 = vunpack.c.l.b16 %v2993
    %v5841 = vunpack.c.h.b16 %v2993
    %v5842 = vunpack.c.l.b16 %v2994
    %v5843 = vunpack.c.h.b16 %v2994
    %v5844 = vunpack.c.l.b16 %v2995
    %v5845 = vunpack.c.h.b16 %v2995
    %v5846 = vunpack.c.l.b16 %v2996
    %v5847 = vunpack.c.h.b16 %v2996
    %v5848 = vunpack.c.l.b16 %v2997
    %v5849 = vunpack.c.h.b16 %v2997
    %v5850 = vunpack.c.l.b16 %v2998
    %v5851 = vunpack.c.h.b16 %v2998
    %v5852 = vunpack.c.l.b16 %v2999
    %v5853 = vunpack.c.h.b16 %v2999
    %v5854 = vunpack.c.l.b16 %v3000
    %v5855 = vunpack.c.h.b16 %v3000
    %v5856 = vunpack.c.l.b16 %v3001
    %v5857 = vunpack.c.h.b16 %v3001
    %v5858 = vunpack.c.l.b16 %v3002
    %v5859 = vunpack.c.h.b16 %v3002
    %v5860 = vunpack.c.l.b16 %v3003
    %v5861 = vunpack.c.h.b16 %v3003
    %v5862 = vunpack.c.l.b16 %v3004
    %v5863 = vunpack.c.h.b16 %v3004
    %v5864 = vunpack.c.l.b16 %v3005
    %v5865 = vunpack.c.h.b16 %v3005
    %v5866 = vunpack.c.l.b16 %v3006
    %v5867 = vunpack.c.h.b16 %v3006
    %v5868 = vunpack.c.l.b16 %v3007
    %v5869 = vunpack.c.h.b16 %v3007
    %v5870 = vunpack.c.l.b16 %v3008
    %v5871 = vunpack.c.h.b16 %v3008
    %v5872 = vunpack.c.l.b16 %v3009
    %v5873 = vunpack.c.h.b16 %v3009
    %v5874 = vunpack.c.l.b16 %v3010
    %v5875 = vunpack.c.h.b16 %v3010
    %v5876 = vunpack.c.l.b16 %v3011
    %v5877 = vunpack.c.h.b16 %v3011
    %v5878 = vunpack.c.l.b16 %v3012
    %v5879 = vunpack.c.h.b16 %v3012
    %v5880 = vunpack.c.l.b16 %v3013
    %v5881 = vunpack.c.h.b16 %v3013
    %v5882 = vunpack.c.l.b16 %v3014
    %v5883 = vunpack.c.h.b16 %v3014
    %v5884 = vunpack.c.l.b16 %v3015
    %v5885 = vunpack.c.h.b16 %v3015
    %v5886 = vunpack.c.l.b16 %v3016
    %v5887 = vunpack.c.h.b16 %v3016
    %v5888 = vunpack.c.l.b16 %v3017
    %v5889 = vunpack.c.h.b16 %v3017
    %v5890 = vunpack.c.l.b16 %v3018
    %v5891 = vunpack.c.h.b16 %v3018
    %v5892 = vunpack.c.l.b16 %v3019
    %v5893 = vunpack.c.h.b16 %v3019
    %v5894 = vunpack.c.l.b16 %v3020
    %v5895 = vunpack.c.h.b16 %v3020
    %v5896 = vunpack.c.l.b16 %v3021
    %v5897 = vunpack.c.h.b16 %v3021
    %v5898 = vunpack.c.l.b16 %v3022
    %v5899 = vunpack.c.h.b16 %v3022
    %v5900 = vunpack.c.l.b16 %v3023
    %v5901 = vunpack.c.h.b16 %v3023
    %v5902 = vunpack.c.l.b16 %v3024
    %v5903 = vunpack.c.h.b16 %v3024
    %v5904 = vunpack.c.l.b16 %v3025
    %v5905 = vunpack.c.h.b16 %v3025
    %v5906 = vunpack.c.l.b16 %v3026
    %v5907 = vunpack.c.h.b16 %v3026
    %v5908 = vunpack.c.l.b16 %v3027
    %v5909 = vunpack.c.h.b16 %v3027
    %v5910 = vunpack.c.l.b16 %v3028
    %v5911 = vunpack.c.h.b16 %v3028
    %v5912 = vunpack.c.l.b16 %v3029
    %v5913 = vunpack.c.h.b16 %v3029
    %v5914 = vunpack.c.l.b16 %v3030
    %v5915 = vunpack.c.h.b16 %v3030
    %v5916 = vunpack.c.l.b16 %v3031
    %v5917 = vunpack.c.h.b16 %v3031
    %v5918 = vunpack.c.l.b16 %v3032
    %v5919 = vunpack.c.h.b16 %v3032
    %v5920 = vunpack.c.l.b16 %v3033
    %v5921 = vunpack.c.h.b16 %v3033
    %v5922 = vunpack.c.l.b16 %v3034
    %v5923 = vunpack.c.h.b16 %v3034
    %v5924 = vunpack.c.l.b16 %v3035
    %v5925 = vunpack.c.h.b16 %v3035
    %v5926 = vunpack.c.l.b16 %v3036
    %v5927 = vunpack.c.h.b16 %v3036
    %v5928 = vunpack.c.l.b16 %v3037
    %v5929 = vunpack.c.h.b16 %v3037
    %v5930 = vunpack.c.l.b16 %v3038
    %v5931 = vunpack.c.h.b16 %v3038
    %v5932 = vunpack.c.l.b16 %v3039
    %v5933 = vunpack.c.h.b16 %v3039
    %v5934 = vunpack.c.l.b16 %v3040
    %v5935 = vunpack.c.h.b16 %v3040
    %v5936 = vunpack.c.l.b16 %v3041
    %v5937 = vunpack.c.h.b16 %v3041
    %v5938 = vunpack.c.l.b16 %v3042
    %v5939 = vunpack.c.h.b16 %v3042
    %v5940 = vunpack.c.l.b16 %v3043
    %v5941 = vunpack.c.h.b16 %v3043
    %v5942 = vunpack.c.l.b16 %v3044
    %v5943 = vunpack.c.h.b16 %v3044
    %v5944 = vunpack.c.l.b16 %v3045
    %v5945 = vunpack.c.h.b16 %v3045
    %v5946 = vunpack.c.l.b16 %v3046
    %v5947 = vunpack.c.h.b16 %v3046
    %v5948 = vunpack.c.l.b16 %v3047
    %v5949 = vunpack.c.h.b16 %v3047
    %v5950 = vunpack.c.l.b16 %v3048
    %v5951 = vunpack.c.h.b16 %v3048
    %v5952 = vunpack.c.l.b16 %v3049
    %v5953 = vunpack.c.h.b16 %v3049
    %v5954 = vunpack.c.l.b16 %v3050
    %v5955 = vunpack.c.h.b16 %v3050
    %v5956 = vunpack.c.l.b16 %v3051
    %v5957 = vunpack.c.h.b16 %v3051
    %v5958 = vunpack.c.l.b16 %v3052
    %v5959 = vunpack.c.h.b16 %v3052
    %v5960 = vunpack.c.l.b16 %v3053
    %v5961 = vunpack.c.h.b16 %v3053
    %v5962 = vunpack.c.l.b16 %v3054
    %v5963 = vunpack.c.h.b16 %v3054
    %v5964 = vunpack.c.l.b16 %v3055
    %v5965 = vunpack.c.h.b16 %v3055
    %v5966 = vunpack.c.l.b16 %v3056
    %v5967 = vunpack.c.h.b16 %v3056
    %v5968 = vunpack.c.l.b16 %v3057
    %v5969 = vunpack.c.h.b16 %v3057
    %v5970 = vunpack.c.l.b16 %v3058
    %v5971 = vunpack.c.h.b16 %v3058
    %v5972 = vunpack.c.l.b16 %v3059
    %v5973 = vunpack.c.h.b16 %v3059
    %v5974 = vunpack.c.l.b16 %v3060
    %v5975 = vunpack.c.h.b16 %v3060
    %v5976 = vunpack.c.l.b16 %v3061
    %v5977 = vunpack.c.h.b16 %v3061
    %v5978 = vunpack.c.l.b16 %v3062
    %v5979 = vunpack.c.h.b16 %v3062
    %v5980 = vunpack.c.l.b16 %v3063
    %v5981 = vunpack.c.h.b16 %v3063
    %v5982 = vunpack.c.l.b16 %v3064
    %v5983 = vunpack.c.h.b16 %v3064
    %v5984 = vunpack.c.l.b16 %v3065
    %v5985 = vunpack.c.h.b16 %v3065
    %v5986 = vunpack.c.l.b16 %v3066
    %v5987 = vunpack.c.h.b16 %v3066
    %v5988 = vunpack.c.l.b16 %v3067
    %v5989 = vunpack.c.h.b16 %v3067
    %v5990 = vunpack.c.l.b16 %v3068
    %v5991 = vunpack.c.h.b16 %v3068
    %v5992 = vunpack.c.l.b16 %v3069
    %v5993 = vunpack.c.h.b16 %v3069
    %v5994 = vunpack.c.l.b16 %v3070
    %v5995 = vunpack.c.h.b16 %v3070
    %v5996 = vunpack.c.l.b16 %v3071
    %v5997 = vunpack.c.h.b16 %v3071
    %v5998 = vunpack.c.l.b16 %v3072
    %v5999 = vunpack.c.h.b16 %v3072
    %v6000 = vunpack.c.l.b16 %v3073
    %v6001 = vunpack.c.h.b16 %v3073
    %v6002 = vunpack.c.l.b16 %v3074
    %v6003 = vunpack.c.h.b16 %v3074
    %v6004 = vunpack.c.l.b16 %v3075
    %v6005 = vunpack.c.h.b16 %v3075
    %v6006 = vunpack.c.l.b16 %v3076
    %v6007 = vunpack.c.h.b16 %v3076
    %v6008 = vunpack.c.l.b16 %v3077
    %v6009 = vunpack.c.h.b16 %v3077
    %v6010 = vunpack.c.l.b16 %v3078
    %v6011 = vunpack.c.h.b16 %v3078
    %v6012 = vunpack.c.l.b16 %v3079
    %v6013 = vunpack.c.h.b16 %v3079
    %v6014 = vunpack.c.l.b16 %v3080
    %v6015 = vunpack.c.h.b16 %v3080
    %v6016 = vunpack.c.l.b16 %v3081
    %v6017 = vunpack.c.h.b16 %v3081
    %v6018 = vunpack.c.l.b16 %v3082
    %v6019 = vunpack.c.h.b16 %v3082
    %v6020 = vunpack.c.l.b16 %v3083
    %v6021 = vunpack.c.h.b16 %v3083
    %v6022 = vunpack.c.l.b16 %v3084
    %v6023 = vunpack.c.h.b16 %v3084
    %v6024 = vunpack.c.l.b16 %v3085
    %v6025 = vunpack.c.h.b16 %v3085
    %v6026 = vunpack.c.l.b16 %v3086
    %v6027 = vunpack.c.h.b16 %v3086
    %v6028 = vunpack.c.l.b16 %v3087
    %v6029 = vunpack.c.h.b16 %v3087
    %v6030 = vunpack.c.l.b16 %v3088
    %v6031 = vunpack.c.h.b16 %v3088
    %v6032 = vunpack.c.l.b16 %v3089
    %v6033 = vunpack.c.h.b16 %v3089
    %v6034 = vunpack.c.l.b16 %v3090
    %v6035 = vunpack.c.h.b16 %v3090
    %v6036 = vunpack.c.l.b16 %v3091
    %v6037 = vunpack.c.h.b16 %v3091
    %v6038 = vunpack.c.l.b16 %v3092
    %v6039 = vunpack.c.h.b16 %v3092
    %v6040 = vunpack.c.l.b16 %v3093
    %v6041 = vunpack.c.h.b16 %v3093
    %v6042 = vunpack.c.l.b16 %v3094
    %v6043 = vunpack.c.h.b16 %v3094
    %v6044 = vunpack.c.l.b16 %v3095
    %v6045 = vunpack.c.h.b16 %v3095
    %v6046 = vunpack.c.l.b16 %v3096
    %v6047 = vunpack.c.h.b16 %v3096
    %v6048 = vunpack.c.l.b16 %v3097
    %v6049 = vunpack.c.h.b16 %v3097
    %v6050 = vunpack.c.l.b16 %v3098
    %v6051 = vunpack.c.h.b16 %v3098
    %v6052 = vunpack.c.l.b16 %v3099
    %v6053 = vunpack.c.h.b16 %v3099
    %v6054 = vunpack.c.l.b16 %v3100
    %v6055 = vunpack.c.h.b16 %v3100
    %v6056 = vunpack.c.l.b16 %v3101
    %v6057 = vunpack.c.h.b16 %v3101
    %v6058 = vunpack.c.l.b16 %v3102
    %v6059 = vunpack.c.h.b16 %v3102
    %v6060 = vunpack.c.l.b16 %v3103
    %v6061 = vunpack.c.h.b16 %v3103
    %v6062 = vunpack.c.l.b16 %v3104
    %v6063 = vunpack.c.h.b16 %v3104
    %v6064 = vunpack.c.l.b16 %v3105
    %v6065 = vunpack.c.h.b16 %v3105
    %v6066 = vunpack.c.l.b16 %v3106
    %v6067 = vunpack.c.h.b16 %v3106
    %v6068 = vunpack.c.l.b16 %v3107
    %v6069 = vunpack.c.h.b16 %v3107
    %v6070 = vunpack.c.l.b16 %v3108
    %v6071 = vunpack.c.h.b16 %v3108
    %v6072 = vunpack.c.l.b16 %v3109
    %v6073 = vunpack.c.h.b16 %v3109
    %v6074 = vunpack.c.l.b16 %v3110
    %v6075 = vunpack.c.h.b16 %v3110
    %v6076 = vunpack.c.l.b16 %v3111
    %v6077 = vunpack.c.h.b16 %v3111
    %v6078 = vunpack.c.l.b16 %v3112
    %v6079 = vunpack.c.h.b16 %v3112
    %v6080 = vunpack.c.l.b16 %v3113
    %v6081 = vunpack.c.h.b16 %v3113
    %v6082 = vunpack.c.l.b16 %v3114
    %v6083 = vunpack.c.h.b16 %v3114
    %v6084 = vunpack.c.l.b16 %v3115
    %v6085 = vunpack.c.h.b16 %v3115
    %v6086 = vunpack.c.l.b16 %v3116
    %v6087 = vunpack.c.h.b16 %v3116
    %v6088 = vunpack.c.l.b16 %v3117
    %v6089 = vunpack.c.h.b16 %v3117
    %v6090 = vunpack.c.l.b16 %v3118
    %v6091 = vunpack.c.h.b16 %v3118
    %v6092 = vunpack.c.l.b16 %v3119
    %v6093 = vunpack.c.h.b16 %v3119
    %v6094 = vunpack.c.l.b16 %v3120
    %v6095 = vunpack.c.h.b16 %v3120
    %v6096 = vunpack.c.l.b16 %v3121
    %v6097 = vunpack.c.h.b16 %v3121
    %v6098 = vunpack.c.l.b16 %v3122
    %v6099 = vunpack.c.h.b16 %v3122
    %v6100 = vunpack.c.l.b16 %v3123
    %v6101 = vunpack.c.h.b16 %v3123
    %v6102 = vunpack.c.l.b16 %v3124
    %v6103 = vunpack.c.h.b16 %v3124
    %v6104 = vunpack.c.l.b16 %v3125
    %v6105 = vunpack.c.h.b16 %v3125
    %v6106 = vunpack.c.l.b16 %v3126
    %v6107 = vunpack.c.h.b16 %v3126
    %v6108 = vunpack.c.l.b16 %v3127
    %v6109 = vunpack.c.h.b16 %v3127
    %v6110 = vunpack.c.l.b16 %v3128
    %v6111 = vunpack.c.h.b16 %v3128
    %v6112 = vunpack.c.l.b16 %v3129
    %v6113 = vunpack.c.h.b16 %v3129
    %v6114 = vunpack.c.l.b16 %v3130
    %v6115 = vunpack.c.h.b16 %v3130
    %v6116 = vunpack.c.l.b16 %v3131
    %v6117 = vunpack.c.h.b16 %v3131
    %v6118 = vunpack.c.l.b16 %v3132
    %v6119 = vunpack.c.h.b16 %v3132
    %v6120 = vunpack.c.l.b16 %v3133
    %v6121 = vunpack.c.h.b16 %v3133
    %v6122 = vunpack.c.l.b16 %v3134
    %v6123 = vunpack.c.h.b16 %v3134
    %v6124 = vunpack.c.l.b16 %v3135
    %v6125 = vunpack.c.h.b16 %v3135
    %v6126 = vunpack.c.l.b16 %v3136
    %v6127 = vunpack.c.h.b16 %v3136
    %v6128 = vunpack.c.l.b16 %v3137
    %v6129 = vunpack.c.h.b16 %v3137
    %v6130 = vunpack.c.l.b16 %v3138
    %v6131 = vunpack.c.h.b16 %v3138
    %v6132 = vunpack.c.l.b16 %v3139
    %v6133 = vunpack.c.h.b16 %v3139
    %v6134 = vunpack.c.l.b16 %v3140
    %v6135 = vunpack.c.h.b16 %v3140
    %v6136 = vunpack.c.l.b16 %v3141
    %v6137 = vunpack.c.h.b16 %v3141
    %v6138 = vunpack.c.l.b16 %v3142
    %v6139 = vunpack.c.h.b16 %v3142
    %v6140 = vunpack.c.l.b16 %v3143
    %v6141 = vunpack.c.h.b16 %v3143
    %v6142 = vunpack.c.l.b16 %v3144
    %v6143 = vunpack.c.h.b16 %v3144
    %v6144 = vunpack.c.l.b16 %v3145
    %v6145 = vunpack.c.h.b16 %v3145
    %v6146 = vunpack.c.l.b16 %v3146
    %v6147 = vunpack.c.h.b16 %v3146
    %v6148 = vunpack.c.l.b16 %v3147
    %v6149 = vunpack.c.h.b16 %v3147
    %v6150 = vunpack.c.l.b16 %v3148
    %v6151 = vunpack.c.h.b16 %v3148
    %v6152 = vunpack.c.l.b16 %v3149
    %v6153 = vunpack.c.h.b16 %v3149
    %v6154 = vunpack.c.l.b16 %v3150
    %v6155 = vunpack.c.h.b16 %v3150
    %v6156 = vunpack.c.l.b16 %v3151
    %v6157 = vunpack.c.h.b16 %v3151
    %v6158 = vunpack.c.l.b16 %v3152
    %v6159 = vunpack.c.h.b16 %v3152
    %v6160 = vunpack.c.l.b16 %v3153
    %v6161 = vunpack.c.h.b16 %v3153
    %v6162 = vunpack.c.l.b16 %v3154
    %v6163 = vunpack.c.h.b16 %v3154
    %v6164 = vunpack.c.l.b16 %v3155
    %v6165 = vunpack.c.h.b16 %v3155
    %v6166 = vunpack.c.l.b16 %v3156
    %v6167 = vunpack.c.h.b16 %v3156
    %v6168 = vunpack.c.l.b16 %v3157
    %v6169 = vunpack.c.h.b16 %v3157
    %v6170 = vunpack.c.l.b16 %v3158
    %v6171 = vunpack.c.h.b16 %v3158
    %v6172 = vunpack.c.l.b16 %v3159
    %v6173 = vunpack.c.h.b16 %v3159
    %v6174 = vunpack.c.l.b16 %v3160
    %v6175 = vunpack.c.h.b16 %v3160
    %v6176 = vunpack.c.l.b16 %v3161
    %v6177 = vunpack.c.h.b16 %v3161
    %v6178 = vunpack.c.l.b16 %v3162
    %v6179 = vunpack.c.h.b16 %v3162
    %v6180 = vunpack.c.l.b16 %v3163
    %v6181 = vunpack.c.h.b16 %v3163
    %v6182 = vunpack.c.l.b16 %v3164
    %v6183 = vunpack.c.h.b16 %v3164
    %v6184 = vunpack.c.l.b16 %v3165
    %v6185 = vunpack.c.h.b16 %v3165
    %v6186 = vunpack.c.l.b16 %v3166
    %v6187 = vunpack.c.h.b16 %v3166
    %v6188 = vunpack.c.l.b16 %v3167
    %v6189 = vunpack.c.h.b16 %v3167
    %v6190 = vunpack.c.l.b16 %v3168
    %v6191 = vunpack.c.h.b16 %v3168
    %v6192 = vunpack.c.l.b16 %v3169
    %v6193 = vunpack.c.h.b16 %v3169
    %v6194 = vunpack.c.l.b16 %v3170
    %v6195 = vunpack.c.h.b16 %v3170
    %v6196 = vunpack.c.l.b16 %v3171
    %v6197 = vunpack.c.h.b16 %v3171
    %v6198 = vunpack.c.l.b16 %v3172
    %v6199 = vunpack.c.h.b16 %v3172
    %v6200 = vunpack.c.l.b16 %v3173
    %v6201 = vunpack.c.h.b16 %v3173
    %v6202 = vunpack.c.l.b16 %v3174
    %v6203 = vunpack.c.h.b16 %v3174
    %v6204 = vunpack.c.l.b16 %v3175
    %v6205 = vunpack.c.h.b16 %v3175
    %v6206 = vunpack.c.l.b16 %v3176
    %v6207 = vunpack.c.h.b16 %v3176
    %v6208 = vunpack.c.l.b16 %v3177
    %v6209 = vunpack.c.h.b16 %v3177
    %v6210 = vunpack.c.l.b16 %v3178
    %v6211 = vunpack.c.h.b16 %v3178
    %v6212 = vunpack.c.l.b16 %v3179
    %v6213 = vunpack.c.h.b16 %v3179
    %v6214 = vunpack.c.l.b16 %v3180
    %v6215 = vunpack.c.h.b16 %v3180
    %v6216 = vunpack.c.l.b16 %v3181
    %v6217 = vunpack.c.h.b16 %v3181
    %v6218 = vunpack.c.l.b16 %v3182
    %v6219 = vunpack.c.h.b16 %v3182
    %v6220 = vunpack.c.l.b16 %v3183
    %v6221 = vunpack.c.h.b16 %v3183
    %v6222 = vunpack.c.l.b16 %v3184
    %v6223 = vunpack.c.h.b16 %v3184
    %v6224 = vunpack.c.l.b16 %v3185
    %v6225 = vunpack.c.h.b16 %v3185
    %v6226 = vunpack.c.l.b16 %v3186
    %v6227 = vunpack.c.h.b16 %v3186
    %v6228 = vunpack.c.l.b16 %v3187
    %v6229 = vunpack.c.h.b16 %v3187
    %v6230 = vunpack.c.l.b16 %v3188
    %v6231 = vunpack.c.h.b16 %v3188
    %v6232 = vunpack.c.l.b16 %v3189
    %v6233 = vunpack.c.h.b16 %v3189
    %v6234 = vunpack.c.l.b16 %v3190
    %v6235 = vunpack.c.h.b16 %v3190
    %v6236 = vunpack.c.l.b16 %v3191
    %v6237 = vunpack.c.h.b16 %v3191
    %v6238 = vunpack.c.l.b16 %v3192
    %v6239 = vunpack.c.h.b16 %v3192
    %v6240 = vunpack.c.l.b16 %v3193
    %v6241 = vunpack.c.h.b16 %v3193
    %v6242 = vunpack.c.l.b16 %v3194
    %v6243 = vunpack.c.h.b16 %v3194
    %v6244 = vunpack.c.l.b16 %v3195
    %v6245 = vunpack.c.h.b16 %v3195
    %v6246 = vunpack.c.l.b16 %v3196
    %v6247 = vunpack.c.h.b16 %v3196
    %v6248 = vunpack.c.l.b16 %v3197
    %v6249 = vunpack.c.h.b16 %v3197
    %v6250 = vunpack.c.l.b16 %v3198
    %v6251 = vunpack.c.h.b16 %v3198
    %v6252 = vunpack.c.l.b16 %v3199
    %v6253 = vunpack.c.h.b16 %v3199
    %v6254 = vunpack.c.l.b16 %v3200
    %v6255 = vunpack.c.h.b16 %v3200
    %v6256 = vunpack.c.l.b16 %v3201
    %v6257 = vunpack.c.h.b16 %v3201
    %v6258 = vunpack.c.l.b16 %v3202
    %v6259 = vunpack.c.h.b16 %v3202
    %v6260 = vunpack.c.l.b16 %v3203
    %v6261 = vunpack.c.h.b16 %v3203
    %v6262 = vunpack.c.l.b16 %v3204
    %v6263 = vunpack.c.h.b16 %v3204
    %v6264 = vunpack.c.l.b16 %v3205
    %v6265 = vunpack.c.h.b16 %v3205
    %v6266 = vunpack.c.l.b16 %v3206
    %v6267 = vunpack.c.h.b16 %v3206
    %v6268 = vunpack.c.l.b16 %v3207
    %v6269 = vunpack.c.h.b16 %v3207
    %v6270 = vunpack.c.l.b16 %v3208
    %v6271 = vunpack.c.h.b16 %v3208
    %v6272 = vunpack.c.l.b16 %v3209
    %v6273 = vunpack.c.h.b16 %v3209
    %v6274 = vunpack.c.l.b16 %v3210
    %v6275 = vunpack.c.h.b16 %v3210
    %v6276 = vunpack.c.l.b16 %v3211
    %v6277 = vunpack.c.h.b16 %v3211
    %v6278 = vunpack.c.l.b16 %v3212
    %v6279 = vunpack.c.h.b16 %v3212
    %v6280 = vunpack.c.l.b16 %v3213
    %v6281 = vunpack.c.h.b16 %v3213
    %v6282 = vunpack.c.l.b16 %v3214
    %v6283 = vunpack.c.h.b16 %v3214
    %v6284 = vunpack.c.l.b16 %v3215
    %v6285 = vunpack.c.h.b16 %v3215
    %v6286 = vunpack.c.l.b16 %v3216
    %v6287 = vunpack.c.h.b16 %v3216
    %v6288 = vunpack.c.l.b16 %v3217
    %v6289 = vunpack.c.h.b16 %v3217
    %v6290 = vunpack.c.l.b16 %v3218
    %v6291 = vunpack.c.h.b16 %v3218
    %v6292 = vunpack.c.l.b16 %v3219
    %v6293 = vunpack.c.h.b16 %v3219
    %v6294 = vunpack.c.l.b16 %v3220
    %v6295 = vunpack.c.h.b16 %v3220
    %v6296 = vunpack.c.l.b16 %v3221
    %v6297 = vunpack.c.h.b16 %v3221
    %v6298 = vunpack.c.l.b16 %v3222
    %v6299 = vunpack.c.h.b16 %v3222
    %v6300 = vunpack.c.l.b16 %v3223
    %v6301 = vunpack.c.h.b16 %v3223
    %v6302 = vunpack.c.l.b16 %v3224
    %v6303 = vunpack.c.h.b16 %v3224
    %v6304 = vunpack.c.l.b16 %v3225
    %v6305 = vunpack.c.h.b16 %v3225
    %v6306 = vunpack.c.l.b16 %v3226
    %v6307 = vunpack.c.h.b16 %v3226
    %v6308 = vunpack.c.l.b16 %v3227
    %v6309 = vunpack.c.h.b16 %v3227
    %v6310 = vunpack.c.l.b16 %v3228
    %v6311 = vunpack.c.h.b16 %v3228
    %v6312 = vunpack.c.l.b16 %v3229
    %v6313 = vunpack.c.h.b16 %v3229
    %v6314 = vunpack.c.l.b16 %v3230
    %v6315 = vunpack.c.h.b16 %v3230
    %v6316 = vunpack.c.l.b16 %v3231
    %v6317 = vunpack.c.h.b16 %v3231
    %v6318 = vunpack.c.l.b16 %v3232
    %v6319 = vunpack.c.h.b16 %v3232
    %v6320 = vunpack.c.l.b16 %v3233
    %v6321 = vunpack.c.h.b16 %v3233
    %v6322 = vunpack.c.l.b16 %v3234
    %v6323 = vunpack.c.h.b16 %v3234
    %v6324 = vunpack.c.l.b16 %v3235
    %v6325 = vunpack.c.h.b16 %v3235
    %v6326 = vunpack.c.l.b16 %v3236
    %v6327 = vunpack.c.h.b16 %v3236
    %v6328 = vunpack.c.l.b16 %v3237
    %v6329 = vunpack.c.h.b16 %v3237
    %v6330 = vunpack.c.l.b16 %v3238
    %v6331 = vunpack.c.h.b16 %v3238
    %v6332 = vunpack.c.l.b16 %v3239
    %v6333 = vunpack.c.h.b16 %v3239
    %v6334 = vpack.c.b16 %v4290, %v4286
    %v6335 = vpack.c.b16 %v4291, %v4287
    %v6336 = vpack.c.b16 %v4292, %v4288
    %v6337 = vpack.c.b16 %v4293, %v4289
    %v6338 = vpack.c.b16 %v4298, %v4294
    %v6339 = vpack.c.b16 %v4299, %v4295
    %v6340 = vpack.c.b16 %v4300, %v4296
    %v6341 = vpack.c.b16 %v4301, %v4297
    %v6342 = vpack.c.b16 %v4306, %v4302
    %v6343 = vpack.c.b16 %v4307, %v4303
    %v6344 = vpack.c.b16 %v4308, %v4304
    %v6345 = vpack.c.b16 %v4309, %v4305
    %v6346 = vpack.c.b16 %v4314, %v4310
    %v6347 = vpack.c.b16 %v4315, %v4311
    %v6348 = vpack.c.b16 %v4316, %v4312
    %v6349 = vpack.c.b16 %v4317, %v4313
    %v6350 = vpack.c.b16 %v4322, %v4318
    %v6351 = vpack.c.b16 %v4323, %v4319
    %v6352 = vpack.c.b16 %v4324, %v4320
    %v6353 = vpack.c.b16 %v4325, %v4321
    %v6354 = vpack.c.b16 %v4330, %v4326
    %v6355 = vpack.c.b16 %v4331, %v4327
    %v6356 = vpack.c.b16 %v4332, %v4328
    %v6357 = vpack.c.b16 %v4333, %v4329
    %v6358 = vpack.c.b16 %v4338, %v4334
    %v6359 = vpack.c.b16 %v4339, %v4335
    %v6360 = vpack.c.b16 %v4340, %v4336
    %v6361 = vpack.c.b16 %v4341, %v4337
    %v6362 = vpack.c.b16 %v4346, %v4342
    %v6363 = vpack.c.b16 %v4347, %v4343
    %v6364 = vpack.c.b16 %v4348, %v4344
    %v6365 = vpack.c.b16 %v4349, %v4345
    %v6366 = vpack.c.b16 %v4354, %v4350
    %v6367 = vpack.c.b16 %v4355, %v4351
    %v6368 = vpack.c.b16 %v4356, %v4352
    %v6369 = vpack.c.b16 %v4357, %v4353
    %v6370 = vpack.c.b16 %v4362, %v4358
    %v6371 = vpack.c.b16 %v4363, %v4359
    %v6372 = vpack.c.b16 %v4364, %v4360
    %v6373 = vpack.c.b16 %v4365, %v4361
    %v6374 = vpack.c.b16 %v4370, %v4366
    %v6375 = vpack.c.b16 %v4371, %v4367
    %v6376 = vpack.c.b16 %v4372, %v4368
    %v6377 = vpack.c.b16 %v4373, %v4369
    %v6378 = vpack.c.b16 %v4378, %v4374
    %v6379 = vpack.c.b16 %v4379, %v4375
    %v6380 = vpack.c.b16 %v4380, %v4376
    %v6381 = vpack.c.b16 %v4381, %v4377
    %v6382 = vpack.c.b16 %v4386, %v4382
    %v6383 = vpack.c.b16 %v4387, %v4383
    %v6384 = vpack.c.b16 %v4388, %v4384
    %v6385 = vpack.c.b16 %v4389, %v4385
    %v6386 = vpack.c.b16 %v4394, %v4390
    %v6387 = vpack.c.b16 %v4395, %v4391
    %v6388 = vpack.c.b16 %v4396, %v4392
    %v6389 = vpack.c.b16 %v4397, %v4393
    %v6390 = vpack.c.b16 %v4402, %v4398
    %v6391 = vpack.c.b16 %v4403, %v4399
    %v6392 = vpack.c.b16 %v4404, %v4400
    %v6393 = vpack.c.b16 %v4405, %v4401
    %v6394 = vpack.c.b16 %v4410, %v4406
    %v6395 = vpack.c.b16 %v4411, %v4407
    %v6396 = vpack.c.b16 %v4412, %v4408
    %v6397 = vpack.c.b16 %v4413, %v4409
    %v6398 = vpack.c.b16 %v4418, %v4414
    %v6399 = vpack.c.b16 %v4419, %v4415
    %v6400 = vpack.c.b16 %v4420, %v4416
    %v6401 = vpack.c.b16 %v4421, %v4417
    %v6402 = vpack.c.b16 %v4426, %v4422
    %v6403 = vpack.c.b16 %v4427, %v4423
    %v6404 = vpack.c.b16 %v4428, %v4424
    %v6405 = vpack.c.b16 %v4429, %v4425
    %v6406 = vpack.c.b16 %v4434, %v4430
    %v6407 = vpack.c.b16 %v4435, %v4431
    %v6408 = vpack.c.b16 %v4436, %v4432
    %v6409 = vpack.c.b16 %v4437, %v4433
    %v6410 = vpack.c.b16 %v4442, %v4438
    %v6411 = vpack.c.b16 %v4443, %v4439
    %v6412 = vpack.c.b16 %v4444, %v4440
    %v6413 = vpack.c.b16 %v4445, %v4441
    %v6414 = vpack.c.b16 %v4450, %v4446
    %v6415 = vpack.c.b16 %v4451, %v4447
    %v6416 = vpack.c.b16 %v4452, %v4448
    %v6417 = vpack.c.b16 %v4453, %v4449
    %v6418 = vpack.c.b16 %v4458, %v4454
    %v6419 = vpack.c.b16 %v4459, %v4455
    %v6420 = vpack.c.b16 %v4460, %v4456
    %v6421 = vpack.c.b16 %v4461, %v4457
    %v6422 = vpack.c.b16 %v4466, %v4462
    %v6423 = vpack.c.b16 %v4467, %v4463
    %v6424 = vpack.c.b16 %v4468, %v4464
    %v6425 = vpack.c.b16 %v4469, %v4465
    %v6426 = vpack.c.b16 %v4474, %v4470
    %v6427 = vpack.c.b16 %v4475, %v4471
    %v6428 = vpack.c.b16 %v4476, %v4472
    %v6429 = vpack.c.b16 %v4477, %v4473
    %v6430 = vpack.c.b16 %v4482, %v4478
    %v6431 = vpack.c.b16 %v4483, %v4479
    %v6432 = vpack.c.b16 %v4484, %v4480
    %v6433 = vpack.c.b16 %v4485, %v4481
    %v6434 = vpack.c.b16 %v4490, %v4486
    %v6435 = vpack.c.b16 %v4491, %v4487
    %v6436 = vpack.c.b16 %v4492, %v4488
    %v6437 = vpack.c.b16 %v4493, %v4489
    %v6438 = vpack.c.b16 %v4498, %v4494
    %v6439 = vpack.c.b16 %v4499, %v4495
    %v6440 = vpack.c.b16 %v4500, %v4496
    %v6441 = vpack.c.b16 %v4501, %v4497
    %v6442 = vpack.c.b16 %v4506, %v4502
    %v6443 = vpack.c.b16 %v4507, %v4503
    %v6444 = vpack.c.b16 %v4508, %v4504
    %v6445 = vpack.c.b16 %v4509, %v4505
    %v6446 = vpack.c.b16 %v4514, %v4510
    %v6447 = vpack.c.b16 %v4515, %v4511
    %v6448 = vpack.c.b16 %v4516, %v4512
    %v6449 = vpack.c.b16 %v4517, %v4513
    %v6450 = vpack.c.b16 %v4522, %v4518
    %v6451 = vpack.c.b16 %v4523, %v4519
    %v6452 = vpack.c.b16 %v4524, %v4520
    %v6453 = vpack.c.b16 %v4525, %v4521
    %v6454 = vpack.c.b16 %v4530, %v4526
    %v6455 = vpack.c.b16 %v4531, %v4527
    %v6456 = vpack.c.b16 %v4532, %v4528
    %v6457 = vpack.c.b16 %v4533, %v4529
    %v6458 = vpack.c.b16 %v4538, %v4534
    %v6459 = vpack.c.b16 %v4539, %v4535
    %v6460 = vpack.c.b16 %v4540, %v4536
    %v6461 = vpack.c.b16 %v4541, %v4537
    %v6462 = vpack.c.b16 %v4546, %v4542
    %v6463 = vpack.c.b16 %v4547, %v4543
    %v6464 = vpack.c.b16 %v4548, %v4544
    %v6465 = vpack.c.b16 %v4549, %v4545
    %v6466 = vpack.c.b16 %v4554, %v4550
    %v6467 = vpack.c.b16 %v4555, %v4551
    %v6468 = vpack.c.b16 %v4556, %v4552
    %v6469 = vpack.c.b16 %v4557, %v4553
    %v6470 = vpack.c.b16 %v4562, %v4558
    %v6471 = vpack.c.b16 %v4563, %v4559
    %v6472 = vpack.c.b16 %v4564, %v4560
    %v6473 = vpack.c.b16 %v4565, %v4561
    %v6474 = vpack.c.b16 %v4570, %v4566
    %v6475 = vpack.c.b16 %v4571, %v4567
    %v6476 = vpack.c.b16 %v4572, %v4568
    %v6477 = vpack.c.b16 %v4573, %v4569
    %v6478 = vpack.c.b16 %v4578, %v4574
    %v6479 = vpack.c.b16 %v4579, %v4575
    %v6480 = vpack.c.b16 %v4580, %v4576
    %v6481 = vpack.c.b16 %v4581, %v4577
    %v6482 = vpack.c.b16 %v4586, %v4582
    %v6483 = vpack.c.b16 %v4587, %v4583
    %v6484 = vpack.c.b16 %v4588, %v4584
    %v6485 = vpack.c.b16 %v4589, %v4585
    %v6486 = vpack.c.b16 %v4594, %v4590
    %v6487 = vpack.c.b16 %v4595, %v4591
    %v6488 = vpack.c.b16 %v4596, %v4592
    %v6489 = vpack.c.b16 %v4597, %v4593
    %v6490 = vpack.c.b16 %v4602, %v4598
    %v6491 = vpack.c.b16 %v4603, %v4599
    %v6492 = vpack.c.b16 %v4604, %v4600
    %v6493 = vpack.c.b16 %v4605, %v4601
    %v6494 = vpack.c.b16 %v4610, %v4606
    %v6495 = vpack.c.b16 %v4611, %v4607
    %v6496 = vpack.c.b16 %v4612, %v4608
    %v6497 = vpack.c.b16 %v4613, %v4609
    %v6498 = vpack.c.b16 %v4618, %v4614
    %v6499 = vpack.c.b16 %v4619, %v4615
    %v6500 = vpack.c.b16 %v4620, %v4616
    %v6501 = vpack.c.b16 %v4621, %v4617
    %v6502 = vpack.c.b16 %v4626, %v4622
    %v6503 = vpack.c.b16 %v4627, %v4623
    %v6504 = vpack.c.b16 %v4628, %v4624
    %v6505 = vpack.c.b16 %v4629, %v4625
    %v6506 = vpack.c.b16 %v4634, %v4630
    %v6507 = vpack.c.b16 %v4635, %v4631
    %v6508 = vpack.c.b16 %v4636, %v4632
    %v6509 = vpack.c.b16 %v4637, %v4633
    %v6510 = vpack.c.b16 %v4642, %v4638
    %v6511 = vpack.c.b16 %v4643, %v4639
    %v6512 = vpack.c.b16 %v4644, %v4640
    %v6513 = vpack.c.b16 %v4645, %v4641
    %v6514 = vpack.c.b16 %v4650, %v4646
    %v6515 = vpack.c.b16 %v4651, %v4647
    %v6516 = vpack.c.b16 %v4652, %v4648
    %v6517 = vpack.c.b16 %v4653, %v4649
    %v6518 = vpack.c.b16 %v4658, %v4654
    %v6519 = vpack.c.b16 %v4659, %v4655
    %v6520 = vpack.c.b16 %v4660, %v4656
    %v6521 = vpack.c.b16 %v4661, %v4657
    %v6522 = vpack.c.b16 %v4666, %v4662
    %v6523 = vpack.c.b16 %v4667, %v4663
    %v6524 = vpack.c.b16 %v4668, %v4664
    %v6525 = vpack.c.b16 %v4669, %v4665
    %v6526 = vpack.c.b16 %v4674, %v4670
    %v6527 = vpack.c.b16 %v4675, %v4671
    %v6528 = vpack.c.b16 %v4676, %v4672
    %v6529 = vpack.c.b16 %v4677, %v4673
    %v6530 = vpack.c.b16 %v4682, %v4678
    %v6531 = vpack.c.b16 %v4683, %v4679
    %v6532 = vpack.c.b16 %v4684, %v4680
    %v6533 = vpack.c.b16 %v4685, %v4681
    %v6534 = vpack.c.b16 %v4690, %v4686
    %v6535 = vpack.c.b16 %v4691, %v4687
    %v6536 = vpack.c.b16 %v4692, %v4688
    %v6537 = vpack.c.b16 %v4693, %v4689
    %v6538 = vpack.c.b16 %v4698, %v4694
    %v6539 = vpack.c.b16 %v4699, %v4695
    %v6540 = vpack.c.b16 %v4700, %v4696
    %v6541 = vpack.c.b16 %v4701, %v4697
    %v6542 = vpack.c.b16 %v4706, %v4702
    %v6543 = vpack.c.b16 %v4707, %v4703
    %v6544 = vpack.c.b16 %v4708, %v4704
    %v6545 = vpack.c.b16 %v4709, %v4705
    %v6546 = vpack.c.b16 %v4714, %v4710
    %v6547 = vpack.c.b16 %v4715, %v4711
    %v6548 = vpack.c.b16 %v4716, %v4712
    %v6549 = vpack.c.b16 %v4717, %v4713
    %v6550 = vpack.c.b16 %v4722, %v4718
    %v6551 = vpack.c.b16 %v4723, %v4719
    %v6552 = vpack.c.b16 %v4724, %v4720
    %v6553 = vpack.c.b16 %v4725, %v4721
    %v6554 = vpack.c.b16 %v4730, %v4726
    %v6555 = vpack.c.b16 %v4731, %v4727
    %v6556 = vpack.c.b16 %v4732, %v4728
    %v6557 = vpack.c.b16 %v4733, %v4729
    %v6558 = vpack.c.b16 %v4738, %v4734
    %v6559 = vpack.c.b16 %v4739, %v4735
    %v6560 = vpack.c.b16 %v4740, %v4736
    %v6561 = vpack.c.b16 %v4741, %v4737
    %v6562 = vpack.c.b16 %v4746, %v4742
    %v6563 = vpack.c.b16 %v4747, %v4743
    %v6564 = vpack.c.b16 %v4748, %v4744
    %v6565 = vpack.c.b16 %v4749, %v4745
    %v6566 = vpack.c.b16 %v4754, %v4750
    %v6567 = vpack.c.b16 %v4755, %v4751
    %v6568 = vpack.c.b16 %v4756, %v4752
    %v6569 = vpack.c.b16 %v4757, %v4753
    %v6570 = vpack.c.b16 %v4762, %v4758
    %v6571 = vpack.c.b16 %v4763, %v4759
    %v6572 = vpack.c.b16 %v4764, %v4760
    %v6573 = vpack.c.b16 %v4765, %v4761
    %v6574 = vpack.c.b16 %v4770, %v4766
    %v6575 = vpack.c.b16 %v4771, %v4767
    %v6576 = vpack.c.b16 %v4772, %v4768
    %v6577 = vpack.c.b16 %v4773, %v4769
    %v6578 = vpack.c.b16 %v4778, %v4774
    %v6579 = vpack.c.b16 %v4779, %v4775
    %v6580 = vpack.c.b16 %v4780, %v4776
    %v6581 = vpack.c.b16 %v4781, %v4777
    %v6582 = vpack.c.b16 %v4786, %v4782
    %v6583 = vpack.c.b16 %v4787, %v4783
    %v6584 = vpack.c.b16 %v4788, %v4784
    %v6585 = vpack.c.b16 %v4789, %v4785
    %v6586 = vpack.c.b16 %v4794, %v4790
    %v6587 = vpack.c.b16 %v4795, %v4791
    %v6588 = vpack.c.b16 %v4796, %v4792
    %v6589 = vpack.c.b16 %v4797, %v4793
    %v6590 = vpack.c.b16 %v4802, %v4798
    %v6591 = vpack.c.b16 %v4803, %v4799
    %v6592 = vpack.c.b16 %v4804, %v4800
    %v6593 = vpack.c.b16 %v4805, %v4801
    %v6594 = vpack.c.b16 %v4810, %v4806
    %v6595 = vpack.c.b16 %v4811, %v4807
    %v6596 = vpack.c.b16 %v4812, %v4808
    %v6597 = vpack.c.b16 %v4813, %v4809
    %v6598 = vpack.c.b16 %v4818, %v4814
    %v6599 = vpack.c.b16 %v4819, %v4815
    %v6600 = vpack.c.b16 %v4820, %v4816
    %v6601 = vpack.c.b16 %v4821, %v4817
    %v6602 = vpack.c.b16 %v4826, %v4822
    %v6603 = vpack.c.b16 %v4827, %v4823
    %v6604 = vpack.c.b16 %v4828, %v4824
    %v6605 = vpack.c.b16 %v4829, %v4825
    %v6606 = vpack.c.b16 %v4834, %v4830
    %v6607 = vpack.c.b16 %v4835, %v4831
    %v6608 = vpack.c.b16 %v4836, %v4832
    %v6609 = vpack.c.b16 %v4837, %v4833
    %v6610 = vpack.c.b16 %v4842, %v4838
    %v6611 = vpack.c.b16 %v4843, %v4839
    %v6612 = vpack.c.b16 %v4844, %v4840
    %v6613 = vpack.c.b16 %v4845, %v4841
    %v6614 = vpack.c.b16 %v4850, %v4846
    %v6615 = vpack.c.b16 %v4851, %v4847
    %v6616 = vpack.c.b16 %v4852, %v4848
    %v6617 = vpack.c.b16 %v4853, %v4849
    %v6618 = vpack.c.b16 %v4858, %v4854
    %v6619 = vpack.c.b16 %v4859, %v4855
    %v6620 = vpack.c.b16 %v4860, %v4856
    %v6621 = vpack.c.b16 %v4861, %v4857
    %v6622 = vpack.c.b16 %v4866, %v4862
    %v6623 = vpack.c.b16 %v4867, %v4863
    %v6624 = vpack.c.b16 %v4868, %v4864
    %v6625 = vpack.c.b16 %v4869, %v4865
    %v6626 = vpack.c.b16 %v4874, %v4870
    %v6627 = vpack.c.b16 %v4875, %v4871
    %v6628 = vpack.c.b16 %v4876, %v4872
    %v6629 = vpack.c.b16 %v4877, %v4873
    %v6630 = vpack.c.b16 %v4882, %v4878
    %v6631 = vpack.c.b16 %v4883, %v4879
    %v6632 = vpack.c.b16 %v4884, %v4880
    %v6633 = vpack.c.b16 %v4885, %v4881
    %v6634 = vpack.c.b16 %v4890, %v4886
    %v6635 = vpack.c.b16 %v4891, %v4887
    %v6636 = vpack.c.b16 %v4892, %v4888
    %v6637 = vpack.c.b16 %v4893, %v4889
    %v6638 = vpack.c.b16 %v4898, %v4894
    %v6639 = vpack.c.b16 %v4899, %v4895
    %v6640 = vpack.c.b16 %v4900, %v4896
    %v6641 = vpack.c.b16 %v4901, %v4897
    %v6642 = vpack.c.b16 %v4906, %v4902
    %v6643 = vpack.c.b16 %v4907, %v4903
    %v6644 = vpack.c.b16 %v4908, %v4904
    %v6645 = vpack.c.b16 %v4909, %v4905
    %v6646 = vpack.c.b16 %v4914, %v4910
    %v6647 = vpack.c.b16 %v4915, %v4911
    %v6648 = vpack.c.b16 %v4916, %v4912
    %v6649 = vpack.c.b16 %v4917, %v4913
    %v6650 = vpack.c.b16 %v4922, %v4918
    %v6651 = vpack.c.b16 %v4923, %v4919
    %v6652 = vpack.c.b16 %v4924, %v4920
    %v6653 = vpack.c.b16 %v4925, %v4921
    %v6654 = vpack.c.b16 %v4930, %v4926
    %v6655 = vpack.c.b16 %v4931, %v4927
    %v6656 = vpack.c.b16 %v4932, %v4928
    %v6657 = vpack.c.b16 %v4933, %v4929
    %v6658 = vpack.c.b16 %v4938, %v4934
    %v6659 = vpack.c.b16 %v4939, %v4935
    %v6660 = vpack.c.b16 %v4940, %v4936
    %v6661 = vpack.c.b16 %v4941, %v4937
    %v6662 = vpack.c.b16 %v4946, %v4942
    %v6663 = vpack.c.b16 %v4947, %v4943
    %v6664 = vpack.c.b16 %v4948, %v4944
    %v6665 = vpack.c.b16 %v4949, %v4945
    %v6666 = vpack.c.b16 %v4954, %v4950
    %v6667 = vpack.c.b16 %v4955, %v4951
    %v6668 = vpack.c.b16 %v4956, %v4952
    %v6669 = vpack.c.b16 %v4957, %v4953
    %v6670 = vpack.c.b16 %v4962, %v4958
    %v6671 = vpack.c.b16 %v4963, %v4959
    %v6672 = vpack.c.b16 %v4964, %v4960
    %v6673 = vpack.c.b16 %v4965, %v4961
    %v6674 = vpack.c.b16 %v4970, %v4966
    %v6675 = vpack.c.b16 %v4971, %v4967
    %v6676 = vpack.c.b16 %v4972, %v4968
    %v6677 = vpack.c.b16 %v4973, %v4969
    %v6678 = vpack.c.b16 %v4978, %v4974
    %v6679 = vpack.c.b16 %v4979, %v4975
    %v6680 = vpack.c.b16 %v4980, %v4976
    %v6681 = vpack.c.b16 %v4981, %v4977
    %v6682 = vpack.c.b16 %v4986, %v4982
    %v6683 = vpack.c.b16 %v4987, %v4983
    %v6684 = vpack.c.b16 %v4988, %v4984
    %v6685 = vpack.c.b16 %v4989, %v4985
    %v6686 = vpack.c.b16 %v4994, %v4990
    %v6687 = vpack.c.b16 %v4995, %v4991
    %v6688 = vpack.c.b16 %v4996, %v4992
    %v6689 = vpack.c.b16 %v4997, %v4993
    %v6690 = vpack.c.b16 %v5002, %v4998
    %v6691 = vpack.c.b16 %v5003, %v4999
    %v6692 = vpack.c.b16 %v5004, %v5000
    %v6693 = vpack.c.b16 %v5005, %v5001
    %v6694 = vpack.c.b16 %v5010, %v5006
    %v6695 = vpack.c.b16 %v5011, %v5007
    %v6696 = vpack.c.b16 %v5012, %v5008
    %v6697 = vpack.c.b16 %v5013, %v5009
    %v6698 = vpack.c.b16 %v5018, %v5014
    %v6699 = vpack.c.b16 %v5019, %v5015
    %v6700 = vpack.c.b16 %v5020, %v5016
    %v6701 = vpack.c.b16 %v5021, %v5017
    %v6702 = vpack.c.b16 %v5026, %v5022
    %v6703 = vpack.c.b16 %v5027, %v5023
    %v6704 = vpack.c.b16 %v5028, %v5024
    %v6705 = vpack.c.b16 %v5029, %v5025
    %v6706 = vpack.c.b16 %v5034, %v5030
    %v6707 = vpack.c.b16 %v5035, %v5031
    %v6708 = vpack.c.b16 %v5036, %v5032
    %v6709 = vpack.c.b16 %v5037, %v5033
    %v6710 = vpack.c.b16 %v5042, %v5038
    %v6711 = vpack.c.b16 %v5043, %v5039
    %v6712 = vpack.c.b16 %v5044, %v5040
    %v6713 = vpack.c.b16 %v5045, %v5041
    %v6714 = vpack.c.b16 %v5050, %v5046
    %v6715 = vpack.c.b16 %v5051, %v5047
    %v6716 = vpack.c.b16 %v5052, %v5048
    %v6717 = vpack.c.b16 %v5053, %v5049
    %v6718 = vpack.c.b16 %v5058, %v5054
    %v6719 = vpack.c.b16 %v5059, %v5055
    %v6720 = vpack.c.b16 %v5060, %v5056
    %v6721 = vpack.c.b16 %v5061, %v5057
    %v6722 = vpack.c.b16 %v5066, %v5062
    %v6723 = vpack.c.b16 %v5067, %v5063
    %v6724 = vpack.c.b16 %v5068, %v5064
    %v6725 = vpack.c.b16 %v5069, %v5065
    %v6726 = vpack.c.b16 %v5074, %v5070
    %v6727 = vpack.c.b16 %v5075, %v5071
    %v6728 = vpack.c.b16 %v5076, %v5072
    %v6729 = vpack.c.b16 %v5077, %v5073
    %v6730 = vpack.c.b16 %v5082, %v5078
    %v6731 = vpack.c.b16 %v5083, %v5079
    %v6732 = vpack.c.b16 %v5084, %v5080
    %v6733 = vpack.c.b16 %v5085, %v5081
    %v6734 = vpack.c.b16 %v5090, %v5086
    %v6735 = vpack.c.b16 %v5091, %v5087
    %v6736 = vpack.c.b16 %v5092, %v5088
    %v6737 = vpack.c.b16 %v5093, %v5089
    %v6738 = vpack.c.b16 %v5098, %v5094
    %v6739 = vpack.c.b16 %v5099, %v5095
    %v6740 = vpack.c.b16 %v5100, %v5096
    %v6741 = vpack.c.b16 %v5101, %v5097
    %v6742 = vpack.c.b16 %v5106, %v5102
    %v6743 = vpack.c.b16 %v5107, %v5103
    %v6744 = vpack.c.b16 %v5108, %v5104
    %v6745 = vpack.c.b16 %v5109, %v5105
    %v6746 = vpack.c.b16 %v5114, %v5110
    %v6747 = vpack.c.b16 %v5115, %v5111
    %v6748 = vpack.c.b16 %v5116, %v5112
    %v6749 = vpack.c.b16 %v5117, %v5113
    %v6750 = vpack.c.b16 %v5122, %v5118
    %v6751 = vpack.c.b16 %v5123, %v5119
    %v6752 = vpack.c.b16 %v5124, %v5120
    %v6753 = vpack.c.b16 %v5125, %v5121
    %v6754 = vpack.c.b16 %v5130, %v5126
    %v6755 = vpack.c.b16 %v5131, %v5127
    %v6756 = vpack.c.b16 %v5132, %v5128
    %v6757 = vpack.c.b16 %v5133, %v5129
    %v6758 = vpack.c.b16 %v5138, %v5134
    %v6759 = vpack.c.b16 %v5139, %v5135
    %v6760 = vpack.c.b16 %v5140, %v5136
    %v6761 = vpack.c.b16 %v5141, %v5137
    %v6762 = vpack.c.b16 %v5146, %v5142
    %v6763 = vpack.c.b16 %v5147, %v5143
    %v6764 = vpack.c.b16 %v5148, %v5144
    %v6765 = vpack.c.b16 %v5149, %v5145
    %v6766 = vpack.c.b16 %v5154, %v5150
    %v6767 = vpack.c.b16 %v5155, %v5151
    %v6768 = vpack.c.b16 %v5156, %v5152
    %v6769 = vpack.c.b16 %v5157, %v5153
    %v6770 = vpack.c.b16 %v5162, %v5158
    %v6771 = vpack.c.b16 %v5163, %v5159
    %v6772 = vpack.c.b16 %v5164, %v5160
    %v6773 = vpack.c.b16 %v5165, %v5161
    %v6774 = vpack.c.b16 %v5170, %v5166
    %v6775 = vpack.c.b16 %v5171, %v5167
    %v6776 = vpack.c.b16 %v5172, %v5168
    %v6777 = vpack.c.b16 %v5173, %v5169
    %v6778 = vpack.c.b16 %v5178, %v5174
    %v6779 = vpack.c.b16 %v5179, %v5175
    %v6780 = vpack.c.b16 %v5180, %v5176
    %v6781 = vpack.c.b16 %v5181, %v5177
    %v6782 = vpack.c.b16 %v5186, %v5182
    %v6783 = vpack.c.b16 %v5187, %v5183
    %v6784 = vpack.c.b16 %v5188, %v5184
    %v6785 = vpack.c.b16 %v5189, %v5185
    %v6786 = vpack.c.b16 %v5194, %v5190
    %v6787 = vpack.c.b16 %v5195, %v5191
    %v6788 = vpack.c.b16 %v5196, %v5192
    %v6789 = vpack.c.b16 %v5197, %v5193
    %v6790 = vpack.c.b16 %v5202, %v5198
    %v6791 = vpack.c.b16 %v5203, %v5199
    %v6792 = vpack.c.b16 %v5204, %v5200
    %v6793 = vpack.c.b16 %v5205, %v5201
    %v6794 = vpack.c.b16 %v5210, %v5206
    %v6795 = vpack.c.b16 %v5211, %v5207
    %v6796 = vpack.c.b16 %v5212, %v5208
    %v6797 = vpack.c.b16 %v5213, %v5209
    %v6798 = vpack.c.b16 %v5218, %v5214
    %v6799 = vpack.c.b16 %v5219, %v5215
    %v6800 = vpack.c.b16 %v5220, %v5216
    %v6801 = vpack.c.b16 %v5221, %v5217
    %v6802 = vpack.c.b16 %v5226, %v5222
    %v6803 = vpack.c.b16 %v5227, %v5223
    %v6804 = vpack.c.b16 %v5228, %v5224
    %v6805 = vpack.c.b16 %v5229, %v5225
    %v6806 = vpack.c.b16 %v5234, %v5230
    %v6807 = vpack.c.b16 %v5235, %v5231
    %v6808 = vpack.c.b16 %v5236, %v5232
    %v6809 = vpack.c.b16 %v5237, %v5233
    %v6810 = vpack.c.b16 %v5242, %v5238
    %v6811 = vpack.c.b16 %v5243, %v5239
    %v6812 = vpack.c.b16 %v5244, %v5240
    %v6813 = vpack.c.b16 %v5245, %v5241
    %v6814 = vpack.c.b16 %v5250, %v5246
    %v6815 = vpack.c.b16 %v5251, %v5247
    %v6816 = vpack.c.b16 %v5252, %v5248
    %v6817 = vpack.c.b16 %v5253, %v5249
    %v6818 = vpack.c.b16 %v5258, %v5254
    %v6819 = vpack.c.b16 %v5259, %v5255
    %v6820 = vpack.c.b16 %v5260, %v5256
    %v6821 = vpack.c.b16 %v5261, %v5257
    %v6822 = vpack.c.b16 %v5266, %v5262
    %v6823 = vpack.c.b16 %v5267, %v5263
    %v6824 = vpack.c.b16 %v5268, %v5264
    %v6825 = vpack.c.b16 %v5269, %v5265
    %v6826 = vpack.c.b16 %v5274, %v5270
    %v6827 = vpack.c.b16 %v5275, %v5271
    %v6828 = vpack.c.b16 %v5276, %v5272
    %v6829 = vpack.c.b16 %v5277, %v5273
    %v6830 = vpack.c.b16 %v5282, %v5278
    %v6831 = vpack.c.b16 %v5283, %v5279
    %v6832 = vpack.c.b16 %v5284, %v5280
    %v6833 = vpack.c.b16 %v5285, %v5281
    %v6834 = vpack.c.b16 %v5290, %v5286
    %v6835 = vpack.c.b16 %v5291, %v5287
    %v6836 = vpack.c.b16 %v5292, %v5288
    %v6837 = vpack.c.b16 %v5293, %v5289
    %v6838 = vpack.c.b16 %v5298, %v5294
    %v6839 = vpack.c.b16 %v5299, %v5295
    %v6840 = vpack.c.b16 %v5300, %v5296
    %v6841 = vpack.c.b16 %v5301, %v5297
    %v6842 = vpack.c.b16 %v5306, %v5302
    %v6843 = vpack.c.b16 %v5307, %v5303
    %v6844 = vpack.c.b16 %v5308, %v5304
    %v6845 = vpack.c.b16 %v5309, %v5305
    %v6846 = vpack.c.b16 %v5314, %v5310
    %v6847 = vpack.c.b16 %v5315, %v5311
    %v6848 = vpack.c.b16 %v5316, %v5312
    %v6849 = vpack.c.b16 %v5317, %v5313
    %v6850 = vpack.c.b16 %v5322, %v5318
    %v6851 = vpack.c.b16 %v5323, %v5319
    %v6852 = vpack.c.b16 %v5324, %v5320
    %v6853 = vpack.c.b16 %v5325, %v5321
    %v6854 = vpack.c.b16 %v5330, %v5326
    %v6855 = vpack.c.b16 %v5331, %v5327
    %v6856 = vpack.c.b16 %v5332, %v5328
    %v6857 = vpack.c.b16 %v5333, %v5329
    %v6858 = vpack.c.b16 %v5338, %v5334
    %v6859 = vpack.c.b16 %v5339, %v5335
    %v6860 = vpack.c.b16 %v5340, %v5336
    %v6861 = vpack.c.b16 %v5341, %v5337
    %v6862 = vpack.c.b16 %v5346, %v5342
    %v6863 = vpack.c.b16 %v5347, %v5343
    %v6864 = vpack.c.b16 %v5348, %v5344
    %v6865 = vpack.c.b16 %v5349, %v5345
    %v6866 = vpack.c.b16 %v5354, %v5350
    %v6867 = vpack.c.b16 %v5355, %v5351
    %v6868 = vpack.c.b16 %v5356, %v5352
    %v6869 = vpack.c.b16 %v5357, %v5353
    %v6870 = vpack.c.b16 %v5362, %v5358
    %v6871 = vpack.c.b16 %v5363, %v5359
    %v6872 = vpack.c.b16 %v5364, %v5360
    %v6873 = vpack.c.b16 %v5365, %v5361
    %v6874 = vpack.c.b16 %v5370, %v5366
    %v6875 = vpack.c.b16 %v5371, %v5367
    %v6876 = vpack.c.b16 %v5372, %v5368
    %v6877 = vpack.c.b16 %v5373, %v5369
    %v6878 = vpack.c.b16 %v5378, %v5374
    %v6879 = vpack.c.b16 %v5379, %v5375
    %v6880 = vpack.c.b16 %v5380, %v5376
    %v6881 = vpack.c.b16 %v5381, %v5377
    %v6882 = vpack.c.b16 %v5386, %v5382
    %v6883 = vpack.c.b16 %v5387, %v5383
    %v6884 = vpack.c.b16 %v5388, %v5384
    %v6885 = vpack.c.b16 %v5389, %v5385
    %v6886 = vpack.c.b16 %v5394, %v5390
    %v6887 = vpack.c.b16 %v5395, %v5391
    %v6888 = vpack.c.b16 %v5396, %v5392
    %v6889 = vpack.c.b16 %v5397, %v5393
    %v6890 = vpack.c.b16 %v5402, %v5398
    %v6891 = vpack.c.b16 %v5403, %v5399
    %v6892 = vpack.c.b16 %v5404, %v5400
    %v6893 = vpack.c.b16 %v5405, %v5401
    %v6894 = vpack.c.b16 %v5410, %v5406
    %v6895 = vpack.c.b16 %v5411, %v5407
    %v6896 = vpack.c.b16 %v5412, %v5408
    %v6897 = vpack.c.b16 %v5413, %v5409
    %v6898 = vpack.c.b16 %v5418, %v5414
    %v6899 = vpack.c.b16 %v5419, %v5415
    %v6900 = vpack.c.b16 %v5420, %v5416
    %v6901 = vpack.c.b16 %v5421, %v5417
    %v6902 = vpack.c.b16 %v5426, %v5422
    %v6903 = vpack.c.b16 %v5427, %v5423
    %v6904 = vpack.c.b16 %v5428, %v5424
    %v6905 = vpack.c.b16 %v5429, %v5425
    %v6906 = vpack.c.b16 %v5434, %v5430
    %v6907 = vpack.c.b16 %v5435, %v5431
    %v6908 = vpack.c.b16 %v5436, %v5432
    %v6909 = vpack.c.b16 %v5437, %v5433
    %v6910 = vpack.c.b16 %v5442, %v5438
    %v6911 = vpack.c.b16 %v5443, %v5439
    %v6912 = vpack.c.b16 %v5444, %v5440
    %v6913 = vpack.c.b16 %v5445, %v5441
    %v6914 = vpack.c.b16 %v5450, %v5446
    %v6915 = vpack.c.b16 %v5451, %v5447
    %v6916 = vpack.c.b16 %v5452, %v5448
    %v6917 = vpack.c.b16 %v5453, %v5449
    %v6918 = vpack.c.b16 %v5458, %v5454
    %v6919 = vpack.c.b16 %v5459, %v5455
    %v6920 = vpack.c.b16 %v5460, %v5456
    %v6921 = vpack.c.b16 %v5461, %v5457
    %v6922 = vpack.c.b16 %v5466, %v5462
    %v6923 = vpack.c.b16 %v5467, %v5463
    %v6924 = vpack.c.b16 %v5468, %v5464
    %v6925 = vpack.c.b16 %v5469, %v5465
    %v6926 = vpack.c.b16 %v5474, %v5470
    %v6927 = vpack.c.b16 %v5475, %v5471
    %v6928 = vpack.c.b16 %v5476, %v5472
    %v6929 = vpack.c.b16 %v5477, %v5473
    %v6930 = vpack.c.b16 %v5482, %v5478
    %v6931 = vpack.c.b16 %v5483, %v5479
    %v6932 = vpack.c.b16 %v5484, %v5480
    %v6933 = vpack.c.b16 %v5485, %v5481
    %v6934 = vpack.c.b16 %v5490, %v5486
    %v6935 = vpack.c.b16 %v5491, %v5487
    %v6936 = vpack.c.b16 %v5492, %v5488
    %v6937 = vpack.c.b16 %v5493, %v5489
    %v6938 = vpack.c.b16 %v5498, %v5494
    %v6939 = vpack.c.b16 %v5499, %v5495
    %v6940 = vpack.c.b16 %v5500, %v5496
    %v6941 = vpack.c.b16 %v5501, %v5497
    %v6942 = vpack.c.b16 %v5506, %v5502
    %v6943 = vpack.c.b16 %v5507, %v5503
    %v6944 = vpack.c.b16 %v5508, %v5504
    %v6945 = vpack.c.b16 %v5509, %v5505
    %v6946 = vpack.c.b16 %v5514, %v5510
    %v6947 = vpack.c.b16 %v5515, %v5511
    %v6948 = vpack.c.b16 %v5516, %v5512
    %v6949 = vpack.c.b16 %v5517, %v5513
    %v6950 = vpack.c.b16 %v5522, %v5518
    %v6951 = vpack.c.b16 %v5523, %v5519
    %v6952 = vpack.c.b16 %v5524, %v5520
    %v6953 = vpack.c.b16 %v5525, %v5521
    %v6954 = vpack.c.b16 %v5530, %v5526
    %v6955 = vpack.c.b16 %v5531, %v5527
    %v6956 = vpack.c.b16 %v5532, %v5528
    %v6957 = vpack.c.b16 %v5533, %v5529
    %v6958 = vpack.c.b16 %v5538, %v5534
    %v6959 = vpack.c.b16 %v5539, %v5535
    %v6960 = vpack.c.b16 %v5540, %v5536
    %v6961 = vpack.c.b16 %v5541, %v5537
    %v6962 = vpack.c.b16 %v5546, %v5542
    %v6963 = vpack.c.b16 %v5547, %v5543
    %v6964 = vpack.c.b16 %v5548, %v5544
    %v6965 = vpack.c.b16 %v5549, %v5545
    %v6966 = vpack.c.b16 %v5554, %v5550
    %v6967 = vpack.c.b16 %v5555, %v5551
    %v6968 = vpack.c.b16 %v5556, %v5552
    %v6969 = vpack.c.b16 %v5557, %v5553
    %v6970 = vpack.c.b16 %v5562, %v5558
    %v6971 = vpack.c.b16 %v5563, %v5559
    %v6972 = vpack.c.b16 %v5564, %v5560
    %v6973 = vpack.c.b16 %v5565, %v5561
    %v6974 = vpack.c.b16 %v5570, %v5566
    %v6975 = vpack.c.b16 %v5571, %v5567
    %v6976 = vpack.c.b16 %v5572, %v5568
    %v6977 = vpack.c.b16 %v5573, %v5569
    %v6978 = vpack.c.b16 %v5578, %v5574
    %v6979 = vpack.c.b16 %v5579, %v5575
    %v6980 = vpack.c.b16 %v5580, %v5576
    %v6981 = vpack.c.b16 %v5581, %v5577
    %v6982 = vpack.c.b16 %v5586, %v5582
    %v6983 = vpack.c.b16 %v5587, %v5583
    %v6984 = vpack.c.b16 %v5588, %v5584
    %v6985 = vpack.c.b16 %v5589, %v5585
    %v6986 = vpack.c.b16 %v5594, %v5590
    %v6987 = vpack.c.b16 %v5595, %v5591
    %v6988 = vpack.c.b16 %v5596, %v5592
    %v6989 = vpack.c.b16 %v5597, %v5593
    %v6990 = vpack.c.b16 %v5602, %v5598
    %v6991 = vpack.c.b16 %v5603, %v5599
    %v6992 = vpack.c.b16 %v5604, %v5600
    %v6993 = vpack.c.b16 %v5605, %v5601
    %v6994 = vpack.c.b16 %v5610, %v5606
    %v6995 = vpack.c.b16 %v5611, %v5607
    %v6996 = vpack.c.b16 %v5612, %v5608
    %v6997 = vpack.c.b16 %v5613, %v5609
    %v6998 = vpack.c.b16 %v5618, %v5614
    %v6999 = vpack.c.b16 %v5619, %v5615
    %v7000 = vpack.c.b16 %v5620, %v5616
    %v7001 = vpack.c.b16 %v5621, %v5617
    %v7002 = vpack.c.b16 %v5626, %v5622
    %v7003 = vpack.c.b16 %v5627, %v5623
    %v7004 = vpack.c.b16 %v5628, %v5624
    %v7005 = vpack.c.b16 %v5629, %v5625
    %v7006 = vpack.c.b16 %v5634, %v5630
    %v7007 = vpack.c.b16 %v5635, %v5631
    %v7008 = vpack.c.b16 %v5636, %v5632
    %v7009 = vpack.c.b16 %v5637, %v5633
    %v7010 = vpack.c.b16 %v5642, %v5638
    %v7011 = vpack.c.b16 %v5643, %v5639
    %v7012 = vpack.c.b16 %v5644, %v5640
    %v7013 = vpack.c.b16 %v5645, %v5641
    %v7014 = vpack.c.b16 %v5650, %v5646
    %v7015 = vpack.c.b16 %v5651, %v5647
    %v7016 = vpack.c.b16 %v5652, %v5648
    %v7017 = vpack.c.b16 %v5653, %v5649
    %v7018 = vpack.c.b16 %v5658, %v5654
    %v7019 = vpack.c.b16 %v5659, %v5655
    %v7020 = vpack.c.b16 %v5660, %v5656
    %v7021 = vpack.c.b16 %v5661, %v5657
    %v7022 = vpack.c.b16 %v5666, %v5662
    %v7023 = vpack.c.b16 %v5667, %v5663
    %v7024 = vpack.c.b16 %v5668, %v5664
    %v7025 = vpack.c.b16 %v5669, %v5665
    %v7026 = vpack.c.b16 %v5674, %v5670
    %v7027 = vpack.c.b16 %v5675, %v5671
    %v7028 = vpack.c.b16 %v5676, %v5672
    %v7029 = vpack.c.b16 %v5677, %v5673
    %v7030 = vpack.c.b16 %v5682, %v5678
    %v7031 = vpack.c.b16 %v5683, %v5679
    %v7032 = vpack.c.b16 %v5684, %v5680
    %v7033 = vpack.c.b16 %v5685, %v5681
    %v7034 = vpack.c.b16 %v5690, %v5686
    %v7035 = vpack.c.b16 %v5691, %v5687
    %v7036 = vpack.c.b16 %v5692, %v5688
    %v7037 = vpack.c.b16 %v5693, %v5689
    %v7038 = vpack.c.b16 %v5698, %v5694
    %v7039 = vpack.c.b16 %v5699, %v5695
    %v7040 = vpack.c.b16 %v5700, %v5696
    %v7041 = vpack.c.b16 %v5701, %v5697
    %v7042 = vpack.c.b16 %v5706, %v5702
    %v7043 = vpack.c.b16 %v5707, %v5703
    %v7044 = vpack.c.b16 %v5708, %v5704
    %v7045 = vpack.c.b16 %v5709, %v5705
    %v7046 = vpack.c.b16 %v5714, %v5710
    %v7047 = vpack.c.b16 %v5715, %v5711
    %v7048 = vpack.c.b16 %v5716, %v5712
    %v7049 = vpack.c.b16 %v5717, %v5713
    %v7050 = vpack.c.b16 %v5722, %v5718
    %v7051 = vpack.c.b16 %v5723, %v5719
    %v7052 = vpack.c.b16 %v5724, %v5720
    %v7053 = vpack.c.b16 %v5725, %v5721
    %v7054 = vpack.c.b16 %v5730, %v5726
    %v7055 = vpack.c.b16 %v5731, %v5727
    %v7056 = vpack.c.b16 %v5732, %v5728
    %v7057 = vpack.c.b16 %v5733, %v5729
    %v7058 = vpack.c.b16 %v5738, %v5734
    %v7059 = vpack.c.b16 %v5739, %v5735
    %v7060 = vpack.c.b16 %v5740, %v5736
    %v7061 = vpack.c.b16 %v5741, %v5737
    %v7062 = vpack.c.b16 %v5746, %v5742
    %v7063 = vpack.c.b16 %v5747, %v5743
    %v7064 = vpack.c.b16 %v5748, %v5744
    %v7065 = vpack.c.b16 %v5749, %v5745
    %v7066 = vpack.c.b16 %v5754, %v5750
    %v7067 = vpack.c.b16 %v5755, %v5751
    %v7068 = vpack.c.b16 %v5756, %v5752
    %v7069 = vpack.c.b16 %v5757, %v5753
    %v7070 = vpack.c.b16 %v5762, %v5758
    %v7071 = vpack.c.b16 %v5763, %v5759
    %v7072 = vpack.c.b16 %v5764, %v5760
    %v7073 = vpack.c.b16 %v5765, %v5761
    %v7074 = vpack.c.b16 %v5770, %v5766
    %v7075 = vpack.c.b16 %v5771, %v5767
    %v7076 = vpack.c.b16 %v5772, %v5768
    %v7077 = vpack.c.b16 %v5773, %v5769
    %v7078 = vpack.c.b16 %v5778, %v5774
    %v7079 = vpack.c.b16 %v5779, %v5775
    %v7080 = vpack.c.b16 %v5780, %v5776
    %v7081 = vpack.c.b16 %v5781, %v5777
    %v7082 = vpack.c.b16 %v5786, %v5782
    %v7083 = vpack.c.b16 %v5787, %v5783
    %v7084 = vpack.c.b16 %v5788, %v5784
    %v7085 = vpack.c.b16 %v5789, %v5785
    %v7086 = vpack.c.b16 %v5794, %v5790
    %v7087 = vpack.c.b16 %v5795, %v5791
    %v7088 = vpack.c.b16 %v5796, %v5792
    %v7089 = vpack.c.b16 %v5797, %v5793
    %v7090 = vpack.c.b16 %v5802, %v5798
    %v7091 = vpack.c.b16 %v5803, %v5799
    %v7092 = vpack.c.b16 %v5804, %v5800
    %v7093 = vpack.c.b16 %v5805, %v5801
    %v7094 = vpack.c.b16 %v5810, %v5806
    %v7095 = vpack.c.b16 %v5811, %v5807
    %v7096 = vpack.c.b16 %v5812, %v5808
    %v7097 = vpack.c.b16 %v5813, %v5809
    %v7098 = vpack.c.b16 %v5818, %v5814
    %v7099 = vpack.c.b16 %v5819, %v5815
    %v7100 = vpack.c.b16 %v5820, %v5816
    %v7101 = vpack.c.b16 %v5821, %v5817
    %v7102 = vpack.c.b16 %v5826, %v5822
    %v7103 = vpack.c.b16 %v5827, %v5823
    %v7104 = vpack.c.b16 %v5828, %v5824
    %v7105 = vpack.c.b16 %v5829, %v5825
    %v7106 = vpack.c.b16 %v5834, %v5830
    %v7107 = vpack.c.b16 %v5835, %v5831
    %v7108 = vpack.c.b16 %v5836, %v5832
    %v7109 = vpack.c.b16 %v5837, %v5833
    %v7110 = vpack.c.b16 %v5842, %v5838
    %v7111 = vpack.c.b16 %v5843, %v5839
    %v7112 = vpack.c.b16 %v5844, %v5840
    %v7113 = vpack.c.b16 %v5845, %v5841
    %v7114 = vpack.c.b16 %v5850, %v5846
    %v7115 = vpack.c.b16 %v5851, %v5847
    %v7116 = vpack.c.b16 %v5852, %v5848
    %v7117 = vpack.c.b16 %v5853, %v5849
    %v7118 = vpack.c.b16 %v5858, %v5854
    %v7119 = vpack.c.b16 %v5859, %v5855
    %v7120 = vpack.c.b16 %v5860, %v5856
    %v7121 = vpack.c.b16 %v5861, %v5857
    %v7122 = vpack.c.b16 %v5866, %v5862
    %v7123 = vpack.c.b16 %v5867, %v5863
    %v7124 = vpack.c.b16 %v5868, %v5864
    %v7125 = vpack.c.b16 %v5869, %v5865
    %v7126 = vpack.c.b16 %v5874, %v5870
    %v7127 = vpack.c.b16 %v5875, %v5871
    %v7128 = vpack.c.b16 %v5876, %v5872
    %v7129 = vpack.c.b16 %v5877, %v5873
    %v7130 = vpack.c.b16 %v5882, %v5878
    %v7131 = vpack.c.b16 %v5883, %v5879
    %v7132 = vpack.c.b16 %v5884, %v5880
    %v7133 = vpack.c.b16 %v5885, %v5881
    %v7134 = vpack.c.b16 %v5890, %v5886
    %v7135 = vpack.c.b16 %v5891, %v5887
    %v7136 = vpack.c.b16 %v5892, %v5888
    %v7137 = vpack.c.b16 %v5893, %v5889
    %v7138 = vpack.c.b16 %v5898, %v5894
    %v7139 = vpack.c.b16 %v5899, %v5895
    %v7140 = vpack.c.b16 %v5900, %v5896
    %v7141 = vpack.c.b16 %v5901, %v5897
    %v7142 = vpack.c.b16 %v5906, %v5902
    %v7143 = vpack.c.b16 %v5907, %v5903
    %v7144 = vpack.c.b16 %v5908, %v5904
    %v7145 = vpack.c.b16 %v5909, %v5905
    %v7146 = vpack.c.b16 %v5914, %v5910
    %v7147 = vpack.c.b16 %v5915, %v5911
    %v7148 = vpack.c.b16 %v5916, %v5912
    %v7149 = vpack.c.b16 %v5917, %v5913
    %v7150 = vpack.c.b16 %v5922, %v5918
    %v7151 = vpack.c.b16 %v5923, %v5919
    %v7152 = vpack.c.b16 %v5924, %v5920
    %v7153 = vpack.c.b16 %v5925, %v5921
    %v7154 = vpack.c.b16 %v5930, %v5926
    %v7155 = vpack.c.b16 %v5931, %v5927
    %v7156 = vpack.c.b16 %v5932, %v5928
    %v7157 = vpack.c.b16 %v5933, %v5929
    %v7158 = vpack.c.b16 %v5938, %v5934
    %v7159 = vpack.c.b16 %v5939, %v5935
    %v7160 = vpack.c.b16 %v5940, %v5936
    %v7161 = vpack.c.b16 %v5941, %v5937
    %v7162 = vpack.c.b16 %v5946, %v5942
    %v7163 = vpack.c.b16 %v5947, %v5943
    %v7164 = vpack.c.b16 %v5948, %v5944
    %v7165 = vpack.c.b16 %v5949, %v5945
    %v7166 = vpack.c.b16 %v5954, %v5950
    %v7167 = vpack.c.b16 %v5955, %v5951
    %v7168 = vpack.c.b16 %v5956, %v5952
    %v7169 = vpack.c.b16 %v5957, %v5953
    %v7170 = vpack.c.b16 %v5962, %v5958
    %v7171 = vpack.c.b16 %v5963, %v5959
    %v7172 = vpack.c.b16 %v5964, %v5960
    %v7173 = vpack.c.b16 %v5965, %v5961
    %v7174 = vpack.c.b16 %v5970, %v5966
    %v7175 = vpack.c.b16 %v5971, %v5967
    %v7176 = vpack.c.b16 %v5972, %v5968
    %v7177 = vpack.c.b16 %v5973, %v5969
    %v7178 = vpack.c.b16 %v5978, %v5974
    %v7179 = vpack.c.b16 %v5979, %v5975
    %v7180 = vpack.c.b16 %v5980, %v5976
    %v7181 = vpack.c.b16 %v5981, %v5977
    %v7182 = vpack.c.b16 %v5986, %v5982
    %v7183 = vpack.c.b16 %v5987, %v5983
    %v7184 = vpack.c.b16 %v5988, %v5984
    %v7185 = vpack.c.b16 %v5989, %v5985
    %v7186 = vpack.c.b16 %v5994, %v5990
    %v7187 = vpack.c.b16 %v5995, %v5991
    %v7188 = vpack.c.b16 %v5996, %v5992
    %v7189 = vpack.c.b16 %v5997, %v5993
    %v7190 = vpack.c.b16 %v6002, %v5998
    %v7191 = vpack.c.b16 %v6003, %v5999
    %v7192 = vpack.c.b16 %v6004, %v6000
    %v7193 = vpack.c.b16 %v6005, %v6001
    %v7194 = vpack.c.b16 %v6010, %v6006
    %v7195 = vpack.c.b16 %v6011, %v6007
    %v7196 = vpack.c.b16 %v6012, %v6008
    %v7197 = vpack.c.b16 %v6013, %v6009
    %v7198 = vpack.c.b16 %v6018, %v6014
    %v7199 = vpack.c.b16 %v6019, %v6015
    %v7200 = vpack.c.b16 %v6020, %v6016
    %v7201 = vpack.c.b16 %v6021, %v6017
    %v7202 = vpack.c.b16 %v6026, %v6022
    %v7203 = vpack.c.b16 %v6027, %v6023
    %v7204 = vpack.c.b16 %v6028, %v6024
    %v7205 = vpack.c.b16 %v6029, %v6025
    %v7206 = vpack.c.b16 %v6034, %v6030
    %v7207 = vpack.c.b16 %v6035, %v6031
    %v7208 = vpack.c.b16 %v6036, %v6032
    %v7209 = vpack.c.b16 %v6037, %v6033
    %v7210 = vpack.c.b16 %v6042, %v6038
    %v7211 = vpack.c.b16 %v6043, %v6039
    %v7212 = vpack.c.b16 %v6044, %v6040
    %v7213 = vpack.c.b16 %v6045, %v6041
    %v7214 = vpack.c.b16 %v6050, %v6046
    %v7215 = vpack.c.b16 %v6051, %v6047
    %v7216 = vpack.c.b16 %v6052, %v6048
    %v7217 = vpack.c.b16 %v6053, %v6049
    %v7218 = vpack.c.b16 %v6058, %v6054
    %v7219 = vpack.c.b16 %v6059, %v6055
    %v7220 = vpack.c.b16 %v6060, %v6056
    %v7221 = vpack.c.b16 %v6061, %v6057
    %v7222 = vpack.c.b16 %v6066, %v6062
    %v7223 = vpack.c.b16 %v6067, %v6063
    %v7224 = vpack.c.b16 %v6068, %v6064
    %v7225 = vpack.c.b16 %v6069, %v6065
    %v7226 = vpack.c.b16 %v6074, %v6070
    %v7227 = vpack.c.b16 %v6075, %v6071
    %v7228 = vpack.c.b16 %v6076, %v6072
    %v7229 = vpack.c.b16 %v6077, %v6073
    %v7230 = vpack.c.b16 %v6082, %v6078
    %v7231 = vpack.c.b16 %v6083, %v6079
    %v7232 = vpack.c.b16 %v6084, %v6080
    %v7233 = vpack.c.b16 %v6085, %v6081
    %v7234 = vpack.c.b16 %v6090, %v6086
    %v7235 = vpack.c.b16 %v6091, %v6087
    %v7236 = vpack.c.b16 %v6092, %v6088
    %v7237 = vpack.c.b16 %v6093, %v6089
    %v7238 = vpack.c.b16 %v6098, %v6094
    %v7239 = vpack.c.b16 %v6099, %v6095
    %v7240 = vpack.c.b16 %v6100, %v6096
    %v7241 = vpack.c.b16 %v6101, %v6097
    %v7242 = vpack.c.b16 %v6106, %v6102
    %v7243 = vpack.c.b16 %v6107, %v6103
    %v7244 = vpack.c.b16 %v6108, %v6104
    %v7245 = vpack.c.b16 %v6109, %v6105
    %v7246 = vpack.c.b16 %v6114, %v6110
    %v7247 = vpack.c.b16 %v6115, %v6111
    %v7248 = vpack.c.b16 %v6116, %v6112
    %v7249 = vpack.c.b16 %v6117, %v6113
    %v7250 = vpack.c.b16 %v6122, %v6118
    %v7251 = vpack.c.b16 %v6123, %v6119
    %v7252 = vpack.c.b16 %v6124, %v6120
    %v7253 = vpack.c.b16 %v6125, %v6121
    %v7254 = vpack.c.b16 %v6130, %v6126
    %v7255 = vpack.c.b16 %v6131, %v6127
    %v7256 = vpack.c.b16 %v6132, %v6128
    %v7257 = vpack.c.b16 %v6133, %v6129
    %v7258 = vpack.c.b16 %v6138, %v6134
    %v7259 = vpack.c.b16 %v6139, %v6135
    %v7260 = vpack.c.b16 %v6140, %v6136
    %v7261 = vpack.c.b16 %v6141, %v6137
    %v7262 = vpack.c.b16 %v6146, %v6142
    %v7263 = vpack.c.b16 %v6147, %v6143
    %v7264 = vpack.c.b16 %v6148, %v6144
    %v7265 = vpack.c.b16 %v6149, %v6145
    %v7266 = vpack.c.b16 %v6154, %v6150
    %v7267 = vpack.c.b16 %v6155, %v6151
    %v7268 = vpack.c.b16 %v6156, %v6152
    %v7269 = vpack.c.b16 %v6157, %v6153
    %v7270 = vpack.c.b16 %v6162, %v6158
    %v7271 = vpack.c.b16 %v6163, %v6159
    %v7272 = vpack.c.b16 %v6164, %v6160
    %v7273 = vpack.c.b16 %v6165, %v6161
    %v7274 = vpack.c.b16 %v6170, %v6166
    %v7275 = vpack.c.b16 %v6171, %v6167
    %v7276 = vpack.c.b16 %v6172, %v6168
    %v7277 = vpack.c.b16 %v6173, %v6169
    %v7278 = vpack.c.b16 %v6178, %v6174
    %v7279 = vpack.c.b16 %v6179, %v6175
    %v7280 = vpack.c.b16 %v6180, %v6176
    %v7281 = vpack.c.b16 %v6181, %v6177
    %v7282 = vpack.c.b16 %v6186, %v6182
    %v7283 = vpack.c.b16 %v6187, %v6183
    %v7284 = vpack.c.b16 %v6188, %v6184
    %v7285 = vpack.c.b16 %v6189, %v6185
    %v7286 = vpack.c.b16 %v6194, %v6190
    %v7287 = vpack.c.b16 %v6195, %v6191
    %v7288 = vpack.c.b16 %v6196, %v6192
    %v7289 = vpack.c.b16 %v6197, %v6193
    %v7290 = vpack.c.b16 %v6202, %v6198
    %v7291 = vpack.c.b16 %v6203, %v6199
    %v7292 = vpack.c.b16 %v6204, %v6200
    %v7293 = vpack.c.b16 %v6205, %v6201
    %v7294 = vpack.c.b16 %v6210, %v6206
    %v7295 = vpack.c.b16 %v6211, %v6207
    %v7296 = vpack.c.b16 %v6212, %v6208
    %v7297 = vpack.c.b16 %v6213, %v6209
    %v7298 = vpack.c.b16 %v6218, %v6214
    %v7299 = vpack.c.b16 %v6219, %v6215
    %v7300 = vpack.c.b16 %v6220, %v6216
    %v7301 = vpack.c.b16 %v6221, %v6217
    %v7302 = vpack.c.b16 %v6226, %v6222
    %v7303 = vpack.c.b16 %v6227, %v6223
    %v7304 = vpack.c.b16 %v6228, %v6224
    %v7305 = vpack.c.b16 %v6229, %v6225
    %v7306 = vpack.c.b16 %v6234, %v6230
    %v7307 = vpack.c.b16 %v6235, %v6231
    %v7308 = vpack.c.b16 %v6236, %v6232
    %v7309 = vpack.c.b16 %v6237, %v6233
    %v7310 = vpack.c.b16 %v6242, %v6238
    %v7311 = vpack.c.b16 %v6243, %v6239
    %v7312 = vpack.c.b16 %v6244, %v6240
    %v7313 = vpack.c.b16 %v6245, %v6241
    %v7314 = vpack.c.b16 %v6250, %v6246
    %v7315 = vpack.c.b16 %v6251, %v6247
    %v7316 = vpack.c.b16 %v6252, %v6248
    %v7317 = vpack.c.b16 %v6253, %v6249
    %v7318 = vpack.c.b16 %v6258, %v6254
    %v7319 = vpack.c.b16 %v6259, %v6255
    %v7320 = vpack.c.b16 %v6260, %v6256
    %v7321 = vpack.c.b16 %v6261, %v6257
    %v7322 = vpack.c.b16 %v6266, %v6262
    %v7323 = vpack.c.b16 %v6267, %v6263
    %v7324 = vpack.c.b16 %v6268, %v6264
    %v7325 = vpack.c.b16 %v6269, %v6265
    %v7326 = vpack.c.b16 %v6274, %v6270
    %v7327 = vpack.c.b16 %v6275, %v6271
    %v7328 = vpack.c.b16 %v6276, %v6272
    %v7329 = vpack.c.b16 %v6277, %v6273
    %v7330 = vpack.c.b16 %v6282, %v6278
    %v7331 = vpack.c.b16 %v6283, %v6279
    %v7332 = vpack.c.b16 %v6284, %v6280
    %v7333 = vpack.c.b16 %v6285, %v6281
    %v7334 = vpack.c.b16 %v6290, %v6286
    %v7335 = vpack.c.b16 %v6291, %v6287
    %v7336 = vpack.c.b16 %v6292, %v6288
    %v7337 = vpack.c.b16 %v6293, %v6289
    %v7338 = vpack.c.b16 %v6298, %v6294
    %v7339 = vpack.c.b16 %v6299, %v6295
    %v7340 = vpack.c.b16 %v6300, %v6296
    %v7341 = vpack.c.b16 %v6301, %v6297
    %v7342 = vpack.c.b16 %v6306, %v6302
    %v7343 = vpack.c.b16 %v6307, %v6303
    %v7344 = vpack.c.b16 %v6308, %v6304
    %v7345 = vpack.c.b16 %v6309, %v6305
    %v7346 = vpack.c.b16 %v6314, %v6310
    %v7347 = vpack.c.b16 %v6315, %v6311
    %v7348 = vpack.c.b16 %v6316, %v6312
    %v7349 = vpack.c.b16 %v6317, %v6313
    %v7350 = vpack.c.b16 %v6322, %v6318
    %v7351 = vpack.c.b16 %v6323, %v6319
    %v7352 = vpack.c.b16 %v6324, %v6320
    %v7353 = vpack.c.b16 %v6325, %v6321
    %v7354 = vpack.c.b16 %v6330, %v6326
    %v7355 = vpack.c.b16 %v6331, %v6327
    %v7356 = vpack.c.b16 %v6332, %v6328
    %v7357 = vpack.c.b16 %v6333, %v6329
    %8382 = vmatprep.subr.bf16.mxu0 %v6335
    %8383 = vmatpush1.bf16.msra.mxu0 %v6334
    %8384 = vmatprep.subr.bf16.mxu0 %v6339
    %8385 = vmatpush1.bf16.msra.mxu0 %v6338
    %8386 = vmatprep.subr.bf16.mxu0 %v6343
    %8387 = vmatpush1.bf16.msra.mxu0 %v6342
    %8388 = vmatprep.subr.bf16.mxu0 %v6347
    %8389 = vmatpush1.bf16.msra.mxu0 %v6346
    %8390 = vmatprep.subr.bf16.mxu0 %v6351
    %8391 = vmatpush1.bf16.msra.mxu0 %v6350
    %8392 = vmatprep.subr.bf16.mxu0 %v6355
    %8393 = vmatpush1.bf16.msra.mxu0 %v6354
    %8394 = vmatprep.subr.bf16.mxu0 %v6359
    %8395 = vmatpush1.bf16.msra.mxu0 %v6358
    %8396 = vmatprep.subr.bf16.mxu0 %v6363
    %8397 = vmatpush1.bf16.msra.mxu0 %v6362
    %8398 = vmatprep.subr.bf16.mxu0 %v6367
    %8399 = vmatpush1.bf16.msra.mxu0 %v6366
    %8400 = vmatprep.subr.bf16.mxu0 %v6371
    %8401 = vmatpush1.bf16.msra.mxu0 %v6370
    %8402 = vmatprep.subr.bf16.mxu0 %v6375
    %8403 = vmatpush1.bf16.msra.mxu0 %v6374
    %8404 = vmatprep.subr.bf16.mxu0 %v6379
    %8405 = vmatpush1.bf16.msra.mxu0 %v6378
    %8406 = vmatprep.subr.bf16.mxu0 %v6383
    %8407 = vmatpush1.bf16.msra.mxu0 %v6382
    %8408 = vmatprep.subr.bf16.mxu0 %v6387
    %8409 = vmatpush1.bf16.msra.mxu0 %v6386
    %8410 = vmatprep.subr.bf16.mxu0 %v6391
    %8411 = vmatpush1.bf16.msra.mxu0 %v6390
    %8412 = vmatprep.subr.bf16.mxu0 %v6395
    %8413 = vmatpush1.bf16.msra.mxu0 %v6394
    %8414 = vmatprep.mubr.bf16.mxu0 %v2185
    %8415 = vmatmul.mubr.bf16.gmra.mrb[0].mxu0 %v2184
    %v8416 = vpop.f32.mrb[0].mxu0
    %v8417 = vadd.f32 %v3245, %v8416
    %v8418 = vpop.f32.mrb[0].mxu0
    %v8419 = vadd.f32 %v3249, %v8418
    %v8420 = vpop.f32.mrb[0].mxu0
    %v8421 = vpop.f32.mrb[0].mxu0
    %8422 = vdwg.mxu0
    %8423 = vmatprep.subr.bf16.mxu0 %v6399
    %8424 = vmatpush1.bf16.msra.mxu0 %v6398
    %8425 = vmatprep.subr.bf16.mxu0 %v6403
    %8426 = vmatpush1.bf16.msra.mxu0 %v6402
    %8427 = vmatprep.subr.bf16.mxu0 %v6407
    %8428 = vmatpush1.bf16.msra.mxu0 %v6406
    %8429 = vmatprep.subr.bf16.mxu0 %v6411
    %8430 = vmatpush1.bf16.msra.mxu0 %v6410
    %8431 = vmatprep.subr.bf16.mxu0 %v6415
    %8432 = vmatpush1.bf16.msra.mxu0 %v6414
    %8433 = vmatprep.subr.bf16.mxu0 %v6419
    %8434 = vmatpush1.bf16.msra.mxu0 %v6418
    %8435 = vmatprep.subr.bf16.mxu0 %v6423
    %8436 = vmatpush1.bf16.msra.mxu0 %v6422
    %8437 = vmatprep.subr.bf16.mxu0 %v6427
    %8438 = vmatpush1.bf16.msra.mxu0 %v6426
    %8439 = vmatprep.subr.bf16.mxu0 %v6431
    %8440 = vmatpush1.bf16.msra.mxu0 %v6430
    %8441 = vmatprep.subr.bf16.mxu0 %v6435
    %8442 = vmatpush1.bf16.msra.mxu0 %v6434
    %8443 = vmatprep.subr.bf16.mxu0 %v6439
    %8444 = vmatpush1.bf16.msra.mxu0 %v6438
    %8445 = vmatprep.subr.bf16.mxu0 %v6443
    %8446 = vmatpush1.bf16.msra.mxu0 %v6442
    %8447 = vmatprep.subr.bf16.mxu0 %v6447
    %8448 = vmatpush1.bf16.msra.mxu0 %v6446
    %8449 = vmatprep.subr.bf16.mxu0 %v6451
    %8450 = vmatpush1.bf16.msra.mxu0 %v6450
    %8451 = vmatprep.subr.bf16.mxu0 %v6455
    %8452 = vmatpush1.bf16.msra.mxu0 %v6454
    %8453 = vmatprep.subr.bf16.mxu0 %v6459
    %8454 = vmatpush1.bf16.msra.mxu0 %v6458
    %8455 = vmatprep.mubr.bf16.mxu0 %v2187
    %8456 = vmatmul.mubr.bf16.gmra.mrb[0].mxu0 %v2186
    %v8457 = vpop.f32.mrb[0].mxu0
    %v8458 = vadd.f32 %v8417, %v8457
    %v8459 = vpop.f32.mrb[0].mxu0
    %v8460 = vadd.f32 %v8419, %v8459
    %v8461 = vpop.f32.mrb[0].mxu0
    %v8462 = vpop.f32.mrb[0].mxu0
    %8463 = vdwg.mxu0
    %8464 = vmatprep.subr.bf16.mxu0 %v6463
    %8465 = vmatpush1.bf16.msra.mxu0 %v6462
    %8466 = vmatprep.subr.bf16.mxu0 %v6467
    %8467 = vmatpush1.bf16.msra.mxu0 %v6466
    %8468 = vmatprep.subr.bf16.mxu0 %v6471
    %8469 = vmatpush1.bf16.msra.mxu0 %v6470
    %8470 = vmatprep.subr.bf16.mxu0 %v6475
    %8471 = vmatpush1.bf16.msra.mxu0 %v6474
    %8472 = vmatprep.subr.bf16.mxu0 %v6479
    %8473 = vmatpush1.bf16.msra.mxu0 %v6478
    %8474 = vmatprep.subr.bf16.mxu0 %v6483
    %8475 = vmatpush1.bf16.msra.mxu0 %v6482
    %8476 = vmatprep.subr.bf16.mxu0 %v6487
    %8477 = vmatpush1.bf16.msra.mxu0 %v6486
    %8478 = vmatprep.subr.bf16.mxu0 %v6491
    %8479 = vmatpush1.bf16.msra.mxu0 %v6490
    %8480 = vmatprep.subr.bf16.mxu0 %v6495
    %8481 = vmatpush1.bf16.msra.mxu0 %v6494
    %8482 = vmatprep.subr.bf16.mxu0 %v6499
    %8483 = vmatpush1.bf16.msra.mxu0 %v6498
    %8484 = vmatprep.subr.bf16.mxu0 %v6503
    %8485 = vmatpush1.bf16.msra.mxu0 %v6502
    %8486 = vmatprep.subr.bf16.mxu0 %v6507
    %8487 = vmatpush1.bf16.msra.mxu0 %v6506
    %8488 = vmatprep.subr.bf16.mxu0 %v6511
    %8489 = vmatpush1.bf16.msra.mxu0 %v6510
    %8490 = vmatprep.subr.bf16.mxu0 %v6515
    %8491 = vmatpush1.bf16.msra.mxu0 %v6514
    %8492 = vmatprep.subr.bf16.mxu0 %v6519
    %8493 = vmatpush1.bf16.msra.mxu0 %v6518
    %8494 = vmatprep.subr.bf16.mxu0 %v6523
    %8495 = vmatpush1.bf16.msra.mxu0 %v6522
    %8496 = vmatprep.mubr.bf16.mxu0 %v2189
    %8497 = vmatmul.mubr.bf16.gmra.mrb[0].mxu0 %v2188
    %v8498 = vpop.f32.mrb[0].mxu0
    %v8499 = vadd.f32 %v8458, %v8498
    %v8500 = vpop.f32.mrb[0].mxu0
    %v8501 = vadd.f32 %v8460, %v8500
    %v8502 = vpop.f32.mrb[0].mxu0
    %v8503 = vpop.f32.mrb[0].mxu0
    %8504 = vdwg.mxu0
    %8505 = vmatprep.subr.bf16.mxu0 %v6527
    %8506 = vmatpush1.bf16.msra.mxu0 %v6526
    %8507 = vmatprep.subr.bf16.mxu0 %v6531
    %8508 = vmatpush1.bf16.msra.mxu0 %v6530
    %8509 = vmatprep.subr.bf16.mxu0 %v6535
    %8510 = vmatpush1.bf16.msra.mxu0 %v6534
    %8511 = vmatprep.subr.bf16.mxu0 %v6539
    %8512 = vmatpush1.bf16.msra.mxu0 %v6538
    %8513 = vmatprep.subr.bf16.mxu0 %v6543
    %8514 = vmatpush1.bf16.msra.mxu0 %v6542
    %8515 = vmatprep.subr.bf16.mxu0 %v6547
    %8516 = vmatpush1.bf16.msra.mxu0 %v6546
    %8517 = vmatprep.subr.bf16.mxu0 %v6551
    %8518 = vmatpush1.bf16.msra.mxu0 %v6550
    %8519 = vmatprep.subr.bf16.mxu0 %v6555
    %8520 = vmatpush1.bf16.msra.mxu0 %v6554
    %8521 = vmatprep.subr.bf16.mxu0 %v6559
    %8522 = vmatpush1.bf16.msra.mxu0 %v6558
    %8523 = vmatprep.subr.bf16.mxu0 %v6563
    %8524 = vmatpush1.bf16.msra.mxu0 %v6562
    %8525 = vmatprep.subr.bf16.mxu0 %v6567
    %8526 = vmatpush1.bf16.msra.mxu0 %v6566
    %8527 = vmatprep.subr.bf16.mxu0 %v6571
    %8528 = vmatpush1.bf16.msra.mxu0 %v6570
    %8529 = vmatprep.subr.bf16.mxu0 %v6575
    %8530 = vmatpush1.bf16.msra.mxu0 %v6574
    %8531 = vmatprep.subr.bf16.mxu0 %v6579
    %8532 = vmatpush1.bf16.msra.mxu0 %v6578
    %8533 = vmatprep.subr.bf16.mxu0 %v6583
    %8534 = vmatpush1.bf16.msra.mxu0 %v6582
    %8535 = vmatprep.subr.bf16.mxu0 %v6587
    %8536 = vmatpush1.bf16.msra.mxu0 %v6586
    %8537 = vmatprep.mubr.bf16.mxu0 %v2191
    %8538 = vmatmul.mubr.bf16.gmra.mrb[0].mxu0 %v2190
    %v8539 = vpop.f32.mrb[0].mxu0
    %v8540 = vadd.f32 %v8499, %v8539
    %v8541 = vpop.f32.mrb[0].mxu0
    %v8542 = vadd.f32 %v8501, %v8541
    %v8543 = vpop.f32.mrb[0].mxu0
    %v8544 = vpop.f32.mrb[0].mxu0
    %8545 = vdwg.mxu0
    %8546 = vmatprep.subr.bf16.mxu0 %v6591
    %8547 = vmatpush1.bf16.msra.mxu0 %v6590
    %8548 = vmatprep.subr.bf16.mxu0 %v6595
    %8549 = vmatpush1.bf16.msra.mxu0 %v6594
    %8550 = vmatprep.subr.bf16.mxu0 %v6599
    %8551 = vmatpush1.bf16.msra.mxu0 %v6598
    %8552 = vmatprep.subr.bf16.mxu0 %v6603
    %8553 = vmatpush1.bf16.msra.mxu0 %v6602
    %8554 = vmatprep.subr.bf16.mxu0 %v6607
    %8555 = vmatpush1.bf16.msra.mxu0 %v6606
    %8556 = vmatprep.subr.bf16.mxu0 %v6611
    %8557 = vmatpush1.bf16.msra.mxu0 %v6610
    %8558 = vmatprep.subr.bf16.mxu0 %v6615
    %8559 = vmatpush1.bf16.msra.mxu0 %v6614
    %8560 = vmatprep.subr.bf16.mxu0 %v6619
    %8561 = vmatpush1.bf16.msra.mxu0 %v6618
    %8562 = vmatprep.subr.bf16.mxu0 %v6623
    %8563 = vmatpush1.bf16.msra.mxu0 %v6622
    %8564 = vmatprep.subr.bf16.mxu0 %v6627
    %8565 = vmatpush1.bf16.msra.mxu0 %v6626
    %8566 = vmatprep.subr.bf16.mxu0 %v6631
    %8567 = vmatpush1.bf16.msra.mxu0 %v6630
    %8568 = vmatprep.subr.bf16.mxu0 %v6635
    %8569 = vmatpush1.bf16.msra.mxu0 %v6634
    %8570 = vmatprep.subr.bf16.mxu0 %v6639
    %8571 = vmatpush1.bf16.msra.mxu0 %v6638
    %8572 = vmatprep.subr.bf16.mxu0 %v6643
    %8573 = vmatpush1.bf16.msra.mxu0 %v6642
    %8574 = vmatprep.subr.bf16.mxu0 %v6647
    %8575 = vmatpush1.bf16.msra.mxu0 %v6646
    %8576 = vmatprep.subr.bf16.mxu0 %v6651
    %8577 = vmatpush1.bf16.msra.mxu0 %v6650
    %8578 = vmatprep.mubr.bf16.mxu0 %v2193
    %8579 = vmatmul.mubr.bf16.gmra.mrb[0].mxu0 %v2192
    %v8580 = vpop.f32.mrb[0].mxu0
    %v8581 = vadd.f32 %v8540, %v8580
    %v8582 = vpop.f32.mrb[0].mxu0
    %v8583 = vadd.f32 %v8542, %v8582
    %v8584 = vpop.f32.mrb[0].mxu0
    %v8585 = vpop.f32.mrb[0].mxu0
    %8586 = vdwg.mxu0
    %8587 = vmatprep.subr.bf16.mxu0 %v6655
    %8588 = vmatpush1.bf16.msra.mxu0 %v6654
    %8589 = vmatprep.subr.bf16.mxu0 %v6659
    %8590 = vmatpush1.bf16.msra.mxu0 %v6658
    %8591 = vmatprep.subr.bf16.mxu0 %v6663
    %8592 = vmatpush1.bf16.msra.mxu0 %v6662
    %8593 = vmatprep.subr.bf16.mxu0 %v6667
    %8594 = vmatpush1.bf16.msra.mxu0 %v6666
    %8595 = vmatprep.subr.bf16.mxu0 %v6671
    %8596 = vmatpush1.bf16.msra.mxu0 %v6670
    %8597 = vmatprep.subr.bf16.mxu0 %v6675
    %8598 = vmatpush1.bf16.msra.mxu0 %v6674
    %8599 = vmatprep.subr.bf16.mxu0 %v6679
    %8600 = vmatpush1.bf16.msra.mxu0 %v6678
    %8601 = vmatprep.subr.bf16.mxu0 %v6683
    %8602 = vmatpush1.bf16.msra.mxu0 %v6682
    %8603 = vmatprep.subr.bf16.mxu0 %v6687
    %8604 = vmatpush1.bf16.msra.mxu0 %v6686
    %8605 = vmatprep.subr.bf16.mxu0 %v6691
    %8606 = vmatpush1.bf16.msra.mxu0 %v6690
    %8607 = vmatprep.subr.bf16.mxu0 %v6695
    %8608 = vmatpush1.bf16.msra.mxu0 %v6694
    %8609 = vmatprep.subr.bf16.mxu0 %v6699
    %8610 = vmatpush1.bf16.msra.mxu0 %v6698
    %8611 = vmatprep.subr.bf16.mxu0 %v6703
    %8612 = vmatpush1.bf16.msra.mxu0 %v6702
    %8613 = vmatprep.subr.bf16.mxu0 %v6707
    %8614 = vmatpush1.bf16.msra.mxu0 %v6706
    %8615 = vmatprep.subr.bf16.mxu0 %v6711
    %8616 = vmatpush1.bf16.msra.mxu0 %v6710
    %8617 = vmatprep.subr.bf16.mxu0 %v6715
    %8618 = vmatpush1.bf16.msra.mxu0 %v6714
    %8619 = vmatprep.mubr.bf16.mxu0 %v2195
    %8620 = vmatmul.mubr.bf16.gmra.mrb[0].mxu0 %v2194
    %v8621 = vpop.f32.mrb[0].mxu0
    %v8622 = vadd.f32 %v8581, %v8621
    %v8623 = vpop.f32.mrb[0].mxu0
    %v8624 = vadd.f32 %v8583, %v8623
    %v8625 = vpop.f32.mrb[0].mxu0
    %v8626 = vpop.f32.mrb[0].mxu0
    %8627 = vdwg.mxu0
    %8628 = vmatprep.subr.bf16.mxu0 %v6719
    %8629 = vmatpush1.bf16.msra.mxu0 %v6718
    %8630 = vmatprep.subr.bf16.mxu0 %v6723
    %8631 = vmatpush1.bf16.msra.mxu0 %v6722
    %8632 = vmatprep.subr.bf16.mxu0 %v6727
    %8633 = vmatpush1.bf16.msra.mxu0 %v6726
    %8634 = vmatprep.subr.bf16.mxu0 %v6731
    %8635 = vmatpush1.bf16.msra.mxu0 %v6730
    %8636 = vmatprep.subr.bf16.mxu0 %v6735
    %8637 = vmatpush1.bf16.msra.mxu0 %v6734
    %8638 = vmatprep.subr.bf16.mxu0 %v6739
    %8639 = vmatpush1.bf16.msra.mxu0 %v6738
    %8640 = vmatprep.subr.bf16.mxu0 %v6743
    %8641 = vmatpush1.bf16.msra.mxu0 %v6742
    %8642 = vmatprep.subr.bf16.mxu0 %v6747
    %8643 = vmatpush1.bf16.msra.mxu0 %v6746
    %8644 = vmatprep.subr.bf16.mxu0 %v6751
    %8645 = vmatpush1.bf16.msra.mxu0 %v6750
    %8646 = vmatprep.subr.bf16.mxu0 %v6755
    %8647 = vmatpush1.bf16.msra.mxu0 %v6754
    %8648 = vmatprep.subr.bf16.mxu0 %v6759
    %8649 = vmatpush1.bf16.msra.mxu0 %v6758
    %8650 = vmatprep.subr.bf16.mxu0 %v6763
    %8651 = vmatpush1.bf16.msra.mxu0 %v6762
    %8652 = vmatprep.subr.bf16.mxu0 %v6767
    %8653 = vmatpush1.bf16.msra.mxu0 %v6766
    %8654 = vmatprep.subr.bf16.mxu0 %v6771
    %8655 = vmatpush1.bf16.msra.mxu0 %v6770
    %8656 = vmatprep.subr.bf16.mxu0 %v6775
    %8657 = vmatpush1.bf16.msra.mxu0 %v6774
    %8658 = vmatprep.subr.bf16.mxu0 %v6779
    %8659 = vmatpush1.bf16.msra.mxu0 %v6778
    %8660 = vmatprep.mubr.bf16.mxu0 %v2197
    %8661 = vmatmul.mubr.bf16.gmra.mrb[0].mxu0 %v2196
    %v8662 = vpop.f32.mrb[0].mxu0
    %v8663 = vadd.f32 %v8622, %v8662
    %v8664 = vpop.f32.mrb[0].mxu0
    %v8665 = vadd.f32 %v8624, %v8664
    %v8666 = vpop.f32.mrb[0].mxu0
    %v8667 = vpop.f32.mrb[0].mxu0
    %8668 = vdwg.mxu0
    %8669 = vmatprep.subr.bf16.mxu0 %v6783
    %8670 = vmatpush1.bf16.msra.mxu0 %v6782
    %8671 = vmatprep.subr.bf16.mxu0 %v6787
    %8672 = vmatpush1.bf16.msra.mxu0 %v6786
    %8673 = vmatprep.subr.bf16.mxu0 %v6791
    %8674 = vmatpush1.bf16.msra.mxu0 %v6790
    %8675 = vmatprep.subr.bf16.mxu0 %v6795
    %8676 = vmatpush1.bf16.msra.mxu0 %v6794
    %8677 = vmatprep.subr.bf16.mxu0 %v6799
    %8678 = vmatpush1.bf16.msra.mxu0 %v6798
    %8679 = vmatprep.subr.bf16.mxu0 %v6803
    %8680 = vmatpush1.bf16.msra.mxu0 %v6802
    %8681 = vmatprep.subr.bf16.mxu0 %v6807
    %8682 = vmatpush1.bf16.msra.mxu0 %v6806
    %8683 = vmatprep.subr.bf16.mxu0 %v6811
    %8684 = vmatpush1.bf16.msra.mxu0 %v6810
    %8685 = vmatprep.subr.bf16.mxu0 %v6815
    %8686 = vmatpush1.bf16.msra.mxu0 %v6814
    %8687 = vmatprep.subr.bf16.mxu0 %v6819
    %8688 = vmatpush1.bf16.msra.mxu0 %v6818
    %8689 = vmatprep.subr.bf16.mxu0 %v6823
    %8690 = vmatpush1.bf16.msra.mxu0 %v6822
    %8691 = vmatprep.subr.bf16.mxu0 %v6827
    %8692 = vmatpush1.bf16.msra.mxu0 %v6826
    %8693 = vmatprep.subr.bf16.mxu0 %v6831
    %8694 = vmatpush1.bf16.msra.mxu0 %v6830
    %8695 = vmatprep.subr.bf16.mxu0 %v6835
    %8696 = vmatpush1.bf16.msra.mxu0 %v6834
    %8697 = vmatprep.subr.bf16.mxu0 %v6839
    %8698 = vmatpush1.bf16.msra.mxu0 %v6838
    %8699 = vmatprep.subr.bf16.mxu0 %v6843
    %8700 = vmatpush1.bf16.msra.mxu0 %v6842
    %8701 = vmatprep.mubr.bf16.mxu0 %v2199
    %8702 = vmatmul.mubr.bf16.gmra.mrb[0].mxu0 %v2198
    %v8703 = vpop.f32.mrb[0].mxu0
    %v8704 = vadd.f32 %v8663, %v8703
    %v8705 = vpop.f32.mrb[0].mxu0
    %v8706 = vadd.f32 %v8665, %v8705
    %v8707 = vpop.f32.mrb[0].mxu0
    %v8708 = vpop.f32.mrb[0].mxu0
    %8709 = vdwg.mxu0
    %8710 = vmatprep.subr.bf16.mxu0 %v6847
    %8711 = vmatpush1.bf16.msra.mxu0 %v6846
    %8712 = vmatprep.subr.bf16.mxu0 %v6851
    %8713 = vmatpush1.bf16.msra.mxu0 %v6850
    %8714 = vmatprep.subr.bf16.mxu0 %v6855
    %8715 = vmatpush1.bf16.msra.mxu0 %v6854
    %8716 = vmatprep.subr.bf16.mxu0 %v6859
    %8717 = vmatpush1.bf16.msra.mxu0 %v6858
    %8718 = vmatprep.subr.bf16.mxu0 %v6863
    %8719 = vmatpush1.bf16.msra.mxu0 %v6862
    %8720 = vmatprep.subr.bf16.mxu0 %v6867
    %8721 = vmatpush1.bf16.msra.mxu0 %v6866
    %8722 = vmatprep.subr.bf16.mxu0 %v6871
    %8723 = vmatpush1.bf16.msra.mxu0 %v6870
    %8724 = vmatprep.subr.bf16.mxu0 %v6875
    %8725 = vmatpush1.bf16.msra.mxu0 %v6874
    %8726 = vmatprep.subr.bf16.mxu0 %v6879
    %8727 = vmatpush1.bf16.msra.mxu0 %v6878
    %8728 = vmatprep.subr.bf16.mxu0 %v6883
    %8729 = vmatpush1.bf16.msra.mxu0 %v6882
    %8730 = vmatprep.subr.bf16.mxu0 %v6887
    %8731 = vmatpush1.bf16.msra.mxu0 %v6886
    %8732 = vmatprep.subr.bf16.mxu0 %v6891
    %8733 = vmatpush1.bf16.msra.mxu0 %v6890
    %8734 = vmatprep.subr.bf16.mxu0 %v6895
    %8735 = vmatpush1.bf16.msra.mxu0 %v6894
    %8736 = vmatprep.subr.bf16.mxu0 %v6899
    %8737 = vmatpush1.bf16.msra.mxu0 %v6898
    %8738 = vmatprep.subr.bf16.mxu0 %v6903
    %8739 = vmatpush1.bf16.msra.mxu0 %v6902
    %8740 = vmatprep.subr.bf16.mxu0 %v6907
    %8741 = vmatpush1.bf16.msra.mxu0 %v6906
    %8742 = vmatprep.mubr.bf16.mxu0 %v2201
    %8743 = vmatmul.mubr.bf16.gmra.mrb[0].mxu0 %v2200
    %v8744 = vpop.f32.mrb[0].mxu0
    %v8745 = vadd.f32 %v8704, %v8744
    %v8746 = vpop.f32.mrb[0].mxu0
    %v8747 = vadd.f32 %v8706, %v8746
    %v8748 = vpop.f32.mrb[0].mxu0
    %v8749 = vpop.f32.mrb[0].mxu0
    %8750 = vdwg.mxu0
    %8751 = vmatprep.subr.bf16.mxu0 %v6911
    %8752 = vmatpush1.bf16.msra.mxu0 %v6910
    %8753 = vmatprep.subr.bf16.mxu0 %v6915
    %8754 = vmatpush1.bf16.msra.mxu0 %v6914
    %8755 = vmatprep.subr.bf16.mxu0 %v6919
    %8756 = vmatpush1.bf16.msra.mxu0 %v6918
    %8757 = vmatprep.subr.bf16.mxu0 %v6923
    %8758 = vmatpush1.bf16.msra.mxu0 %v6922
    %8759 = vmatprep.subr.bf16.mxu0 %v6927
    %8760 = vmatpush1.bf16.msra.mxu0 %v6926
    %8761 = vmatprep.subr.bf16.mxu0 %v6931
    %8762 = vmatpush1.bf16.msra.mxu0 %v6930
    %8763 = vmatprep.subr.bf16.mxu0 %v6935
    %8764 = vmatpush1.bf16.msra.mxu0 %v6934
    %8765 = vmatprep.subr.bf16.mxu0 %v6939
    %8766 = vmatpush1.bf16.msra.mxu0 %v6938
    %8767 = vmatprep.subr.bf16.mxu0 %v6943
    %8768 = vmatpush1.bf16.msra.mxu0 %v6942
    %8769 = vmatprep.subr.bf16.mxu0 %v6947
    %8770 = vmatpush1.bf16.msra.mxu0 %v6946
    %8771 = vmatprep.subr.bf16.mxu0 %v6951
    %8772 = vmatpush1.bf16.msra.mxu0 %v6950
    %8773 = vmatprep.subr.bf16.mxu0 %v6955
    %8774 = vmatpush1.bf16.msra.mxu0 %v6954
    %8775 = vmatprep.subr.bf16.mxu0 %v6959
    %8776 = vmatpush1.bf16.msra.mxu0 %v6958
    %8777 = vmatprep.subr.bf16.mxu0 %v6963
    %8778 = vmatpush1.bf16.msra.mxu0 %v6962
    %8779 = vmatprep.subr.bf16.mxu0 %v6967
    %8780 = vmatpush1.bf16.msra.mxu0 %v6966
    %8781 = vmatprep.subr.bf16.mxu0 %v6971
    %8782 = vmatpush1.bf16.msra.mxu0 %v6970
    %8783 = vmatprep.mubr.bf16.mxu0 %v2203
    %8784 = vmatmul.mubr.bf16.gmra.mrb[0].mxu0 %v2202
    %v8785 = vpop.f32.mrb[0].mxu0
    %v8786 = vadd.f32 %v8745, %v8785
    %v8787 = vpop.f32.mrb[0].mxu0
    %v8788 = vadd.f32 %v8747, %v8787
    %v8789 = vpop.f32.mrb[0].mxu0
    %v8790 = vpop.f32.mrb[0].mxu0
    %8791 = vdwg.mxu0
    %8792 = vmatprep.subr.bf16.mxu0 %v6975
    %8793 = vmatpush1.bf16.msra.mxu0 %v6974
    %8794 = vmatprep.subr.bf16.mxu0 %v6979
    %8795 = vmatpush1.bf16.msra.mxu0 %v6978
    %8796 = vmatprep.subr.bf16.mxu0 %v6983
    %8797 = vmatpush1.bf16.msra.mxu0 %v6982
    %8798 = vmatprep.subr.bf16.mxu0 %v6987
    %8799 = vmatpush1.bf16.msra.mxu0 %v6986
    %8800 = vmatprep.subr.bf16.mxu0 %v6991
    %8801 = vmatpush1.bf16.msra.mxu0 %v6990
    %8802 = vmatprep.subr.bf16.mxu0 %v6995
    %8803 = vmatpush1.bf16.msra.mxu0 %v6994
    %8804 = vmatprep.subr.bf16.mxu0 %v6999
    %8805 = vmatpush1.bf16.msra.mxu0 %v6998
    %8806 = vmatprep.subr.bf16.mxu0 %v7003
    %8807 = vmatpush1.bf16.msra.mxu0 %v7002
    %8808 = vmatprep.subr.bf16.mxu0 %v7007
    %8809 = vmatpush1.bf16.msra.mxu0 %v7006
    %8810 = vmatprep.subr.bf16.mxu0 %v7011
    %8811 = vmatpush1.bf16.msra.mxu0 %v7010
    %8812 = vmatprep.subr.bf16.mxu0 %v7015
    %8813 = vmatpush1.bf16.msra.mxu0 %v7014
    %8814 = vmatprep.subr.bf16.mxu0 %v7019
    %8815 = vmatpush1.bf16.msra.mxu0 %v7018
    %8816 = vmatprep.subr.bf16.mxu0 %v7023
    %8817 = vmatpush1.bf16.msra.mxu0 %v7022
    %8818 = vmatprep.subr.bf16.mxu0 %v7027
    %8819 = vmatpush1.bf16.msra.mxu0 %v7026
    %8820 = vmatprep.subr.bf16.mxu0 %v7031
    %8821 = vmatpush1.bf16.msra.mxu0 %v7030
    %8822 = vmatprep.subr.bf16.mxu0 %v7035
    %8823 = vmatpush1.bf16.msra.mxu0 %v7034
    %8824 = vmatprep.mubr.bf16.mxu0 %v2205
    %8825 = vmatmul.mubr.bf16.gmra.mrb[0].mxu0 %v2204
    %v8826 = vpop.f32.mrb[0].mxu0
    %v8827 = vadd.f32 %v8786, %v8826
    %v8828 = vpop.f32.mrb[0].mxu0
    %v8829 = vadd.f32 %v8788, %v8828
    %v8830 = vpop.f32.mrb[0].mxu0
    %v8831 = vpop.f32.mrb[0].mxu0
    %8832 = vdwg.mxu0
    %8833 = vmatprep.subr.bf16.mxu0 %v7039
    %8834 = vmatpush1.bf16.msra.mxu0 %v7038
    %8835 = vmatprep.subr.bf16.mxu0 %v7043
    %8836 = vmatpush1.bf16.msra.mxu0 %v7042
    %8837 = vmatprep.subr.bf16.mxu0 %v7047
    %8838 = vmatpush1.bf16.msra.mxu0 %v7046
    %8839 = vmatprep.subr.bf16.mxu0 %v7051
    %8840 = vmatpush1.bf16.msra.mxu0 %v7050
    %8841 = vmatprep.subr.bf16.mxu0 %v7055
    %8842 = vmatpush1.bf16.msra.mxu0 %v7054
    %8843 = vmatprep.subr.bf16.mxu0 %v7059
    %8844 = vmatpush1.bf16.msra.mxu0 %v7058
    %8845 = vmatprep.subr.bf16.mxu0 %v7063
    %8846 = vmatpush1.bf16.msra.mxu0 %v7062
    %8847 = vmatprep.subr.bf16.mxu0 %v7067
    %8848 = vmatpush1.bf16.msra.mxu0 %v7066
    %8849 = vmatprep.subr.bf16.mxu0 %v7071
    %8850 = vmatpush1.bf16.msra.mxu0 %v7070
    %8851 = vmatprep.subr.bf16.mxu0 %v7075
    %8852 = vmatpush1.bf16.msra.mxu0 %v7074
    %8853 = vmatprep.subr.bf16.mxu0 %v7079
    %8854 = vmatpush1.bf16.msra.mxu0 %v7078
    %8855 = vmatprep.subr.bf16.mxu0 %v7083
    %8856 = vmatpush1.bf16.msra.mxu0 %v7082
    %8857 = vmatprep.subr.bf16.mxu0 %v7087
    %8858 = vmatpush1.bf16.msra.mxu0 %v7086
    %8859 = vmatprep.subr.bf16.mxu0 %v7091
    %8860 = vmatpush1.bf16.msra.mxu0 %v7090
    %8861 = vmatprep.subr.bf16.mxu0 %v7095
    %8862 = vmatpush1.bf16.msra.mxu0 %v7094
    %8863 = vmatprep.subr.bf16.mxu0 %v7099
    %8864 = vmatpush1.bf16.msra.mxu0 %v7098
    %8865 = vmatprep.mubr.bf16.mxu0 %v2207
    %8866 = vmatmul.mubr.bf16.gmra.mrb[0].mxu0 %v2206
    %v8867 = vpop.f32.mrb[0].mxu0
    %v8868 = vadd.f32 %v8827, %v8867
    %v8869 = vpop.f32.mrb[0].mxu0
    %v8870 = vadd.f32 %v8829, %v8869
    %v8871 = vpop.f32.mrb[0].mxu0
    %v8872 = vpop.f32.mrb[0].mxu0
    %8873 = vdwg.mxu0
    %8874 = vmatprep.subr.bf16.mxu0 %v7103
    %8875 = vmatpush1.bf16.msra.mxu0 %v7102
    %8876 = vmatprep.subr.bf16.mxu0 %v7107
    %8877 = vmatpush1.bf16.msra.mxu0 %v7106
    %8878 = vmatprep.subr.bf16.mxu0 %v7111
    %8879 = vmatpush1.bf16.msra.mxu0 %v7110
    %8880 = vmatprep.subr.bf16.mxu0 %v7115
    %8881 = vmatpush1.bf16.msra.mxu0 %v7114
    %8882 = vmatprep.subr.bf16.mxu0 %v7119
    %8883 = vmatpush1.bf16.msra.mxu0 %v7118
    %8884 = vmatprep.subr.bf16.mxu0 %v7123
    %8885 = vmatpush1.bf16.msra.mxu0 %v7122
    %8886 = vmatprep.subr.bf16.mxu0 %v7127
    %8887 = vmatpush1.bf16.msra.mxu0 %v7126
    %8888 = vmatprep.subr.bf16.mxu0 %v7131
    %8889 = vmatpush1.bf16.msra.mxu0 %v7130
    %8890 = vmatprep.subr.bf16.mxu0 %v7135
    %8891 = vmatpush1.bf16.msra.mxu0 %v7134
    %8892 = vmatprep.subr.bf16.mxu0 %v7139
    %8893 = vmatpush1.bf16.msra.mxu0 %v7138
    %8894 = vmatprep.subr.bf16.mxu0 %v7143
    %8895 = vmatpush1.bf16.msra.mxu0 %v7142
    %8896 = vmatprep.subr.bf16.mxu0 %v7147
    %8897 = vmatpush1.bf16.msra.mxu0 %v7146
    %8898 = vmatprep.subr.bf16.mxu0 %v7151
    %8899 = vmatpush1.bf16.msra.mxu0 %v7150
    %8900 = vmatprep.subr.bf16.mxu0 %v7155
    %8901 = vmatpush1.bf16.msra.mxu0 %v7154
    %8902 = vmatprep.subr.bf16.mxu0 %v7159
    %8903 = vmatpush1.bf16.msra.mxu0 %v7158
    %8904 = vmatprep.subr.bf16.mxu0 %v7163
    %8905 = vmatpush1.bf16.msra.mxu0 %v7162
    %8906 = vmatprep.mubr.bf16.mxu0 %v2209
    %8907 = vmatmul.mubr.bf16.gmra.mrb[0].mxu0 %v2208
    %v8908 = vpop.f32.mrb[0].mxu0
    %v8909 = vadd.f32 %v8868, %v8908
    %v8910 = vpop.f32.mrb[0].mxu0
    %v8911 = vadd.f32 %v8870, %v8910
    %v8912 = vpop.f32.mrb[0].mxu0
    %v8913 = vpop.f32.mrb[0].mxu0
    %8914 = vdwg.mxu0
    %8915 = vmatprep.subr.bf16.mxu0 %v7167
    %8916 = vmatpush1.bf16.msra.mxu0 %v7166
    %8917 = vmatprep.subr.bf16.mxu0 %v7171
    %8918 = vmatpush1.bf16.msra.mxu0 %v7170
    %8919 = vmatprep.subr.bf16.mxu0 %v7175
    %8920 = vmatpush1.bf16.msra.mxu0 %v7174
    %8921 = vmatprep.subr.bf16.mxu0 %v7179
    %8922 = vmatpush1.bf16.msra.mxu0 %v7178
    %8923 = vmatprep.subr.bf16.mxu0 %v7183
    %8924 = vmatpush1.bf16.msra.mxu0 %v7182
    %8925 = vmatprep.subr.bf16.mxu0 %v7187
    %8926 = vmatpush1.bf16.msra.mxu0 %v7186
    %8927 = vmatprep.subr.bf16.mxu0 %v7191
    %8928 = vmatpush1.bf16.msra.mxu0 %v7190
    %8929 = vmatprep.subr.bf16.mxu0 %v7195
    %8930 = vmatpush1.bf16.msra.mxu0 %v7194
    %8931 = vmatprep.subr.bf16.mxu0 %v7199
    %8932 = vmatpush1.bf16.msra.mxu0 %v7198
    %8933 = vmatprep.subr.bf16.mxu0 %v7203
    %8934 = vmatpush1.bf16.msra.mxu0 %v7202
    %8935 = vmatprep.subr.bf16.mxu0 %v7207
    %8936 = vmatpush1.bf16.msra.mxu0 %v7206
    %8937 = vmatprep.subr.bf16.mxu0 %v7211
    %8938 = vmatpush1.bf16.msra.mxu0 %v7210
    %8939 = vmatprep.subr.bf16.mxu0 %v7215
    %8940 = vmatpush1.bf16.msra.mxu0 %v7214
    %8941 = vmatprep.subr.bf16.mxu0 %v7219
    %8942 = vmatpush1.bf16.msra.mxu0 %v7218
    %8943 = vmatprep.subr.bf16.mxu0 %v7223
    %8944 = vmatpush1.bf16.msra.mxu0 %v7222
    %8945 = vmatprep.subr.bf16.mxu0 %v7227
    %8946 = vmatpush1.bf16.msra.mxu0 %v7226
    %8947 = vmatprep.mubr.bf16.mxu0 %v2211
    %8948 = vmatmul.mubr.bf16.gmra.mrb[0].mxu0 %v2210
    %v8949 = vpop.f32.mrb[0].mxu0
    %v8950 = vadd.f32 %v8909, %v8949
    %v8951 = vpop.f32.mrb[0].mxu0
    %v8952 = vadd.f32 %v8911, %v8951
    %v8953 = vpop.f32.mrb[0].mxu0
    %v8954 = vpop.f32.mrb[0].mxu0
    %8955 = vdwg.mxu0
    %8956 = vmatprep.subr.bf16.mxu0 %v7231
    %8957 = vmatpush1.bf16.msra.mxu0 %v7230
    %8958 = vmatprep.subr.bf16.mxu0 %v7235
    %8959 = vmatpush1.bf16.msra.mxu0 %v7234
    %8960 = vmatprep.subr.bf16.mxu0 %v7239
    %8961 = vmatpush1.bf16.msra.mxu0 %v7238
    %8962 = vmatprep.subr.bf16.mxu0 %v7243
    %8963 = vmatpush1.bf16.msra.mxu0 %v7242
    %8964 = vmatprep.subr.bf16.mxu0 %v7247
    %8965 = vmatpush1.bf16.msra.mxu0 %v7246
    %8966 = vmatprep.subr.bf16.mxu0 %v7251
    %8967 = vmatpush1.bf16.msra.mxu0 %v7250
    %8968 = vmatprep.subr.bf16.mxu0 %v7255
    %8969 = vmatpush1.bf16.msra.mxu0 %v7254
    %8970 = vmatprep.subr.bf16.mxu0 %v7259
    %8971 = vmatpush1.bf16.msra.mxu0 %v7258
    %8972 = vmatprep.subr.bf16.mxu0 %v7263
    %8973 = vmatpush1.bf16.msra.mxu0 %v7262
    %8974 = vmatprep.subr.bf16.mxu0 %v7267
    %8975 = vmatpush1.bf16.msra.mxu0 %v7266
    %8976 = vmatprep.subr.bf16.mxu0 %v7271
    %8977 = vmatpush1.bf16.msra.mxu0 %v7270
    %8978 = vmatprep.subr.bf16.mxu0 %v7275
    %8979 = vmatpush1.bf16.msra.mxu0 %v7274
    %8980 = vmatprep.subr.bf16.mxu0 %v7279
    %8981 = vmatpush1.bf16.msra.mxu0 %v7278
    %8982 = vmatprep.subr.bf16.mxu0 %v7283
    %8983 = vmatpush1.bf16.msra.mxu0 %v7282
    %8984 = vmatprep.subr.bf16.mxu0 %v7287
    %8985 = vmatpush1.bf16.msra.mxu0 %v7286
    %8986 = vmatprep.subr.bf16.mxu0 %v7291
    %8987 = vmatpush1.bf16.msra.mxu0 %v7290
    %8988 = vmatprep.mubr.bf16.mxu0 %v2213
    %8989 = vmatmul.mubr.bf16.gmra.mrb[0].mxu0 %v2212
    %v8990 = vpop.f32.mrb[0].mxu0
    %v8991 = vadd.f32 %v8950, %v8990
    %v8992 = vpop.f32.mrb[0].mxu0
    %v8993 = vadd.f32 %v8952, %v8992
    %v8994 = vpop.f32.mrb[0].mxu0
    %v8995 = vpop.f32.mrb[0].mxu0
    %8996 = vdwg.mxu0
    %8997 = vmatprep.subr.bf16.mxu0 %v7295
    %8998 = vmatpush1.bf16.msra.mxu0 %v7294
    %8999 = vmatprep.subr.bf16.mxu0 %v7299
    %9000 = vmatpush1.bf16.msra.mxu0 %v7298
    %9001 = vmatprep.subr.bf16.mxu0 %v7303
    %9002 = vmatpush1.bf16.msra.mxu0 %v7302
    %9003 = vmatprep.subr.bf16.mxu0 %v7307
    %9004 = vmatpush1.bf16.msra.mxu0 %v7306
    %9005 = vmatprep.subr.bf16.mxu0 %v7311
    %9006 = vmatpush1.bf16.msra.mxu0 %v7310
    %9007 = vmatprep.subr.bf16.mxu0 %v7315
    %9008 = vmatpush1.bf16.msra.mxu0 %v7314
    %9009 = vmatprep.subr.bf16.mxu0 %v7319
    %9010 = vmatpush1.bf16.msra.mxu0 %v7318
    %9011 = vmatprep.subr.bf16.mxu0 %v7323
    %9012 = vmatpush1.bf16.msra.mxu0 %v7322
    %9013 = vmatprep.subr.bf16.mxu0 %v7327
    %9014 = vmatpush1.bf16.msra.mxu0 %v7326
    %9015 = vmatprep.subr.bf16.mxu0 %v7331
    %9016 = vmatpush1.bf16.msra.mxu0 %v7330
    %9017 = vmatprep.subr.bf16.mxu0 %v7335
    %9018 = vmatpush1.bf16.msra.mxu0 %v7334
    %9019 = vmatprep.subr.bf16.mxu0 %v7339
    %9020 = vmatpush1.bf16.msra.mxu0 %v7338
    %9021 = vmatprep.subr.bf16.mxu0 %v7343
    %9022 = vmatpush1.bf16.msra.mxu0 %v7342
    %9023 = vmatprep.subr.bf16.mxu0 %v7347
    %9024 = vmatpush1.bf16.msra.mxu0 %v7346
    %9025 = vmatprep.subr.bf16.mxu0 %v7351
    %9026 = vmatpush1.bf16.msra.mxu0 %v7350
    %9027 = vmatprep.subr.bf16.mxu0 %v7355
    %9028 = vmatpush1.bf16.msra.mxu0 %v7354
    %9029 = vmatprep.mubr.bf16.mxu0 %v2215
    %9030 = vmatmul.mubr.bf16.gmra.mrb[0].mxu0 %v2214
    %v9031 = vpop.f32.mrb[0].mxu0
    %v9032 = vadd.f32 %v8991, %v9031
    %v9033 = vpop.f32.mrb[0].mxu0
    %v9034 = vadd.f32 %v8993, %v9033
    %v9035 = vpop.f32.mrb[0].mxu0
    %v9036 = vpop.f32.mrb[0].mxu0
    %9037 = vdwg.mxu0
    %9038 = vmatprep.subr.bf16.mxu0 %v6337
    %9039 = vmatpush1.bf16.msra.mxu0 %v6336
    %9040 = vmatprep.subr.bf16.mxu0 %v6341
    %9041 = vmatpush1.bf16.msra.mxu0 %v6340
    %9042 = vmatprep.subr.bf16.mxu0 %v6345
    %9043 = vmatpush1.bf16.msra.mxu0 %v6344
    %9044 = vmatprep.subr.bf16.mxu0 %v6349
    %9045 = vmatpush1.bf16.msra.mxu0 %v6348
    %9046 = vmatprep.subr.bf16.mxu0 %v6353
    %9047 = vmatpush1.bf16.msra.mxu0 %v6352
    %9048 = vmatprep.subr.bf16.mxu0 %v6357
    %9049 = vmatpush1.bf16.msra.mxu0 %v6356
    %9050 = vmatprep.subr.bf16.mxu0 %v6361
    %9051 = vmatpush1.bf16.msra.mxu0 %v6360
    %9052 = vmatprep.subr.bf16.mxu0 %v6365
    %9053 = vmatpush1.bf16.msra.mxu0 %v6364
    %9054 = vmatprep.subr.bf16.mxu0 %v6369
    %9055 = vmatpush1.bf16.msra.mxu0 %v6368
    %9056 = vmatprep.subr.bf16.mxu0 %v6373
    %9057 = vmatpush1.bf16.msra.mxu0 %v6372
    %9058 = vmatprep.subr.bf16.mxu0 %v6377
    %9059 = vmatpush1.bf16.msra.mxu0 %v6376
    %9060 = vmatprep.subr.bf16.mxu0 %v6381
    %9061 = vmatpush1.bf16.msra.mxu0 %v6380
    %9062 = vmatprep.subr.bf16.mxu0 %v6385
    %9063 = vmatpush1.bf16.msra.mxu0 %v6384
    %9064 = vmatprep.subr.bf16.mxu0 %v6389
    %9065 = vmatpush1.bf16.msra.mxu0 %v6388
    %9066 = vmatprep.subr.bf16.mxu0 %v6393
    %9067 = vmatpush1.bf16.msra.mxu0 %v6392
    %9068 = vmatprep.subr.bf16.mxu0 %v6397
    %9069 = vmatpush1.bf16.msra.mxu0 %v6396
    %9070 = vmatprep.mubr.bf16.mxu0 %v2185
    %9071 = vmatmul.mubr.bf16.gmra.mrb[0].mxu0 %v2184
    %v9072 = vpop.f32.mrb[0].mxu0
    %v9073 = vadd.f32 %v3253, %v9072
    %v9074 = vpop.f32.mrb[0].mxu0
    %v9075 = vadd.f32 %v3257, %v9074
    %v9076 = vpop.f32.mrb[0].mxu0
    %v9077 = vpop.f32.mrb[0].mxu0
    %9078 = vdwg.mxu0
    %9079 = vmatprep.subr.bf16.mxu0 %v6401
    %9080 = vmatpush1.bf16.msra.mxu0 %v6400
    %9081 = vmatprep.subr.bf16.mxu0 %v6405
    %9082 = vmatpush1.bf16.msra.mxu0 %v6404
    %9083 = vmatprep.subr.bf16.mxu0 %v6409
    %9084 = vmatpush1.bf16.msra.mxu0 %v6408
    %9085 = vmatprep.subr.bf16.mxu0 %v6413
    %9086 = vmatpush1.bf16.msra.mxu0 %v6412
    %9087 = vmatprep.subr.bf16.mxu0 %v6417
    %9088 = vmatpush1.bf16.msra.mxu0 %v6416
    %9089 = vmatprep.subr.bf16.mxu0 %v6421
    %9090 = vmatpush1.bf16.msra.mxu0 %v6420
    %9091 = vmatprep.subr.bf16.mxu0 %v6425
    %9092 = vmatpush1.bf16.msra.mxu0 %v6424
    %9093 = vmatprep.subr.bf16.mxu0 %v6429
    %9094 = vmatpush1.bf16.msra.mxu0 %v6428
    %9095 = vmatprep.subr.bf16.mxu0 %v6433
    %9096 = vmatpush1.bf16.msra.mxu0 %v6432
    %9097 = vmatprep.subr.bf16.mxu0 %v6437
    %9098 = vmatpush1.bf16.msra.mxu0 %v6436
    %9099 = vmatprep.subr.bf16.mxu0 %v6441
    %9100 = vmatpush1.bf16.msra.mxu0 %v6440
    %9101 = vmatprep.subr.bf16.mxu0 %v6445
    %9102 = vmatpush1.bf16.msra.mxu0 %v6444
    %9103 = vmatprep.subr.bf16.mxu0 %v6449
    %9104 = vmatpush1.bf16.msra.mxu0 %v6448
    %9105 = vmatprep.subr.bf16.mxu0 %v6453
    %9106 = vmatpush1.bf16.msra.mxu0 %v6452
    %9107 = vmatprep.subr.bf16.mxu0 %v6457
    %9108 = vmatpush1.bf16.msra.mxu0 %v6456
    %9109 = vmatprep.subr.bf16.mxu0 %v6461
    %9110 = vmatpush1.bf16.msra.mxu0 %v6460
    %9111 = vmatprep.mubr.bf16.mxu0 %v2187
    %9112 = vmatmul.mubr.bf16.gmra.mrb[0].mxu0 %v2186
    %v9113 = vpop.f32.mrb[0].mxu0
    %v9114 = vadd.f32 %v9073, %v9113
    %v9115 = vpop.f32.mrb[0].mxu0
    %v9116 = vadd.f32 %v9075, %v9115
    %v9117 = vpop.f32.mrb[0].mxu0
    %v9118 = vpop.f32.mrb[0].mxu0
    %9119 = vdwg.mxu0
    %9120 = vmatprep.subr.bf16.mxu0 %v6465
    %9121 = vmatpush1.bf16.msra.mxu0 %v6464
    %9122 = vmatprep.subr.bf16.mxu0 %v6469
    %9123 = vmatpush1.bf16.msra.mxu0 %v6468
    %9124 = vmatprep.subr.bf16.mxu0 %v6473
    %9125 = vmatpush1.bf16.msra.mxu0 %v6472
    %9126 = vmatprep.subr.bf16.mxu0 %v6477
    %9127 = vmatpush1.bf16.msra.mxu0 %v6476
    %9128 = vmatprep.subr.bf16.mxu0 %v6481
    %9129 = vmatpush1.bf16.msra.mxu0 %v6480
    %9130 = vmatprep.subr.bf16.mxu0 %v6485
    %9131 = vmatpush1.bf16.msra.mxu0 %v6484
    %9132 = vmatprep.subr.bf16.mxu0 %v6489
    %9133 = vmatpush1.bf16.msra.mxu0 %v6488
    %9134 = vmatprep.subr.bf16.mxu0 %v6493
    %9135 = vmatpush1.bf16.msra.mxu0 %v6492
    %9136 = vmatprep.subr.bf16.mxu0 %v6497
    %9137 = vmatpush1.bf16.msra.mxu0 %v6496
    %9138 = vmatprep.subr.bf16.mxu0 %v6501
    %9139 = vmatpush1.bf16.msra.mxu0 %v6500
    %9140 = vmatprep.subr.bf16.mxu0 %v6505
    %9141 = vmatpush1.bf16.msra.mxu0 %v6504
    %9142 = vmatprep.subr.bf16.mxu0 %v6509
    %9143 = vmatpush1.bf16.msra.mxu0 %v6508
    %9144 = vmatprep.subr.bf16.mxu0 %v6513
    %9145 = vmatpush1.bf16.msra.mxu0 %v6512
    %9146 = vmatprep.subr.bf16.mxu0 %v6517
    %9147 = vmatpush1.bf16.msra.mxu0 %v6516
    %9148 = vmatprep.subr.bf16.mxu0 %v6521
    %9149 = vmatpush1.bf16.msra.mxu0 %v6520
    %9150 = vmatprep.subr.bf16.mxu0 %v6525
    %9151 = vmatpush1.bf16.msra.mxu0 %v6524
    %9152 = vmatprep.mubr.bf16.mxu0 %v2189
    %9153 = vmatmul.mubr.bf16.gmra.mrb[0].mxu0 %v2188
    %v9154 = vpop.f32.mrb[0].mxu0
    %v9155 = vadd.f32 %v9114, %v9154
    %v9156 = vpop.f32.mrb[0].mxu0
    %v9157 = vadd.f32 %v9116, %v9156
    %v9158 = vpop.f32.mrb[0].mxu0
    %v9159 = vpop.f32.mrb[0].mxu0
    %9160 = vdwg.mxu0
    %9161 = vmatprep.subr.bf16.mxu0 %v6529
    %9162 = vmatpush1.bf16.msra.mxu0 %v6528
    %9163 = vmatprep.subr.bf16.mxu0 %v6533
    %9164 = vmatpush1.bf16.msra.mxu0 %v6532
    %9165 = vmatprep.subr.bf16.mxu0 %v6537
    %9166 = vmatpush1.bf16.msra.mxu0 %v6536
    %9167 = vmatprep.subr.bf16.mxu0 %v6541
    %9168 = vmatpush1.bf16.msra.mxu0 %v6540
    %9169 = vmatprep.subr.bf16.mxu0 %v6545
    %9170 = vmatpush1.bf16.msra.mxu0 %v6544
    %9171 = vmatprep.subr.bf16.mxu0 %v6549
    %9172 = vmatpush1.bf16.msra.mxu0 %v6548
    %9173 = vmatprep.subr.bf16.mxu0 %v6553
    %9174 = vmatpush1.bf16.msra.mxu0 %v6552
    %9175 = vmatprep.subr.bf16.mxu0 %v6557
    %9176 = vmatpush1.bf16.msra.mxu0 %v6556
    %9177 = vmatprep.subr.bf16.mxu0 %v6561
    %9178 = vmatpush1.bf16.msra.mxu0 %v6560
    %9179 = vmatprep.subr.bf16.mxu0 %v6565
    %9180 = vmatpush1.bf16.msra.mxu0 %v6564
    %9181 = vmatprep.subr.bf16.mxu0 %v6569
    %9182 = vmatpush1.bf16.msra.mxu0 %v6568
    %9183 = vmatprep.subr.bf16.mxu0 %v6573
    %9184 = vmatpush1.bf16.msra.mxu0 %v6572
    %9185 = vmatprep.subr.bf16.mxu0 %v6577
    %9186 = vmatpush1.bf16.msra.mxu0 %v6576
    %9187 = vmatprep.subr.bf16.mxu0 %v6581
    %9188 = vmatpush1.bf16.msra.mxu0 %v6580
    %9189 = vmatprep.subr.bf16.mxu0 %v6585
    %9190 = vmatpush1.bf16.msra.mxu0 %v6584
    %9191 = vmatprep.subr.bf16.mxu0 %v6589
    %9192 = vmatpush1.bf16.msra.mxu0 %v6588
    %9193 = vmatprep.mubr.bf16.mxu0 %v2191
    %9194 = vmatmul.mubr.bf16.gmra.mrb[0].mxu0 %v2190
    %v9195 = vpop.f32.mrb[0].mxu0
    %v9196 = vadd.f32 %v9155, %v9195
    %v9197 = vpop.f32.mrb[0].mxu0
    %v9198 = vadd.f32 %v9157, %v9197
    %v9199 = vpop.f32.mrb[0].mxu0
    %v9200 = vpop.f32.mrb[0].mxu0
    %9201 = vdwg.mxu0
    %9202 = vmatprep.subr.bf16.mxu0 %v6593
    %9203 = vmatpush1.bf16.msra.mxu0 %v6592
    %9204 = vmatprep.subr.bf16.mxu0 %v6597
    %9205 = vmatpush1.bf16.msra.mxu0 %v6596
    %9206 = vmatprep.subr.bf16.mxu0 %v6601
    %9207 = vmatpush1.bf16.msra.mxu0 %v6600
    %9208 = vmatprep.subr.bf16.mxu0 %v6605
    %9209 = vmatpush1.bf16.msra.mxu0 %v6604
    %9210 = vmatprep.subr.bf16.mxu0 %v6609
    %9211 = vmatpush1.bf16.msra.mxu0 %v6608
    %9212 = vmatprep.subr.bf16.mxu0 %v6613
    %9213 = vmatpush1.bf16.msra.mxu0 %v6612
    %9214 = vmatprep.subr.bf16.mxu0 %v6617
    %9215 = vmatpush1.bf16.msra.mxu0 %v6616
    %9216 = vmatprep.subr.bf16.mxu0 %v6621
    %9217 = vmatpush1.bf16.msra.mxu0 %v6620
    %9218 = vmatprep.subr.bf16.mxu0 %v6625
    %9219 = vmatpush1.bf16.msra.mxu0 %v6624
    %9220 = vmatprep.subr.bf16.mxu0 %v6629
    %9221 = vmatpush1.bf16.msra.mxu0 %v6628
    %9222 = vmatprep.subr.bf16.mxu0 %v6633
    %9223 = vmatpush1.bf16.msra.mxu0 %v6632
    %9224 = vmatprep.subr.bf16.mxu0 %v6637
    %9225 = vmatpush1.bf16.msra.mxu0 %v6636
    %9226 = vmatprep.subr.bf16.mxu0 %v6641
    %9227 = vmatpush1.bf16.msra.mxu0 %v6640
    %9228 = vmatprep.subr.bf16.mxu0 %v6645
    %9229 = vmatpush1.bf16.msra.mxu0 %v6644
    %9230 = vmatprep.subr.bf16.mxu0 %v6649
    %9231 = vmatpush1.bf16.msra.mxu0 %v6648
    %9232 = vmatprep.subr.bf16.mxu0 %v6653
    %9233 = vmatpush1.bf16.msra.mxu0 %v6652
    %9234 = vmatprep.mubr.bf16.mxu0 %v2193
    %9235 = vmatmul.mubr.bf16.gmra.mrb[0].mxu0 %v2192
    %v9236 = vpop.f32.mrb[0].mxu0
    %v9237 = vadd.f32 %v9196, %v9236
    %v9238 = vpop.f32.mrb[0].mxu0
    %v9239 = vadd.f32 %v9198, %v9238
    %v9240 = vpop.f32.mrb[0].mxu0
    %v9241 = vpop.f32.mrb[0].mxu0
    %9242 = vdwg.mxu0
    %9243 = vmatprep.subr.bf16.mxu0 %v6657
    %9244 = vmatpush1.bf16.msra.mxu0 %v6656
    %9245 = vmatprep.subr.bf16.mxu0 %v6661
    %9246 = vmatpush1.bf16.msra.mxu0 %v6660
    %9247 = vmatprep.subr.bf16.mxu0 %v6665
    %9248 = vmatpush1.bf16.msra.mxu0 %v6664
    %9249 = vmatprep.subr.bf16.mxu0 %v6669
    %9250 = vmatpush1.bf16.msra.mxu0 %v6668
    %9251 = vmatprep.subr.bf16.mxu0 %v6673
    %9252 = vmatpush1.bf16.msra.mxu0 %v6672
    %9253 = vmatprep.subr.bf16.mxu0 %v6677
    %9254 = vmatpush1.bf16.msra.mxu0 %v6676
    %9255 = vmatprep.subr.bf16.mxu0 %v6681
    %9256 = vmatpush1.bf16.msra.mxu0 %v6680
    %9257 = vmatprep.subr.bf16.mxu0 %v6685
    %9258 = vmatpush1.bf16.msra.mxu0 %v6684
    %9259 = vmatprep.subr.bf16.mxu0 %v6689
    %9260 = vmatpush1.bf16.msra.mxu0 %v6688
    %9261 = vmatprep.subr.bf16.mxu0 %v6693
    %9262 = vmatpush1.bf16.msra.mxu0 %v6692
    %9263 = vmatprep.subr.bf16.mxu0 %v6697
    %9264 = vmatpush1.bf16.msra.mxu0 %v6696
    %9265 = vmatprep.subr.bf16.mxu0 %v6701
    %9266 = vmatpush1.bf16.msra.mxu0 %v6700
    %9267 = vmatprep.subr.bf16.mxu0 %v6705
    %9268 = vmatpush1.bf16.msra.mxu0 %v6704
    %9269 = vmatprep.subr.bf16.mxu0 %v6709
    %9270 = vmatpush1.bf16.msra.mxu0 %v6708
    %9271 = vmatprep.subr.bf16.mxu0 %v6713
    %9272 = vmatpush1.bf16.msra.mxu0 %v6712
    %9273 = vmatprep.subr.bf16.mxu0 %v6717
    %9274 = vmatpush1.bf16.msra.mxu0 %v6716
    %9275 = vmatprep.mubr.bf16.mxu0 %v2195
    %9276 = vmatmul.mubr.bf16.gmra.mrb[0].mxu0 %v2194
    %v9277 = vpop.f32.mrb[0].mxu0
    %v9278 = vadd.f32 %v9237, %v9277
    %v9279 = vpop.f32.mrb[0].mxu0
    %v9280 = vadd.f32 %v9239, %v9279
    %v9281 = vpop.f32.mrb[0].mxu0
    %v9282 = vpop.f32.mrb[0].mxu0
    %9283 = vdwg.mxu0
    %9284 = vmatprep.subr.bf16.mxu0 %v6721
    %9285 = vmatpush1.bf16.msra.mxu0 %v6720
    %9286 = vmatprep.subr.bf16.mxu0 %v6725
    %9287 = vmatpush1.bf16.msra.mxu0 %v6724
    %9288 = vmatprep.subr.bf16.mxu0 %v6729
    %9289 = vmatpush1.bf16.msra.mxu0 %v6728
    %9290 = vmatprep.subr.bf16.mxu0 %v6733
    %9291 = vmatpush1.bf16.msra.mxu0 %v6732
    %9292 = vmatprep.subr.bf16.mxu0 %v6737
    %9293 = vmatpush1.bf16.msra.mxu0 %v6736
    %9294 = vmatprep.subr.bf16.mxu0 %v6741
    %9295 = vmatpush1.bf16.msra.mxu0 %v6740
    %9296 = vmatprep.subr.bf16.mxu0 %v6745
    %9297 = vmatpush1.bf16.msra.mxu0 %v6744
    %9298 = vmatprep.subr.bf16.mxu0 %v6749
    %9299 = vmatpush1.bf16.msra.mxu0 %v6748
    %9300 = vmatprep.subr.bf16.mxu0 %v6753
    %9301 = vmatpush1.bf16.msra.mxu0 %v6752
    %9302 = vmatprep.subr.bf16.mxu0 %v6757
    %9303 = vmatpush1.bf16.msra.mxu0 %v6756
    %9304 = vmatprep.subr.bf16.mxu0 %v6761
    %9305 = vmatpush1.bf16.msra.mxu0 %v6760
    %9306 = vmatprep.subr.bf16.mxu0 %v6765
    %9307 = vmatpush1.bf16.msra.mxu0 %v6764
    %9308 = vmatprep.subr.bf16.mxu0 %v6769
    %9309 = vmatpush1.bf16.msra.mxu0 %v6768
    %9310 = vmatprep.subr.bf16.mxu0 %v6773
    %9311 = vmatpush1.bf16.msra.mxu0 %v6772
    %9312 = vmatprep.subr.bf16.mxu0 %v6777
    %9313 = vmatpush1.bf16.msra.mxu0 %v6776
    %9314 = vmatprep.subr.bf16.mxu0 %v6781
    %9315 = vmatpush1.bf16.msra.mxu0 %v6780
    %9316 = vmatprep.mubr.bf16.mxu0 %v2197
    %9317 = vmatmul.mubr.bf16.gmra.mrb[0].mxu0 %v2196
    %v9318 = vpop.f32.mrb[0].mxu0
    %v9319 = vadd.f32 %v9278, %v9318
    %v9320 = vpop.f32.mrb[0].mxu0
    %v9321 = vadd.f32 %v9280, %v9320
    %v9322 = vpop.f32.mrb[0].mxu0
    %v9323 = vpop.f32.mrb[0].mxu0
    %9324 = vdwg.mxu0
    %9325 = vmatprep.subr.bf16.mxu0 %v6785
    %9326 = vmatpush1.bf16.msra.mxu0 %v6784
    %9327 = vmatprep.subr.bf16.mxu0 %v6789
    %9328 = vmatpush1.bf16.msra.mxu0 %v6788
    %9329 = vmatprep.subr.bf16.mxu0 %v6793
    %9330 = vmatpush1.bf16.msra.mxu0 %v6792
    %9331 = vmatprep.subr.bf16.mxu0 %v6797
    %9332 = vmatpush1.bf16.msra.mxu0 %v6796
    %9333 = vmatprep.subr.bf16.mxu0 %v6801
    %9334 = vmatpush1.bf16.msra.mxu0 %v6800
    %9335 = vmatprep.subr.bf16.mxu0 %v6805
    %9336 = vmatpush1.bf16.msra.mxu0 %v6804
    %9337 = vmatprep.subr.bf16.mxu0 %v6809
    %9338 = vmatpush1.bf16.msra.mxu0 %v6808
    %9339 = vmatprep.subr.bf16.mxu0 %v6813
    %9340 = vmatpush1.bf16.msra.mxu0 %v6812
    %9341 = vmatprep.subr.bf16.mxu0 %v6817
    %9342 = vmatpush1.bf16.msra.mxu0 %v6816
    %9343 = vmatprep.subr.bf16.mxu0 %v6821
    %9344 = vmatpush1.bf16.msra.mxu0 %v6820
    %9345 = vmatprep.subr.bf16.mxu0 %v6825
    %9346 = vmatpush1.bf16.msra.mxu0 %v6824
    %9347 = vmatprep.subr.bf16.mxu0 %v6829
    %9348 = vmatpush1.bf16.msra.mxu0 %v6828
    %9349 = vmatprep.subr.bf16.mxu0 %v6833
    %9350 = vmatpush1.bf16.msra.mxu0 %v6832
    %9351 = vmatprep.subr.bf16.mxu0 %v6837
    %9352 = vmatpush1.bf16.msra.mxu0 %v6836
    %9353 = vmatprep.subr.bf16.mxu0 %v6841
    %9354 = vmatpush1.bf16.msra.mxu0 %v6840
    %9355 = vmatprep.subr.bf16.mxu0 %v6845
    %9356 = vmatpush1.bf16.msra.mxu0 %v6844
    %9357 = vmatprep.mubr.bf16.mxu0 %v2199
    %9358 = vmatmul.mubr.bf16.gmra.mrb[0].mxu0 %v2198
    %v9359 = vpop.f32.mrb[0].mxu0
    %v9360 = vadd.f32 %v9319, %v9359
    %v9361 = vpop.f32.mrb[0].mxu0
    %v9362 = vadd.f32 %v9321, %v9361
    %v9363 = vpop.f32.mrb[0].mxu0
    %v9364 = vpop.f32.mrb[0].mxu0
    %9365 = vdwg.mxu0
    %9366 = vmatprep.subr.bf16.mxu0 %v6849
    %9367 = vmatpush1.bf16.msra.mxu0 %v6848
    %9368 = vmatprep.subr.bf16.mxu0 %v6853
    %9369 = vmatpush1.bf16.msra.mxu0 %v6852
    %9370 = vmatprep.subr.bf16.mxu0 %v6857
    %9371 = vmatpush1.bf16.msra.mxu0 %v6856
    %9372 = vmatprep.subr.bf16.mxu0 %v6861
    %9373 = vmatpush1.bf16.msra.mxu0 %v6860
    %9374 = vmatprep.subr.bf16.mxu0 %v6865
    %9375 = vmatpush1.bf16.msra.mxu0 %v6864
    %9376 = vmatprep.subr.bf16.mxu0 %v6869
    %9377 = vmatpush1.bf16.msra.mxu0 %v6868
    %9378 = vmatprep.subr.bf16.mxu0 %v6873
    %9379 = vmatpush1.bf16.msra.mxu0 %v6872
    %9380 = vmatprep.subr.bf16.mxu0 %v6877
    %9381 = vmatpush1.bf16.msra.mxu0 %v6876
    %9382 = vmatprep.subr.bf16.mxu0 %v6881
    %9383 = vmatpush1.bf16.msra.mxu0 %v6880
    %9384 = vmatprep.subr.bf16.mxu0 %v6885
    %9385 = vmatpush1.bf16.msra.mxu0 %v6884
    %9386 = vmatprep.subr.bf16.mxu0 %v6889
    %9387 = vmatpush1.bf16.msra.mxu0 %v6888
    %9388 = vmatprep.subr.bf16.mxu0 %v6893
    %9389 = vmatpush1.bf16.msra.mxu0 %v6892
    %9390 = vmatprep.subr.bf16.mxu0 %v6897
    %9391 = vmatpush1.bf16.msra.mxu0 %v6896
    %9392 = vmatprep.subr.bf16.mxu0 %v6901
    %9393 = vmatpush1.bf16.msra.mxu0 %v6900
    %9394 = vmatprep.subr.bf16.mxu0 %v6905
    %9395 = vmatpush1.bf16.msra.mxu0 %v6904
    %9396 = vmatprep.subr.bf16.mxu0 %v6909
    %9397 = vmatpush1.bf16.msra.mxu0 %v6908
    %9398 = vmatprep.mubr.bf16.mxu0 %v2201
    %9399 = vmatmul.mubr.bf16.gmra.mrb[0].mxu0 %v2200
    %v9400 = vpop.f32.mrb[0].mxu0
    %v9401 = vadd.f32 %v9360, %v9400
    %v9402 = vpop.f32.mrb[0].mxu0
    %v9403 = vadd.f32 %v9362, %v9402
    %v9404 = vpop.f32.mrb[0].mxu0
    %v9405 = vpop.f32.mrb[0].mxu0
    %9406 = vdwg.mxu0
    %9407 = vmatprep.subr.bf16.mxu0 %v6913
    %9408 = vmatpush1.bf16.msra.mxu0 %v6912
    %9409 = vmatprep.subr.bf16.mxu0 %v6917
    %9410 = vmatpush1.bf16.msra.mxu0 %v6916
    %9411 = vmatprep.subr.bf16.mxu0 %v6921
    %9412 = vmatpush1.bf16.msra.mxu0 %v6920
    %9413 = vmatprep.subr.bf16.mxu0 %v6925
    %9414 = vmatpush1.bf16.msra.mxu0 %v6924
    %9415 = vmatprep.subr.bf16.mxu0 %v6929
    %9416 = vmatpush1.bf16.msra.mxu0 %v6928
    %9417 = vmatprep.subr.bf16.mxu0 %v6933
    %9418 = vmatpush1.bf16.msra.mxu0 %v6932
    %9419 = vmatprep.subr.bf16.mxu0 %v6937
    %9420 = vmatpush1.bf16.msra.mxu0 %v6936
    %9421 = vmatprep.subr.bf16.mxu0 %v6941
    %9422 = vmatpush1.bf16.msra.mxu0 %v6940
    %9423 = vmatprep.subr.bf16.mxu0 %v6945
    %9424 = vmatpush1.bf16.msra.mxu0 %v6944
    %9425 = vmatprep.subr.bf16.mxu0 %v6949
    %9426 = vmatpush1.bf16.msra.mxu0 %v6948
    %9427 = vmatprep.subr.bf16.mxu0 %v6953
    %9428 = vmatpush1.bf16.msra.mxu0 %v6952
    %9429 = vmatprep.subr.bf16.mxu0 %v6957
    %9430 = vmatpush1.bf16.msra.mxu0 %v6956
    %9431 = vmatprep.subr.bf16.mxu0 %v6961
    %9432 = vmatpush1.bf16.msra.mxu0 %v6960
    %9433 = vmatprep.subr.bf16.mxu0 %v6965
    %9434 = vmatpush1.bf16.msra.mxu0 %v6964
    %9435 = vmatprep.subr.bf16.mxu0 %v6969
    %9436 = vmatpush1.bf16.msra.mxu0 %v6968
    %9437 = vmatprep.subr.bf16.mxu0 %v6973
    %9438 = vmatpush1.bf16.msra.mxu0 %v6972
    %9439 = vmatprep.mubr.bf16.mxu0 %v2203
    %9440 = vmatmul.mubr.bf16.gmra.mrb[0].mxu0 %v2202
    %v9441 = vpop.f32.mrb[0].mxu0
    %v9442 = vadd.f32 %v9401, %v9441
    %v9443 = vpop.f32.mrb[0].mxu0
    %v9444 = vadd.f32 %v9403, %v9443
    %v9445 = vpop.f32.mrb[0].mxu0
    %v9446 = vpop.f32.mrb[0].mxu0
    %9447 = vdwg.mxu0
    %9448 = vmatprep.subr.bf16.mxu0 %v6977
    %9449 = vmatpush1.bf16.msra.mxu0 %v6976
    %9450 = vmatprep.subr.bf16.mxu0 %v6981
    %9451 = vmatpush1.bf16.msra.mxu0 %v6980
    %9452 = vmatprep.subr.bf16.mxu0 %v6985
    %9453 = vmatpush1.bf16.msra.mxu0 %v6984
    %9454 = vmatprep.subr.bf16.mxu0 %v6989
    %9455 = vmatpush1.bf16.msra.mxu0 %v6988
    %9456 = vmatprep.subr.bf16.mxu0 %v6993
    %9457 = vmatpush1.bf16.msra.mxu0 %v6992
    %9458 = vmatprep.subr.bf16.mxu0 %v6997
    %9459 = vmatpush1.bf16.msra.mxu0 %v6996
    %9460 = vmatprep.subr.bf16.mxu0 %v7001
    %9461 = vmatpush1.bf16.msra.mxu0 %v7000
    %9462 = vmatprep.subr.bf16.mxu0 %v7005
    %9463 = vmatpush1.bf16.msra.mxu0 %v7004
    %9464 = vmatprep.subr.bf16.mxu0 %v7009
    %9465 = vmatpush1.bf16.msra.mxu0 %v7008
    %9466 = vmatprep.subr.bf16.mxu0 %v7013
    %9467 = vmatpush1.bf16.msra.mxu0 %v7012
    %9468 = vmatprep.subr.bf16.mxu0 %v7017
    %9469 = vmatpush1.bf16.msra.mxu0 %v7016
    %9470 = vmatprep.subr.bf16.mxu0 %v7021
    %9471 = vmatpush1.bf16.msra.mxu0 %v7020
    %9472 = vmatprep.subr.bf16.mxu0 %v7025
    %9473 = vmatpush1.bf16.msra.mxu0 %v7024
    %9474 = vmatprep.subr.bf16.mxu0 %v7029
    %9475 = vmatpush1.bf16.msra.mxu0 %v7028
    %9476 = vmatprep.subr.bf16.mxu0 %v7033
    %9477 = vmatpush1.bf16.msra.mxu0 %v7032
    %9478 = vmatprep.subr.bf16.mxu0 %v7037
    %9479 = vmatpush1.bf16.msra.mxu0 %v7036
    %9480 = vmatprep.mubr.bf16.mxu0 %v2205
    %9481 = vmatmul.mubr.bf16.gmra.mrb[0].mxu0 %v2204
    %v9482 = vpop.f32.mrb[0].mxu0
    %v9483 = vadd.f32 %v9442, %v9482
    %v9484 = vpop.f32.mrb[0].mxu0
    %v9485 = vadd.f32 %v9444, %v9484
    %v9486 = vpop.f32.mrb[0].mxu0
    %v9487 = vpop.f32.mrb[0].mxu0
    %9488 = vdwg.mxu0
    %9489 = vmatprep.subr.bf16.mxu0 %v7041
    %9490 = vmatpush1.bf16.msra.mxu0 %v7040
    %9491 = vmatprep.subr.bf16.mxu0 %v7045
    %9492 = vmatpush1.bf16.msra.mxu0 %v7044
    %9493 = vmatprep.subr.bf16.mxu0 %v7049
    %9494 = vmatpush1.bf16.msra.mxu0 %v7048
    %9495 = vmatprep.subr.bf16.mxu0 %v7053
    %9496 = vmatpush1.bf16.msra.mxu0 %v7052
    %9497 = vmatprep.subr.bf16.mxu0 %v7057
    %9498 = vmatpush1.bf16.msra.mxu0 %v7056
    %9499 = vmatprep.subr.bf16.mxu0 %v7061
    %9500 = vmatpush1.bf16.msra.mxu0 %v7060
    %9501 = vmatprep.subr.bf16.mxu0 %v7065
    %9502 = vmatpush1.bf16.msra.mxu0 %v7064
    %9503 = vmatprep.subr.bf16.mxu0 %v7069
    %9504 = vmatpush1.bf16.msra.mxu0 %v7068
    %9505 = vmatprep.subr.bf16.mxu0 %v7073
    %9506 = vmatpush1.bf16.msra.mxu0 %v7072
    %9507 = vmatprep.subr.bf16.mxu0 %v7077
    %9508 = vmatpush1.bf16.msra.mxu0 %v7076
    %9509 = vmatprep.subr.bf16.mxu0 %v7081
    %9510 = vmatpush1.bf16.msra.mxu0 %v7080
    %9511 = vmatprep.subr.bf16.mxu0 %v7085
    %9512 = vmatpush1.bf16.msra.mxu0 %v7084
    %9513 = vmatprep.subr.bf16.mxu0 %v7089
    %9514 = vmatpush1.bf16.msra.mxu0 %v7088
    %9515 = vmatprep.subr.bf16.mxu0 %v7093
    %9516 = vmatpush1.bf16.msra.mxu0 %v7092
    %9517 = vmatprep.subr.bf16.mxu0 %v7097
    %9518 = vmatpush1.bf16.msra.mxu0 %v7096
    %9519 = vmatprep.subr.bf16.mxu0 %v7101
    %9520 = vmatpush1.bf16.msra.mxu0 %v7100
    %9521 = vmatprep.mubr.bf16.mxu0 %v2207
    %9522 = vmatmul.mubr.bf16.gmra.mrb[0].mxu0 %v2206
    %v9523 = vpop.f32.mrb[0].mxu0
    %v9524 = vadd.f32 %v9483, %v9523
    %v9525 = vpop.f32.mrb[0].mxu0
    %v9526 = vadd.f32 %v9485, %v9525
    %v9527 = vpop.f32.mrb[0].mxu0
    %v9528 = vpop.f32.mrb[0].mxu0
    %9529 = vdwg.mxu0
    %9530 = vmatprep.subr.bf16.mxu0 %v7105
    %9531 = vmatpush1.bf16.msra.mxu0 %v7104
    %9532 = vmatprep.subr.bf16.mxu0 %v7109
    %9533 = vmatpush1.bf16.msra.mxu0 %v7108
    %9534 = vmatprep.subr.bf16.mxu0 %v7113
    %9535 = vmatpush1.bf16.msra.mxu0 %v7112
    %9536 = vmatprep.subr.bf16.mxu0 %v7117
    %9537 = vmatpush1.bf16.msra.mxu0 %v7116
    %9538 = vmatprep.subr.bf16.mxu0 %v7121
    %9539 = vmatpush1.bf16.msra.mxu0 %v7120
    %9540 = vmatprep.subr.bf16.mxu0 %v7125
    %9541 = vmatpush1.bf16.msra.mxu0 %v7124
    %9542 = vmatprep.subr.bf16.mxu0 %v7129
    %9543 = vmatpush1.bf16.msra.mxu0 %v7128
    %9544 = vmatprep.subr.bf16.mxu0 %v7133
    %9545 = vmatpush1.bf16.msra.mxu0 %v7132
    %9546 = vmatprep.subr.bf16.mxu0 %v7137
    %9547 = vmatpush1.bf16.msra.mxu0 %v7136
    %9548 = vmatprep.subr.bf16.mxu0 %v7141
    %9549 = vmatpush1.bf16.msra.mxu0 %v7140
    %9550 = vmatprep.subr.bf16.mxu0 %v7145
    %9551 = vmatpush1.bf16.msra.mxu0 %v7144
    %9552 = vmatprep.subr.bf16.mxu0 %v7149
    %9553 = vmatpush1.bf16.msra.mxu0 %v7148
    %9554 = vmatprep.subr.bf16.mxu0 %v7153
    %9555 = vmatpush1.bf16.msra.mxu0 %v7152
    %9556 = vmatprep.subr.bf16.mxu0 %v7157
    %9557 = vmatpush1.bf16.msra.mxu0 %v7156
    %9558 = vmatprep.subr.bf16.mxu0 %v7161
    %9559 = vmatpush1.bf16.msra.mxu0 %v7160
    %9560 = vmatprep.subr.bf16.mxu0 %v7165
    %9561 = vmatpush1.bf16.msra.mxu0 %v7164
    %9562 = vmatprep.mubr.bf16.mxu0 %v2209
    %9563 = vmatmul.mubr.bf16.gmra.mrb[0].mxu0 %v2208
    %v9564 = vpop.f32.mrb[0].mxu0
    %v9565 = vadd.f32 %v9524, %v9564
    %v9566 = vpop.f32.mrb[0].mxu0
    %v9567 = vadd.f32 %v9526, %v9566
    %v9568 = vpop.f32.mrb[0].mxu0
    %v9569 = vpop.f32.mrb[0].mxu0
    %9570 = vdwg.mxu0
    %9571 = vmatprep.subr.bf16.mxu0 %v7169
    %9572 = vmatpush1.bf16.msra.mxu0 %v7168
    %9573 = vmatprep.subr.bf16.mxu0 %v7173
    %9574 = vmatpush1.bf16.msra.mxu0 %v7172
    %9575 = vmatprep.subr.bf16.mxu0 %v7177
    %9576 = vmatpush1.bf16.msra.mxu0 %v7176
    %9577 = vmatprep.subr.bf16.mxu0 %v7181
    %9578 = vmatpush1.bf16.msra.mxu0 %v7180
    %9579 = vmatprep.subr.bf16.mxu0 %v7185
    %9580 = vmatpush1.bf16.msra.mxu0 %v7184
    %9581 = vmatprep.subr.bf16.mxu0 %v7189
    %9582 = vmatpush1.bf16.msra.mxu0 %v7188
    %9583 = vmatprep.subr.bf16.mxu0 %v7193
    %9584 = vmatpush1.bf16.msra.mxu0 %v7192
    %9585 = vmatprep.subr.bf16.mxu0 %v7197
    %9586 = vmatpush1.bf16.msra.mxu0 %v7196
    %9587 = vmatprep.subr.bf16.mxu0 %v7201
    %9588 = vmatpush1.bf16.msra.mxu0 %v7200
    %9589 = vmatprep.subr.bf16.mxu0 %v7205
    %9590 = vmatpush1.bf16.msra.mxu0 %v7204
    %9591 = vmatprep.subr.bf16.mxu0 %v7209
    %9592 = vmatpush1.bf16.msra.mxu0 %v7208
    %9593 = vmatprep.subr.bf16.mxu0 %v7213
    %9594 = vmatpush1.bf16.msra.mxu0 %v7212
    %9595 = vmatprep.subr.bf16.mxu0 %v7217
    %9596 = vmatpush1.bf16.msra.mxu0 %v7216
    %9597 = vmatprep.subr.bf16.mxu0 %v7221
    %9598 = vmatpush1.bf16.msra.mxu0 %v7220
    %9599 = vmatprep.subr.bf16.mxu0 %v7225
    %9600 = vmatpush1.bf16.msra.mxu0 %v7224
    %9601 = vmatprep.subr.bf16.mxu0 %v7229
    %9602 = vmatpush1.bf16.msra.mxu0 %v7228
    %9603 = vmatprep.mubr.bf16.mxu0 %v2211
    %9604 = vmatmul.mubr.bf16.gmra.mrb[0].mxu0 %v2210
    %v9605 = vpop.f32.mrb[0].mxu0
    %v9606 = vadd.f32 %v9565, %v9605
    %v9607 = vpop.f32.mrb[0].mxu0
    %v9608 = vadd.f32 %v9567, %v9607
    %v9609 = vpop.f32.mrb[0].mxu0
    %v9610 = vpop.f32.mrb[0].mxu0
    %9611 = vdwg.mxu0
    %9612 = vmatprep.subr.bf16.mxu0 %v7233
    %9613 = vmatpush1.bf16.msra.mxu0 %v7232
    %9614 = vmatprep.subr.bf16.mxu0 %v7237
    %9615 = vmatpush1.bf16.msra.mxu0 %v7236
    %9616 = vmatprep.subr.bf16.mxu0 %v7241
    %9617 = vmatpush1.bf16.msra.mxu0 %v7240
    %9618 = vmatprep.subr.bf16.mxu0 %v7245
    %9619 = vmatpush1.bf16.msra.mxu0 %v7244
    %9620 = vmatprep.subr.bf16.mxu0 %v7249
    %9621 = vmatpush1.bf16.msra.mxu0 %v7248
    %9622 = vmatprep.subr.bf16.mxu0 %v7253
    %9623 = vmatpush1.bf16.msra.mxu0 %v7252
    %9624 = vmatprep.subr.bf16.mxu0 %v7257
    %9625 = vmatpush1.bf16.msra.mxu0 %v7256
    %9626 = vmatprep.subr.bf16.mxu0 %v7261
    %9627 = vmatpush1.bf16.msra.mxu0 %v7260
    %9628 = vmatprep.subr.bf16.mxu0 %v7265
    %9629 = vmatpush1.bf16.msra.mxu0 %v7264
    %9630 = vmatprep.subr.bf16.mxu0 %v7269
    %9631 = vmatpush1.bf16.msra.mxu0 %v7268
    %9632 = vmatprep.subr.bf16.mxu0 %v7273
    %9633 = vmatpush1.bf16.msra.mxu0 %v7272
    %9634 = vmatprep.subr.bf16.mxu0 %v7277
    %9635 = vmatpush1.bf16.msra.mxu0 %v7276
    %9636 = vmatprep.subr.bf16.mxu0 %v7281
    %9637 = vmatpush1.bf16.msra.mxu0 %v7280
    %9638 = vmatprep.subr.bf16.mxu0 %v7285
    %9639 = vmatpush1.bf16.msra.mxu0 %v7284
    %9640 = vmatprep.subr.bf16.mxu0 %v7289
    %9641 = vmatpush1.bf16.msra.mxu0 %v7288
    %9642 = vmatprep.subr.bf16.mxu0 %v7293
    %9643 = vmatpush1.bf16.msra.mxu0 %v7292
    %9644 = vmatprep.mubr.bf16.mxu0 %v2213
    %9645 = vmatmul.mubr.bf16.gmra.mrb[0].mxu0 %v2212
    %v9646 = vpop.f32.mrb[0].mxu0
    %v9647 = vadd.f32 %v9606, %v9646
    %v9648 = vpop.f32.mrb[0].mxu0
    %v9649 = vadd.f32 %v9608, %v9648
    %v9650 = vpop.f32.mrb[0].mxu0
    %v9651 = vpop.f32.mrb[0].mxu0
    %9652 = vdwg.mxu0
    %9653 = vmatprep.subr.bf16.mxu0 %v7297
    %9654 = vmatpush1.bf16.msra.mxu0 %v7296
    %9655 = vmatprep.subr.bf16.mxu0 %v7301
    %9656 = vmatpush1.bf16.msra.mxu0 %v7300
    %9657 = vmatprep.subr.bf16.mxu0 %v7305
    %9658 = vmatpush1.bf16.msra.mxu0 %v7304
    %9659 = vmatprep.subr.bf16.mxu0 %v7309
    %9660 = vmatpush1.bf16.msra.mxu0 %v7308
    %9661 = vmatprep.subr.bf16.mxu0 %v7313
    %9662 = vmatpush1.bf16.msra.mxu0 %v7312
    %9663 = vmatprep.subr.bf16.mxu0 %v7317
    %9664 = vmatpush1.bf16.msra.mxu0 %v7316
    %9665 = vmatprep.subr.bf16.mxu0 %v7321
    %9666 = vmatpush1.bf16.msra.mxu0 %v7320
    %9667 = vmatprep.subr.bf16.mxu0 %v7325
    %9668 = vmatpush1.bf16.msra.mxu0 %v7324
    %9669 = vmatprep.subr.bf16.mxu0 %v7329
    %9670 = vmatpush1.bf16.msra.mxu0 %v7328
    %9671 = vmatprep.subr.bf16.mxu0 %v7333
    %9672 = vmatpush1.bf16.msra.mxu0 %v7332
    %9673 = vmatprep.subr.bf16.mxu0 %v7337
    %9674 = vmatpush1.bf16.msra.mxu0 %v7336
    %9675 = vmatprep.subr.bf16.mxu0 %v7341
    %9676 = vmatpush1.bf16.msra.mxu0 %v7340
    %9677 = vmatprep.subr.bf16.mxu0 %v7345
    %9678 = vmatpush1.bf16.msra.mxu0 %v7344
    %9679 = vmatprep.subr.bf16.mxu0 %v7349
    %9680 = vmatpush1.bf16.msra.mxu0 %v7348
    %9681 = vmatprep.subr.bf16.mxu0 %v7353
    %9682 = vmatpush1.bf16.msra.mxu0 %v7352
    %9683 = vmatprep.subr.bf16.mxu0 %v7357
    %9684 = vmatpush1.bf16.msra.mxu0 %v7356
    %9685 = vmatprep.mubr.bf16.mxu0 %v2215
    %9686 = vmatmul.mubr.bf16.gmra.mrb[0].mxu0 %v2214
    %v9687 = vpop.f32.mrb[0].mxu0
    %v9688 = vadd.f32 %v9647, %v9687
    %v9689 = vpop.f32.mrb[0].mxu0
    %v9690 = vadd.f32 %v9649, %v9689
    %v9691 = vpop.f32.mrb[0].mxu0
    %v9692 = vpop.f32.mrb[0].mxu0
    %9693 = vdwg.mxu0
    %v9694 = vld [vmem:[#allocation12] sm:$0xff]
    %v9695 = vld [vmem:[#allocation12 + $0x8] sm:$0xff]
    %v9696 = vld [vmem:[#allocation12 + $0x10] sm:$0xff]
    %v9697 = vld [vmem:[#allocation12 + $0x18] sm:$0xff]
    %v9698 = vld [vmem:[#allocation12 + $0x20] sm:$0xff]
    %v9699 = vld [vmem:[#allocation12 + $0x28] sm:$0xff]
    %v9700 = vld [vmem:[#allocation12 + $0x30] sm:$0xff]
    %v9701 = vld [vmem:[#allocation12 + $0x38] sm:$0xff]
    %v9702 = vld [vmem:[#allocation12 + $0x40] sm:$0xff]
    %v9703 = vld [vmem:[#allocation12 + $0x48] sm:$0xff]
    %v9704 = vld [vmem:[#allocation12 + $0x50] sm:$0xff]
    %v9705 = vld [vmem:[#allocation12 + $0x58] sm:$0xff]
    %v9706 = vld [vmem:[#allocation12 + $0x60] sm:$0xff]
    %v9707 = vld [vmem:[#allocation12 + $0x68] sm:$0xff]
    %v9708 = vld [vmem:[#allocation12 + $0x70] sm:$0xff]
    %v9709 = vld [vmem:[#allocation12 + $0x78] sm:$0xff]
    %v9710 = vld [vmem:[#allocation12 + $0x80] sm:$0xff]
    %v9711 = vld [vmem:[#allocation12 + $0x88] sm:$0xff]
    %v9712 = vld [vmem:[#allocation12 + $0x90] sm:$0xff]
    %v9713 = vld [vmem:[#allocation12 + $0x98] sm:$0xff]
    %v9714 = vld [vmem:[#allocation12 + $0xa0] sm:$0xff]
    %v9715 = vld [vmem:[#allocation12 + $0xa8] sm:$0xff]
    %v9716 = vld [vmem:[#allocation12 + $0xb0] sm:$0xff]
    %v9717 = vld [vmem:[#allocation12 + $0xb8] sm:$0xff]
    %v9718 = vld [vmem:[#allocation12 + $0xc0] sm:$0xff]
    %v9719 = vld [vmem:[#allocation12 + $0xc8] sm:$0xff]
    %v9720 = vld [vmem:[#allocation12 + $0xd0] sm:$0xff]
    %v9721 = vld [vmem:[#allocation12 + $0xd8] sm:$0xff]
    %v9722 = vld [vmem:[#allocation12 + $0xe0] sm:$0xff]
    %v9723 = vld [vmem:[#allocation12 + $0xe8] sm:$0xff]
    %v9724 = vld [vmem:[#allocation12 + $0xf0] sm:$0xff]
    %v9725 = vld [vmem:[#allocation12 + $0xf8] sm:$0xff]
    %v9726 = vld [vmem:[#allocation12 + $0x100] sm:$0xff]
    %v9727 = vld [vmem:[#allocation12 + $0x108] sm:$0xff]
    %v9728 = vld [vmem:[#allocation12 + $0x110] sm:$0xff]
    %v9729 = vld [vmem:[#allocation12 + $0x118] sm:$0xff]
    %v9730 = vld [vmem:[#allocation12 + $0x120] sm:$0xff]
    %v9731 = vld [vmem:[#allocation12 + $0x128] sm:$0xff]
    %v9732 = vld [vmem:[#allocation12 + $0x130] sm:$0xff]
    %v9733 = vld [vmem:[#allocation12 + $0x138] sm:$0xff]
    %v9734 = vld [vmem:[#allocation12 + $0x140] sm:$0xff]
    %v9735 = vld [vmem:[#allocation12 + $0x148] sm:$0xff]
    %v9736 = vld [vmem:[#allocation12 + $0x150] sm:$0xff]
    %v9737 = vld [vmem:[#allocation12 + $0x158] sm:$0xff]
    %v9738 = vld [vmem:[#allocation12 + $0x160] sm:$0xff]
    %v9739 = vld [vmem:[#allocation12 + $0x168] sm:$0xff]
    %v9740 = vld [vmem:[#allocation12 + $0x170] sm:$0xff]
    %v9741 = vld [vmem:[#allocation12 + $0x178] sm:$0xff]
    %v9742 = vld [vmem:[#allocation12 + $0x180] sm:$0xff]
    %v9743 = vld [vmem:[#allocation12 + $0x188] sm:$0xff]
    %v9744 = vld [vmem:[#allocation12 + $0x190] sm:$0xff]
    %v9745 = vld [vmem:[#allocation12 + $0x198] sm:$0xff]
    %v9746 = vld [vmem:[#allocation12 + $0x1a0] sm:$0xff]
    %v9747 = vld [vmem:[#allocation12 + $0x1a8] sm:$0xff]
    %v9748 = vld [vmem:[#allocation12 + $0x1b0] sm:$0xff]
    %v9749 = vld [vmem:[#allocation12 + $0x1b8] sm:$0xff]
    %v9750 = vld [vmem:[#allocation12 + $0x1c0] sm:$0xff]
    %v9751 = vld [vmem:[#allocation12 + $0x1c8] sm:$0xff]
    %v9752 = vld [vmem:[#allocation12 + $0x1d0] sm:$0xff]
    %v9753 = vld [vmem:[#allocation12 + $0x1d8] sm:$0xff]
    %v9754 = vld [vmem:[#allocation12 + $0x1e0] sm:$0xff]
    %v9755 = vld [vmem:[#allocation12 + $0x1e8] sm:$0xff]
    %v9756 = vld [vmem:[#allocation12 + $0x1f0] sm:$0xff]
    %v9757 = vld [vmem:[#allocation12 + $0x1f8] sm:$0xff]
    %v9758 = vld [vmem:[#allocation12 + $0x200] sm:$0xff]
    %v9759 = vld [vmem:[#allocation12 + $0x208] sm:$0xff]
    %v9760 = vld [vmem:[#allocation12 + $0x210] sm:$0xff]
    %v9761 = vld [vmem:[#allocation12 + $0x218] sm:$0xff]
    %v9762 = vld [vmem:[#allocation12 + $0x220] sm:$0xff]
    %v9763 = vld [vmem:[#allocation12 + $0x228] sm:$0xff]
    %v9764 = vld [vmem:[#allocation12 + $0x230] sm:$0xff]
    %v9765 = vld [vmem:[#allocation12 + $0x238] sm:$0xff]
    %v9766 = vld [vmem:[#allocation12 + $0x240] sm:$0xff]
    %v9767 = vld [vmem:[#allocation12 + $0x248] sm:$0xff]
    %v9768 = vld [vmem:[#allocation12 + $0x250] sm:$0xff]
    %v9769 = vld [vmem:[#allocation12 + $0x258] sm:$0xff]
    %v9770 = vld [vmem:[#allocation12 + $0x260] sm:$0xff]
    %v9771 = vld [vmem:[#allocation12 + $0x268] sm:$0xff]
    %v9772 = vld [vmem:[#allocation12 + $0x270] sm:$0xff]
    %v9773 = vld [vmem:[#allocation12 + $0x278] sm:$0xff]
    %v9774 = vld [vmem:[#allocation12 + $0x280] sm:$0xff]
    %v9775 = vld [vmem:[#allocation12 + $0x288] sm:$0xff]
    %v9776 = vld [vmem:[#allocation12 + $0x290] sm:$0xff]
    %v9777 = vld [vmem:[#allocation12 + $0x298] sm:$0xff]
    %v9778 = vld [vmem:[#allocation12 + $0x2a0] sm:$0xff]
    %v9779 = vld [vmem:[#allocation12 + $0x2a8] sm:$0xff]
    %v9780 = vld [vmem:[#allocation12 + $0x2b0] sm:$0xff]
    %v9781 = vld [vmem:[#allocation12 + $0x2b8] sm:$0xff]
    %v9782 = vld [vmem:[#allocation12 + $0x2c0] sm:$0xff]
    %v9783 = vld [vmem:[#allocation12 + $0x2c8] sm:$0xff]
    %v9784 = vld [vmem:[#allocation12 + $0x2d0] sm:$0xff]
    %v9785 = vld [vmem:[#allocation12 + $0x2d8] sm:$0xff]
    %v9786 = vld [vmem:[#allocation12 + $0x2e0] sm:$0xff]
    %v9787 = vld [vmem:[#allocation12 + $0x2e8] sm:$0xff]
    %v9788 = vld [vmem:[#allocation12 + $0x2f0] sm:$0xff]
    %v9789 = vld [vmem:[#allocation12 + $0x2f8] sm:$0xff]
    %v9790 = vld [vmem:[#allocation12 + $0x300] sm:$0xff]
    %v9791 = vld [vmem:[#allocation12 + $0x308] sm:$0xff]
    %v9792 = vld [vmem:[#allocation12 + $0x310] sm:$0xff]
    %v9793 = vld [vmem:[#allocation12 + $0x318] sm:$0xff]
    %v9794 = vld [vmem:[#allocation12 + $0x320] sm:$0xff]
    %v9795 = vld [vmem:[#allocation12 + $0x328] sm:$0xff]
    %v9796 = vld [vmem:[#allocation12 + $0x330] sm:$0xff]
    %v9797 = vld [vmem:[#allocation12 + $0x338] sm:$0xff]
    %v9798 = vld [vmem:[#allocation12 + $0x340] sm:$0xff]
    %v9799 = vld [vmem:[#allocation12 + $0x348] sm:$0xff]
    %v9800 = vld [vmem:[#allocation12 + $0x350] sm:$0xff]
    %v9801 = vld [vmem:[#allocation12 + $0x358] sm:$0xff]
    %v9802 = vld [vmem:[#allocation12 + $0x360] sm:$0xff]
    %v9803 = vld [vmem:[#allocation12 + $0x368] sm:$0xff]
    %v9804 = vld [vmem:[#allocation12 + $0x370] sm:$0xff]
    %v9805 = vld [vmem:[#allocation12 + $0x378] sm:$0xff]
    %v9806 = vld [vmem:[#allocation12 + $0x380] sm:$0xff]
    %v9807 = vld [vmem:[#allocation12 + $0x388] sm:$0xff]
    %v9808 = vld [vmem:[#allocation12 + $0x390] sm:$0xff]
    %v9809 = vld [vmem:[#allocation12 + $0x398] sm:$0xff]
    %v9810 = vld [vmem:[#allocation12 + $0x3a0] sm:$0xff]
    %v9811 = vld [vmem:[#allocation12 + $0x3a8] sm:$0xff]
    %v9812 = vld [vmem:[#allocation12 + $0x3b0] sm:$0xff]
    %v9813 = vld [vmem:[#allocation12 + $0x3b8] sm:$0xff]
    %v9814 = vld [vmem:[#allocation12 + $0x3c0] sm:$0xff]
    %v9815 = vld [vmem:[#allocation12 + $0x3c8] sm:$0xff]
    %v9816 = vld [vmem:[#allocation12 + $0x3d0] sm:$0xff]
    %v9817 = vld [vmem:[#allocation12 + $0x3d8] sm:$0xff]
    %v9818 = vld [vmem:[#allocation12 + $0x3e0] sm:$0xff]
    %v9819 = vld [vmem:[#allocation12 + $0x3e8] sm:$0xff]
    %v9820 = vld [vmem:[#allocation12 + $0x3f0] sm:$0xff]
    %v9821 = vld [vmem:[#allocation12 + $0x3f8] sm:$0xff]
    %v9822 = vld [vmem:[#allocation13] sm:$0x3]
    %v9824 = vlaneseq
    %v9825 = vshrl.u32 %v9824, 7
    %v9826 = vsub.s32 0, %v9825
    %v9827 = vrot.slane %v9822, %v9826
    %v9828 = vlaneseq
    %v9829 = vshrl.u32 %v9828, 7
    %v9830 = vsub.s32 1, %v9829
    %v9831 = vrot.slane %v9822, %v9830
    %9834 = vmatprep.subr.mxu0 %v9695
    %9835 = vmatpush1.msra.mxu0 %v9694
    %9836 = vmatprep.subr.mxu0 %v9697
    %9837 = vmatpush1.msra.mxu0 %v9696
    %9838 = vmatprep.subr.mxu0 %v9699
    %9839 = vmatpush1.msra.mxu0 %v9698
    %9840 = vmatprep.subr.mxu0 %v9701
    %9841 = vmatpush1.msra.mxu0 %v9700
    %9842 = vmatprep.subr.mxu0 %v9703
    %9843 = vmatpush1.msra.mxu0 %v9702
    %9844 = vmatprep.subr.mxu0 %v9705
    %9845 = vmatpush1.msra.mxu0 %v9704
    %9846 = vmatprep.subr.mxu0 %v9707
    %9847 = vmatpush1.msra.mxu0 %v9706
    %9848 = vmatprep.subr.mxu0 %v9709
    %9849 = vmatpush1.msra.mxu0 %v9708
    %9850 = vmatprep.subr.mxu0 %v9711
    %9851 = vmatpush1.msra.mxu0 %v9710
    %9852 = vmatprep.subr.mxu0 %v9713
    %9853 = vmatpush1.msra.mxu0 %v9712
    %9854 = vmatprep.subr.mxu0 %v9715
    %9855 = vmatpush1.msra.mxu0 %v9714
    %9856 = vmatprep.subr.mxu0 %v9717
    %9857 = vmatpush1.msra.mxu0 %v9716
    %9858 = vmatprep.subr.mxu0 %v9719
    %9859 = vmatpush1.msra.mxu0 %v9718
    %9860 = vmatprep.subr.mxu0 %v9721
    %9861 = vmatpush1.msra.mxu0 %v9720
    %9862 = vmatprep.subr.mxu0 %v9723
    %9863 = vmatpush1.msra.mxu0 %v9722
    %9864 = vmatprep.subr.mxu0 %v9725
    %9865 = vmatpush1.msra.mxu0 %v9724
    %9866 = vmatprep.subr.mxu0 %v9727
    %9867 = vmatpush1.msra.mxu0 %v9726
    %9868 = vmatprep.subr.mxu0 %v9729
    %9869 = vmatpush1.msra.mxu0 %v9728
    %9870 = vmatprep.subr.mxu0 %v9731
    %9871 = vmatpush1.msra.mxu0 %v9730
    %9872 = vmatprep.subr.mxu0 %v9733
    %9873 = vmatpush1.msra.mxu0 %v9732
    %9874 = vmatprep.subr.mxu0 %v9735
    %9875 = vmatpush1.msra.mxu0 %v9734
    %9876 = vmatprep.subr.mxu0 %v9737
    %9877 = vmatpush1.msra.mxu0 %v9736
    %9878 = vmatprep.subr.mxu0 %v9739
    %9879 = vmatpush1.msra.mxu0 %v9738
    %9880 = vmatprep.subr.mxu0 %v9741
    %9881 = vmatpush1.msra.mxu0 %v9740
    %9882 = vmatprep.subr.mxu0 %v9743
    %9883 = vmatpush1.msra.mxu0 %v9742
    %9884 = vmatprep.subr.mxu0 %v9745
    %9885 = vmatpush1.msra.mxu0 %v9744
    %9886 = vmatprep.subr.mxu0 %v9747
    %9887 = vmatpush1.msra.mxu0 %v9746
    %9888 = vmatprep.subr.mxu0 %v9749
    %9889 = vmatpush1.msra.mxu0 %v9748
    %9890 = vmatprep.subr.mxu0 %v9751
    %9891 = vmatpush1.msra.mxu0 %v9750
    %9892 = vmatprep.subr.mxu0 %v9753
    %9893 = vmatpush1.msra.mxu0 %v9752
    %9894 = vmatprep.subr.mxu0 %v9755
    %9895 = vmatpush1.msra.mxu0 %v9754
    %9896 = vmatprep.subr.mxu0 %v9757
    %9897 = vmatpush1.msra.mxu0 %v9756
    %9898 = vmatprep.mubr.f32.mxu0 %v9034
    %9899 = vmatmul.mubr.f32.gmra.mrb[0].mxu0 %v9032
    %v9900 = vpop.f32.mrb[0].mxu0
    %v9901 = vadd.f32 %v9827, %v9900
    %v9902 = vpop.f32.mrb[0].mxu0
    %v9903 = vadd.f32 %v9831, %v9902
    %9904 = vdwg.mxu0
    %9905 = vmatprep.subr.mxu0 %v9759
    %9906 = vmatpush1.msra.mxu0 %v9758
    %9907 = vmatprep.subr.mxu0 %v9761
    %9908 = vmatpush1.msra.mxu0 %v9760
    %9909 = vmatprep.subr.mxu0 %v9763
    %9910 = vmatpush1.msra.mxu0 %v9762
    %9911 = vmatprep.subr.mxu0 %v9765
    %9912 = vmatpush1.msra.mxu0 %v9764
    %9913 = vmatprep.subr.mxu0 %v9767
    %9914 = vmatpush1.msra.mxu0 %v9766
    %9915 = vmatprep.subr.mxu0 %v9769
    %9916 = vmatpush1.msra.mxu0 %v9768
    %9917 = vmatprep.subr.mxu0 %v9771
    %9918 = vmatpush1.msra.mxu0 %v9770
    %9919 = vmatprep.subr.mxu0 %v9773
    %9920 = vmatpush1.msra.mxu0 %v9772
    %9921 = vmatprep.subr.mxu0 %v9775
    %9922 = vmatpush1.msra.mxu0 %v9774
    %9923 = vmatprep.subr.mxu0 %v9777
    %9924 = vmatpush1.msra.mxu0 %v9776
    %9925 = vmatprep.subr.mxu0 %v9779
    %9926 = vmatpush1.msra.mxu0 %v9778
    %9927 = vmatprep.subr.mxu0 %v9781
    %9928 = vmatpush1.msra.mxu0 %v9780
    %9929 = vmatprep.subr.mxu0 %v9783
    %9930 = vmatpush1.msra.mxu0 %v9782
    %9931 = vmatprep.subr.mxu0 %v9785
    %9932 = vmatpush1.msra.mxu0 %v9784
    %9933 = vmatprep.subr.mxu0 %v9787
    %9934 = vmatpush1.msra.mxu0 %v9786
    %9935 = vmatprep.subr.mxu0 %v9789
    %9936 = vmatpush1.msra.mxu0 %v9788
    %9937 = vmatprep.subr.mxu0 %v9791
    %9938 = vmatpush1.msra.mxu0 %v9790
    %9939 = vmatprep.subr.mxu0 %v9793
    %9940 = vmatpush1.msra.mxu0 %v9792
    %9941 = vmatprep.subr.mxu0 %v9795
    %9942 = vmatpush1.msra.mxu0 %v9794
    %9943 = vmatprep.subr.mxu0 %v9797
    %9944 = vmatpush1.msra.mxu0 %v9796
    %9945 = vmatprep.subr.mxu0 %v9799
    %9946 = vmatpush1.msra.mxu0 %v9798
    %9947 = vmatprep.subr.mxu0 %v9801
    %9948 = vmatpush1.msra.mxu0 %v9800
    %9949 = vmatprep.subr.mxu0 %v9803
    %9950 = vmatpush1.msra.mxu0 %v9802
    %9951 = vmatprep.subr.mxu0 %v9805
    %9952 = vmatpush1.msra.mxu0 %v9804
    %9953 = vmatprep.subr.mxu0 %v9807
    %9954 = vmatpush1.msra.mxu0 %v9806
    %9955 = vmatprep.subr.mxu0 %v9809
    %9956 = vmatpush1.msra.mxu0 %v9808
    %9957 = vmatprep.subr.mxu0 %v9811
    %9958 = vmatpush1.msra.mxu0 %v9810
    %9959 = vmatprep.subr.mxu0 %v9813
    %9960 = vmatpush1.msra.mxu0 %v9812
    %9961 = vmatprep.subr.mxu0 %v9815
    %9962 = vmatpush1.msra.mxu0 %v9814
    %9963 = vmatprep.subr.mxu0 %v9817
    %9964 = vmatpush1.msra.mxu0 %v9816
    %9965 = vmatprep.subr.mxu0 %v9819
    %9966 = vmatpush1.msra.mxu0 %v9818
    %9967 = vmatprep.subr.mxu0 %v9821
    %9968 = vmatpush1.msra.mxu0 %v9820
    %9969 = vmatprep.mubr.f32.mxu0 %v9690
    %9970 = vmatmul.mubr.f32.gmra.mrb[0].mxu0 %v9688
    %v9971 = vpop.f32.mrb[0].mxu0
    %v9972 = vadd.f32 %v9901, %v9971
    %v9973 = vpop.f32.mrb[0].mxu0
    %v9974 = vadd.f32 %v9903, %v9973
    %9975 = vdwg.mxu0
    %vm9976 = vcmp.gt.f32.partialorder %v9972, 0.0
    %vm9977 = vcmp.gt.f32.partialorder %v9974, 0.0
    %v9978 = vmul.f32 %v9972, 0.2
    %v9979 = vmul.f32 %v9974, 0.2
    %v9980 = vsel %vm9976, %v9972, %v9978
    %v9981 = vsel %vm9977, %v9974, %v9979
    %v9982 = vld [vmem:[#allocation15] sm:$0xff]
    %v9983 = vld [vmem:[#allocation15 + $0x8] sm:$0xff]
    %v9984 = vld [vmem:[#allocation15 + $0x10] sm:$0xff]
    %v9985 = vld [vmem:[#allocation15 + $0x18] sm:$0xff]
    %v9986 = vld [vmem:[#allocation15 + $0x20] sm:$0xff]
    %v9987 = vld [vmem:[#allocation15 + $0x28] sm:$0xff]
    %v9988 = vld [vmem:[#allocation15 + $0x30] sm:$0xff]
    %v9989 = vld [vmem:[#allocation15 + $0x38] sm:$0xff]
    %v9990 = vld [vmem:[#allocation15 + $0x40] sm:$0xff]
    %v9991 = vld [vmem:[#allocation15 + $0x48] sm:$0xff]
    %v9992 = vld [vmem:[#allocation15 + $0x50] sm:$0xff]
    %v9993 = vld [vmem:[#allocation15 + $0x58] sm:$0xff]
    %v9994 = vld [vmem:[#allocation15 + $0x60] sm:$0xff]
    %v9995 = vld [vmem:[#allocation15 + $0x68] sm:$0xff]
    %v9996 = vld [vmem:[#allocation15 + $0x70] sm:$0xff]
    %v9997 = vld [vmem:[#allocation15 + $0x78] sm:$0xff]
    %v9998 = vld [vmem:[#allocation15 + $0x80] sm:$0xff]
    %v9999 = vld [vmem:[#allocation15 + $0x88] sm:$0xff]
    %v10000 = vld [vmem:[#allocation15 + $0x90] sm:$0xff]
    %v10001 = vld [vmem:[#allocation15 + $0x98] sm:$0xff]
    %v10002 = vld [vmem:[#allocation15 + $0xa0] sm:$0xff]
    %v10003 = vld [vmem:[#allocation15 + $0xa8] sm:$0xff]
    %v10004 = vld [vmem:[#allocation15 + $0xb0] sm:$0xff]
    %v10005 = vld [vmem:[#allocation15 + $0xb8] sm:$0xff]
    %v10006 = vld [vmem:[#allocation15 + $0xc0] sm:$0xff]
    %v10007 = vld [vmem:[#allocation15 + $0xc8] sm:$0xff]
    %v10008 = vld [vmem:[#allocation15 + $0xd0] sm:$0xff]
    %v10009 = vld [vmem:[#allocation15 + $0xd8] sm:$0xff]
    %v10010 = vld [vmem:[#allocation15 + $0xe0] sm:$0xff]
    %v10011 = vld [vmem:[#allocation15 + $0xe8] sm:$0xff]
    %v10012 = vld [vmem:[#allocation15 + $0xf0] sm:$0xff]
    %v10013 = vld [vmem:[#allocation15 + $0xf8] sm:$0xff]
    %v10014 = vld [vmem:[#allocation16] sm:$0x1]
    %v10016 = vlaneseq
    %v10017 = vshrl.u32 %v10016, 7
    %v10018 = vsub.s32 0, %v10017
    %v10019 = vrot.slane %v10014, %v10018
    %10021 = vmatprep.subr.mxu0 0.0
    %10022 = vmatpush1.msra.mxu0 %v9982
    %10023 = vmatprep.subr.mxu0 0.0
    %10024 = vmatpush1.msra.mxu0 %v9983
    %10025 = vmatprep.subr.mxu0 0.0
    %10026 = vmatpush1.msra.mxu0 %v9984
    %10027 = vmatprep.subr.mxu0 0.0
    %10028 = vmatpush1.msra.mxu0 %v9985
    %10029 = vmatprep.subr.mxu0 0.0
    %10030 = vmatpush1.msra.mxu0 %v9986
    %10031 = vmatprep.subr.mxu0 0.0
    %10032 = vmatpush1.msra.mxu0 %v9987
    %10033 = vmatprep.subr.mxu0 0.0
    %10034 = vmatpush1.msra.mxu0 %v9988
    %10035 = vmatprep.subr.mxu0 0.0
    %10036 = vmatpush1.msra.mxu0 %v9989
    %10037 = vmatprep.subr.mxu0 0.0
    %10038 = vmatpush1.msra.mxu0 %v9990
    %10039 = vmatprep.subr.mxu0 0.0
    %10040 = vmatpush1.msra.mxu0 %v9991
    %10041 = vmatprep.subr.mxu0 0.0
    %10042 = vmatpush1.msra.mxu0 %v9992
    %10043 = vmatprep.subr.mxu0 0.0
    %10044 = vmatpush1.msra.mxu0 %v9993
    %10045 = vmatprep.subr.mxu0 0.0
    %10046 = vmatpush1.msra.mxu0 %v9994
    %10047 = vmatprep.subr.mxu0 0.0
    %10048 = vmatpush1.msra.mxu0 %v9995
    %10049 = vmatprep.subr.mxu0 0.0
    %10050 = vmatpush1.msra.mxu0 %v9996
    %10051 = vmatprep.subr.mxu0 0.0
    %10052 = vmatpush1.msra.mxu0 %v9997
    %10053 = vmatprep.subr.mxu0 0.0
    %10054 = vmatpush1.msra.mxu0 %v9998
    %10055 = vmatprep.subr.mxu0 0.0
    %10056 = vmatpush1.msra.mxu0 %v9999
    %10057 = vmatprep.subr.mxu0 0.0
    %10058 = vmatpush1.msra.mxu0 %v10000
    %10059 = vmatprep.subr.mxu0 0.0
    %10060 = vmatpush1.msra.mxu0 %v10001
    %10061 = vmatprep.subr.mxu0 0.0
    %10062 = vmatpush1.msra.mxu0 %v10002
    %10063 = vmatprep.subr.mxu0 0.0
    %10064 = vmatpush1.msra.mxu0 %v10003
    %10065 = vmatprep.subr.mxu0 0.0
    %10066 = vmatpush1.msra.mxu0 %v10004
    %10067 = vmatprep.subr.mxu0 0.0
    %10068 = vmatpush1.msra.mxu0 %v10005
    %10069 = vmatprep.subr.mxu0 0.0
    %10070 = vmatpush1.msra.mxu0 %v10006
    %10071 = vmatprep.subr.mxu0 0.0
    %10072 = vmatpush1.msra.mxu0 %v10007
    %10073 = vmatprep.subr.mxu0 0.0
    %10074 = vmatpush1.msra.mxu0 %v10008
    %10075 = vmatprep.subr.mxu0 0.0
    %10076 = vmatpush1.msra.mxu0 %v10009
    %10077 = vmatprep.subr.mxu0 0.0
    %10078 = vmatpush1.msra.mxu0 %v10010
    %10079 = vmatprep.subr.mxu0 0.0
    %10080 = vmatpush1.msra.mxu0 %v10011
    %10081 = vmatprep.subr.mxu0 0.0
    %10082 = vmatpush1.msra.mxu0 %v10012
    %10083 = vmatprep.subr.mxu0 0.0
    %10084 = vmatpush1.msra.mxu0 %v10013
    %10085 = vmatprep.mubr.f32.mxu0 %v9981
    %10086 = vmatmul.mubr.f32.gmra.mrb[0].mxu0 %v9980
    %v10087 = vpop.f32.mrb[0].mxu0
    %v10088 = vadd.f32 %v10019, %v10087
    %v10089 = vpop.f32.mrb[0].mxu0
    %10090 = vdwg.mxu0
    %vm10091 = vcmask 1041408
    %v10092 = vsel %vm10091, %v10088, 0.0
    %v10093 = vrot.slane %v10092, 4
    %v10094 = vadd.f32 %v10092, %v10093
    %v10095 = vrot.slane %v10094, 2
    %v10096 = vadd.f32 %v10094, %v10095
    %v10097 = vrot.slane %v10096, 1
    %v10098 = vadd.f32 %v10096, %v10097
    %v10099 = vmul.f32 %v10088, %v10088
    %v10100 = vsel %vm10091, %v10099, 0.0
    %v10101 = vrot.slane %v10100, 4
    %v10102 = vadd.f32 %v10100, %v10101
    %v10103 = vrot.slane %v10102, 2
    %v10104 = vadd.f32 %v10102, %v10103
    %v10105 = vrot.slane %v10104, 1
    %v10106 = vadd.f32 %v10104, %v10105
    %v10107 = vld [vmem:[%s27] sm:$0xff]
    %v10108 = vld [vmem:[%s27 + $0x8] sm:$0xff]
    %v10109 = vld [vmem:[%s27 + $0x10] sm:$0xff]
    %v10110 = vld [vmem:[%s27 + $0x18] sm:$0xff]
    %v10111 = vld [vmem:[%s27 + $0x20] sm:$0xff]
    %v10112 = vld [vmem:[%s27 + $0x28] sm:$0xff]
    %v10113 = vld [vmem:[%s27 + $0x30] sm:$0xff]
    %v10114 = vld [vmem:[%s27 + $0x38] sm:$0xff]
    %v10115 = vld [vmem:[%s27 + $0x40] sm:$0xff]
    %v10116 = vld [vmem:[%s27 + $0x48] sm:$0xff]
    %v10117 = vld [vmem:[%s27 + $0x50] sm:$0xff]
    %v10118 = vld [vmem:[%s27 + $0x58] sm:$0xff]
    %v10119 = vld [vmem:[%s27 + $0x60] sm:$0xff]
    %v10120 = vld [vmem:[%s27 + $0x68] sm:$0xff]
    %v10121 = vld [vmem:[%s27 + $0x70] sm:$0xff]
    %v10122 = vld [vmem:[%s27 + $0x78] sm:$0xff]
    %10123 = vmatprep.subr.mxu0 0.0
    %10124 = vmatpush1.msra.mxu0 %v10107
    %10125 = vmatprep.subr.mxu0 0.0
    %10126 = vmatpush1.msra.mxu0 %v10108
    %10127 = vmatprep.subr.mxu0 0.0
    %10128 = vmatpush1.msra.mxu0 %v10109
    %10129 = vmatprep.subr.mxu0 0.0
    %10130 = vmatpush1.msra.mxu0 %v10110
    %10131 = vmatprep.subr.mxu0 0.0
    %10132 = vmatpush1.msra.mxu0 %v10111
    %10133 = vmatprep.subr.mxu0 0.0
    %10134 = vmatpush1.msra.mxu0 %v10112
    %10135 = vmatprep.subr.mxu0 0.0
    %10136 = vmatpush1.msra.mxu0 %v10113
    %10137 = vmatprep.subr.mxu0 0.0
    %10138 = vmatpush1.msra.mxu0 %v10114
    %10139 = vmatprep.subr.mxu0 0.0
    %10140 = vmatpush1.msra.mxu0 %v10115
    %10141 = vmatprep.subr.mxu0 0.0
    %10142 = vmatpush1.msra.mxu0 %v10116
    %10143 = vmatprep.subr.mxu0 0.0
    %10144 = vmatpush1.msra.mxu0 %v10117
    %10145 = vmatprep.subr.mxu0 0.0
    %10146 = vmatpush1.msra.mxu0 %v10118
    %10147 = vmatprep.subr.mxu0 0.0
    %10148 = vmatpush1.msra.mxu0 %v10119
    %10149 = vmatprep.subr.mxu0 0.0
    %10150 = vmatpush1.msra.mxu0 %v10120
    %10151 = vmatprep.subr.mxu0 0.0
    %10152 = vmatpush1.msra.mxu0 %v10121
    %10153 = vmatprep.subr.mxu0 0.0
    %10154 = vmatpush1.msra.mxu0 %v10122
    %10155 = vmatprep.subr.mxu0 0.0
    %10156 = vmatpush1.msra.mxu0 0.0
    %10157 = vmatprep.subr.mxu0 0.0
    %10158 = vmatpush1.msra.mxu0 0.0
    %10159 = vmatprep.subr.mxu0 0.0
    %10160 = vmatpush1.msra.mxu0 0.0
    %10161 = vmatprep.subr.mxu0 0.0
    %10162 = vmatpush1.msra.mxu0 0.0
    %10163 = vmatprep.subr.mxu0 0.0
    %10164 = vmatpush1.msra.mxu0 0.0
    %10165 = vmatprep.subr.mxu0 0.0
    %10166 = vmatpush1.msra.mxu0 0.0
    %10167 = vmatprep.subr.mxu0 0.0
    %10168 = vmatpush1.msra.mxu0 0.0
    %10169 = vmatprep.subr.mxu0 0.0
    %10170 = vmatpush1.msra.mxu0 0.0
    %10171 = vmatprep.subr.mxu0 0.0
    %10172 = vmatpush1.msra.mxu0 0.0
    %10173 = vmatprep.subr.mxu0 0.0
    %10174 = vmatpush1.msra.mxu0 0.0
    %10175 = vmatprep.subr.mxu0 0.0
    %10176 = vmatpush1.msra.mxu0 0.0
    %10177 = vmatprep.subr.mxu0 0.0
    %10178 = vmatpush1.msra.mxu0 0.0
    %10179 = vmatprep.subr.mxu0 0.0
    %10180 = vmatpush1.msra.mxu0 0.0
    %10181 = vmatprep.subr.mxu0 0.0
    %10182 = vmatpush1.msra.mxu0 0.0
    %10183 = vmatprep.subr.mxu0 0.0
    %10184 = vmatpush1.msra.mxu0 0.0
    %10185 = vmatprep.subr.mxu0 0.0
    %10186 = vmatpush1.msra.mxu0 0.0
    %10187 = vmatprep.mubr.f32.mxu0 0.0
    %10188 = vmatmul.mubr.f32.gmra.mrb[0].mxu0 %v10098
    %v10189 = vpop.f32.mrb[0].mxu0
    %v10190 = vadd.f32 0.0, %v10189
    %v10191 = vpop.f32.mrb[0].mxu0
    %10192 = vdwg.mxu0
    %v10193 = vmul.f32 %v10190, 0.125
    %10194 = vmatprep.subr.mxu0 0.0
    %10195 = vmatpush1.msra.mxu0 %v10107
    %10196 = vmatprep.subr.mxu0 0.0
    %10197 = vmatpush1.msra.mxu0 %v10108
    %10198 = vmatprep.subr.mxu0 0.0
    %10199 = vmatpush1.msra.mxu0 %v10109
    %10200 = vmatprep.subr.mxu0 0.0
    %10201 = vmatpush1.msra.mxu0 %v10110
    %10202 = vmatprep.subr.mxu0 0.0
    %10203 = vmatpush1.msra.mxu0 %v10111
    %10204 = vmatprep.subr.mxu0 0.0
    %10205 = vmatpush1.msra.mxu0 %v10112
    %10206 = vmatprep.subr.mxu0 0.0
    %10207 = vmatpush1.msra.mxu0 %v10113
    %10208 = vmatprep.subr.mxu0 0.0
    %10209 = vmatpush1.msra.mxu0 %v10114
    %10210 = vmatprep.subr.mxu0 0.0
    %10211 = vmatpush1.msra.mxu0 %v10115
    %10212 = vmatprep.subr.mxu0 0.0
    %10213 = vmatpush1.msra.mxu0 %v10116
    %10214 = vmatprep.subr.mxu0 0.0
    %10215 = vmatpush1.msra.mxu0 %v10117
    %10216 = vmatprep.subr.mxu0 0.0
    %10217 = vmatpush1.msra.mxu0 %v10118
    %10218 = vmatprep.subr.mxu0 0.0
    %10219 = vmatpush1.msra.mxu0 %v10119
    %10220 = vmatprep.subr.mxu0 0.0
    %10221 = vmatpush1.msra.mxu0 %v10120
    %10222 = vmatprep.subr.mxu0 0.0
    %10223 = vmatpush1.msra.mxu0 %v10121
    %10224 = vmatprep.subr.mxu0 0.0
    %10225 = vmatpush1.msra.mxu0 %v10122
    %10226 = vmatprep.subr.mxu0 0.0
    %10227 = vmatpush1.msra.mxu0 0.0
    %10228 = vmatprep.subr.mxu0 0.0
    %10229 = vmatpush1.msra.mxu0 0.0
    %10230 = vmatprep.subr.mxu0 0.0
    %10231 = vmatpush1.msra.mxu0 0.0
    %10232 = vmatprep.subr.mxu0 0.0
    %10233 = vmatpush1.msra.mxu0 0.0
    %10234 = vmatprep.subr.mxu0 0.0
    %10235 = vmatpush1.msra.mxu0 0.0
    %10236 = vmatprep.subr.mxu0 0.0
    %10237 = vmatpush1.msra.mxu0 0.0
    %10238 = vmatprep.subr.mxu0 0.0
    %10239 = vmatpush1.msra.mxu0 0.0
    %10240 = vmatprep.subr.mxu0 0.0
    %10241 = vmatpush1.msra.mxu0 0.0
    %10242 = vmatprep.subr.mxu0 0.0
    %10243 = vmatpush1.msra.mxu0 0.0
    %10244 = vmatprep.subr.mxu0 0.0
    %10245 = vmatpush1.msra.mxu0 0.0
    %10246 = vmatprep.subr.mxu0 0.0
    %10247 = vmatpush1.msra.mxu0 0.0
    %10248 = vmatprep.subr.mxu0 0.0
    %10249 = vmatpush1.msra.mxu0 0.0
    %10250 = vmatprep.subr.mxu0 0.0
    %10251 = vmatpush1.msra.mxu0 0.0
    %10252 = vmatprep.subr.mxu0 0.0
    %10253 = vmatpush1.msra.mxu0 0.0
    %10254 = vmatprep.subr.mxu0 0.0
    %10255 = vmatpush1.msra.mxu0 0.0
    %10256 = vmatprep.subr.mxu0 0.0
    %10257 = vmatpush1.msra.mxu0 0.0
    %10258 = vmatprep.mubr.f32.mxu0 0.0
    %10259 = vmatmul.mubr.f32.gmra.mrb[0].mxu0 %v10106
    %v10260 = vpop.f32.mrb[0].mxu0
    %v10261 = vadd.f32 0.0, %v10260
    %v10262 = vpop.f32.mrb[0].mxu0
    %10263 = vdwg.mxu0
    %v10264 = vmul.f32 %v10261, 0.125
    %v10265 = vmul.f32 %v10193, %v10193
    %v10266 = vsub.f32 %v10264, %v10265
    %v10267 = vmax.f32 %v10266, 0.0
    %v10268 = vld [vmem:[#allocation18] sm:$0x1]
    %v10269 = vadd.f32 %v10267, 1e-05
    %v10270 = vrsqrt.pop %v10269
    %v10271 = vmul.f32 %v10268, %v10270
    %v10272 = vld [vmem:[#allocation19] sm:$0x1]
    %v10273 = vmul.f32 %v10193, %v10271
    %v10274 = vsub.f32 %v10272, %v10273
    %v10275 = vld [vmem:[#allocation21] sm:$0xff]
    %v10276 = vld [vmem:[#allocation21 + $0x8] sm:$0xff]
    %v10277 = vld [vmem:[#allocation21 + $0x10] sm:$0xff]
    %v10278 = vld [vmem:[#allocation21 + $0x18] sm:$0xff]
    %vm10279 = vcmask 261120
    %v10281 = vsel %vm10279, %v10271, 0
    %10283 = vmatprep.subr.mxu0 0.0
    %10284 = vmatpush1.msra.mxu0 %v10275
    %10285 = vmatprep.subr.mxu0 0.0
    %10286 = vmatpush1.msra.mxu0 %v10276
    %10287 = vmatprep.subr.mxu0 0.0
    %10288 = vmatpush1.msra.mxu0 %v10277
    %10289 = vmatprep.subr.mxu0 0.0
    %10290 = vmatpush1.msra.mxu0 %v10278
    %10291 = vmatprep.subr.mxu0 0.0
    %10292 = vmatpush1.msra.mxu0 0.0
    %10293 = vmatprep.subr.mxu0 0.0
    %10294 = vmatpush1.msra.mxu0 0.0
    %10295 = vmatprep.subr.mxu0 0.0
    %10296 = vmatpush1.msra.mxu0 0.0
    %10297 = vmatprep.subr.mxu0 0.0
    %10298 = vmatpush1.msra.mxu0 0.0
    %10299 = vmatprep.subr.mxu0 0.0
    %10300 = vmatpush1.msra.mxu0 0.0
    %10301 = vmatprep.subr.mxu0 0.0
    %10302 = vmatpush1.msra.mxu0 0.0
    %10303 = vmatprep.subr.mxu0 0.0
    %10304 = vmatpush1.msra.mxu0 0.0
    %10305 = vmatprep.subr.mxu0 0.0
    %10306 = vmatpush1.msra.mxu0 0.0
    %10307 = vmatprep.subr.mxu0 0.0
    %10308 = vmatpush1.msra.mxu0 0.0
    %10309 = vmatprep.subr.mxu0 0.0
    %10310 = vmatpush1.msra.mxu0 0.0
    %10311 = vmatprep.subr.mxu0 0.0
    %10312 = vmatpush1.msra.mxu0 0.0
    %10313 = vmatprep.subr.mxu0 0.0
    %10314 = vmatpush1.msra.mxu0 0.0
    %10315 = vmatprep.subr.mxu0 0.0
    %10316 = vmatpush1.msra.mxu0 0.0
    %10317 = vmatprep.subr.mxu0 0.0
    %10318 = vmatpush1.msra.mxu0 0.0
    %10319 = vmatprep.subr.mxu0 0.0
    %10320 = vmatpush1.msra.mxu0 0.0
    %10321 = vmatprep.subr.mxu0 0.0
    %10322 = vmatpush1.msra.mxu0 0.0
    %10323 = vmatprep.subr.mxu0 0.0
    %10324 = vmatpush1.msra.mxu0 0.0
    %10325 = vmatprep.subr.mxu0 0.0
    %10326 = vmatpush1.msra.mxu0 0.0
    %10327 = vmatprep.subr.mxu0 0.0
    %10328 = vmatpush1.msra.mxu0 0.0
    %10329 = vmatprep.subr.mxu0 0.0
    %10330 = vmatpush1.msra.mxu0 0.0
    %10331 = vmatprep.subr.mxu0 0.0
    %10332 = vmatpush1.msra.mxu0 0.0
    %10333 = vmatprep.subr.mxu0 0.0
    %10334 = vmatpush1.msra.mxu0 0.0
    %10335 = vmatprep.subr.mxu0 0.0
    %10336 = vmatpush1.msra.mxu0 0.0
    %10337 = vmatprep.subr.mxu0 0.0
    %10338 = vmatpush1.msra.mxu0 0.0
    %10339 = vmatprep.subr.mxu0 0.0
    %10340 = vmatpush1.msra.mxu0 0.0
    %10341 = vmatprep.subr.mxu0 0.0
    %10342 = vmatpush1.msra.mxu0 0.0
    %10343 = vmatprep.subr.mxu0 0.0
    %10344 = vmatpush1.msra.mxu0 0.0
    %10345 = vmatprep.subr.mxu0 0.0
    %10346 = vmatpush1.msra.mxu0 0.0
    %10347 = vmatprep.mubr.f32.mxu0 0.0
    %10348 = vmatmul.mubr.f32.gmra.mrb[0].mxu0 %v10281
    %v10349 = vpop.f32.mrb[0].mxu0
    %v10350 = vadd.f32 0.0, %v10349
    %v10351 = vpop.f32.mrb[0].mxu0
    %10352 = vdwg.mxu0
    %v10353 = vlaneseq
    %v10354 = vshrl.u32 %v10353, 7
    %v10355 = vsub.s32 0, %v10354
    %v10356 = vrot.slane %v10350, %v10355
    %v10357 = vmul.f32 %v10088, %v10356
    %v10359 = vsel %vm10279, %v10274, 0
    %10361 = vmatprep.subr.mxu0 0.0
    %10362 = vmatpush1.msra.mxu0 %v10275
    %10363 = vmatprep.subr.mxu0 0.0
    %10364 = vmatpush1.msra.mxu0 %v10276
    %10365 = vmatprep.subr.mxu0 0.0
    %10366 = vmatpush1.msra.mxu0 %v10277
    %10367 = vmatprep.subr.mxu0 0.0
    %10368 = vmatpush1.msra.mxu0 %v10278
    %10369 = vmatprep.subr.mxu0 0.0
    %10370 = vmatpush1.msra.mxu0 0.0
    %10371 = vmatprep.subr.mxu0 0.0
    %10372 = vmatpush1.msra.mxu0 0.0
    %10373 = vmatprep.subr.mxu0 0.0
    %10374 = vmatpush1.msra.mxu0 0.0
    %10375 = vmatprep.subr.mxu0 0.0
    %10376 = vmatpush1.msra.mxu0 0.0
    %10377 = vmatprep.subr.mxu0 0.0
    %10378 = vmatpush1.msra.mxu0 0.0
    %10379 = vmatprep.subr.mxu0 0.0
    %10380 = vmatpush1.msra.mxu0 0.0
    %10381 = vmatprep.subr.mxu0 0.0
    %10382 = vmatpush1.msra.mxu0 0.0
    %10383 = vmatprep.subr.mxu0 0.0
    %10384 = vmatpush1.msra.mxu0 0.0
    %10385 = vmatprep.subr.mxu0 0.0
    %10386 = vmatpush1.msra.mxu0 0.0
    %10387 = vmatprep.subr.mxu0 0.0
    %10388 = vmatpush1.msra.mxu0 0.0
    %10389 = vmatprep.subr.mxu0 0.0
    %10390 = vmatpush1.msra.mxu0 0.0
    %10391 = vmatprep.subr.mxu0 0.0
    %10392 = vmatpush1.msra.mxu0 0.0
    %10393 = vmatprep.subr.mxu0 0.0
    %10394 = vmatpush1.msra.mxu0 0.0
    %10395 = vmatprep.subr.mxu0 0.0
    %10396 = vmatpush1.msra.mxu0 0.0
    %10397 = vmatprep.subr.mxu0 0.0
    %10398 = vmatpush1.msra.mxu0 0.0
    %10399 = vmatprep.subr.mxu0 0.0
    %10400 = vmatpush1.msra.mxu0 0.0
    %10401 = vmatprep.subr.mxu0 0.0
    %10402 = vmatpush1.msra.mxu0 0.0
    %10403 = vmatprep.subr.mxu0 0.0
    %10404 = vmatpush1.msra.mxu0 0.0
    %10405 = vmatprep.subr.mxu0 0.0
    %10406 = vmatpush1.msra.mxu0 0.0
    %10407 = vmatprep.subr.mxu0 0.0
    %10408 = vmatpush1.msra.mxu0 0.0
    %10409 = vmatprep.subr.mxu0 0.0
    %10410 = vmatpush1.msra.mxu0 0.0
    %10411 = vmatprep.subr.mxu0 0.0
    %10412 = vmatpush1.msra.mxu0 0.0
    %10413 = vmatprep.subr.mxu0 0.0
    %10414 = vmatpush1.msra.mxu0 0.0
    %10415 = vmatprep.subr.mxu0 0.0
    %10416 = vmatpush1.msra.mxu0 0.0
    %10417 = vmatprep.subr.mxu0 0.0
    %10418 = vmatpush1.msra.mxu0 0.0
    %10419 = vmatprep.subr.mxu0 0.0
    %10420 = vmatpush1.msra.mxu0 0.0
    %10421 = vmatprep.subr.mxu0 0.0
    %10422 = vmatpush1.msra.mxu0 0.0
    %10423 = vmatprep.subr.mxu0 0.0
    %10424 = vmatpush1.msra.mxu0 0.0
    %10425 = vmatprep.mubr.f32.mxu0 0.0
    %10426 = vmatmul.mubr.f32.gmra.mrb[0].mxu0 %v10359
    %v10427 = vpop.f32.mrb[0].mxu0
    %v10428 = vadd.f32 0.0, %v10427
    %v10429 = vpop.f32.mrb[0].mxu0
    %10430 = vdwg.mxu0
    %v10431 = vlaneseq
    %v10432 = vshrl.u32 %v10431, 7
    %v10433 = vsub.s32 0, %v10432
    %v10434 = vrot.slane %v10428, %v10433
    %v10435 = vadd.f32 %v10357, %v10434
    %v10436 = vld [vmem:[%s31] sm:$0xff]
    %v10437 = vld [vmem:[%s31 + $0x8] sm:$0xff]
    %v10438 = vld [vmem:[%s31 + $0x10] sm:$0xff]
    %v10439 = vld [vmem:[%s31 + $0x18] sm:$0xff]
    %v10440 = vld [vmem:[%s31 + $0x20] sm:$0xff]
    %v10441 = vld [vmem:[%s31 + $0x28] sm:$0xff]
    %v10442 = vld [vmem:[%s31 + $0x30] sm:$0xff]
    %v10443 = vld [vmem:[%s31 + $0x38] sm:$0xff]
    %v10444 = vld [vmem:[%s31 + $0x40] sm:$0xff]
    %v10445 = vld [vmem:[%s31 + $0x48] sm:$0xff]
    %v10446 = vld [vmem:[%s31 + $0x50] sm:$0xff]
    %v10447 = vld [vmem:[%s31 + $0x58] sm:$0xff]
    %v10448 = vld [vmem:[%s31 + $0x60] sm:$0xff]
    %v10449 = vld [vmem:[%s31 + $0x68] sm:$0xff]
    %v10450 = vld [vmem:[%s31 + $0x70] sm:$0xff]
    %v10451 = vld [vmem:[%s31 + $0x78] sm:$0xff]
    %v10452 = vld [vmem:[#allocation22] sm:$0x1]
    %v10454 = vlaneseq
    %v10455 = vshrl.u32 %v10454, 7
    %v10456 = vsub.s32 0, %v10455
    %v10457 = vrot.slane %v10452, %v10456
    %10459 = vmatprep.subr.mxu0 0.0
    %10460 = vmatpush1.msra.mxu0 %v10436
    %10461 = vmatprep.subr.mxu0 0.0
    %10462 = vmatpush1.msra.mxu0 %v10437
    %10463 = vmatprep.subr.mxu0 0.0
    %10464 = vmatpush1.msra.mxu0 %v10438
    %10465 = vmatprep.subr.mxu0 0.0
    %10466 = vmatpush1.msra.mxu0 %v10439
    %10467 = vmatprep.subr.mxu0 0.0
    %10468 = vmatpush1.msra.mxu0 %v10440
    %10469 = vmatprep.subr.mxu0 0.0
    %10470 = vmatpush1.msra.mxu0 %v10441
    %10471 = vmatprep.subr.mxu0 0.0
    %10472 = vmatpush1.msra.mxu0 %v10442
    %10473 = vmatprep.subr.mxu0 0.0
    %10474 = vmatpush1.msra.mxu0 %v10443
    %10475 = vmatprep.subr.mxu0 0.0
    %10476 = vmatpush1.msra.mxu0 %v10444
    %10477 = vmatprep.subr.mxu0 0.0
    %10478 = vmatpush1.msra.mxu0 %v10445
    %10479 = vmatprep.subr.mxu0 0.0
    %10480 = vmatpush1.msra.mxu0 %v10446
    %10481 = vmatprep.subr.mxu0 0.0
    %10482 = vmatpush1.msra.mxu0 %v10447
    %10483 = vmatprep.subr.mxu0 0.0
    %10484 = vmatpush1.msra.mxu0 %v10448
    %10485 = vmatprep.subr.mxu0 0.0
    %10486 = vmatpush1.msra.mxu0 %v10449
    %10487 = vmatprep.subr.mxu0 0.0
    %10488 = vmatpush1.msra.mxu0 %v10450
    %10489 = vmatprep.subr.mxu0 0.0
    %10490 = vmatpush1.msra.mxu0 %v10451
    %10491 = vmatprep.subr.mxu0 0.0
    %10492 = vmatpush1.msra.mxu0 0.0
    %10493 = vmatprep.subr.mxu0 0.0
    %10494 = vmatpush1.msra.mxu0 0.0
    %10495 = vmatprep.subr.mxu0 0.0
    %10496 = vmatpush1.msra.mxu0 0.0
    %10497 = vmatprep.subr.mxu0 0.0
    %10498 = vmatpush1.msra.mxu0 0.0
    %10499 = vmatprep.subr.mxu0 0.0
    %10500 = vmatpush1.msra.mxu0 0.0
    %10501 = vmatprep.subr.mxu0 0.0
    %10502 = vmatpush1.msra.mxu0 0.0
    %10503 = vmatprep.subr.mxu0 0.0
    %10504 = vmatpush1.msra.mxu0 0.0
    %10505 = vmatprep.subr.mxu0 0.0
    %10506 = vmatpush1.msra.mxu0 0.0
    %10507 = vmatprep.subr.mxu0 0.0
    %10508 = vmatpush1.msra.mxu0 0.0
    %10509 = vmatprep.subr.mxu0 0.0
    %10510 = vmatpush1.msra.mxu0 0.0
    %10511 = vmatprep.subr.mxu0 0.0
    %10512 = vmatpush1.msra.mxu0 0.0
    %10513 = vmatprep.subr.mxu0 0.0
    %10514 = vmatpush1.msra.mxu0 0.0
    %10515 = vmatprep.subr.mxu0 0.0
    %10516 = vmatpush1.msra.mxu0 0.0
    %10517 = vmatprep.subr.mxu0 0.0
    %10518 = vmatpush1.msra.mxu0 0.0
    %10519 = vmatprep.subr.mxu0 0.0
    %10520 = vmatpush1.msra.mxu0 0.0
    %10521 = vmatprep.subr.mxu0 0.0
    %10522 = vmatpush1.msra.mxu0 0.0
    %10523 = vmatprep.mubr.f32.mxu0 0.0
    %10524 = vmatmul.mubr.f32.gmra.mrb[0].mxu0 %v10435
    %v10525 = vpop.f32.mrb[0].mxu0
    %v10526 = vadd.f32 %v10457, %v10525
    %v10527 = vpop.f32.mrb[0].mxu0
    %10528 = vdwg.mxu0
    %vm10529 = vcmp.gt.f32.partialorder %v10526, 0.0
    %v10530 = vmul.f32 %v10526, 0.2
    %v10531 = vsel %vm10529, %v10526, %v10530
    %v10532 = vld [vmem:[#allocation24] sm:$0xff]
    %v10533 = vld [vmem:[#allocation24 + $0x8] sm:$0xff]
    %v10534 = vld [vmem:[#allocation24 + $0x10] sm:$0xff]
    %v10535 = vld [vmem:[#allocation24 + $0x18] sm:$0xff]
    %v10536 = vld [vmem:[#allocation24 + $0x20] sm:$0xff]
    %v10537 = vld [vmem:[#allocation24 + $0x28] sm:$0xff]
    %v10538 = vld [vmem:[#allocation24 + $0x30] sm:$0xff]
    %v10539 = vld [vmem:[#allocation24 + $0x38] sm:$0xff]
    %v10540 = vld [vmem:[#allocation24 + $0x40] sm:$0xff]
    %v10541 = vld [vmem:[#allocation24 + $0x48] sm:$0xff]
    %v10542 = vld [vmem:[#allocation24 + $0x50] sm:$0xff]
    %v10543 = vld [vmem:[#allocation24 + $0x58] sm:$0xff]
    %v10544 = vld [vmem:[#allocation24 + $0x60] sm:$0xff]
    %v10545 = vld [vmem:[#allocation24 + $0x68] sm:$0xff]
    %v10546 = vld [vmem:[#allocation24 + $0x70] sm:$0xff]
    %v10547 = vld [vmem:[#allocation24 + $0x78] sm:$0xff]
    %vm10548 = vcmask 523264
    %v10550 = vsel %vm10548, %v10531, 0
    %10552 = vmatprep.subr.mxu0 %v10533
    %10553 = vmatpush1.msra.mxu0 %v10532
    %10554 = vmatprep.subr.mxu0 %v10535
    %10555 = vmatpush1.msra.mxu0 %v10534
    %10556 = vmatprep.subr.mxu0 %v10537
    %10557 = vmatpush1.msra.mxu0 %v10536
    %10558 = vmatprep.subr.mxu0 %v10539
    %10559 = vmatpush1.msra.mxu0 %v10538
    %10560 = vmatprep.subr.mxu0 %v10541
    %10561 = vmatpush1.msra.mxu0 %v10540
    %10562 = vmatprep.subr.mxu0 %v10543
    %10563 = vmatpush1.msra.mxu0 %v10542
    %10564 = vmatprep.subr.mxu0 %v10545
    %10565 = vmatpush1.msra.mxu0 %v10544
    %10566 = vmatprep.subr.mxu0 %v10547
    %10567 = vmatpush1.msra.mxu0 %v10546
    %10568 = vmatprep.subr.mxu0 0.0
    %10569 = vmatpush1.msra.mxu0 0.0
    %10570 = vmatprep.subr.mxu0 0.0
    %10571 = vmatpush1.msra.mxu0 0.0
    %10572 = vmatprep.subr.mxu0 0.0
    %10573 = vmatpush1.msra.mxu0 0.0
    %10574 = vmatprep.subr.mxu0 0.0
    %10575 = vmatpush1.msra.mxu0 0.0
    %10576 = vmatprep.subr.mxu0 0.0
    %10577 = vmatpush1.msra.mxu0 0.0
    %10578 = vmatprep.subr.mxu0 0.0
    %10579 = vmatpush1.msra.mxu0 0.0
    %10580 = vmatprep.subr.mxu0 0.0
    %10581 = vmatpush1.msra.mxu0 0.0
    %10582 = vmatprep.subr.mxu0 0.0
    %10583 = vmatpush1.msra.mxu0 0.0
    %10584 = vmatprep.subr.mxu0 0.0
    %10585 = vmatpush1.msra.mxu0 0.0
    %10586 = vmatprep.subr.mxu0 0.0
    %10587 = vmatpush1.msra.mxu0 0.0
    %10588 = vmatprep.subr.mxu0 0.0
    %10589 = vmatpush1.msra.mxu0 0.0
    %10590 = vmatprep.subr.mxu0 0.0
    %10591 = vmatpush1.msra.mxu0 0.0
    %10592 = vmatprep.subr.mxu0 0.0
    %10593 = vmatpush1.msra.mxu0 0.0
    %10594 = vmatprep.subr.mxu0 0.0
    %10595 = vmatpush1.msra.mxu0 0.0
    %10596 = vmatprep.subr.mxu0 0.0
    %10597 = vmatpush1.msra.mxu0 0.0
    %10598 = vmatprep.subr.mxu0 0.0
    %10599 = vmatpush1.msra.mxu0 0.0
    %10600 = vmatprep.subr.mxu0 0.0
    %10601 = vmatpush1.msra.mxu0 0.0
    %10602 = vmatprep.subr.mxu0 0.0
    %10603 = vmatpush1.msra.mxu0 0.0
    %10604 = vmatprep.subr.mxu0 0.0
    %10605 = vmatpush1.msra.mxu0 0.0
    %10606 = vmatprep.subr.mxu0 0.0
    %10607 = vmatpush1.msra.mxu0 0.0
    %10608 = vmatprep.subr.mxu0 0.0
    %10609 = vmatpush1.msra.mxu0 0.0
    %10610 = vmatprep.subr.mxu0 0.0
    %10611 = vmatpush1.msra.mxu0 0.0
    %10612 = vmatprep.subr.mxu0 0.0
    %10613 = vmatpush1.msra.mxu0 0.0
    %10614 = vmatprep.subr.mxu0 0.0
    %10615 = vmatpush1.msra.mxu0 0.0
    %10616 = vmatprep.mubr.f32.mxu0 0.0
    %10617 = vmatmul.mubr.f32.gmra.mrb[0].mxu0 %v10550
    %v10618 = vpop.f32.mrb[0].mxu0
    %v10619 = vadd.f32 0.0, %v10618
    %v10620 = vpop.f32.mrb[0].mxu0
    %v10621 = vadd.f32 0.0, %v10620
    %10622 = vdwg.mxu0
    %v10623 = vsel %vm10091, %v10619, 0.0
    %v10624 = vrot.slane %v10623, 4
    %v10625 = vadd.f32 %v10623, %v10624
    %v10626 = vrot.slane %v10625, 2
    %v10627 = vadd.f32 %v10625, %v10626
    %v10628 = vrot.slane %v10627, 1
    %v10629 = vadd.f32 %v10627, %v10628
    %v10630 = vsel %vm10091, %v10621, 0.0
    %v10631 = vrot.slane %v10630, 4
    %v10632 = vadd.f32 %v10630, %v10631
    %v10633 = vrot.slane %v10632, 2
    %v10634 = vadd.f32 %v10632, %v10633
    %v10635 = vrot.slane %v10634, 1
    %v10636 = vadd.f32 %v10634, %v10635
    %v10637 = vmul.f32 %v10619, %v10619
    %v10638 = vmul.f32 %v10621, %v10621
    %v10639 = vsel %vm10091, %v10637, 0.0
    %v10640 = vrot.slane %v10639, 4
    %v10641 = vadd.f32 %v10639, %v10640
    %v10642 = vrot.slane %v10641, 2
    %v10643 = vadd.f32 %v10641, %v10642
    %v10644 = vrot.slane %v10643, 1
    %v10645 = vadd.f32 %v10643, %v10644
    %v10646 = vsel %vm10091, %v10638, 0.0
    %v10647 = vrot.slane %v10646, 4
    %v10648 = vadd.f32 %v10646, %v10647
    %v10649 = vrot.slane %v10648, 2
    %v10650 = vadd.f32 %v10648, %v10649
    %v10651 = vrot.slane %v10650, 1
    %v10652 = vadd.f32 %v10650, %v10651
    %v10653 = vld [vmem:[%s41] sm:$0xff]
    %v10654 = vld [vmem:[%s41 + $0x8] sm:$0xff]
    %v10655 = vld [vmem:[%s41 + $0x10] sm:$0xff]
    %v10656 = vld [vmem:[%s41 + $0x18] sm:$0xff]
    %v10657 = vld [vmem:[%s41 + $0x20] sm:$0xff]
    %v10658 = vld [vmem:[%s41 + $0x28] sm:$0xff]
    %v10659 = vld [vmem:[%s41 + $0x30] sm:$0xff]
    %v10660 = vld [vmem:[%s41 + $0x38] sm:$0xff]
    %v10661 = vld [vmem:[%s41 + $0x40] sm:$0xff]
    %v10662 = vld [vmem:[%s41 + $0x48] sm:$0xff]
    %v10663 = vld [vmem:[%s41 + $0x50] sm:$0xff]
    %v10664 = vld [vmem:[%s41 + $0x58] sm:$0xff]
    %v10665 = vld [vmem:[%s41 + $0x60] sm:$0xff]
    %v10666 = vld [vmem:[%s41 + $0x68] sm:$0xff]
    %v10667 = vld [vmem:[%s41 + $0x70] sm:$0xff]
    %v10668 = vld [vmem:[%s41 + $0x78] sm:$0xff]
    %v10669 = vld [vmem:[%s41 + $0x80] sm:$0xff]
    %v10670 = vld [vmem:[%s41 + $0x88] sm:$0xff]
    %v10671 = vld [vmem:[%s41 + $0x90] sm:$0xff]
    %v10672 = vld [vmem:[%s41 + $0x98] sm:$0xff]
    %v10673 = vld [vmem:[%s41 + $0xa0] sm:$0xff]
    %v10674 = vld [vmem:[%s41 + $0xa8] sm:$0xff]
    %v10675 = vld [vmem:[%s41 + $0xb0] sm:$0xff]
    %v10676 = vld [vmem:[%s41 + $0xb8] sm:$0xff]
    %v10677 = vld [vmem:[%s41 + $0xc0] sm:$0xff]
    %v10678 = vld [vmem:[%s41 + $0xc8] sm:$0xff]
    %v10679 = vld [vmem:[%s41 + $0xd0] sm:$0xff]
    %v10680 = vld [vmem:[%s41 + $0xd8] sm:$0xff]
    %v10681 = vld [vmem:[%s41 + $0xe0] sm:$0xff]
    %v10682 = vld [vmem:[%s41 + $0xe8] sm:$0xff]
    %v10683 = vld [vmem:[%s41 + $0xf0] sm:$0xff]
    %v10684 = vld [vmem:[%s41 + $0xf8] sm:$0xff]
    %10685 = vmatprep.subr.mxu0 0.0
    %10686 = vmatpush1.msra.mxu0 %v10653
    %10687 = vmatprep.subr.mxu0 0.0
    %10688 = vmatpush1.msra.mxu0 %v10654
    %10689 = vmatprep.subr.mxu0 0.0
    %10690 = vmatpush1.msra.mxu0 %v10655
    %10691 = vmatprep.subr.mxu0 0.0
    %10692 = vmatpush1.msra.mxu0 %v10656
    %10693 = vmatprep.subr.mxu0 0.0
    %10694 = vmatpush1.msra.mxu0 %v10657
    %10695 = vmatprep.subr.mxu0 0.0
    %10696 = vmatpush1.msra.mxu0 %v10658
    %10697 = vmatprep.subr.mxu0 0.0
    %10698 = vmatpush1.msra.mxu0 %v10659
    %10699 = vmatprep.subr.mxu0 0.0
    %10700 = vmatpush1.msra.mxu0 %v10660
    %10701 = vmatprep.subr.mxu0 0.0
    %10702 = vmatpush1.msra.mxu0 %v10661
    %10703 = vmatprep.subr.mxu0 0.0
    %10704 = vmatpush1.msra.mxu0 %v10662
    %10705 = vmatprep.subr.mxu0 0.0
    %10706 = vmatpush1.msra.mxu0 %v10663
    %10707 = vmatprep.subr.mxu0 0.0
    %10708 = vmatpush1.msra.mxu0 %v10664
    %10709 = vmatprep.subr.mxu0 0.0
    %10710 = vmatpush1.msra.mxu0 %v10665
    %10711 = vmatprep.subr.mxu0 0.0
    %10712 = vmatpush1.msra.mxu0 %v10666
    %10713 = vmatprep.subr.mxu0 0.0
    %10714 = vmatpush1.msra.mxu0 %v10667
    %10715 = vmatprep.subr.mxu0 0.0
    %10716 = vmatpush1.msra.mxu0 %v10668
    %10717 = vmatprep.subr.mxu0 0.0
    %10718 = vmatpush1.msra.mxu0 %v10669
    %10719 = vmatprep.subr.mxu0 0.0
    %10720 = vmatpush1.msra.mxu0 %v10670
    %10721 = vmatprep.subr.mxu0 0.0
    %10722 = vmatpush1.msra.mxu0 %v10671
    %10723 = vmatprep.subr.mxu0 0.0
    %10724 = vmatpush1.msra.mxu0 %v10672
    %10725 = vmatprep.subr.mxu0 0.0
    %10726 = vmatpush1.msra.mxu0 %v10673
    %10727 = vmatprep.subr.mxu0 0.0
    %10728 = vmatpush1.msra.mxu0 %v10674
    %10729 = vmatprep.subr.mxu0 0.0
    %10730 = vmatpush1.msra.mxu0 %v10675
    %10731 = vmatprep.subr.mxu0 0.0
    %10732 = vmatpush1.msra.mxu0 %v10676
    %10733 = vmatprep.subr.mxu0 0.0
    %10734 = vmatpush1.msra.mxu0 %v10677
    %10735 = vmatprep.subr.mxu0 0.0
    %10736 = vmatpush1.msra.mxu0 %v10678
    %10737 = vmatprep.subr.mxu0 0.0
    %10738 = vmatpush1.msra.mxu0 %v10679
    %10739 = vmatprep.subr.mxu0 0.0
    %10740 = vmatpush1.msra.mxu0 %v10680
    %10741 = vmatprep.subr.mxu0 0.0
    %10742 = vmatpush1.msra.mxu0 %v10681
    %10743 = vmatprep.subr.mxu0 0.0
    %10744 = vmatpush1.msra.mxu0 %v10682
    %10745 = vmatprep.subr.mxu0 0.0
    %10746 = vmatpush1.msra.mxu0 %v10683
    %10747 = vmatprep.subr.mxu0 0.0
    %10748 = vmatpush1.msra.mxu0 %v10684
    %10749 = vmatprep.mubr.f32.mxu0 %v10636
    %10750 = vmatmul.mubr.f32.gmra.mrb[0].mxu0 %v10629
    %v10751 = vpop.f32.mrb[0].mxu0
    %v10752 = vadd.f32 0.0, %v10751
    %v10753 = vpop.f32.mrb[0].mxu0
    %10754 = vdwg.mxu0
    %v10755 = vmul.f32 %v10752, 0.03125
    %10756 = vmatprep.subr.mxu0 0.0
    %10757 = vmatpush1.msra.mxu0 %v10653
    %10758 = vmatprep.subr.mxu0 0.0
    %10759 = vmatpush1.msra.mxu0 %v10654
    %10760 = vmatprep.subr.mxu0 0.0
    %10761 = vmatpush1.msra.mxu0 %v10655
    %10762 = vmatprep.subr.mxu0 0.0
    %10763 = vmatpush1.msra.mxu0 %v10656
    %10764 = vmatprep.subr.mxu0 0.0
    %10765 = vmatpush1.msra.mxu0 %v10657
    %10766 = vmatprep.subr.mxu0 0.0
    %10767 = vmatpush1.msra.mxu0 %v10658
    %10768 = vmatprep.subr.mxu0 0.0
    %10769 = vmatpush1.msra.mxu0 %v10659
    %10770 = vmatprep.subr.mxu0 0.0
    %10771 = vmatpush1.msra.mxu0 %v10660
    %10772 = vmatprep.subr.mxu0 0.0
    %10773 = vmatpush1.msra.mxu0 %v10661
    %10774 = vmatprep.subr.mxu0 0.0
    %10775 = vmatpush1.msra.mxu0 %v10662
    %10776 = vmatprep.subr.mxu0 0.0
    %10777 = vmatpush1.msra.mxu0 %v10663
    %10778 = vmatprep.subr.mxu0 0.0
    %10779 = vmatpush1.msra.mxu0 %v10664
    %10780 = vmatprep.subr.mxu0 0.0
    %10781 = vmatpush1.msra.mxu0 %v10665
    %10782 = vmatprep.subr.mxu0 0.0
    %10783 = vmatpush1.msra.mxu0 %v10666
    %10784 = vmatprep.subr.mxu0 0.0
    %10785 = vmatpush1.msra.mxu0 %v10667
    %10786 = vmatprep.subr.mxu0 0.0
    %10787 = vmatpush1.msra.mxu0 %v10668
    %10788 = vmatprep.subr.mxu0 0.0
    %10789 = vmatpush1.msra.mxu0 %v10669
    %10790 = vmatprep.subr.mxu0 0.0
    %10791 = vmatpush1.msra.mxu0 %v10670
    %10792 = vmatprep.subr.mxu0 0.0
    %10793 = vmatpush1.msra.mxu0 %v10671
    %10794 = vmatprep.subr.mxu0 0.0
    %10795 = vmatpush1.msra.mxu0 %v10672
    %10796 = vmatprep.subr.mxu0 0.0
    %10797 = vmatpush1.msra.mxu0 %v10673
    %10798 = vmatprep.subr.mxu0 0.0
    %10799 = vmatpush1.msra.mxu0 %v10674
    %10800 = vmatprep.subr.mxu0 0.0
    %10801 = vmatpush1.msra.mxu0 %v10675
    %10802 = vmatprep.subr.mxu0 0.0
    %10803 = vmatpush1.msra.mxu0 %v10676
    %10804 = vmatprep.subr.mxu0 0.0
    %10805 = vmatpush1.msra.mxu0 %v10677
    %10806 = vmatprep.subr.mxu0 0.0
    %10807 = vmatpush1.msra.mxu0 %v10678
    %10808 = vmatprep.subr.mxu0 0.0
    %10809 = vmatpush1.msra.mxu0 %v10679
    %10810 = vmatprep.subr.mxu0 0.0
    %10811 = vmatpush1.msra.mxu0 %v10680
    %10812 = vmatprep.subr.mxu0 0.0
    %10813 = vmatpush1.msra.mxu0 %v10681
    %10814 = vmatprep.subr.mxu0 0.0
    %10815 = vmatpush1.msra.mxu0 %v10682
    %10816 = vmatprep.subr.mxu0 0.0
    %10817 = vmatpush1.msra.mxu0 %v10683
    %10818 = vmatprep.subr.mxu0 0.0
    %10819 = vmatpush1.msra.mxu0 %v10684
    %10820 = vmatprep.mubr.f32.mxu0 %v10652
    %10821 = vmatmul.mubr.f32.gmra.mrb[0].mxu0 %v10645
    %v10822 = vpop.f32.mrb[0].mxu0
    %v10823 = vadd.f32 0.0, %v10822
    %v10824 = vpop.f32.mrb[0].mxu0
    %10825 = vdwg.mxu0
    %v10826 = vmul.f32 %v10823, 0.03125
    %v10827 = vmul.f32 %v10755, %v10755
    %v10828 = vsub.f32 %v10826, %v10827
    %v10829 = vmax.f32 %v10828, 0.0
    %v10830 = vld [vmem:[#allocation25] sm:$0x1]
    %v10831 = vadd.f32 %v10829, 1e-05
    %v10832 = vrsqrt.pop %v10831
    %v10833 = vmul.f32 %v10830, %v10832
    %v10834 = vld [vmem:[#allocation27] sm:$0x1]
    %v10835 = vmul.f32 %v10755, %v10833
    %v10836 = vsub.f32 %v10834, %v10835
    %v10837 = vld [vmem:[#allocation28] sm:$0xff]
    %v10838 = vld [vmem:[#allocation28 + $0x8] sm:$0xff]
    %v10839 = vld [vmem:[#allocation28 + $0x10] sm:$0xff]
    %v10840 = vld [vmem:[#allocation28 + $0x18] sm:$0xff]
    %vm10841 = vcmask 130048
    %v10843 = vsel %vm10841, %v10833, 0
    %10845 = vmatprep.subr.mxu0 %v10838
    %10846 = vmatpush1.msra.mxu0 %v10837
    %10847 = vmatprep.subr.mxu0 %v10840
    %10848 = vmatpush1.msra.mxu0 %v10839
    %10849 = vmatprep.subr.mxu0 0.0
    %10850 = vmatpush1.msra.mxu0 0.0
    %10851 = vmatprep.subr.mxu0 0.0
    %10852 = vmatpush1.msra.mxu0 0.0
    %10853 = vmatprep.subr.mxu0 0.0
    %10854 = vmatpush1.msra.mxu0 0.0
    %10855 = vmatprep.subr.mxu0 0.0
    %10856 = vmatpush1.msra.mxu0 0.0
    %10857 = vmatprep.subr.mxu0 0.0
    %10858 = vmatpush1.msra.mxu0 0.0
    %10859 = vmatprep.subr.mxu0 0.0
    %10860 = vmatpush1.msra.mxu0 0.0
    %10861 = vmatprep.subr.mxu0 0.0
    %10862 = vmatpush1.msra.mxu0 0.0
    %10863 = vmatprep.subr.mxu0 0.0
    %10864 = vmatpush1.msra.mxu0 0.0
    %10865 = vmatprep.subr.mxu0 0.0
    %10866 = vmatpush1.msra.mxu0 0.0
    %10867 = vmatprep.subr.mxu0 0.0
    %10868 = vmatpush1.msra.mxu0 0.0
    %10869 = vmatprep.subr.mxu0 0.0
    %10870 = vmatpush1.msra.mxu0 0.0
    %10871 = vmatprep.subr.mxu0 0.0
    %10872 = vmatpush1.msra.mxu0 0.0
    %10873 = vmatprep.subr.mxu0 0.0
    %10874 = vmatpush1.msra.mxu0 0.0
    %10875 = vmatprep.subr.mxu0 0.0
    %10876 = vmatpush1.msra.mxu0 0.0
    %10877 = vmatprep.subr.mxu0 0.0
    %10878 = vmatpush1.msra.mxu0 0.0
    %10879 = vmatprep.subr.mxu0 0.0
    %10880 = vmatpush1.msra.mxu0 0.0
    %10881 = vmatprep.subr.mxu0 0.0
    %10882 = vmatpush1.msra.mxu0 0.0
    %10883 = vmatprep.subr.mxu0 0.0
    %10884 = vmatpush1.msra.mxu0 0.0
    %10885 = vmatprep.subr.mxu0 0.0
    %10886 = vmatpush1.msra.mxu0 0.0
    %10887 = vmatprep.subr.mxu0 0.0
    %10888 = vmatpush1.msra.mxu0 0.0
    %10889 = vmatprep.subr.mxu0 0.0
    %10890 = vmatpush1.msra.mxu0 0.0
    %10891 = vmatprep.subr.mxu0 0.0
    %10892 = vmatpush1.msra.mxu0 0.0
    %10893 = vmatprep.subr.mxu0 0.0
    %10894 = vmatpush1.msra.mxu0 0.0
    %10895 = vmatprep.subr.mxu0 0.0
    %10896 = vmatpush1.msra.mxu0 0.0
    %10897 = vmatprep.subr.mxu0 0.0
    %10898 = vmatpush1.msra.mxu0 0.0
    %10899 = vmatprep.subr.mxu0 0.0
    %10900 = vmatpush1.msra.mxu0 0.0
    %10901 = vmatprep.subr.mxu0 0.0
    %10902 = vmatpush1.msra.mxu0 0.0
    %10903 = vmatprep.subr.mxu0 0.0
    %10904 = vmatpush1.msra.mxu0 0.0
    %10905 = vmatprep.subr.mxu0 0.0
    %10906 = vmatpush1.msra.mxu0 0.0
    %10907 = vmatprep.subr.mxu0 0.0
    %10908 = vmatpush1.msra.mxu0 0.0
    %10909 = vmatprep.mubr.f32.mxu0 0.0
    %10910 = vmatmul.mubr.f32.gmra.mrb[0].mxu0 %v10843
    %v10911 = vpop.f32.mrb[0].mxu0
    %v10912 = vadd.f32 0.0, %v10911
    %v10913 = vpop.f32.mrb[0].mxu0
    %v10914 = vadd.f32 0.0, %v10913
    %10915 = vdwg.mxu0
    %v10916 = vlaneseq
    %v10917 = vshrl.u32 %v10916, 7
    %v10918 = vsub.s32 0, %v10917
    %v10919 = vrot.slane %v10912, %v10918
    %v10920 = vlaneseq
    %v10921 = vshrl.u32 %v10920, 7
    %v10922 = vsub.s32 0, %v10921
    %v10923 = vrot.slane %v10914, %v10922
    %v10924 = vmul.f32 %v10619, %v10919
    %v10925 = vmul.f32 %v10621, %v10923
    %v10927 = vsel %vm10841, %v10836, 0
    %10929 = vmatprep.subr.mxu0 %v10838
    %10930 = vmatpush1.msra.mxu0 %v10837
    %10931 = vmatprep.subr.mxu0 %v10840
    %10932 = vmatpush1.msra.mxu0 %v10839
    %10933 = vmatprep.subr.mxu0 0.0
    %10934 = vmatpush1.msra.mxu0 0.0
    %10935 = vmatprep.subr.mxu0 0.0
    %10936 = vmatpush1.msra.mxu0 0.0
    %10937 = vmatprep.subr.mxu0 0.0
    %10938 = vmatpush1.msra.mxu0 0.0
    %10939 = vmatprep.subr.mxu0 0.0
    %10940 = vmatpush1.msra.mxu0 0.0
    %10941 = vmatprep.subr.mxu0 0.0
    %10942 = vmatpush1.msra.mxu0 0.0
    %10943 = vmatprep.subr.mxu0 0.0
    %10944 = vmatpush1.msra.mxu0 0.0
    %10945 = vmatprep.subr.mxu0 0.0
    %10946 = vmatpush1.msra.mxu0 0.0
    %10947 = vmatprep.subr.mxu0 0.0
    %10948 = vmatpush1.msra.mxu0 0.0
    %10949 = vmatprep.subr.mxu0 0.0
    %10950 = vmatpush1.msra.mxu0 0.0
    %10951 = vmatprep.subr.mxu0 0.0
    %10952 = vmatpush1.msra.mxu0 0.0
    %10953 = vmatprep.subr.mxu0 0.0
    %10954 = vmatpush1.msra.mxu0 0.0
    %10955 = vmatprep.subr.mxu0 0.0
    %10956 = vmatpush1.msra.mxu0 0.0
    %10957 = vmatprep.subr.mxu0 0.0
    %10958 = vmatpush1.msra.mxu0 0.0
    %10959 = vmatprep.subr.mxu0 0.0
    %10960 = vmatpush1.msra.mxu0 0.0
    %10961 = vmatprep.subr.mxu0 0.0
    %10962 = vmatpush1.msra.mxu0 0.0
    %10963 = vmatprep.subr.mxu0 0.0
    %10964 = vmatpush1.msra.mxu0 0.0
    %10965 = vmatprep.subr.mxu0 0.0
    %10966 = vmatpush1.msra.mxu0 0.0
    %10967 = vmatprep.subr.mxu0 0.0
    %10968 = vmatpush1.msra.mxu0 0.0
    %10969 = vmatprep.subr.mxu0 0.0
    %10970 = vmatpush1.msra.mxu0 0.0
    %10971 = vmatprep.subr.mxu0 0.0
    %10972 = vmatpush1.msra.mxu0 0.0
    %10973 = vmatprep.subr.mxu0 0.0
    %10974 = vmatpush1.msra.mxu0 0.0
    %10975 = vmatprep.subr.mxu0 0.0
    %10976 = vmatpush1.msra.mxu0 0.0
    %10977 = vmatprep.subr.mxu0 0.0
    %10978 = vmatpush1.msra.mxu0 0.0
    %10979 = vmatprep.subr.mxu0 0.0
    %10980 = vmatpush1.msra.mxu0 0.0
    %10981 = vmatprep.subr.mxu0 0.0
    %10982 = vmatpush1.msra.mxu0 0.0
    %10983 = vmatprep.subr.mxu0 0.0
    %10984 = vmatpush1.msra.mxu0 0.0
    %10985 = vmatprep.subr.mxu0 0.0
    %10986 = vmatpush1.msra.mxu0 0.0
    %10987 = vmatprep.subr.mxu0 0.0
    %10988 = vmatpush1.msra.mxu0 0.0
    %10989 = vmatprep.subr.mxu0 0.0
    %10990 = vmatpush1.msra.mxu0 0.0
    %10991 = vmatprep.subr.mxu0 0.0
    %10992 = vmatpush1.msra.mxu0 0.0
    %10993 = vmatprep.mubr.f32.mxu0 0.0
    %10994 = vmatmul.mubr.f32.gmra.mrb[0].mxu0 %v10927
    %v10995 = vpop.f32.mrb[0].mxu0
    %v10996 = vadd.f32 0.0, %v10995
    %v10997 = vpop.f32.mrb[0].mxu0
    %v10998 = vadd.f32 0.0, %v10997
    %10999 = vdwg.mxu0
    %v11000 = vlaneseq
    %v11001 = vshrl.u32 %v11000, 7
    %v11002 = vsub.s32 0, %v11001
    %v11003 = vrot.slane %v10996, %v11002
    %v11004 = vlaneseq
    %v11005 = vshrl.u32 %v11004, 7
    %v11006 = vsub.s32 0, %v11005
    %v11007 = vrot.slane %v10998, %v11006
    %v11008 = vadd.f32 %v10924, %v11003
    %v11009 = vadd.f32 %v10925, %v11007
    %v11010 = vld [vmem:[#allocation30] sm:$0xff]
    %v11011 = vld [vmem:[#allocation30 + $0x8] sm:$0xff]
    %v11012 = vld [vmem:[#allocation30 + $0x10] sm:$0xff]
    %v11013 = vld [vmem:[#allocation30 + $0x18] sm:$0xff]
    %v11014 = vld [vmem:[#allocation30 + $0x20] sm:$0xff]
    %v11015 = vld [vmem:[#allocation30 + $0x28] sm:$0xff]
    %v11016 = vld [vmem:[#allocation30 + $0x30] sm:$0xff]
    %v11017 = vld [vmem:[#allocation30 + $0x38] sm:$0xff]
    %v11018 = vld [vmem:[#allocation30 + $0x40] sm:$0xff]
    %v11019 = vld [vmem:[#allocation30 + $0x48] sm:$0xff]
    %v11020 = vld [vmem:[#allocation30 + $0x50] sm:$0xff]
    %v11021 = vld [vmem:[#allocation30 + $0x58] sm:$0xff]
    %v11022 = vld [vmem:[#allocation30 + $0x60] sm:$0xff]
    %v11023 = vld [vmem:[#allocation30 + $0x68] sm:$0xff]
    %v11024 = vld [vmem:[#allocation30 + $0x70] sm:$0xff]
    %v11025 = vld [vmem:[#allocation30 + $0x78] sm:$0xff]
    %v11026 = vld [vmem:[#allocation30 + $0x80] sm:$0xff]
    %v11027 = vld [vmem:[#allocation30 + $0x88] sm:$0xff]
    %v11028 = vld [vmem:[#allocation30 + $0x90] sm:$0xff]
    %v11029 = vld [vmem:[#allocation30 + $0x98] sm:$0xff]
    %v11030 = vld [vmem:[#allocation30 + $0xa0] sm:$0xff]
    %v11031 = vld [vmem:[#allocation30 + $0xa8] sm:$0xff]
    %v11032 = vld [vmem:[#allocation30 + $0xb0] sm:$0xff]
    %v11033 = vld [vmem:[#allocation30 + $0xb8] sm:$0xff]
    %v11034 = vld [vmem:[#allocation30 + $0xc0] sm:$0xff]
    %v11035 = vld [vmem:[#allocation30 + $0xc8] sm:$0xff]
    %v11036 = vld [vmem:[#allocation30 + $0xd0] sm:$0xff]
    %v11037 = vld [vmem:[#allocation30 + $0xd8] sm:$0xff]
    %v11038 = vld [vmem:[#allocation30 + $0xe0] sm:$0xff]
    %v11039 = vld [vmem:[#allocation30 + $0xe8] sm:$0xff]
    %v11040 = vld [vmem:[#allocation30 + $0xf0] sm:$0xff]
    %v11041 = vld [vmem:[#allocation30 + $0xf8] sm:$0xff]
    %v11042 = vld [vmem:[#allocation31] sm:$0x1]
    %v11044 = vlaneseq
    %v11045 = vshrl.u32 %v11044, 7
    %v11046 = vsub.s32 0, %v11045
    %v11047 = vrot.slane %v11042, %v11046
    %11049 = vmatprep.subr.mxu0 0.0
    %11050 = vmatpush1.msra.mxu0 %v11010
    %11051 = vmatprep.subr.mxu0 0.0
    %11052 = vmatpush1.msra.mxu0 %v11011
    %11053 = vmatprep.subr.mxu0 0.0
    %11054 = vmatpush1.msra.mxu0 %v11012
    %11055 = vmatprep.subr.mxu0 0.0
    %11056 = vmatpush1.msra.mxu0 %v11013
    %11057 = vmatprep.subr.mxu0 0.0
    %11058 = vmatpush1.msra.mxu0 %v11014
    %11059 = vmatprep.subr.mxu0 0.0
    %11060 = vmatpush1.msra.mxu0 %v11015
    %11061 = vmatprep.subr.mxu0 0.0
    %11062 = vmatpush1.msra.mxu0 %v11016
    %11063 = vmatprep.subr.mxu0 0.0
    %11064 = vmatpush1.msra.mxu0 %v11017
    %11065 = vmatprep.subr.mxu0 0.0
    %11066 = vmatpush1.msra.mxu0 %v11018
    %11067 = vmatprep.subr.mxu0 0.0
    %11068 = vmatpush1.msra.mxu0 %v11019
    %11069 = vmatprep.subr.mxu0 0.0
    %11070 = vmatpush1.msra.mxu0 %v11020
    %11071 = vmatprep.subr.mxu0 0.0
    %11072 = vmatpush1.msra.mxu0 %v11021
    %11073 = vmatprep.subr.mxu0 0.0
    %11074 = vmatpush1.msra.mxu0 %v11022
    %11075 = vmatprep.subr.mxu0 0.0
    %11076 = vmatpush1.msra.mxu0 %v11023
    %11077 = vmatprep.subr.mxu0 0.0
    %11078 = vmatpush1.msra.mxu0 %v11024
    %11079 = vmatprep.subr.mxu0 0.0
    %11080 = vmatpush1.msra.mxu0 %v11025
    %11081 = vmatprep.subr.mxu0 0.0
    %11082 = vmatpush1.msra.mxu0 %v11026
    %11083 = vmatprep.subr.mxu0 0.0
    %11084 = vmatpush1.msra.mxu0 %v11027
    %11085 = vmatprep.subr.mxu0 0.0
    %11086 = vmatpush1.msra.mxu0 %v11028
    %11087 = vmatprep.subr.mxu0 0.0
    %11088 = vmatpush1.msra.mxu0 %v11029
    %11089 = vmatprep.subr.mxu0 0.0
    %11090 = vmatpush1.msra.mxu0 %v11030
    %11091 = vmatprep.subr.mxu0 0.0
    %11092 = vmatpush1.msra.mxu0 %v11031
    %11093 = vmatprep.subr.mxu0 0.0
    %11094 = vmatpush1.msra.mxu0 %v11032
    %11095 = vmatprep.subr.mxu0 0.0
    %11096 = vmatpush1.msra.mxu0 %v11033
    %11097 = vmatprep.subr.mxu0 0.0
    %11098 = vmatpush1.msra.mxu0 %v11034
    %11099 = vmatprep.subr.mxu0 0.0
    %11100 = vmatpush1.msra.mxu0 %v11035
    %11101 = vmatprep.subr.mxu0 0.0
    %11102 = vmatpush1.msra.mxu0 %v11036
    %11103 = vmatprep.subr.mxu0 0.0
    %11104 = vmatpush1.msra.mxu0 %v11037
    %11105 = vmatprep.subr.mxu0 0.0
    %11106 = vmatpush1.msra.mxu0 %v11038
    %11107 = vmatprep.subr.mxu0 0.0
    %11108 = vmatpush1.msra.mxu0 %v11039
    %11109 = vmatprep.subr.mxu0 0.0
    %11110 = vmatpush1.msra.mxu0 %v11040
    %11111 = vmatprep.subr.mxu0 0.0
    %11112 = vmatpush1.msra.mxu0 %v11041
    %11113 = vmatprep.mubr.f32.mxu0 %v11009
    %11114 = vmatmul.mubr.f32.gmra.mrb[0].mxu0 %v11008
    %v11115 = vpop.f32.mrb[0].mxu0
    %v11116 = vadd.f32 %v11047, %v11115
    %v11117 = vpop.f32.mrb[0].mxu0
    %11118 = vdwg.mxu0
    %vm11119 = vcmp.gt.f32.partialorder %v11116, 0.0
    %v11120 = vmul.f32 %v11116, 0.2
    %v11121 = vsel %vm11119, %v11116, %v11120
    %v11122 = vld [vmem:[#allocation33] sm:$0xff]
    %v11123 = vld [vmem:[#allocation33 + $0x8] sm:$0xff]
    %v11124 = vld [vmem:[#allocation33 + $0x10] sm:$0xff]
    %v11125 = vld [vmem:[#allocation33 + $0x18] sm:$0xff]
    %v11126 = vld [vmem:[#allocation33 + $0x20] sm:$0xff]
    %v11127 = vld [vmem:[#allocation33 + $0x28] sm:$0xff]
    %v11128 = vld [vmem:[#allocation33 + $0x30] sm:$0xff]
    %v11129 = vld [vmem:[#allocation33 + $0x38] sm:$0xff]
    %v11130 = vld [vmem:[#allocation33 + $0x40] sm:$0xff]
    %v11131 = vld [vmem:[#allocation33 + $0x48] sm:$0xff]
    %v11132 = vld [vmem:[#allocation33 + $0x50] sm:$0xff]
    %v11133 = vld [vmem:[#allocation33 + $0x58] sm:$0xff]
    %v11134 = vld [vmem:[#allocation33 + $0x60] sm:$0xff]
    %v11135 = vld [vmem:[#allocation33 + $0x68] sm:$0xff]
    %v11136 = vld [vmem:[#allocation33 + $0x70] sm:$0xff]
    %v11137 = vld [vmem:[#allocation33 + $0x78] sm:$0xff]
    %v11138 = vld [vmem:[#allocation33 + $0x80] sm:$0xff]
    %v11139 = vld [vmem:[#allocation33 + $0x88] sm:$0xff]
    %v11140 = vld [vmem:[#allocation33 + $0x90] sm:$0xff]
    %v11141 = vld [vmem:[#allocation33 + $0x98] sm:$0xff]
    %v11142 = vld [vmem:[#allocation33 + $0xa0] sm:$0xff]
    %v11143 = vld [vmem:[#allocation33 + $0xa8] sm:$0xff]
    %v11144 = vld [vmem:[#allocation33 + $0xb0] sm:$0xff]
    %v11145 = vld [vmem:[#allocation33 + $0xb8] sm:$0xff]
    %v11146 = vld [vmem:[#allocation33 + $0xc0] sm:$0xff]
    %v11147 = vld [vmem:[#allocation33 + $0xc8] sm:$0xff]
    %v11148 = vld [vmem:[#allocation33 + $0xd0] sm:$0xff]
    %v11149 = vld [vmem:[#allocation33 + $0xd8] sm:$0xff]
    %v11150 = vld [vmem:[#allocation33 + $0xe0] sm:$0xff]
    %v11151 = vld [vmem:[#allocation33 + $0xe8] sm:$0xff]
    %v11152 = vld [vmem:[#allocation33 + $0xf0] sm:$0xff]
    %v11153 = vld [vmem:[#allocation33 + $0xf8] sm:$0xff]
    %v11154 = vld [vmem:[#allocation33 + $0x100] sm:$0xff]
    %v11155 = vld [vmem:[#allocation33 + $0x108] sm:$0xff]
    %v11156 = vld [vmem:[#allocation33 + $0x110] sm:$0xff]
    %v11157 = vld [vmem:[#allocation33 + $0x118] sm:$0xff]
    %v11158 = vld [vmem:[#allocation33 + $0x120] sm:$0xff]
    %v11159 = vld [vmem:[#allocation33 + $0x128] sm:$0xff]
    %v11160 = vld [vmem:[#allocation33 + $0x130] sm:$0xff]
    %v11161 = vld [vmem:[#allocation33 + $0x138] sm:$0xff]
    %v11162 = vld [vmem:[#allocation33 + $0x140] sm:$0xff]
    %v11163 = vld [vmem:[#allocation33 + $0x148] sm:$0xff]
    %v11164 = vld [vmem:[#allocation33 + $0x150] sm:$0xff]
    %v11165 = vld [vmem:[#allocation33 + $0x158] sm:$0xff]
    %v11166 = vld [vmem:[#allocation33 + $0x160] sm:$0xff]
    %v11167 = vld [vmem:[#allocation33 + $0x168] sm:$0xff]
    %v11168 = vld [vmem:[#allocation33 + $0x170] sm:$0xff]
    %v11169 = vld [vmem:[#allocation33 + $0x178] sm:$0xff]
    %v11170 = vld [vmem:[#allocation33 + $0x180] sm:$0xff]
    %v11171 = vld [vmem:[#allocation33 + $0x188] sm:$0xff]
    %v11172 = vld [vmem:[#allocation33 + $0x190] sm:$0xff]
    %v11173 = vld [vmem:[#allocation33 + $0x198] sm:$0xff]
    %v11174 = vld [vmem:[#allocation33 + $0x1a0] sm:$0xff]
    %v11175 = vld [vmem:[#allocation33 + $0x1a8] sm:$0xff]
    %v11176 = vld [vmem:[#allocation33 + $0x1b0] sm:$0xff]
    %v11177 = vld [vmem:[#allocation33 + $0x1b8] sm:$0xff]
    %v11178 = vld [vmem:[#allocation33 + $0x1c0] sm:$0xff]
    %v11179 = vld [vmem:[#allocation33 + $0x1c8] sm:$0xff]
    %v11180 = vld [vmem:[#allocation33 + $0x1d0] sm:$0xff]
    %v11181 = vld [vmem:[#allocation33 + $0x1d8] sm:$0xff]
    %v11182 = vld [vmem:[#allocation33 + $0x1e0] sm:$0xff]
    %v11183 = vld [vmem:[#allocation33 + $0x1e8] sm:$0xff]
    %v11184 = vld [vmem:[#allocation33 + $0x1f0] sm:$0xff]
    %v11185 = vld [vmem:[#allocation33 + $0x1f8] sm:$0xff]
    %11186 = vmatprep.subr.mxu0 %v11123
    %11187 = vmatpush1.msra.mxu0 %v11122
    %11188 = vmatprep.subr.mxu0 %v11127
    %11189 = vmatpush1.msra.mxu0 %v11126
    %11190 = vmatprep.subr.mxu0 %v11131
    %11191 = vmatpush1.msra.mxu0 %v11130
    %11192 = vmatprep.subr.mxu0 %v11135
    %11193 = vmatpush1.msra.mxu0 %v11134
    %11194 = vmatprep.subr.mxu0 %v11139
    %11195 = vmatpush1.msra.mxu0 %v11138
    %11196 = vmatprep.subr.mxu0 %v11143
    %11197 = vmatpush1.msra.mxu0 %v11142
    %11198 = vmatprep.subr.mxu0 %v11147
    %11199 = vmatpush1.msra.mxu0 %v11146
    %11200 = vmatprep.subr.mxu0 %v11151
    %11201 = vmatpush1.msra.mxu0 %v11150
    %11202 = vmatprep.subr.mxu0 %v11155
    %11203 = vmatpush1.msra.mxu0 %v11154
    %11204 = vmatprep.subr.mxu0 %v11159
    %11205 = vmatpush1.msra.mxu0 %v11158
    %11206 = vmatprep.subr.mxu0 %v11163
    %11207 = vmatpush1.msra.mxu0 %v11162
    %11208 = vmatprep.subr.mxu0 %v11167
    %11209 = vmatpush1.msra.mxu0 %v11166
    %11210 = vmatprep.subr.mxu0 %v11171
    %11211 = vmatpush1.msra.mxu0 %v11170
    %11212 = vmatprep.subr.mxu0 %v11175
    %11213 = vmatpush1.msra.mxu0 %v11174
    %11214 = vmatprep.subr.mxu0 %v11179
    %11215 = vmatpush1.msra.mxu0 %v11178
    %11216 = vmatprep.subr.mxu0 %v11183
    %11217 = vmatpush1.msra.mxu0 %v11182
    %11218 = vmatprep.subr.mxu0 0.0
    %11219 = vmatpush1.msra.mxu0 0.0
    %11220 = vmatprep.subr.mxu0 0.0
    %11221 = vmatpush1.msra.mxu0 0.0
    %11222 = vmatprep.subr.mxu0 0.0
    %11223 = vmatpush1.msra.mxu0 0.0
    %11224 = vmatprep.subr.mxu0 0.0
    %11225 = vmatpush1.msra.mxu0 0.0
    %11226 = vmatprep.subr.mxu0 0.0
    %11227 = vmatpush1.msra.mxu0 0.0
    %11228 = vmatprep.subr.mxu0 0.0
    %11229 = vmatpush1.msra.mxu0 0.0
    %11230 = vmatprep.subr.mxu0 0.0
    %11231 = vmatpush1.msra.mxu0 0.0
    %11232 = vmatprep.subr.mxu0 0.0
    %11233 = vmatpush1.msra.mxu0 0.0
    %11234 = vmatprep.subr.mxu0 0.0
    %11235 = vmatpush1.msra.mxu0 0.0
    %11236 = vmatprep.subr.mxu0 0.0
    %11237 = vmatpush1.msra.mxu0 0.0
    %11238 = vmatprep.subr.mxu0 0.0
    %11239 = vmatpush1.msra.mxu0 0.0
    %11240 = vmatprep.subr.mxu0 0.0
    %11241 = vmatpush1.msra.mxu0 0.0
    %11242 = vmatprep.subr.mxu0 0.0
    %11243 = vmatpush1.msra.mxu0 0.0
    %11244 = vmatprep.subr.mxu0 0.0
    %11245 = vmatpush1.msra.mxu0 0.0
    %11246 = vmatprep.subr.mxu0 0.0
    %11247 = vmatpush1.msra.mxu0 0.0
    %11248 = vmatprep.subr.mxu0 0.0
    %11249 = vmatpush1.msra.mxu0 0.0
    %11250 = vmatprep.mubr.f32.mxu0 0.0
    %11251 = vmatmul.mubr.f32.gmra.mrb[0].mxu0 %v11121
    %v11252 = vpop.f32.mrb[0].mxu0
    %v11253 = vadd.f32 0.0, %v11252
    %v11254 = vpop.f32.mrb[0].mxu0
    %v11255 = vadd.f32 0.0, %v11254
    %11256 = vdwg.mxu0
    %11257 = vmatprep.subr.mxu0 %v11125
    %11258 = vmatpush1.msra.mxu0 %v11124
    %11259 = vmatprep.subr.mxu0 %v11129
    %11260 = vmatpush1.msra.mxu0 %v11128
    %11261 = vmatprep.subr.mxu0 %v11133
    %11262 = vmatpush1.msra.mxu0 %v11132
    %11263 = vmatprep.subr.mxu0 %v11137
    %11264 = vmatpush1.msra.mxu0 %v11136
    %11265 = vmatprep.subr.mxu0 %v11141
    %11266 = vmatpush1.msra.mxu0 %v11140
    %11267 = vmatprep.subr.mxu0 %v11145
    %11268 = vmatpush1.msra.mxu0 %v11144
    %11269 = vmatprep.subr.mxu0 %v11149
    %11270 = vmatpush1.msra.mxu0 %v11148
    %11271 = vmatprep.subr.mxu0 %v11153
    %11272 = vmatpush1.msra.mxu0 %v11152
    %11273 = vmatprep.subr.mxu0 %v11157
    %11274 = vmatpush1.msra.mxu0 %v11156
    %11275 = vmatprep.subr.mxu0 %v11161
    %11276 = vmatpush1.msra.mxu0 %v11160
    %11277 = vmatprep.subr.mxu0 %v11165
    %11278 = vmatpush1.msra.mxu0 %v11164
    %11279 = vmatprep.subr.mxu0 %v11169
    %11280 = vmatpush1.msra.mxu0 %v11168
    %11281 = vmatprep.subr.mxu0 %v11173
    %11282 = vmatpush1.msra.mxu0 %v11172
    %11283 = vmatprep.subr.mxu0 %v11177
    %11284 = vmatpush1.msra.mxu0 %v11176
    %11285 = vmatprep.subr.mxu0 %v11181
    %11286 = vmatpush1.msra.mxu0 %v11180
    %11287 = vmatprep.subr.mxu0 %v11185
    %11288 = vmatpush1.msra.mxu0 %v11184
    %11289 = vmatprep.subr.mxu0 0.0
    %11290 = vmatpush1.msra.mxu0 0.0
    %11291 = vmatprep.subr.mxu0 0.0
    %11292 = vmatpush1.msra.mxu0 0.0
    %11293 = vmatprep.subr.mxu0 0.0
    %11294 = vmatpush1.msra.mxu0 0.0
    %11295 = vmatprep.subr.mxu0 0.0
    %11296 = vmatpush1.msra.mxu0 0.0
    %11297 = vmatprep.subr.mxu0 0.0
    %11298 = vmatpush1.msra.mxu0 0.0
    %11299 = vmatprep.subr.mxu0 0.0
    %11300 = vmatpush1.msra.mxu0 0.0
    %11301 = vmatprep.subr.mxu0 0.0
    %11302 = vmatpush1.msra.mxu0 0.0
    %11303 = vmatprep.subr.mxu0 0.0
    %11304 = vmatpush1.msra.mxu0 0.0
    %11305 = vmatprep.subr.mxu0 0.0
    %11306 = vmatpush1.msra.mxu0 0.0
    %11307 = vmatprep.subr.mxu0 0.0
    %11308 = vmatpush1.msra.mxu0 0.0
    %11309 = vmatprep.subr.mxu0 0.0
    %11310 = vmatpush1.msra.mxu0 0.0
    %11311 = vmatprep.subr.mxu0 0.0
    %11312 = vmatpush1.msra.mxu0 0.0
    %11313 = vmatprep.subr.mxu0 0.0
    %11314 = vmatpush1.msra.mxu0 0.0
    %11315 = vmatprep.subr.mxu0 0.0
    %11316 = vmatpush1.msra.mxu0 0.0
    %11317 = vmatprep.subr.mxu0 0.0
    %11318 = vmatpush1.msra.mxu0 0.0
    %11319 = vmatprep.subr.mxu0 0.0
    %11320 = vmatpush1.msra.mxu0 0.0
    %11321 = vmatprep.mubr.f32.mxu0 0.0
    %11322 = vmatmul.mubr.f32.gmra.mrb[0].mxu0 %v11121
    %v11323 = vpop.f32.mrb[0].mxu0
    %v11324 = vadd.f32 0.0, %v11323
    %v11325 = vpop.f32.mrb[0].mxu0
    %v11326 = vadd.f32 0.0, %v11325
    %11327 = vdwg.mxu0
    %v11328 = vsel %vm10091, %v11253, 0.0
    %v11329 = vrot.slane %v11328, 4
    %v11330 = vadd.f32 %v11328, %v11329
    %v11331 = vrot.slane %v11330, 2
    %v11332 = vadd.f32 %v11330, %v11331
    %v11333 = vrot.slane %v11332, 1
    %v11334 = vadd.f32 %v11332, %v11333
    %v11335 = vsel %vm10091, %v11255, 0.0
    %v11336 = vrot.slane %v11335, 4
    %v11337 = vadd.f32 %v11335, %v11336
    %v11338 = vrot.slane %v11337, 2
    %v11339 = vadd.f32 %v11337, %v11338
    %v11340 = vrot.slane %v11339, 1
    %v11341 = vadd.f32 %v11339, %v11340
    %v11342 = vsel %vm10091, %v11324, 0.0
    %v11343 = vrot.slane %v11342, 4
    %v11344 = vadd.f32 %v11342, %v11343
    %v11345 = vrot.slane %v11344, 2
    %v11346 = vadd.f32 %v11344, %v11345
    %v11347 = vrot.slane %v11346, 1
    %v11348 = vadd.f32 %v11346, %v11347
    %v11349 = vsel %vm10091, %v11326, 0.0
    %v11350 = vrot.slane %v11349, 4
    %v11351 = vadd.f32 %v11349, %v11350
    %v11352 = vrot.slane %v11351, 2
    %v11353 = vadd.f32 %v11351, %v11352
    %v11354 = vrot.slane %v11353, 1
    %v11355 = vadd.f32 %v11353, %v11354
    %v11356 = vmul.f32 %v11253, %v11253
    %v11357 = vmul.f32 %v11255, %v11255
    %v11358 = vmul.f32 %v11324, %v11324
    %v11359 = vmul.f32 %v11326, %v11326
    %v11360 = vsel %vm10091, %v11356, 0.0
    %v11361 = vrot.slane %v11360, 4
    %v11362 = vadd.f32 %v11360, %v11361
    %v11363 = vrot.slane %v11362, 2
    %v11364 = vadd.f32 %v11362, %v11363
    %v11365 = vrot.slane %v11364, 1
    %v11366 = vadd.f32 %v11364, %v11365
    %v11367 = vsel %vm10091, %v11357, 0.0
    %v11368 = vrot.slane %v11367, 4
    %v11369 = vadd.f32 %v11367, %v11368
    %v11370 = vrot.slane %v11369, 2
    %v11371 = vadd.f32 %v11369, %v11370
    %v11372 = vrot.slane %v11371, 1
    %v11373 = vadd.f32 %v11371, %v11372
    %v11374 = vsel %vm10091, %v11358, 0.0
    %v11375 = vrot.slane %v11374, 4
    %v11376 = vadd.f32 %v11374, %v11375
    %v11377 = vrot.slane %v11376, 2
    %v11378 = vadd.f32 %v11376, %v11377
    %v11379 = vrot.slane %v11378, 1
    %v11380 = vadd.f32 %v11378, %v11379
    %v11381 = vsel %vm10091, %v11359, 0.0
    %v11382 = vrot.slane %v11381, 4
    %v11383 = vadd.f32 %v11381, %v11382
    %v11384 = vrot.slane %v11383, 2
    %v11385 = vadd.f32 %v11383, %v11384
    %v11386 = vrot.slane %v11385, 1
    %v11387 = vadd.f32 %v11385, %v11386
    %v11388 = vld [vmem:[%s55] sm:$0xff]
    %v11389 = vld [vmem:[%s55 + $0x8] sm:$0xff]
    %v11390 = vld [vmem:[%s55 + $0x10] sm:$0xff]
    %v11391 = vld [vmem:[%s55 + $0x18] sm:$0xff]
    %v11392 = vld [vmem:[%s55 + $0x20] sm:$0xff]
    %v11393 = vld [vmem:[%s55 + $0x28] sm:$0xff]
    %v11394 = vld [vmem:[%s55 + $0x30] sm:$0xff]
    %v11395 = vld [vmem:[%s55 + $0x38] sm:$0xff]
    %v11396 = vld [vmem:[%s55 + $0x40] sm:$0xff]
    %v11397 = vld [vmem:[%s55 + $0x48] sm:$0xff]
    %v11398 = vld [vmem:[%s55 + $0x50] sm:$0xff]
    %v11399 = vld [vmem:[%s55 + $0x58] sm:$0xff]
    %v11400 = vld [vmem:[%s55 + $0x60] sm:$0xff]
    %v11401 = vld [vmem:[%s55 + $0x68] sm:$0xff]
    %v11402 = vld [vmem:[%s55 + $0x70] sm:$0xff]
    %v11403 = vld [vmem:[%s55 + $0x78] sm:$0xff]
    %v11404 = vld [vmem:[%s55 + $0x80] sm:$0xff]
    %v11405 = vld [vmem:[%s55 + $0x88] sm:$0xff]
    %v11406 = vld [vmem:[%s55 + $0x90] sm:$0xff]
    %v11407 = vld [vmem:[%s55 + $0x98] sm:$0xff]
    %v11408 = vld [vmem:[%s55 + $0xa0] sm:$0xff]
    %v11409 = vld [vmem:[%s55 + $0xa8] sm:$0xff]
    %v11410 = vld [vmem:[%s55 + $0xb0] sm:$0xff]
    %v11411 = vld [vmem:[%s55 + $0xb8] sm:$0xff]
    %v11412 = vld [vmem:[%s55 + $0xc0] sm:$0xff]
    %v11413 = vld [vmem:[%s55 + $0xc8] sm:$0xff]
    %v11414 = vld [vmem:[%s55 + $0xd0] sm:$0xff]
    %v11415 = vld [vmem:[%s55 + $0xd8] sm:$0xff]
    %v11416 = vld [vmem:[%s55 + $0xe0] sm:$0xff]
    %v11417 = vld [vmem:[%s55 + $0xe8] sm:$0xff]
    %v11418 = vld [vmem:[%s55 + $0xf0] sm:$0xff]
    %v11419 = vld [vmem:[%s55 + $0xf8] sm:$0xff]
    %v11420 = vld [vmem:[%s55 + $0x100] sm:$0xff]
    %v11421 = vld [vmem:[%s55 + $0x108] sm:$0xff]
    %v11422 = vld [vmem:[%s55 + $0x110] sm:$0xff]
    %v11423 = vld [vmem:[%s55 + $0x118] sm:$0xff]
    %v11424 = vld [vmem:[%s55 + $0x120] sm:$0xff]
    %v11425 = vld [vmem:[%s55 + $0x128] sm:$0xff]
    %v11426 = vld [vmem:[%s55 + $0x130] sm:$0xff]
    %v11427 = vld [vmem:[%s55 + $0x138] sm:$0xff]
    %v11428 = vld [vmem:[%s55 + $0x140] sm:$0xff]
    %v11429 = vld [vmem:[%s55 + $0x148] sm:$0xff]
    %v11430 = vld [vmem:[%s55 + $0x150] sm:$0xff]
    %v11431 = vld [vmem:[%s55 + $0x158] sm:$0xff]
    %v11432 = vld [vmem:[%s55 + $0x160] sm:$0xff]
    %v11433 = vld [vmem:[%s55 + $0x168] sm:$0xff]
    %v11434 = vld [vmem:[%s55 + $0x170] sm:$0xff]
    %v11435 = vld [vmem:[%s55 + $0x178] sm:$0xff]
    %v11436 = vld [vmem:[%s55 + $0x180] sm:$0xff]
    %v11437 = vld [vmem:[%s55 + $0x188] sm:$0xff]
    %v11438 = vld [vmem:[%s55 + $0x190] sm:$0xff]
    %v11439 = vld [vmem:[%s55 + $0x198] sm:$0xff]
    %v11440 = vld [vmem:[%s55 + $0x1a0] sm:$0xff]
    %v11441 = vld [vmem:[%s55 + $0x1a8] sm:$0xff]
    %v11442 = vld [vmem:[%s55 + $0x1b0] sm:$0xff]
    %v11443 = vld [vmem:[%s55 + $0x1b8] sm:$0xff]
    %v11444 = vld [vmem:[%s55 + $0x1c0] sm:$0xff]
    %v11445 = vld [vmem:[%s55 + $0x1c8] sm:$0xff]
    %v11446 = vld [vmem:[%s55 + $0x1d0] sm:$0xff]
    %v11447 = vld [vmem:[%s55 + $0x1d8] sm:$0xff]
    %v11448 = vld [vmem:[%s55 + $0x1e0] sm:$0xff]
    %v11449 = vld [vmem:[%s55 + $0x1e8] sm:$0xff]
    %v11450 = vld [vmem:[%s55 + $0x1f0] sm:$0xff]
    %v11451 = vld [vmem:[%s55 + $0x1f8] sm:$0xff]
    %11452 = vmatprep.subr.mxu0 0.0
    %11453 = vmatpush1.msra.mxu0 %v11388
    %11454 = vmatprep.subr.mxu0 0.0
    %11455 = vmatpush1.msra.mxu0 %v11389
    %11456 = vmatprep.subr.mxu0 0.0
    %11457 = vmatpush1.msra.mxu0 %v11390
    %11458 = vmatprep.subr.mxu0 0.0
    %11459 = vmatpush1.msra.mxu0 %v11391
    %11460 = vmatprep.subr.mxu0 0.0
    %11461 = vmatpush1.msra.mxu0 %v11392
    %11462 = vmatprep.subr.mxu0 0.0
    %11463 = vmatpush1.msra.mxu0 %v11393
    %11464 = vmatprep.subr.mxu0 0.0
    %11465 = vmatpush1.msra.mxu0 %v11394
    %11466 = vmatprep.subr.mxu0 0.0
    %11467 = vmatpush1.msra.mxu0 %v11395
    %11468 = vmatprep.subr.mxu0 0.0
    %11469 = vmatpush1.msra.mxu0 %v11396
    %11470 = vmatprep.subr.mxu0 0.0
    %11471 = vmatpush1.msra.mxu0 %v11397
    %11472 = vmatprep.subr.mxu0 0.0
    %11473 = vmatpush1.msra.mxu0 %v11398
    %11474 = vmatprep.subr.mxu0 0.0
    %11475 = vmatpush1.msra.mxu0 %v11399
    %11476 = vmatprep.subr.mxu0 0.0
    %11477 = vmatpush1.msra.mxu0 %v11400
    %11478 = vmatprep.subr.mxu0 0.0
    %11479 = vmatpush1.msra.mxu0 %v11401
    %11480 = vmatprep.subr.mxu0 0.0
    %11481 = vmatpush1.msra.mxu0 %v11402
    %11482 = vmatprep.subr.mxu0 0.0
    %11483 = vmatpush1.msra.mxu0 %v11403
    %11484 = vmatprep.subr.mxu0 0.0
    %11485 = vmatpush1.msra.mxu0 %v11404
    %11486 = vmatprep.subr.mxu0 0.0
    %11487 = vmatpush1.msra.mxu0 %v11405
    %11488 = vmatprep.subr.mxu0 0.0
    %11489 = vmatpush1.msra.mxu0 %v11406
    %11490 = vmatprep.subr.mxu0 0.0
    %11491 = vmatpush1.msra.mxu0 %v11407
    %11492 = vmatprep.subr.mxu0 0.0
    %11493 = vmatpush1.msra.mxu0 %v11408
    %11494 = vmatprep.subr.mxu0 0.0
    %11495 = vmatpush1.msra.mxu0 %v11409
    %11496 = vmatprep.subr.mxu0 0.0
    %11497 = vmatpush1.msra.mxu0 %v11410
    %11498 = vmatprep.subr.mxu0 0.0
    %11499 = vmatpush1.msra.mxu0 %v11411
    %11500 = vmatprep.subr.mxu0 0.0
    %11501 = vmatpush1.msra.mxu0 %v11412
    %11502 = vmatprep.subr.mxu0 0.0
    %11503 = vmatpush1.msra.mxu0 %v11413
    %11504 = vmatprep.subr.mxu0 0.0
    %11505 = vmatpush1.msra.mxu0 %v11414
    %11506 = vmatprep.subr.mxu0 0.0
    %11507 = vmatpush1.msra.mxu0 %v11415
    %11508 = vmatprep.subr.mxu0 0.0
    %11509 = vmatpush1.msra.mxu0 %v11416
    %11510 = vmatprep.subr.mxu0 0.0
    %11511 = vmatpush1.msra.mxu0 %v11417
    %11512 = vmatprep.subr.mxu0 0.0
    %11513 = vmatpush1.msra.mxu0 %v11418
    %11514 = vmatprep.subr.mxu0 0.0
    %11515 = vmatpush1.msra.mxu0 %v11419
    %11516 = vmatprep.mubr.f32.mxu0 %v11341
    %11517 = vmatmul.mubr.f32.gmra.mrb[0].mxu0 %v11334
    %v11518 = vpop.f32.mrb[0].mxu0
    %v11519 = vadd.f32 0.0, %v11518
    %v11520 = vpop.f32.mrb[0].mxu0
    %11521 = vdwg.mxu0
    %11522 = vmatprep.subr.mxu0 0.0
    %11523 = vmatpush1.msra.mxu0 %v11420
    %11524 = vmatprep.subr.mxu0 0.0
    %11525 = vmatpush1.msra.mxu0 %v11421
    %11526 = vmatprep.subr.mxu0 0.0
    %11527 = vmatpush1.msra.mxu0 %v11422
    %11528 = vmatprep.subr.mxu0 0.0
    %11529 = vmatpush1.msra.mxu0 %v11423
    %11530 = vmatprep.subr.mxu0 0.0
    %11531 = vmatpush1.msra.mxu0 %v11424
    %11532 = vmatprep.subr.mxu0 0.0
    %11533 = vmatpush1.msra.mxu0 %v11425
    %11534 = vmatprep.subr.mxu0 0.0
    %11535 = vmatpush1.msra.mxu0 %v11426
    %11536 = vmatprep.subr.mxu0 0.0
    %11537 = vmatpush1.msra.mxu0 %v11427
    %11538 = vmatprep.subr.mxu0 0.0
    %11539 = vmatpush1.msra.mxu0 %v11428
    %11540 = vmatprep.subr.mxu0 0.0
    %11541 = vmatpush1.msra.mxu0 %v11429
    %11542 = vmatprep.subr.mxu0 0.0
    %11543 = vmatpush1.msra.mxu0 %v11430
    %11544 = vmatprep.subr.mxu0 0.0
    %11545 = vmatpush1.msra.mxu0 %v11431
    %11546 = vmatprep.subr.mxu0 0.0
    %11547 = vmatpush1.msra.mxu0 %v11432
    %11548 = vmatprep.subr.mxu0 0.0
    %11549 = vmatpush1.msra.mxu0 %v11433
    %11550 = vmatprep.subr.mxu0 0.0
    %11551 = vmatpush1.msra.mxu0 %v11434
    %11552 = vmatprep.subr.mxu0 0.0
    %11553 = vmatpush1.msra.mxu0 %v11435
    %11554 = vmatprep.subr.mxu0 0.0
    %11555 = vmatpush1.msra.mxu0 %v11436
    %11556 = vmatprep.subr.mxu0 0.0
    %11557 = vmatpush1.msra.mxu0 %v11437
    %11558 = vmatprep.subr.mxu0 0.0
    %11559 = vmatpush1.msra.mxu0 %v11438
    %11560 = vmatprep.subr.mxu0 0.0
    %11561 = vmatpush1.msra.mxu0 %v11439
    %11562 = vmatprep.subr.mxu0 0.0
    %11563 = vmatpush1.msra.mxu0 %v11440
    %11564 = vmatprep.subr.mxu0 0.0
    %11565 = vmatpush1.msra.mxu0 %v11441
    %11566 = vmatprep.subr.mxu0 0.0
    %11567 = vmatpush1.msra.mxu0 %v11442
    %11568 = vmatprep.subr.mxu0 0.0
    %11569 = vmatpush1.msra.mxu0 %v11443
    %11570 = vmatprep.subr.mxu0 0.0
    %11571 = vmatpush1.msra.mxu0 %v11444
    %11572 = vmatprep.subr.mxu0 0.0
    %11573 = vmatpush1.msra.mxu0 %v11445
    %11574 = vmatprep.subr.mxu0 0.0
    %11575 = vmatpush1.msra.mxu0 %v11446
    %11576 = vmatprep.subr.mxu0 0.0
    %11577 = vmatpush1.msra.mxu0 %v11447
    %11578 = vmatprep.subr.mxu0 0.0
    %11579 = vmatpush1.msra.mxu0 %v11448
    %11580 = vmatprep.subr.mxu0 0.0
    %11581 = vmatpush1.msra.mxu0 %v11449
    %11582 = vmatprep.subr.mxu0 0.0
    %11583 = vmatpush1.msra.mxu0 %v11450
    %11584 = vmatprep.subr.mxu0 0.0
    %11585 = vmatpush1.msra.mxu0 %v11451
    %11586 = vmatprep.mubr.f32.mxu0 %v11355
    %11587 = vmatmul.mubr.f32.gmra.mrb[0].mxu0 %v11348
    %v11588 = vpop.f32.mrb[0].mxu0
    %v11589 = vadd.f32 %v11519, %v11588
    %v11590 = vpop.f32.mrb[0].mxu0
    %11591 = vdwg.mxu0
    %v11592 = vmul.f32 %v11589, 0.0078125
    %11593 = vmatprep.subr.mxu0 0.0
    %11594 = vmatpush1.msra.mxu0 %v11388
    %11595 = vmatprep.subr.mxu0 0.0
    %11596 = vmatpush1.msra.mxu0 %v11389
    %11597 = vmatprep.subr.mxu0 0.0
    %11598 = vmatpush1.msra.mxu0 %v11390
    %11599 = vmatprep.subr.mxu0 0.0
    %11600 = vmatpush1.msra.mxu0 %v11391
    %11601 = vmatprep.subr.mxu0 0.0
    %11602 = vmatpush1.msra.mxu0 %v11392
    %11603 = vmatprep.subr.mxu0 0.0
    %11604 = vmatpush1.msra.mxu0 %v11393
    %11605 = vmatprep.subr.mxu0 0.0
    %11606 = vmatpush1.msra.mxu0 %v11394
    %11607 = vmatprep.subr.mxu0 0.0
    %11608 = vmatpush1.msra.mxu0 %v11395
    %11609 = vmatprep.subr.mxu0 0.0
    %11610 = vmatpush1.msra.mxu0 %v11396
    %11611 = vmatprep.subr.mxu0 0.0
    %11612 = vmatpush1.msra.mxu0 %v11397
    %11613 = vmatprep.subr.mxu0 0.0
    %11614 = vmatpush1.msra.mxu0 %v11398
    %11615 = vmatprep.subr.mxu0 0.0
    %11616 = vmatpush1.msra.mxu0 %v11399
    %11617 = vmatprep.subr.mxu0 0.0
    %11618 = vmatpush1.msra.mxu0 %v11400
    %11619 = vmatprep.subr.mxu0 0.0
    %11620 = vmatpush1.msra.mxu0 %v11401
    %11621 = vmatprep.subr.mxu0 0.0
    %11622 = vmatpush1.msra.mxu0 %v11402
    %11623 = vmatprep.subr.mxu0 0.0
    %11624 = vmatpush1.msra.mxu0 %v11403
    %11625 = vmatprep.subr.mxu0 0.0
    %11626 = vmatpush1.msra.mxu0 %v11404
    %11627 = vmatprep.subr.mxu0 0.0
    %11628 = vmatpush1.msra.mxu0 %v11405
    %11629 = vmatprep.subr.mxu0 0.0
    %11630 = vmatpush1.msra.mxu0 %v11406
    %11631 = vmatprep.subr.mxu0 0.0
    %11632 = vmatpush1.msra.mxu0 %v11407
    %11633 = vmatprep.subr.mxu0 0.0
    %11634 = vmatpush1.msra.mxu0 %v11408
    %11635 = vmatprep.subr.mxu0 0.0
    %11636 = vmatpush1.msra.mxu0 %v11409
    %11637 = vmatprep.subr.mxu0 0.0
    %11638 = vmatpush1.msra.mxu0 %v11410
    %11639 = vmatprep.subr.mxu0 0.0
    %11640 = vmatpush1.msra.mxu0 %v11411
    %11641 = vmatprep.subr.mxu0 0.0
    %11642 = vmatpush1.msra.mxu0 %v11412
    %11643 = vmatprep.subr.mxu0 0.0
    %11644 = vmatpush1.msra.mxu0 %v11413
    %11645 = vmatprep.subr.mxu0 0.0
    %11646 = vmatpush1.msra.mxu0 %v11414
    %11647 = vmatprep.subr.mxu0 0.0
    %11648 = vmatpush1.msra.mxu0 %v11415
    %11649 = vmatprep.subr.mxu0 0.0
    %11650 = vmatpush1.msra.mxu0 %v11416
    %11651 = vmatprep.subr.mxu0 0.0
    %11652 = vmatpush1.msra.mxu0 %v11417
    %11653 = vmatprep.subr.mxu0 0.0
    %11654 = vmatpush1.msra.mxu0 %v11418
    %11655 = vmatprep.subr.mxu0 0.0
    %11656 = vmatpush1.msra.mxu0 %v11419
    %11657 = vmatprep.mubr.f32.mxu0 %v11373
    %11658 = vmatmul.mubr.f32.gmra.mrb[0].mxu0 %v11366
    %v11659 = vpop.f32.mrb[0].mxu0
    %v11660 = vadd.f32 0.0, %v11659
    %v11661 = vpop.f32.mrb[0].mxu0
    %11662 = vdwg.mxu0
    %11663 = vmatprep.subr.mxu0 0.0
    %11664 = vmatpush1.msra.mxu0 %v11420
    %11665 = vmatprep.subr.mxu0 0.0
    %11666 = vmatpush1.msra.mxu0 %v11421
    %11667 = vmatprep.subr.mxu0 0.0
    %11668 = vmatpush1.msra.mxu0 %v11422
    %11669 = vmatprep.subr.mxu0 0.0
    %11670 = vmatpush1.msra.mxu0 %v11423
    %11671 = vmatprep.subr.mxu0 0.0
    %11672 = vmatpush1.msra.mxu0 %v11424
    %11673 = vmatprep.subr.mxu0 0.0
    %11674 = vmatpush1.msra.mxu0 %v11425
    %11675 = vmatprep.subr.mxu0 0.0
    %11676 = vmatpush1.msra.mxu0 %v11426
    %11677 = vmatprep.subr.mxu0 0.0
    %11678 = vmatpush1.msra.mxu0 %v11427
    %11679 = vmatprep.subr.mxu0 0.0
    %11680 = vmatpush1.msra.mxu0 %v11428
    %11681 = vmatprep.subr.mxu0 0.0
    %11682 = vmatpush1.msra.mxu0 %v11429
    %11683 = vmatprep.subr.mxu0 0.0
    %11684 = vmatpush1.msra.mxu0 %v11430
    %11685 = vmatprep.subr.mxu0 0.0
    %11686 = vmatpush1.msra.mxu0 %v11431
    %11687 = vmatprep.subr.mxu0 0.0
    %11688 = vmatpush1.msra.mxu0 %v11432
    %11689 = vmatprep.subr.mxu0 0.0
    %11690 = vmatpush1.msra.mxu0 %v11433
    %11691 = vmatprep.subr.mxu0 0.0
    %11692 = vmatpush1.msra.mxu0 %v11434
    %11693 = vmatprep.subr.mxu0 0.0
    %11694 = vmatpush1.msra.mxu0 %v11435
    %11695 = vmatprep.subr.mxu0 0.0
    %11696 = vmatpush1.msra.mxu0 %v11436
    %11697 = vmatprep.subr.mxu0 0.0
    %11698 = vmatpush1.msra.mxu0 %v11437
    %11699 = vmatprep.subr.mxu0 0.0
    %11700 = vmatpush1.msra.mxu0 %v11438
    %11701 = vmatprep.subr.mxu0 0.0
    %11702 = vmatpush1.msra.mxu0 %v11439
    %11703 = vmatprep.subr.mxu0 0.0
    %11704 = vmatpush1.msra.mxu0 %v11440
    %11705 = vmatprep.subr.mxu0 0.0
    %11706 = vmatpush1.msra.mxu0 %v11441
    %11707 = vmatprep.subr.mxu0 0.0
    %11708 = vmatpush1.msra.mxu0 %v11442
    %11709 = vmatprep.subr.mxu0 0.0
    %11710 = vmatpush1.msra.mxu0 %v11443
    %11711 = vmatprep.subr.mxu0 0.0
    %11712 = vmatpush1.msra.mxu0 %v11444
    %11713 = vmatprep.subr.mxu0 0.0
    %11714 = vmatpush1.msra.mxu0 %v11445
    %11715 = vmatprep.subr.mxu0 0.0
    %11716 = vmatpush1.msra.mxu0 %v11446
    %11717 = vmatprep.subr.mxu0 0.0
    %11718 = vmatpush1.msra.mxu0 %v11447
    %11719 = vmatprep.subr.mxu0 0.0
    %11720 = vmatpush1.msra.mxu0 %v11448
    %11721 = vmatprep.subr.mxu0 0.0
    %11722 = vmatpush1.msra.mxu0 %v11449
    %11723 = vmatprep.subr.mxu0 0.0
    %11724 = vmatpush1.msra.mxu0 %v11450
    %11725 = vmatprep.subr.mxu0 0.0
    %11726 = vmatpush1.msra.mxu0 %v11451
    %11727 = vmatprep.mubr.f32.mxu0 %v11387
    %11728 = vmatmul.mubr.f32.gmra.mrb[0].mxu0 %v11380
    %v11729 = vpop.f32.mrb[0].mxu0
    %v11730 = vadd.f32 %v11660, %v11729
    %v11731 = vpop.f32.mrb[0].mxu0
    %11732 = vdwg.mxu0
    %v11733 = vmul.f32 %v11730, 0.0078125
    %v11734 = vmul.f32 %v11592, %v11592
    %v11735 = vsub.f32 %v11733, %v11734
    %v11736 = vmax.f32 %v11735, 0.0
    %v11737 = vld [vmem:[#allocation34] sm:$0x1]
    %v11738 = vadd.f32 %v11736, 1e-05
    %v11739 = vrsqrt.pop %v11738
    %v11740 = vmul.f32 %v11737, %v11739
    %v11741 = vld [vmem:[#allocation36] sm:$0x1]
    %v11742 = vmul.f32 %v11592, %v11740
    %v11743 = vsub.f32 %v11741, %v11742
    %v11744 = vld [vmem:[#allocation37] sm:$0xff]
    %v11745 = vld [vmem:[#allocation37 + $0x8] sm:$0xff]
    %v11746 = vld [vmem:[#allocation37 + $0x10] sm:$0xff]
    %v11747 = vld [vmem:[#allocation37 + $0x18] sm:$0xff]
    %v11749 = vsel %vm716, %v11740, 0
    %11751 = vmatprep.subr.mxu0 %v11745
    %11752 = vmatpush1.msra.mxu0 %v11744
    %11753 = vmatprep.subr.mxu0 0.0
    %11754 = vmatpush1.msra.mxu0 0.0
    %11755 = vmatprep.subr.mxu0 0.0
    %11756 = vmatpush1.msra.mxu0 0.0
    %11757 = vmatprep.subr.mxu0 0.0
    %11758 = vmatpush1.msra.mxu0 0.0
    %11759 = vmatprep.subr.mxu0 0.0
    %11760 = vmatpush1.msra.mxu0 0.0
    %11761 = vmatprep.subr.mxu0 0.0
    %11762 = vmatpush1.msra.mxu0 0.0
    %11763 = vmatprep.subr.mxu0 0.0
    %11764 = vmatpush1.msra.mxu0 0.0
    %11765 = vmatprep.subr.mxu0 0.0
    %11766 = vmatpush1.msra.mxu0 0.0
    %11767 = vmatprep.subr.mxu0 0.0
    %11768 = vmatpush1.msra.mxu0 0.0
    %11769 = vmatprep.subr.mxu0 0.0
    %11770 = vmatpush1.msra.mxu0 0.0
    %11771 = vmatprep.subr.mxu0 0.0
    %11772 = vmatpush1.msra.mxu0 0.0
    %11773 = vmatprep.subr.mxu0 0.0
    %11774 = vmatpush1.msra.mxu0 0.0
    %11775 = vmatprep.subr.mxu0 0.0
    %11776 = vmatpush1.msra.mxu0 0.0
    %11777 = vmatprep.subr.mxu0 0.0
    %11778 = vmatpush1.msra.mxu0 0.0
    %11779 = vmatprep.subr.mxu0 0.0
    %11780 = vmatpush1.msra.mxu0 0.0
    %11781 = vmatprep.subr.mxu0 0.0
    %11782 = vmatpush1.msra.mxu0 0.0
    %11783 = vmatprep.subr.mxu0 0.0
    %11784 = vmatpush1.msra.mxu0 0.0
    %11785 = vmatprep.subr.mxu0 0.0
    %11786 = vmatpush1.msra.mxu0 0.0
    %11787 = vmatprep.subr.mxu0 0.0
    %11788 = vmatpush1.msra.mxu0 0.0
    %11789 = vmatprep.subr.mxu0 0.0
    %11790 = vmatpush1.msra.mxu0 0.0
    %11791 = vmatprep.subr.mxu0 0.0
    %11792 = vmatpush1.msra.mxu0 0.0
    %11793 = vmatprep.subr.mxu0 0.0
    %11794 = vmatpush1.msra.mxu0 0.0
    %11795 = vmatprep.subr.mxu0 0.0
    %11796 = vmatpush1.msra.mxu0 0.0
    %11797 = vmatprep.subr.mxu0 0.0
    %11798 = vmatpush1.msra.mxu0 0.0
    %11799 = vmatprep.subr.mxu0 0.0
    %11800 = vmatpush1.msra.mxu0 0.0
    %11801 = vmatprep.subr.mxu0 0.0
    %11802 = vmatpush1.msra.mxu0 0.0
    %11803 = vmatprep.subr.mxu0 0.0
    %11804 = vmatpush1.msra.mxu0 0.0
    %11805 = vmatprep.subr.mxu0 0.0
    %11806 = vmatpush1.msra.mxu0 0.0
    %11807 = vmatprep.subr.mxu0 0.0
    %11808 = vmatpush1.msra.mxu0 0.0
    %11809 = vmatprep.subr.mxu0 0.0
    %11810 = vmatpush1.msra.mxu0 0.0
    %11811 = vmatprep.subr.mxu0 0.0
    %11812 = vmatpush1.msra.mxu0 0.0
    %11813 = vmatprep.subr.mxu0 0.0
    %11814 = vmatpush1.msra.mxu0 0.0
    %11815 = vmatprep.mubr.f32.mxu0 0.0
    %11816 = vmatmul.mubr.f32.gmra.mrb[0].mxu0 %v11749
    %v11817 = vpop.f32.mrb[0].mxu0
    %v11818 = vadd.f32 0.0, %v11817
    %v11819 = vpop.f32.mrb[0].mxu0
    %v11820 = vadd.f32 0.0, %v11819
    %11821 = vdwg.mxu0
    %11822 = vmatprep.subr.mxu0 %v11747
    %11823 = vmatpush1.msra.mxu0 %v11746
    %11824 = vmatprep.subr.mxu0 0.0
    %11825 = vmatpush1.msra.mxu0 0.0
    %11826 = vmatprep.subr.mxu0 0.0
    %11827 = vmatpush1.msra.mxu0 0.0
    %11828 = vmatprep.subr.mxu0 0.0
    %11829 = vmatpush1.msra.mxu0 0.0
    %11830 = vmatprep.subr.mxu0 0.0
    %11831 = vmatpush1.msra.mxu0 0.0
    %11832 = vmatprep.subr.mxu0 0.0
    %11833 = vmatpush1.msra.mxu0 0.0
    %11834 = vmatprep.subr.mxu0 0.0
    %11835 = vmatpush1.msra.mxu0 0.0
    %11836 = vmatprep.subr.mxu0 0.0
    %11837 = vmatpush1.msra.mxu0 0.0
    %11838 = vmatprep.subr.mxu0 0.0
    %11839 = vmatpush1.msra.mxu0 0.0
    %11840 = vmatprep.subr.mxu0 0.0
    %11841 = vmatpush1.msra.mxu0 0.0
    %11842 = vmatprep.subr.mxu0 0.0
    %11843 = vmatpush1.msra.mxu0 0.0
    %11844 = vmatprep.subr.mxu0 0.0
    %11845 = vmatpush1.msra.mxu0 0.0
    %11846 = vmatprep.subr.mxu0 0.0
    %11847 = vmatpush1.msra.mxu0 0.0
    %11848 = vmatprep.subr.mxu0 0.0
    %11849 = vmatpush1.msra.mxu0 0.0
    %11850 = vmatprep.subr.mxu0 0.0
    %11851 = vmatpush1.msra.mxu0 0.0
    %11852 = vmatprep.subr.mxu0 0.0
    %11853 = vmatpush1.msra.mxu0 0.0
    %11854 = vmatprep.subr.mxu0 0.0
    %11855 = vmatpush1.msra.mxu0 0.0
    %11856 = vmatprep.subr.mxu0 0.0
    %11857 = vmatpush1.msra.mxu0 0.0
    %11858 = vmatprep.subr.mxu0 0.0
    %11859 = vmatpush1.msra.mxu0 0.0
    %11860 = vmatprep.subr.mxu0 0.0
    %11861 = vmatpush1.msra.mxu0 0.0
    %11862 = vmatprep.subr.mxu0 0.0
    %11863 = vmatpush1.msra.mxu0 0.0
    %11864 = vmatprep.subr.mxu0 0.0
    %11865 = vmatpush1.msra.mxu0 0.0
    %11866 = vmatprep.subr.mxu0 0.0
    %11867 = vmatpush1.msra.mxu0 0.0
    %11868 = vmatprep.subr.mxu0 0.0
    %11869 = vmatpush1.msra.mxu0 0.0
    %11870 = vmatprep.subr.mxu0 0.0
    %11871 = vmatpush1.msra.mxu0 0.0
    %11872 = vmatprep.subr.mxu0 0.0
    %11873 = vmatpush1.msra.mxu0 0.0
    %11874 = vmatprep.subr.mxu0 0.0
    %11875 = vmatpush1.msra.mxu0 0.0
    %11876 = vmatprep.subr.mxu0 0.0
    %11877 = vmatpush1.msra.mxu0 0.0
    %11878 = vmatprep.subr.mxu0 0.0
    %11879 = vmatpush1.msra.mxu0 0.0
    %11880 = vmatprep.subr.mxu0 0.0
    %11881 = vmatpush1.msra.mxu0 0.0
    %11882 = vmatprep.subr.mxu0 0.0
    %11883 = vmatpush1.msra.mxu0 0.0
    %11884 = vmatprep.subr.mxu0 0.0
    %11885 = vmatpush1.msra.mxu0 0.0
    %11886 = vmatprep.mubr.f32.mxu0 0.0
    %11887 = vmatmul.mubr.f32.gmra.mrb[0].mxu0 %v11749
    %v11888 = vpop.f32.mrb[0].mxu0
    %v11889 = vadd.f32 0.0, %v11888
    %v11890 = vpop.f32.mrb[0].mxu0
    %v11891 = vadd.f32 0.0, %v11890
    %11892 = vdwg.mxu0
    %v11893 = vlaneseq
    %v11894 = vshrl.u32 %v11893, 7
    %v11895 = vsub.s32 0, %v11894
    %v11896 = vrot.slane %v11818, %v11895
    %v11897 = vlaneseq
    %v11898 = vshrl.u32 %v11897, 7
    %v11899 = vsub.s32 0, %v11898
    %v11900 = vrot.slane %v11820, %v11899
    %v11901 = vlaneseq
    %v11902 = vshrl.u32 %v11901, 7
    %v11903 = vsub.s32 0, %v11902
    %v11904 = vrot.slane %v11889, %v11903
    %v11905 = vlaneseq
    %v11906 = vshrl.u32 %v11905, 7
    %v11907 = vsub.s32 0, %v11906
    %v11908 = vrot.slane %v11891, %v11907
    %v11909 = vmul.f32 %v11253, %v11896
    %v11910 = vmul.f32 %v11255, %v11900
    %v11911 = vmul.f32 %v11324, %v11904
    %v11912 = vmul.f32 %v11326, %v11908
    %v11914 = vsel %vm716, %v11743, 0
    %11916 = vmatprep.subr.mxu0 %v11745
    %11917 = vmatpush1.msra.mxu0 %v11744
    %11918 = vmatprep.subr.mxu0 0.0
    %11919 = vmatpush1.msra.mxu0 0.0
    %11920 = vmatprep.subr.mxu0 0.0
    %11921 = vmatpush1.msra.mxu0 0.0
    %11922 = vmatprep.subr.mxu0 0.0
    %11923 = vmatpush1.msra.mxu0 0.0
    %11924 = vmatprep.subr.mxu0 0.0
    %11925 = vmatpush1.msra.mxu0 0.0
    %11926 = vmatprep.subr.mxu0 0.0
    %11927 = vmatpush1.msra.mxu0 0.0
    %11928 = vmatprep.subr.mxu0 0.0
    %11929 = vmatpush1.msra.mxu0 0.0
    %11930 = vmatprep.subr.mxu0 0.0
    %11931 = vmatpush1.msra.mxu0 0.0
    %11932 = vmatprep.subr.mxu0 0.0
    %11933 = vmatpush1.msra.mxu0 0.0
    %11934 = vmatprep.subr.mxu0 0.0
    %11935 = vmatpush1.msra.mxu0 0.0
    %11936 = vmatprep.subr.mxu0 0.0
    %11937 = vmatpush1.msra.mxu0 0.0
    %11938 = vmatprep.subr.mxu0 0.0
    %11939 = vmatpush1.msra.mxu0 0.0
    %11940 = vmatprep.subr.mxu0 0.0
    %11941 = vmatpush1.msra.mxu0 0.0
    %11942 = vmatprep.subr.mxu0 0.0
    %11943 = vmatpush1.msra.mxu0 0.0
    %11944 = vmatprep.subr.mxu0 0.0
    %11945 = vmatpush1.msra.mxu0 0.0
    %11946 = vmatprep.subr.mxu0 0.0
    %11947 = vmatpush1.msra.mxu0 0.0
    %11948 = vmatprep.subr.mxu0 0.0
    %11949 = vmatpush1.msra.mxu0 0.0
    %11950 = vmatprep.subr.mxu0 0.0
    %11951 = vmatpush1.msra.mxu0 0.0
    %11952 = vmatprep.subr.mxu0 0.0
    %11953 = vmatpush1.msra.mxu0 0.0
    %11954 = vmatprep.subr.mxu0 0.0
    %11955 = vmatpush1.msra.mxu0 0.0
    %11956 = vmatprep.subr.mxu0 0.0
    %11957 = vmatpush1.msra.mxu0 0.0
    %11958 = vmatprep.subr.mxu0 0.0
    %11959 = vmatpush1.msra.mxu0 0.0
    %11960 = vmatprep.subr.mxu0 0.0
    %11961 = vmatpush1.msra.mxu0 0.0
    %11962 = vmatprep.subr.mxu0 0.0
    %11963 = vmatpush1.msra.mxu0 0.0
    %11964 = vmatprep.subr.mxu0 0.0
    %11965 = vmatpush1.msra.mxu0 0.0
    %11966 = vmatprep.subr.mxu0 0.0
    %11967 = vmatpush1.msra.mxu0 0.0
    %11968 = vmatprep.subr.mxu0 0.0
    %11969 = vmatpush1.msra.mxu0 0.0
    %11970 = vmatprep.subr.mxu0 0.0
    %11971 = vmatpush1.msra.mxu0 0.0
    %11972 = vmatprep.subr.mxu0 0.0
    %11973 = vmatpush1.msra.mxu0 0.0
    %11974 = vmatprep.subr.mxu0 0.0
    %11975 = vmatpush1.msra.mxu0 0.0
    %11976 = vmatprep.subr.mxu0 0.0
    %11977 = vmatpush1.msra.mxu0 0.0
    %11978 = vmatprep.subr.mxu0 0.0
    %11979 = vmatpush1.msra.mxu0 0.0
    %11980 = vmatprep.mubr.f32.mxu0 0.0
    %11981 = vmatmul.mubr.f32.gmra.mrb[0].mxu0 %v11914
    %v11982 = vpop.f32.mrb[0].mxu0
    %v11983 = vadd.f32 0.0, %v11982
    %v11984 = vpop.f32.mrb[0].mxu0
    %v11985 = vadd.f32 0.0, %v11984
    %11986 = vdwg.mxu0
    %11987 = vmatprep.subr.mxu0 %v11747
    %11988 = vmatpush1.msra.mxu0 %v11746
    %11989 = vmatprep.subr.mxu0 0.0
    %11990 = vmatpush1.msra.mxu0 0.0
    %11991 = vmatprep.subr.mxu0 0.0
    %11992 = vmatpush1.msra.mxu0 0.0
    %11993 = vmatprep.subr.mxu0 0.0
    %11994 = vmatpush1.msra.mxu0 0.0
    %11995 = vmatprep.subr.mxu0 0.0
    %11996 = vmatpush1.msra.mxu0 0.0
    %11997 = vmatprep.subr.mxu0 0.0
    %11998 = vmatpush1.msra.mxu0 0.0
    %11999 = vmatprep.subr.mxu0 0.0
    %12000 = vmatpush1.msra.mxu0 0.0
    %12001 = vmatprep.subr.mxu0 0.0
    %12002 = vmatpush1.msra.mxu0 0.0
    %12003 = vmatprep.subr.mxu0 0.0
    %12004 = vmatpush1.msra.mxu0 0.0
    %12005 = vmatprep.subr.mxu0 0.0
    %12006 = vmatpush1.msra.mxu0 0.0
    %12007 = vmatprep.subr.mxu0 0.0
    %12008 = vmatpush1.msra.mxu0 0.0
    %12009 = vmatprep.subr.mxu0 0.0
    %12010 = vmatpush1.msra.mxu0 0.0
    %12011 = vmatprep.subr.mxu0 0.0
    %12012 = vmatpush1.msra.mxu0 0.0
    %12013 = vmatprep.subr.mxu0 0.0
    %12014 = vmatpush1.msra.mxu0 0.0
    %12015 = vmatprep.subr.mxu0 0.0
    %12016 = vmatpush1.msra.mxu0 0.0
    %12017 = vmatprep.subr.mxu0 0.0
    %12018 = vmatpush1.msra.mxu0 0.0
    %12019 = vmatprep.subr.mxu0 0.0
    %12020 = vmatpush1.msra.mxu0 0.0
    %12021 = vmatprep.subr.mxu0 0.0
    %12022 = vmatpush1.msra.mxu0 0.0
    %12023 = vmatprep.subr.mxu0 0.0
    %12024 = vmatpush1.msra.mxu0 0.0
    %12025 = vmatprep.subr.mxu0 0.0
    %12026 = vmatpush1.msra.mxu0 0.0
    %12027 = vmatprep.subr.mxu0 0.0
    %12028 = vmatpush1.msra.mxu0 0.0
    %12029 = vmatprep.subr.mxu0 0.0
    %12030 = vmatpush1.msra.mxu0 0.0
    %12031 = vmatprep.subr.mxu0 0.0
    %12032 = vmatpush1.msra.mxu0 0.0
    %12033 = vmatprep.subr.mxu0 0.0
    %12034 = vmatpush1.msra.mxu0 0.0
    %12035 = vmatprep.subr.mxu0 0.0
    %12036 = vmatpush1.msra.mxu0 0.0
    %12037 = vmatprep.subr.mxu0 0.0
    %12038 = vmatpush1.msra.mxu0 0.0
    %12039 = vmatprep.subr.mxu0 0.0
    %12040 = vmatpush1.msra.mxu0 0.0
    %12041 = vmatprep.subr.mxu0 0.0
    %12042 = vmatpush1.msra.mxu0 0.0
    %12043 = vmatprep.subr.mxu0 0.0
    %12044 = vmatpush1.msra.mxu0 0.0
    %12045 = vmatprep.subr.mxu0 0.0
    %12046 = vmatpush1.msra.mxu0 0.0
    %12047 = vmatprep.subr.mxu0 0.0
    %12048 = vmatpush1.msra.mxu0 0.0
    %12049 = vmatprep.subr.mxu0 0.0
    %12050 = vmatpush1.msra.mxu0 0.0
    %12051 = vmatprep.mubr.f32.mxu0 0.0
    %12052 = vmatmul.mubr.f32.gmra.mrb[0].mxu0 %v11914
    %v12053 = vpop.f32.mrb[0].mxu0
    %v12054 = vadd.f32 0.0, %v12053
    %v12055 = vpop.f32.mrb[0].mxu0
    %v12056 = vadd.f32 0.0, %v12055
    %12057 = vdwg.mxu0
    %v12058 = vlaneseq
    %v12059 = vshrl.u32 %v12058, 7
    %v12060 = vsub.s32 0, %v12059
    %v12061 = vrot.slane %v11983, %v12060
    %v12062 = vlaneseq
    %v12063 = vshrl.u32 %v12062, 7
    %v12064 = vsub.s32 0, %v12063
    %v12065 = vrot.slane %v11985, %v12064
    %v12066 = vlaneseq
    %v12067 = vshrl.u32 %v12066, 7
    %v12068 = vsub.s32 0, %v12067
    %v12069 = vrot.slane %v12054, %v12068
    %v12070 = vlaneseq
    %v12071 = vshrl.u32 %v12070, 7
    %v12072 = vsub.s32 0, %v12071
    %v12073 = vrot.slane %v12056, %v12072
    %v12074 = vadd.f32 %v11909, %v12061
    %v12075 = vadd.f32 %v11910, %v12065
    %v12076 = vadd.f32 %v11911, %v12069
    %v12077 = vadd.f32 %v11912, %v12073
    %v12078 = vld [vmem:[%s59] sm:$0xff]
    %v12079 = vld [vmem:[%s59 + $0x8] sm:$0xff]
    %v12080 = vld [vmem:[%s59 + $0x10] sm:$0xff]
    %v12081 = vld [vmem:[%s59 + $0x18] sm:$0xff]
    %v12082 = vld [vmem:[%s59 + $0x20] sm:$0xff]
    %v12083 = vld [vmem:[%s59 + $0x28] sm:$0xff]
    %v12084 = vld [vmem:[%s59 + $0x30] sm:$0xff]
    %v12085 = vld [vmem:[%s59 + $0x38] sm:$0xff]
    %v12086 = vld [vmem:[%s59 + $0x40] sm:$0xff]
    %v12087 = vld [vmem:[%s59 + $0x48] sm:$0xff]
    %v12088 = vld [vmem:[%s59 + $0x50] sm:$0xff]
    %v12089 = vld [vmem:[%s59 + $0x58] sm:$0xff]
    %v12090 = vld [vmem:[%s59 + $0x60] sm:$0xff]
    %v12091 = vld [vmem:[%s59 + $0x68] sm:$0xff]
    %v12092 = vld [vmem:[%s59 + $0x70] sm:$0xff]
    %v12093 = vld [vmem:[%s59 + $0x78] sm:$0xff]
    %v12094 = vld [vmem:[%s59 + $0x80] sm:$0xff]
    %v12095 = vld [vmem:[%s59 + $0x88] sm:$0xff]
    %v12096 = vld [vmem:[%s59 + $0x90] sm:$0xff]
    %v12097 = vld [vmem:[%s59 + $0x98] sm:$0xff]
    %v12098 = vld [vmem:[%s59 + $0xa0] sm:$0xff]
    %v12099 = vld [vmem:[%s59 + $0xa8] sm:$0xff]
    %v12100 = vld [vmem:[%s59 + $0xb0] sm:$0xff]
    %v12101 = vld [vmem:[%s59 + $0xb8] sm:$0xff]
    %v12102 = vld [vmem:[%s59 + $0xc0] sm:$0xff]
    %v12103 = vld [vmem:[%s59 + $0xc8] sm:$0xff]
    %v12104 = vld [vmem:[%s59 + $0xd0] sm:$0xff]
    %v12105 = vld [vmem:[%s59 + $0xd8] sm:$0xff]
    %v12106 = vld [vmem:[%s59 + $0xe0] sm:$0xff]
    %v12107 = vld [vmem:[%s59 + $0xe8] sm:$0xff]
    %v12108 = vld [vmem:[%s59 + $0xf0] sm:$0xff]
    %v12109 = vld [vmem:[%s59 + $0xf8] sm:$0xff]
    %v12110 = vld [vmem:[%s59 + $0x100] sm:$0xff]
    %v12111 = vld [vmem:[%s59 + $0x108] sm:$0xff]
    %v12112 = vld [vmem:[%s59 + $0x110] sm:$0xff]
    %v12113 = vld [vmem:[%s59 + $0x118] sm:$0xff]
    %v12114 = vld [vmem:[%s59 + $0x120] sm:$0xff]
    %v12115 = vld [vmem:[%s59 + $0x128] sm:$0xff]
    %v12116 = vld [vmem:[%s59 + $0x130] sm:$0xff]
    %v12117 = vld [vmem:[%s59 + $0x138] sm:$0xff]
    %v12118 = vld [vmem:[%s59 + $0x140] sm:$0xff]
    %v12119 = vld [vmem:[%s59 + $0x148] sm:$0xff]
    %v12120 = vld [vmem:[%s59 + $0x150] sm:$0xff]
    %v12121 = vld [vmem:[%s59 + $0x158] sm:$0xff]
    %v12122 = vld [vmem:[%s59 + $0x160] sm:$0xff]
    %v12123 = vld [vmem:[%s59 + $0x168] sm:$0xff]
    %v12124 = vld [vmem:[%s59 + $0x170] sm:$0xff]
    %v12125 = vld [vmem:[%s59 + $0x178] sm:$0xff]
    %v12126 = vld [vmem:[%s59 + $0x180] sm:$0xff]
    %v12127 = vld [vmem:[%s59 + $0x188] sm:$0xff]
    %v12128 = vld [vmem:[%s59 + $0x190] sm:$0xff]
    %v12129 = vld [vmem:[%s59 + $0x198] sm:$0xff]
    %v12130 = vld [vmem:[%s59 + $0x1a0] sm:$0xff]
    %v12131 = vld [vmem:[%s59 + $0x1a8] sm:$0xff]
    %v12132 = vld [vmem:[%s59 + $0x1b0] sm:$0xff]
    %v12133 = vld [vmem:[%s59 + $0x1b8] sm:$0xff]
    %v12134 = vld [vmem:[%s59 + $0x1c0] sm:$0xff]
    %v12135 = vld [vmem:[%s59 + $0x1c8] sm:$0xff]
    %v12136 = vld [vmem:[%s59 + $0x1d0] sm:$0xff]
    %v12137 = vld [vmem:[%s59 + $0x1d8] sm:$0xff]
    %v12138 = vld [vmem:[%s59 + $0x1e0] sm:$0xff]
    %v12139 = vld [vmem:[%s59 + $0x1e8] sm:$0xff]
    %v12140 = vld [vmem:[%s59 + $0x1f0] sm:$0xff]
    %v12141 = vld [vmem:[%s59 + $0x1f8] sm:$0xff]
    %v12142 = vld [vmem:[#allocation39] sm:$0x1]
    %v12144 = vlaneseq
    %v12145 = vshrl.u32 %v12144, 7
    %v12146 = vsub.s32 0, %v12145
    %v12147 = vrot.slane %v12142, %v12146
    %12149 = vmatprep.subr.mxu0 0.0
    %12150 = vmatpush1.msra.mxu0 %v12078
    %12151 = vmatprep.subr.mxu0 0.0
    %12152 = vmatpush1.msra.mxu0 %v12079
    %12153 = vmatprep.subr.mxu0 0.0
    %12154 = vmatpush1.msra.mxu0 %v12080
    %12155 = vmatprep.subr.mxu0 0.0
    %12156 = vmatpush1.msra.mxu0 %v12081
    %12157 = vmatprep.subr.mxu0 0.0
    %12158 = vmatpush1.msra.mxu0 %v12082
    %12159 = vmatprep.subr.mxu0 0.0
    %12160 = vmatpush1.msra.mxu0 %v12083
    %12161 = vmatprep.subr.mxu0 0.0
    %12162 = vmatpush1.msra.mxu0 %v12084
    %12163 = vmatprep.subr.mxu0 0.0
    %12164 = vmatpush1.msra.mxu0 %v12085
    %12165 = vmatprep.subr.mxu0 0.0
    %12166 = vmatpush1.msra.mxu0 %v12086
    %12167 = vmatprep.subr.mxu0 0.0
    %12168 = vmatpush1.msra.mxu0 %v12087
    %12169 = vmatprep.subr.mxu0 0.0
    %12170 = vmatpush1.msra.mxu0 %v12088
    %12171 = vmatprep.subr.mxu0 0.0
    %12172 = vmatpush1.msra.mxu0 %v12089
    %12173 = vmatprep.subr.mxu0 0.0
    %12174 = vmatpush1.msra.mxu0 %v12090
    %12175 = vmatprep.subr.mxu0 0.0
    %12176 = vmatpush1.msra.mxu0 %v12091
    %12177 = vmatprep.subr.mxu0 0.0
    %12178 = vmatpush1.msra.mxu0 %v12092
    %12179 = vmatprep.subr.mxu0 0.0
    %12180 = vmatpush1.msra.mxu0 %v12093
    %12181 = vmatprep.subr.mxu0 0.0
    %12182 = vmatpush1.msra.mxu0 %v12094
    %12183 = vmatprep.subr.mxu0 0.0
    %12184 = vmatpush1.msra.mxu0 %v12095
    %12185 = vmatprep.subr.mxu0 0.0
    %12186 = vmatpush1.msra.mxu0 %v12096
    %12187 = vmatprep.subr.mxu0 0.0
    %12188 = vmatpush1.msra.mxu0 %v12097
    %12189 = vmatprep.subr.mxu0 0.0
    %12190 = vmatpush1.msra.mxu0 %v12098
    %12191 = vmatprep.subr.mxu0 0.0
    %12192 = vmatpush1.msra.mxu0 %v12099
    %12193 = vmatprep.subr.mxu0 0.0
    %12194 = vmatpush1.msra.mxu0 %v12100
    %12195 = vmatprep.subr.mxu0 0.0
    %12196 = vmatpush1.msra.mxu0 %v12101
    %12197 = vmatprep.subr.mxu0 0.0
    %12198 = vmatpush1.msra.mxu0 %v12102
    %12199 = vmatprep.subr.mxu0 0.0
    %12200 = vmatpush1.msra.mxu0 %v12103
    %12201 = vmatprep.subr.mxu0 0.0
    %12202 = vmatpush1.msra.mxu0 %v12104
    %12203 = vmatprep.subr.mxu0 0.0
    %12204 = vmatpush1.msra.mxu0 %v12105
    %12205 = vmatprep.subr.mxu0 0.0
    %12206 = vmatpush1.msra.mxu0 %v12106
    %12207 = vmatprep.subr.mxu0 0.0
    %12208 = vmatpush1.msra.mxu0 %v12107
    %12209 = vmatprep.subr.mxu0 0.0
    %12210 = vmatpush1.msra.mxu0 %v12108
    %12211 = vmatprep.subr.mxu0 0.0
    %12212 = vmatpush1.msra.mxu0 %v12109
    %12213 = vmatprep.mubr.f32.mxu0 %v12075
    %12214 = vmatmul.mubr.f32.gmra.mrb[0].mxu0 %v12074
    %v12215 = vpop.f32.mrb[0].mxu0
    %v12216 = vadd.f32 %v12147, %v12215
    %v12217 = vpop.f32.mrb[0].mxu0
    %12218 = vdwg.mxu0
    %12219 = vmatprep.subr.mxu0 0.0
    %12220 = vmatpush1.msra.mxu0 %v12110
    %12221 = vmatprep.subr.mxu0 0.0
    %12222 = vmatpush1.msra.mxu0 %v12111
    %12223 = vmatprep.subr.mxu0 0.0
    %12224 = vmatpush1.msra.mxu0 %v12112
    %12225 = vmatprep.subr.mxu0 0.0
    %12226 = vmatpush1.msra.mxu0 %v12113
    %12227 = vmatprep.subr.mxu0 0.0
    %12228 = vmatpush1.msra.mxu0 %v12114
    %12229 = vmatprep.subr.mxu0 0.0
    %12230 = vmatpush1.msra.mxu0 %v12115
    %12231 = vmatprep.subr.mxu0 0.0
    %12232 = vmatpush1.msra.mxu0 %v12116
    %12233 = vmatprep.subr.mxu0 0.0
    %12234 = vmatpush1.msra.mxu0 %v12117
    %12235 = vmatprep.subr.mxu0 0.0
    %12236 = vmatpush1.msra.mxu0 %v12118
    %12237 = vmatprep.subr.mxu0 0.0
    %12238 = vmatpush1.msra.mxu0 %v12119
    %12239 = vmatprep.subr.mxu0 0.0
    %12240 = vmatpush1.msra.mxu0 %v12120
    %12241 = vmatprep.subr.mxu0 0.0
    %12242 = vmatpush1.msra.mxu0 %v12121
    %12243 = vmatprep.subr.mxu0 0.0
    %12244 = vmatpush1.msra.mxu0 %v12122
    %12245 = vmatprep.subr.mxu0 0.0
    %12246 = vmatpush1.msra.mxu0 %v12123
    %12247 = vmatprep.subr.mxu0 0.0
    %12248 = vmatpush1.msra.mxu0 %v12124
    %12249 = vmatprep.subr.mxu0 0.0
    %12250 = vmatpush1.msra.mxu0 %v12125
    %12251 = vmatprep.subr.mxu0 0.0
    %12252 = vmatpush1.msra.mxu0 %v12126
    %12253 = vmatprep.subr.mxu0 0.0
    %12254 = vmatpush1.msra.mxu0 %v12127
    %12255 = vmatprep.subr.mxu0 0.0
    %12256 = vmatpush1.msra.mxu0 %v12128
    %12257 = vmatprep.subr.mxu0 0.0
    %12258 = vmatpush1.msra.mxu0 %v12129
    %12259 = vmatprep.subr.mxu0 0.0
    %12260 = vmatpush1.msra.mxu0 %v12130
    %12261 = vmatprep.subr.mxu0 0.0
    %12262 = vmatpush1.msra.mxu0 %v12131
    %12263 = vmatprep.subr.mxu0 0.0
    %12264 = vmatpush1.msra.mxu0 %v12132
    %12265 = vmatprep.subr.mxu0 0.0
    %12266 = vmatpush1.msra.mxu0 %v12133
    %12267 = vmatprep.subr.mxu0 0.0
    %12268 = vmatpush1.msra.mxu0 %v12134
    %12269 = vmatprep.subr.mxu0 0.0
    %12270 = vmatpush1.msra.mxu0 %v12135
    %12271 = vmatprep.subr.mxu0 0.0
    %12272 = vmatpush1.msra.mxu0 %v12136
    %12273 = vmatprep.subr.mxu0 0.0
    %12274 = vmatpush1.msra.mxu0 %v12137
    %12275 = vmatprep.subr.mxu0 0.0
    %12276 = vmatpush1.msra.mxu0 %v12138
    %12277 = vmatprep.subr.mxu0 0.0
    %12278 = vmatpush1.msra.mxu0 %v12139
    %12279 = vmatprep.subr.mxu0 0.0
    %12280 = vmatpush1.msra.mxu0 %v12140
    %12281 = vmatprep.subr.mxu0 0.0
    %12282 = vmatpush1.msra.mxu0 %v12141
    %12283 = vmatprep.mubr.f32.mxu0 %v12077
    %12284 = vmatmul.mubr.f32.gmra.mrb[0].mxu0 %v12076
    %v12285 = vpop.f32.mrb[0].mxu0
    %v12286 = vadd.f32 %v12216, %v12285
    %v12287 = vpop.f32.mrb[0].mxu0
    %12288 = vdwg.mxu0
    %vm12289 = vcmp.gt.f32.partialorder %v12286, 0.0
    %v12290 = vmul.f32 %v12286, 0.2
    %v12291 = vsel %vm12289, %v12286, %v12290
    %v12292 = vld [vmem:[#allocation40] sm:$0xff]
    %v12293 = vld [vmem:[#allocation40 + $0x8] sm:$0xff]
    %v12294 = vld [vmem:[#allocation40 + $0x10] sm:$0xff]
    %v12295 = vld [vmem:[#allocation40 + $0x18] sm:$0xff]
    %v12296 = vld [vmem:[#allocation40 + $0x20] sm:$0xff]
    %v12297 = vld [vmem:[#allocation40 + $0x28] sm:$0xff]
    %v12298 = vld [vmem:[#allocation40 + $0x30] sm:$0xff]
    %v12299 = vld [vmem:[#allocation40 + $0x38] sm:$0xff]
    %v12300 = vld [vmem:[#allocation40 + $0x40] sm:$0xff]
    %v12301 = vld [vmem:[#allocation40 + $0x48] sm:$0xff]
    %v12302 = vld [vmem:[#allocation40 + $0x50] sm:$0xff]
    %v12303 = vld [vmem:[#allocation40 + $0x58] sm:$0xff]
    %v12304 = vld [vmem:[#allocation40 + $0x60] sm:$0xff]
    %v12305 = vld [vmem:[#allocation40 + $0x68] sm:$0xff]
    %v12306 = vld [vmem:[#allocation40 + $0x70] sm:$0xff]
    %v12307 = vld [vmem:[#allocation40 + $0x78] sm:$0xff]
    %v12309 = vsel %vm10548, %v12291, 0
    %12311 = vmatprep.subr.mxu0 %v12293
    %12312 = vmatpush1.msra.mxu0 %v12292
    %12313 = vmatprep.subr.mxu0 %v12295
    %12314 = vmatpush1.msra.mxu0 %v12294
    %12315 = vmatprep.subr.mxu0 %v12297
    %12316 = vmatpush1.msra.mxu0 %v12296
    %12317 = vmatprep.subr.mxu0 %v12299
    %12318 = vmatpush1.msra.mxu0 %v12298
    %12319 = vmatprep.subr.mxu0 %v12301
    %12320 = vmatpush1.msra.mxu0 %v12300
    %12321 = vmatprep.subr.mxu0 %v12303
    %12322 = vmatpush1.msra.mxu0 %v12302
    %12323 = vmatprep.subr.mxu0 %v12305
    %12324 = vmatpush1.msra.mxu0 %v12304
    %12325 = vmatprep.subr.mxu0 %v12307
    %12326 = vmatpush1.msra.mxu0 %v12306
    %12327 = vmatprep.subr.mxu0 0.0
    %12328 = vmatpush1.msra.mxu0 0.0
    %12329 = vmatprep.subr.mxu0 0.0
    %12330 = vmatpush1.msra.mxu0 0.0
    %12331 = vmatprep.subr.mxu0 0.0
    %12332 = vmatpush1.msra.mxu0 0.0
    %12333 = vmatprep.subr.mxu0 0.0
    %12334 = vmatpush1.msra.mxu0 0.0
    %12335 = vmatprep.subr.mxu0 0.0
    %12336 = vmatpush1.msra.mxu0 0.0
    %12337 = vmatprep.subr.mxu0 0.0
    %12338 = vmatpush1.msra.mxu0 0.0
    %12339 = vmatprep.subr.mxu0 0.0
    %12340 = vmatpush1.msra.mxu0 0.0
    %12341 = vmatprep.subr.mxu0 0.0
    %12342 = vmatpush1.msra.mxu0 0.0
    %12343 = vmatprep.subr.mxu0 0.0
    %12344 = vmatpush1.msra.mxu0 0.0
    %12345 = vmatprep.subr.mxu0 0.0
    %12346 = vmatpush1.msra.mxu0 0.0
    %12347 = vmatprep.subr.mxu0 0.0
    %12348 = vmatpush1.msra.mxu0 0.0
    %12349 = vmatprep.subr.mxu0 0.0
    %12350 = vmatpush1.msra.mxu0 0.0
    %12351 = vmatprep.subr.mxu0 0.0
    %12352 = vmatpush1.msra.mxu0 0.0
    %12353 = vmatprep.subr.mxu0 0.0
    %12354 = vmatpush1.msra.mxu0 0.0
    %12355 = vmatprep.subr.mxu0 0.0
    %12356 = vmatpush1.msra.mxu0 0.0
    %12357 = vmatprep.subr.mxu0 0.0
    %12358 = vmatpush1.msra.mxu0 0.0
    %12359 = vmatprep.subr.mxu0 0.0
    %12360 = vmatpush1.msra.mxu0 0.0
    %12361 = vmatprep.subr.mxu0 0.0
    %12362 = vmatpush1.msra.mxu0 0.0
    %12363 = vmatprep.subr.mxu0 0.0
    %12364 = vmatpush1.msra.mxu0 0.0
    %12365 = vmatprep.subr.mxu0 0.0
    %12366 = vmatpush1.msra.mxu0 0.0
    %12367 = vmatprep.subr.mxu0 0.0
    %12368 = vmatpush1.msra.mxu0 0.0
    %12369 = vmatprep.subr.mxu0 0.0
    %12370 = vmatpush1.msra.mxu0 0.0
    %12371 = vmatprep.subr.mxu0 0.0
    %12372 = vmatpush1.msra.mxu0 0.0
    %12373 = vmatprep.subr.mxu0 0.0
    %12374 = vmatpush1.msra.mxu0 0.0
    %12375 = vmatprep.mubr.f32.mxu0 0.0
    %12376 = vmatmul.mubr.f32.gmra.mrb[0].mxu0 %v12309
    %v12377 = vpop.f32.mrb[0].mxu0
    %v12378 = vadd.f32 0.0, %v12377
    %v12379 = vpop.f32.mrb[0].mxu0
    %v12380 = vadd.f32 0.0, %v12379
    %12381 = vdwg.mxu0
    %v12384 = vcombine.low %v12378, %v12380
    %v12386 = vunpack.c.l.s4 1983009808
    %v12387 = vunpack.c.0.s8 %v12386
    %v12388 = vlaneseq
    %v12389 = vshrl.u32 %v12388, 7
    %v12390 = vsub.s32 %v12387, %v12389
    %v12391 = vrot.slane %v12384, %v12390
    %12393 = vst [vmem:[%s65] sm:$0xf] %v12391
    // Predicated region
    $region234: #{decoder_forward.1} parent=1 // pred_check
      _
    $region235: #{decoder_forward.1} parent=1 // pred_check_branch
      %12395 = sbr.rel (0) target = $region237
    $region236: #{decoder_forward.1} parent=1 // pred_region
      _
    $region237: #{decoder_forward.1} parent=1 // pred_fallthru
      _
    // Predicated region
    $region238: #{decoder_forward.1} parent=1 // pred_check
      _
    $region239: #{decoder_forward.1} parent=1 // pred_check_branch
      %12397 = sbr.rel (0) target = $region241
    $region240: #{decoder_forward.1} parent=1 // pred_region
      _
    $region241: #{decoder_forward.1} parent=1 // pred_fallthru
      _
    %12398 = vsyncpa [#allocation3], 1
    %12399 = vsyncpa [#allocation5], 1
    %12400 = vsyncpa [#allocation8], 1
    %12401 = vsyncpa [#allocation11], 1
    %12402 = vsyncpa [#allocation14], 1
    %12403 = vsyncpa [#allocation17], 1
    %12404 = vsyncpa [#allocation20], 1
    %12405 = vsyncpa [#allocation23], 1
    %12406 = vsyncpa [#allocation26], 1
    %12407 = vsyncpa [#allocation29], 1
    %12408 = vsyncpa [#allocation32], 1
    %12409 = vsyncpa [#allocation35], 1
    %12410 = vsyncpa [#allocation38], 1
    %12411 = vsyncpa [#allocation41], 1

</llo_original>
